<compile_context>
chip_gen: v7x
topology: tpu7x:2x2x1
jax: 0.10.0
libtpu: 0.0.40
codegen_flags: <defaults>
</compile_context>

<pallas_src>
import functools
import math

import jax
import jax.numpy as jnp
from jax.experimental import pallas as pl
from jax.experimental.pallas import tpu as pltpu


# ----------------------------- per-generation presets -----------------------------

@functools.lru_cache(maxsize=None)
def _tile_preset():
    """Tile / scoped-VMEM presets: large on v5e/v6e (128 MiB VMEM), capped on v7x (64 MiB)."""
    vmem_cap = 128 << 20
    try:
        vmem_cap = int(pltpu.get_tpu_info().vmem_capacity_bytes)
    except Exception:
        pass
    if vmem_cap <= (64 << 20):            # v7x-class TensorCore
        return dict(tm=256, tn=256, tk=1024, vmem_limit_bytes=44 << 20)
    return dict(tm=512, tn=512, tk=1024, vmem_limit_bytes=96 << 20)


def _tile_and_pad(dim, pref):
    """Pick tile <= pref. If dim is larger and not divisible, pad UP to a tile multiple
    (never silently fall back to the full dimension -> bounded VMEM everywhere)."""
    if dim <= pref:
        return dim, dim
    padded = ((dim + pref - 1) // pref) * pref
    return pref, padded


# ------------------------------- fused linear kernel -------------------------------

def _fused_linear_kernel(*refs, has_bias, has_ln, has_scale, has_res, act, l2,
                         single_k, ln_cache, trans_b, mxu_dtype):
    it = iter(refs)
    x_ref = next(it)
    w_ref = next(it)
    res_ref = next(it) if has_res else None
    b_ref = next(it) if has_bias else None
    g_ref = next(it) if has_ln else None
    lb_ref = next(it) if has_ln else None
    s_ref = next(it) if has_scale else None
    o_ref = next(it)
    acc_ref = None if single_k else next(it)
    xn_ref = next(it) if ln_cache else None

    j = pl.program_id(1)
    k = pl.program_id(2)

    def _normalized_x():
        xf = x_ref[...].astype(jnp.float32)
        mu = jnp.mean(xf, axis=-1, keepdims=True)
        var = jnp.mean(jnp.square(xf - mu), axis=-1, keepdims=True)
        xf = (xf - mu) * jax.lax.rsqrt(var + 1e-5)
        xf = xf * g_ref[...].astype(jnp.float32) + lb_ref[...].astype(jnp.float32)
        return xf.astype(w_ref.dtype)          # back to bf16 for full MXU rate

    if has_ln:
        if ln_cache:
            # LN of the x tile is identical for every output-N tile j: compute once.
            @pl.when(j == 0)
            def _():
                xn_ref[...] = _normalized_x()
            x = xn_ref[...]
        else:
            x = _normalized_x()
    else:
        x = x_ref[...]

    w = w_ref[...]
    if mxu_dtype is not None:
        x = x.astype(mxu_dtype)
        w = w.astype(mxu_dtype)
    if trans_b:
        part = jax.lax.dot_general(x, w, (((1,), (1,)), ((), ())),
                                   preferred_element_type=jnp.float32)
    else:
        part = jnp.dot(x, w, preferred_element_type=jnp.float32)

    def _epilogue(y):
        if has_bias:
            y = y + b_ref[...].astype(jnp.float32)
        if act == "quick_gelu":
            y = y * jax.nn.sigmoid(1.702 * y)
        if has_res:
            y = y + res_ref[...].astype(jnp.float32)
        if has_scale:
            y = y * s_ref[0, 0]
        if l2:
            ssq = jnp.sum(y * y, axis=-1, keepdims=True)
            # matches torch F.normalize(eps=1e-12) semantics (1e-24 on the squared norm)
            y = y * jax.lax.rsqrt(jnp.maximum(ssq, 1e-24))
        return y.astype(o_ref.dtype)

    if single_k:
        # Single K step: no accumulator scratch -> no extra f32 VMEM traffic.
        o_ref[...] = _epilogue(part)
    else:
        @pl.when(k == 0)
        def _():
            acc_ref[...] = jnp.zeros_like(acc_ref)
        acc_ref[...] += part

        @pl.when(k == pl.num_programs(2) - 1)
        def _():
            o_ref[...] = _epilogue(acc_ref[...])


def fused_linear(x, w, b=None, *, residual=None, ln_g=None, ln_b=None, act=None,
                 l2=False, scale=None, trans_b=False, mxu_dtype=None, out_dtype=None):
    """y = epilogue( LN?(x) @ W  [+bias] [QuickGELU] [+residual] [*scale] [L2-norm] ).

    W is [K, N], or [N, K] with trans_b=True (contract on the last dim of both)."""
    M, K = x.shape
    if trans_b:
        N, Kw = w.shape
    else:
        Kw, N = w.shape
    assert K == Kw
    out_dtype = out_dtype if out_dtype is not None else x.dtype
    has_bias = b is not None
    has_ln = ln_g is not None
    has_res = residual is not None
    has_scale = scale is not None

    preset = _tile_preset()
    tm, Mp = _tile_and_pad(M, preset["tm"])
    tn, Np = (N, N) if l2 else _tile_and_pad(N, preset["tn"])       # L2 needs full row
    tk, Kp = (K, K) if has_ln else _tile_and_pad(K, preset["tk"])   # LN needs full row

    # Zero-pad to tile multiples (padded rows/cols contribute zeros, sliced off after).
    if Mp != M:
        x = jnp.pad(x, ((0, Mp - M), (0, 0)))
    if Kp != K:
        x = jnp.pad(x, ((0, 0), (0, Kp - K)))
        w = jnp.pad(w, ((0, 0), (0, Kp - K)) if trans_b else ((0, Kp - K), (0, 0)))
    if Np != N:
        w = jnp.pad(w, ((0, Np - N), (0, 0)) if trans_b else ((0, 0), (0, Np - N)))
        if has_bias:
            b = jnp.pad(b, (0, Np - N))
    if has_res and (Mp != M or Np != N):
        residual = jnp.pad(residual, ((0, Mp - M), (0, Np - N)))

    grid = (Mp // tm, Np // tn, Kp // tk)
    single_k = grid[2] == 1
    ln_cache = has_ln and grid[1] > 1

    in_specs = [pl.BlockSpec((tm, tk), lambda i, j, k: (i, k))]
    if trans_b:
        in_specs.append(pl.BlockSpec((tn, tk), lambda i, j, k: (j, k)))
    else:
        in_specs.append(pl.BlockSpec((tk, tn), lambda i, j, k: (k, j)))
    args = [x, w]
    if has_res:
        in_specs.append(pl.BlockSpec((tm, tn), lambda i, j, k: (i, j)))
        args.append(residual)
    if has_bias:
        in_specs.append(pl.BlockSpec((1, tn), lambda i, j, k: (0, j)))
        args.append(b.reshape(1, Np))
    if has_ln:
        in_specs.append(pl.BlockSpec((1, tk), lambda i, j, k: (0, k)))
        in_specs.append(pl.BlockSpec((1, tk), lambda i, j, k: (0, k)))
        args.extend([ln_g.reshape(1, K), ln_b.reshape(1, K)])
    if has_scale:
        # scalar goes through SMEM (no per-call VMEM DMA for a single value)
        in_specs.append(pl.BlockSpec(memory_space=pltpu.MemorySpace.SMEM))
        args.append(jnp.asarray(scale, jnp.float32).reshape(1, 1))

    scratch = []
    if not single_k:
        scratch.append(pltpu.VMEM((tm, tn), jnp.float32))
    if ln_cache:
        scratch.append(pltpu.VMEM((tm, Kp), w.dtype))

    # When caching LN across j, keep j sequential so j == 0 runs first on each core.
    dims = (("parallel", "arbitrary", "arbitrary") if ln_cache
            else ("parallel", "parallel", "arbitrary"))

    cost = pl.CostEstimate(
        flops=2 * Mp * Np * Kp,
        transcendentals=Mp * Np if act == "quick_gelu" else 0,
        bytes_accessed=int(x.size * x.dtype.itemsize + w.size * w.dtype.itemsize
                           + Mp * Np * jnp.dtype(out_dtype).itemsize))

    kernel = functools.partial(
        _fused_linear_kernel, has_bias=has_bias, has_ln=has_ln, has_scale=has_scale,
        has_res=has_res, act=act, l2=l2, single_k=single_k, ln_cache=ln_cache,
        trans_b=trans_b, mxu_dtype=mxu_dtype)

    out = pl.pallas_call(
        kernel,
        grid=grid,
        in_specs=in_specs,
        out_specs=pl.BlockSpec((tm, tn), lambda i, j, k: (i, j)),
        out_shape=jax.ShapeDtypeStruct((Mp, Np), out_dtype),
        scratch_shapes=scratch,
        compiler_params=pltpu.CompilerParams(
            dimension_semantics=dims,
            vmem_limit_bytes=preset["vmem_limit_bytes"]),
        cost_estimate=cost,
    )(*args)
    if Mp != M or Np != N:
        out = out[:M, :N]
    return out


# ---------------------------------- attention kernel ----------------------------------

def _mha_kernel(qkv_ref, o_ref, *, n_heads, scale, causal):
    Bb, S, D3 = qkv_ref.shape
    D = D3 // 3
    Dh = D // n_heads
    if causal:
        row = jax.lax.broadcasted_iota(jnp.int32, (S, S), 0)
        col = jax.lax.broadcasted_iota(jnp.int32, (S, S), 1)
        mask = (col <= row)[None, :, :]
    # TODO(synk): a head-major QKV layout ([B, 3, H, S, Dh]) emitted by the QKV matmul
    # would make every per-head slice 128-lane aligned; kept packed [Q|K|V] here.
    for h in range(n_heads):                       # static loop; head split stays in-kernel
        q = qkv_ref[:, :, h * Dh:(h + 1) * Dh] * scale          # fold 1/sqrt(Dh) into q
        k = qkv_ref[:, :, D + h * Dh:D + (h + 1) * Dh]
        v = qkv_ref[:, :, 2 * D + h * Dh:2 * D + (h + 1) * Dh]
        s = jax.lax.dot_general(q, k, (((2,), (2,)), ((0,), (0,))),
                                preferred_element_type=jnp.float32)
        if causal:
            s = jnp.where(mask, s, -1e30)
        s = s - jnp.max(s, axis=-1, keepdims=True)
        p = jnp.exp(s)
        p = p * pl.reciprocal(jnp.sum(p, axis=-1, keepdims=True), approx=True)
        o = jax.lax.dot_general(p.astype(v.dtype), v, (((2,), (1,)), ((0,), (0,))),
                                preferred_element_type=jnp.float32)
        o_ref[:, :, h * Dh:(h + 1) * Dh] = o.astype(o_ref.dtype)   # no lane concat


def mha_attention(qkv, n_heads, causal):
    """qkv: [B, S, 3*D] packed projection -> out [B, S, D]."""
    B, S, D3 = qkv.shape
    D = D3 // 3
    Dh = D // n_heads
    scale = 1.0 / math.sqrt(Dh)
    bb = 1
    for d in (8, 4, 2, 1):                 # batch several sequences per grid step
        if B % d == 0:
            bb = d
            break
    return pl.pallas_call(
        functools.partial(_mha_kernel, n_heads=n_heads, scale=scale, causal=causal),
        grid=(B // bb,),
        in_specs=[pl.BlockSpec((bb, S, D3), lambda i: (i, 0, 0))],
        out_specs=pl.BlockSpec((bb, S, D), lambda i: (i, 0, 0)),
        out_shape=jax.ShapeDtypeStruct((B, S, D), qkv.dtype),
        compiler_params=pltpu.CompilerParams(dimension_semantics=("parallel",)),
        cost_estimate=pl.CostEstimate(
            flops=4 * B * n_heads * S * S * Dh,
            transcendentals=B * n_heads * S * S,
            bytes_accessed=int(qkv.size * qkv.dtype.itemsize
                               + B * S * D * qkv.dtype.itemsize)),
    )(qkv)


# --------------------------- standalone layernorm (ln_pre) ---------------------------

def _layernorm_kernel(x_ref, g_ref, b_ref, o_ref):
    x = x_ref[...].astype(jnp.float32)
    mu = jnp.mean(x, axis=-1, keepdims=True)
    var = jnp.mean(jnp.square(x - mu), axis=-1, keepdims=True)
    y = (x - mu) * jax.lax.rsqrt(var + 1e-5)
    o_ref[...] = (y * g_ref[...].astype(jnp.float32)
                  + b_ref[...].astype(jnp.float32)).astype(o_ref.dtype)


def layer_norm(x, g, b, *, block_rows=1024):
    shp = x.shape
    D = shp[-1]
    x2 = x.reshape(-1, D)
    M = x2.shape[0]
    tm, Mp = _tile_and_pad(M, block_rows)
    if Mp != M:
        x2 = jnp.pad(x2, ((0, Mp - M), (0, 0)))
    out = pl.pallas_call(
        _layernorm_kernel,
        grid=(Mp // tm,),
        in_specs=[pl.BlockSpec((tm, D), lambda i: (i, 0)),
                  pl.BlockSpec((1, D), lambda i: (0, 0)),
                  pl.BlockSpec((1, D), lambda i: (0, 0))],
        out_specs=pl.BlockSpec((tm, D), lambda i: (i, 0)),
        out_shape=jax.ShapeDtypeStruct((Mp, D), x.dtype),
        compiler_params=pltpu.CompilerParams(dimension_semantics=("parallel",)),
    )(x2, g.reshape(1, D), b.reshape(1, D))
    if Mp != M:
        out = out[:M]
    return out.reshape(shp)


# ------------------------------- model (glue + kernels) -------------------------------

def residual_block(x, p, n_heads, causal):
    B, S, D = x.shape
    x2 = x.reshape(B * S, D)
    # ln_1 fused into the QKV projection
    qkv = fused_linear(x2, p["in_w"], p["in_b"], ln_g=p["ln1_g"], ln_b=p["ln1_b"])
    attn = mha_attention(qkv.reshape(B, S, 3 * D), n_heads, causal)
    # residual add fused into the attention output projection
    x2 = fused_linear(attn.reshape(B * S, D), p["out_w"], p["out_b"], residual=x2)
    # ln_2 + QuickGELU fused into the MLP fc matmul
    h = fused_linear(x2, p["fc_w"], p["fc_b"], ln_g=p["ln2_g"], ln_b=p["ln2_b"],
                     act="quick_gelu")
    # residual add fused into the MLP down-projection
    x2 = fused_linear(h, p["proj_w"], p["proj_b"], residual=x2)
    return x2.reshape(B, S, D)


def transformer(x, layers, n_heads, causal):
    for p in layers:
        x = residual_block(x, p, n_heads, causal)
    return x


def image_encoder(image, p, cfg):
    # image: [B, 3, H, W] (NCHW). conv1 (stride=patch, no bias) == patch matmul.
    B, C, H, W = image.shape
    ps = cfg["patch_size"]
    gh, gw = H // ps, W // ps
    Dv = cfg["vision_width"]
    patches = image.reshape(B, C, gh, ps, gw, ps).transpose(0, 2, 4, 1, 3, 5)
    patches = patches.reshape(B * gh * gw, C * ps * ps)
    w = p["conv1_w"].reshape(Dv, C * ps * ps).T
    x = fused_linear(patches, w).reshape(B, gh * gw, Dv)
    cls = jnp.broadcast_to(p["class_emb"].reshape(1, 1, Dv), (B, 1, Dv)).astype(x.dtype)
    x = jnp.concatenate([cls, x], axis=1)
    x = x + p["pos_emb"][None].astype(x.dtype)
    x = layer_norm(x, p["ln_pre_g"], p["ln_pre_b"])
    x = transformer(x, p["layers"], cfg["vision_heads"], causal=False)
    cls_tok = x[:, 0, :]
    # ln_post + visual projection + L2-normalization fused in one kernel, f32 output.
    return fused_linear(cls_tok, p["proj"], ln_g=p["ln_post_g"], ln_b=p["ln_post_b"],
                        l2=True, out_dtype=jnp.float32)


def text_encoder(prompts, tokenized_prompts, p, cfg):
    # prompts: [R, S, Dt] with R = n_block * n_cls (all prompt rows batched together
    # so the text-transformer weights stream from HBM once).
    R, S, Dt = prompts.shape
    x = prompts + p["pos_emb"][None].astype(prompts.dtype)
    x = transformer(x, p["layers"], cfg["text_heads"], causal=True)
    n_cls = tokenized_prompts.shape[0]
    eot = jnp.argmax(tokenized_prompts, axis=-1)           # [n_cls]
    eot_all = jnp.tile(eot, R // n_cls)                    # [R]
    x_eot = x[jnp.arange(R), eot_all]                      # gather EOT rows (XLA glue)
    # LayerNorm commutes with the per-row gather, so ln_final + text_projection + L2
    # are fused on the gathered rows only.
    return fused_linear(x_eot, p["text_projection"], ln_g=p["ln_final_g"],
                        ln_b=p["ln_final_b"], l2=True, out_dtype=jnp.float32)


def prompt_learner_forward(p):
    # class_token_position == 'end'
    ctx = p["ctx"]                                         # [n_block, n_ctx, dim]
    n_block, n_ctx, dim = ctx.shape
    n_cls = p["token_prefix"].shape[1]
    ctx = jnp.broadcast_to(ctx[:, None], (n_block, n_cls, n_ctx, dim))
    return jnp.concatenate([p["token_prefix"], ctx, p["token_suffix"]], axis=2)


def custom_clip_matrix_forward(params, image, tokenized_prompts, cfg):
    compute_dtype = jnp.bfloat16
    img = image_encoder(image.astype(compute_dtype), params["visual"], cfg)  # [B,E] f32
    logit_scale = jnp.exp(params["logit_scale"])

    prompts_matrix = prompt_learner_forward(params["prompt"])   # [n_block, n_cls, S, Dt]
    n_block, n_cls, S, Dt = prompts_matrix.shape
    prompts_all = prompts_matrix.reshape(n_block * n_cls, S, Dt).astype(compute_dtype)
    txt_all = text_encoder(prompts_all, tokenized_prompts, params["text"], cfg)  # [R,E] f32

    # logit_scale * img @ txt.T fused: contract on E (no transpose copy), bf16 MXU
    # inputs with f32 accumulate, scale read from SMEM.
    logits_all = fused_linear(img, txt_all, trans_b=True, mxu_dtype=jnp.bfloat16,
                              scale=logit_scale, out_dtype=jnp.float32)
    B = img.shape[0]
    logits_matrix = logits_all.reshape(B, n_block, n_cls).transpose(1, 0, 2)
    texts_matrix = txt_all.reshape(n_block, n_cls, txt_all.shape[-1])
    return logits_matrix, img, texts_matrix


# ------------------------- deterministic parameter init -------------------------

def init_params(key, cfg, compute_dtype=jnp.bfloat16):
    keys = iter(jax.random.split(key, 256))

    def nrm(shape, std=0.02):
        return (std * jax.random.normal(next(keys), shape)).astype(jnp.float32)

    def block(D):
        return dict(
            ln1_g=jnp.ones((D,), jnp.float32), ln1_b=jnp.zeros((D,), jnp.float32),
            in_w=nrm((D, 3 * D)), in_b=jnp.zeros((3 * D,), jnp.float32),
            out_w=nrm((D, D)), out_b=jnp.zeros((D,), jnp.float32),
            ln2_g=jnp.ones((D,), jnp.float32), ln2_b=jnp.zeros((D,), jnp.float32),
            fc_w=nrm((D, 4 * D)), fc_b=jnp.zeros((4 * D,), jnp.float32),
            proj_w=nrm((4 * D, D)), proj_b=jnp.zeros((D,), jnp.float32),
        )

    Dv, Dt, E = cfg["vision_width"], cfg["text_width"], cfg["embed_dim"]
    n_patches = (cfg["image_size"] // cfg["patch_size"]) ** 2

    visual = dict(
        conv1_w=nrm((Dv, 3, cfg["patch_size"], cfg["patch_size"])),
        class_emb=nrm((Dv,)),
        pos_emb=nrm((n_patches + 1, Dv)),
        ln_pre_g=jnp.ones((Dv,), jnp.float32), ln_pre_b=jnp.zeros((Dv,), jnp.float32),
        layers=[block(Dv) for _ in range(cfg["vision_layers"])],
        ln_post_g=jnp.ones((Dv,), jnp.float32), ln_post_b=jnp.zeros((Dv,), jnp.float32),
        proj=nrm((Dv, E)),
    )
    text = dict(
        pos_emb=nrm((cfg["seq_len"], Dt)),
        layers=[block(Dt) for _ in range(cfg["text_layers"])],
        ln_final_g=jnp.ones((Dt,), jnp.float32), ln_final_b=jnp.zeros((Dt,), jnp.float32),
        text_projection=nrm((Dt, E)),
    )

    # TODO(synk): real CLIP BPE tokenizer + pretrained token_embedding; synthesized here.
    n_cls, n_ctx, n_block, seq = cfg["n_cls"], cfg["n_ctx"], cfg["n_block"], cfg["seq_len"]
    sot, eot = cfg["vocab"] - 2, cfg["vocab"] - 1   # EOT is the max token id -> argmax hits it
    tok_rows = []
    for i, nl in enumerate(cfg["name_lens"]):
        row = [sot] + [10 + j for j in range(n_ctx)] + [20 + 4 * i + j for j in range(nl)] + [eot]
        row = row + [0] * (seq - len(row))
        tok_rows.append(row)
    tokenized_prompts = jnp.array(tok_rows, dtype=jnp.int32)          # [n_cls, seq]

    token_embedding = nrm((cfg["vocab"], Dt))
    embedding = token_embedding[tokenized_prompts]                    # [n_cls, seq, Dt]
    token_prefix = jnp.broadcast_to(embedding[:, :1, :][None], (n_block, n_cls, 1, Dt))
    token_suffix = jnp.broadcast_to(embedding[:, 1 + n_ctx:, :][None],
                                    (n_block, n_cls, seq - 1 - n_ctx, Dt))
    prompt = dict(ctx=nrm((n_block, n_ctx, Dt)),
                  token_prefix=token_prefix, token_suffix=token_suffix)

    # bf16 weights/activations everywhere (f32 accumulate in-kernel); logit_scale stays f32.
    def cast(a):
        return a.astype(compute_dtype) if jnp.issubdtype(a.dtype, jnp.floating) else a

    visual = jax.tree_util.tree_map(cast, visual)
    text = jax.tree_util.tree_map(cast, text)
    prompt = jax.tree_util.tree_map(cast, prompt)

    params = dict(visual=visual, text=text, prompt=prompt,
                  logit_scale=jnp.array(math.log(1.0 / 0.07), jnp.float32))
    return params, tokenized_prompts


# ----------------------------------- main -----------------------------------

if __name__ == "__main__":
    cfg = dict(
        image_size=32, patch_size=8,
        vision_width=64, vision_heads=4, vision_layers=2,
        text_width=64, text_heads=4, text_layers=2,
        seq_len=16, vocab=64, embed_dim=64,
        n_cls=3, n_ctx=4, n_block=2, name_lens=[1, 2, 1],
    )
    key = jax.random.PRNGKey(0)
    k_params, k_img = jax.random.split(key)
    params, tokenized_prompts = init_params(k_params, cfg)
    image = jax.random.normal(k_img, (2, 3, cfg["image_size"], cfg["image_size"]), jnp.float32)

    fwd = jax.jit(functools.partial(custom_clip_matrix_forward, cfg=cfg))
    logits_matrix, img_feat, texts_matrix = fwd(params, image, tokenized_prompts)
    jax.block_until_ready((logits_matrix, img_feat, texts_matrix))

    assert logits_matrix.shape == (cfg["n_block"], image.shape[0], cfg["n_cls"])
    assert img_feat.shape == (image.shape[0], cfg["embed_dim"])
    assert texts_matrix.shape == (cfg["n_block"], cfg["n_cls"], cfg["embed_dim"])
    assert bool(jnp.all(jnp.isfinite(logits_matrix)))
    assert bool(jnp.all(jnp.isfinite(img_feat)))
    assert bool(jnp.all(jnp.isfinite(texts_matrix)))
    print("KERNEL_OK")
</pallas_src>

<mosaic_0001>
module attributes {stable_mosaic.version = 11 : i64} {
  func.func @_fused_linear_kernel(%arg0: i32, %arg1: i32, %arg2: i32, %arg3: memref<32x192xbf16, #tpu.memory_space<vmem>>, %arg4: memref<192x64xbf16, #tpu.memory_space<vmem>>, %arg5: memref<32x64xbf16, #tpu.memory_space<vmem>>) attributes {dimension_semantics = [#tpu.dimension_semantics<parallel>, #tpu.dimension_semantics<parallel>, #tpu.dimension_semantics<arbitrary>], iteration_bounds = array<i64: 1, 1, 1>, scalar_prefetch = 0 : i64, scratch_operands = 0 : i64, tpu.core_type = #tpu.core_type<tc>, window_params = [{transform_indices = @transform_0, window_bounds = array<i64: 32, 192>}, {transform_indices = @transform_1, window_bounds = array<i64: 192, 64>}, {transform_indices = @transform_2, window_bounds = array<i64: 32, 64>}]} {
    %c0 = arith.constant 0 : index
    %c0_0 = arith.constant 0 : index
    %0 = vector.load %arg3[%c0, %c0_0] : memref<32x192xbf16, #tpu.memory_space<vmem>>, vector<32x192xbf16>
    %c0_1 = arith.constant 0 : index
    %c0_2 = arith.constant 0 : index
    %1 = vector.load %arg4[%c0_1, %c0_2] : memref<192x64xbf16, #tpu.memory_space<vmem>>, vector<192x64xbf16>
    %cst = arith.constant dense<0.000000e+00> : vector<32x64xf32>
    %2 = tpu.matmul %0, %1, %cst {dimension_numbers = #tpu.dot_dimension_numbers<[1], [0], [0], [1], [0, 0, 1, 1], [], []>} : vector<32x192xbf16>, vector<192x64xbf16>, vector<32x64xf32> -> vector<32x64xf32>
    %3 = arith.truncf %2 : vector<32x64xf32> to vector<32x64xbf16>
    %c0_3 = arith.constant 0 : index
    %c0_4 = arith.constant 0 : index
    %4 = vector.load %arg5[%c0_3, %c0_4] : memref<32x64xbf16, #tpu.memory_space<vmem>>, vector<32x64xbf16>
    tpu.vector_store %arg5[%c0_3, %c0_4], %3 {strides = array<i32>} : memref<32x64xbf16, #tpu.memory_space<vmem>>, vector<32x64xbf16>,
    return
  }
  func.func @transform_0(%arg0: i32, %arg1: i32, %arg2: i32) -> (i32, i32) {
    %c0_i32 = arith.constant 0 : i32
    return %arg0, %arg2 : i32, i32
  }
  func.func @transform_1(%arg0: i32, %arg1: i32, %arg2: i32) -> (i32, i32) {
    %c0_i32 = arith.constant 0 : i32
    return %arg2, %arg1 : i32, i32
  }
  func.func @transform_2(%arg0: i32, %arg1: i32, %arg2: i32) -> (i32, i32) {
    %c0_i32 = arith.constant 0 : i32
    return %arg0, %arg1 : i32, i32
  }
}

module attributes {stable_mosaic.version = 11 : i64} {
  func.func @_fused_linear_kernel(%arg0: i32, %arg1: i32, %arg2: i32, %arg3: memref<34x64xbf16, #tpu.memory_space<vmem>>, %arg4: memref<64x192xbf16, #tpu.memory_space<vmem>>, %arg5: memref<1x192xbf16, #tpu.memory_space<vmem>>, %arg6: memref<1x64xbf16, #tpu.memory_space<vmem>>, %arg7: memref<1x64xbf16, #tpu.memory_space<vmem>>, %arg8: memref<34x192xbf16, #tpu.memory_space<vmem>>) attributes {dimension_semantics = [#tpu.dimension_semantics<parallel>, #tpu.dimension_semantics<parallel>, #tpu.dimension_semantics<arbitrary>], iteration_bounds = array<i64: 1, 1, 1>, scalar_prefetch = 0 : i64, scratch_operands = 0 : i64, tpu.core_type = #tpu.core_type<tc>, window_params = [{transform_indices = @transform_0, window_bounds = array<i64: 34, 64>}, {transform_indices = @transform_1, window_bounds = array<i64: 64, 192>}, {transform_indices = @transform_2, window_bounds = array<i64: 1, 192>}, {transform_indices = @transform_3, window_bounds = array<i64: 1, 64>}, {transform_indices = @transform_4, window_bounds = array<i64: 1, 64>}, {transform_indices = @transform_5, window_bounds = array<i64: 34, 192>}]} {
    %c0 = arith.constant 0 : index
    %c0_0 = arith.constant 0 : index
    %0 = vector.load %arg3[%c0, %c0_0] : memref<34x64xbf16, #tpu.memory_space<vmem>>, vector<34x64xbf16>
    %1 = arith.extf %0 : vector<34x64xbf16> to vector<34x64xf32>
    %cst = arith.constant dense<0.000000e+00> : vector<34xf32>
    %2 = vector.multi_reduction <add>, %1, %cst [1] : vector<34x64xf32> to vector<34xf32>
    %3 = vector.shape_cast %2 : vector<34xf32> to vector<34x1xf32>
    %cst_1 = arith.constant 6.400000e+01 : f32
    %4 = vector.broadcast %cst_1 : f32 to vector<34x1xf32>
    %5 = arith.divf %3, %4 : vector<34x1xf32>
    %6 = vector.broadcast %5 : vector<34x1xf32> to vector<34x64xf32>
    %7 = arith.subf %1, %6 : vector<34x64xf32>
    %8 = arith.mulf %7, %7 : vector<34x64xf32>
    %cst_2 = arith.constant dense<0.000000e+00> : vector<34xf32>
    %9 = vector.multi_reduction <add>, %8, %cst_2 [1] : vector<34x64xf32> to vector<34xf32>
    %10 = vector.shape_cast %9 : vector<34xf32> to vector<34x1xf32>
    %cst_3 = arith.constant 6.400000e+01 : f32
    %11 = vector.broadcast %cst_3 : f32 to vector<34x1xf32>
    %12 = arith.divf %10, %11 : vector<34x1xf32>
    %13 = vector.broadcast %5 : vector<34x1xf32> to vector<34x64xf32>
    %14 = arith.subf %1, %13 : vector<34x64xf32>
    %cst_4 = arith.constant 9.99999974E-6 : f32
    %15 = vector.broadcast %cst_4 : f32 to vector<34x1xf32>
    %16 = arith.addf %12, %15 : vector<34x1xf32>
    %17 = math.rsqrt %16 : vector<34x1xf32>
    %18 = vector.broadcast %17 : vector<34x1xf32> to vector<34x64xf32>
    %19 = arith.mulf %14, %18 : vector<34x64xf32>
    %c0_5 = arith.constant 0 : index
    %c0_6 = arith.constant 0 : index
    %20 = vector.load %arg6[%c0_5, %c0_6] : memref<1x64xbf16, #tpu.memory_space<vmem>>, vector<1x64xbf16>
    %21 = arith.extf %20 : vector<1x64xbf16> to vector<1x64xf32>
    %22 = vector.broadcast %21 : vector<1x64xf32> to vector<34x64xf32>
    %23 = arith.mulf %19, %22 : vector<34x64xf32>
    %c0_7 = arith.constant 0 : index
    %c0_8 = arith.constant 0 : index
    %24 = vector.load %arg7[%c0_7, %c0_8] : memref<1x64xbf16, #tpu.memory_space<vmem>>, vector<1x64xbf16>
    %25 = arith.extf %24 : vector<1x64xbf16> to vector<1x64xf32>
    %26 = vector.broadcast %25 : vector<1x64xf32> to vector<34x64xf32>
    %27 = arith.addf %23, %26 : vector<34x64xf32>
    %28 = arith.truncf %27 : vector<34x64xf32> to vector<34x64xbf16>
    %c0_9 = arith.constant 0 : index
    %c0_10 = arith.constant 0 : index
    %29 = vector.load %arg4[%c0_9, %c0_10] : memref<64x192xbf16, #tpu.memory_space<vmem>>, vector<64x192xbf16>
    %cst_11 = arith.constant dense<0.000000e+00> : vector<34x192xf32>
    %30 = tpu.matmul %28, %29, %cst_11 {dimension_numbers = #tpu.dot_dimension_numbers<[1], [0], [0], [1], [0, 0, 1, 1], [], []>} : vector<34x64xbf16>, vector<64x192xbf16>, vector<34x192xf32> -> vector<34x192xf32>
    %c0_12 = arith.constant 0 : index
    %c0_13 = arith.constant 0 : index
    %31 = vector.load %arg5[%c0_12, %c0_13] : memref<1x192xbf16, #tpu.memory_space<vmem>>, vector<1x192xbf16>
    %32 = arith.extf %31 : vector<1x192xbf16> to vector<1x192xf32>
    %33 = vector.broadcast %32 : vector<1x192xf32> to vector<34x192xf32>
    %34 = arith.addf %30, %33 : vector<34x192xf32>
    %35 = arith.truncf %34 : vector<34x192xf32> to vector<34x192xbf16>
    %c0_14 = arith.constant 0 : index
    %c0_15 = arith.constant 0 : index
    %36 = vector.load %arg8[%c0_14, %c0_15] : memref<34x192xbf16, #tpu.memory_space<vmem>>, vector<34x192xbf16>
    tpu.vector_store %arg8[%c0_14, %c0_15], %35 {strides = array<i32>} : memref<34x192xbf16, #tpu.memory_space<vmem>>, vector<34x192xbf16>,
    return
  }
  func.func @transform_0(%arg0: i32, %arg1: i32, %arg2: i32) -> (i32, i32) {
    %c0_i32 = arith.constant 0 : i32
    return %arg0, %arg2 : i32, i32
  }
  func.func @transform_1(%arg0: i32, %arg1: i32, %arg2: i32) -> (i32, i32) {
    %c0_i32 = arith.constant 0 : i32
    return %arg2, %arg1 : i32, i32
  }
  func.func @transform_2(%arg0: i32, %arg1: i32, %arg2: i32) -> (i32, i32) {
    %c0_i32 = arith.constant 0 : i32
    %c0_i32_0 = arith.constant 0 : i32
    return %c0_i32, %arg1 : i32, i32
  }
  func.func @transform_3(%arg0: i32, %arg1: i32, %arg2: i32) -> (i32, i32) {
    %c0_i32 = arith.constant 0 : i32
    %c0_i32_0 = arith.constant 0 : i32
    return %c0_i32, %arg2 : i32, i32
  }
  func.func @transform_4(%arg0: i32, %arg1: i32, %arg2: i32) -> (i32, i32) {
    %c0_i32 = arith.constant 0 : i32
    %c0_i32_0 = arith.constant 0 : i32
    return %c0_i32, %arg2 : i32, i32
  }
  func.func @transform_5(%arg0: i32, %arg1: i32, %arg2: i32) -> (i32, i32) {
    %c0_i32 = arith.constant 0 : i32
    return %arg0, %arg1 : i32, i32
  }
}

module attributes {stable_mosaic.version = 11 : i64} {
  func.func @_layernorm_kernel(%arg0: i32, %arg1: memref<34x64xbf16, #tpu.memory_space<vmem>>, %arg2: memref<1x64xbf16, #tpu.memory_space<vmem>>, %arg3: memref<1x64xbf16, #tpu.memory_space<vmem>>, %arg4: memref<34x64xbf16, #tpu.memory_space<vmem>>) attributes {dimension_semantics = [#tpu.dimension_semantics<parallel>], iteration_bounds = array<i64: 1>, scalar_prefetch = 0 : i64, scratch_operands = 0 : i64, tpu.core_type = #tpu.core_type<tc>, window_params = [{transform_indices = @transform_0, window_bounds = array<i64: 34, 64>}, {pipeline_mode = #tpu.pipeline_mode<synchronous>, transform_indices = @transform_1, window_bounds = array<i64: 1, 64>}, {pipeline_mode = #tpu.pipeline_mode<synchronous>, transform_indices = @transform_2, window_bounds = array<i64: 1, 64>}, {transform_indices = @transform_3, window_bounds = array<i64: 34, 64>}]} {
    %c0 = arith.constant 0 : index
    %c0_0 = arith.constant 0 : index
    %0 = vector.load %arg1[%c0, %c0_0] : memref<34x64xbf16, #tpu.memory_space<vmem>>, vector<34x64xbf16>
    %1 = arith.extf %0 : vector<34x64xbf16> to vector<34x64xf32>
    %cst = arith.constant dense<0.000000e+00> : vector<34xf32>
    %2 = vector.multi_reduction <add>, %1, %cst [1] : vector<34x64xf32> to vector<34xf32>
    %3 = vector.shape_cast %2 : vector<34xf32> to vector<34x1xf32>
    %cst_1 = arith.constant 6.400000e+01 : f32
    %4 = vector.broadcast %cst_1 : f32 to vector<34x1xf32>
    %5 = arith.divf %3, %4 : vector<34x1xf32>
    %6 = vector.broadcast %5 : vector<34x1xf32> to vector<34x64xf32>
    %7 = arith.subf %1, %6 : vector<34x64xf32>
    %8 = arith.mulf %7, %7 : vector<34x64xf32>
    %cst_2 = arith.constant dense<0.000000e+00> : vector<34xf32>
    %9 = vector.multi_reduction <add>, %8, %cst_2 [1] : vector<34x64xf32> to vector<34xf32>
    %10 = vector.shape_cast %9 : vector<34xf32> to vector<34x1xf32>
    %cst_3 = arith.constant 6.400000e+01 : f32
    %11 = vector.broadcast %cst_3 : f32 to vector<34x1xf32>
    %12 = arith.divf %10, %11 : vector<34x1xf32>
    %13 = vector.broadcast %5 : vector<34x1xf32> to vector<34x64xf32>
    %14 = arith.subf %1, %13 : vector<34x64xf32>
    %cst_4 = arith.constant 9.99999974E-6 : f32
    %15 = vector.broadcast %cst_4 : f32 to vector<34x1xf32>
    %16 = arith.addf %12, %15 : vector<34x1xf32>
    %17 = math.rsqrt %16 : vector<34x1xf32>
    %18 = vector.broadcast %17 : vector<34x1xf32> to vector<34x64xf32>
    %19 = arith.mulf %14, %18 : vector<34x64xf32>
    %c0_5 = arith.constant 0 : index
    %c0_6 = arith.constant 0 : index
    %20 = vector.load %arg2[%c0_5, %c0_6] : memref<1x64xbf16, #tpu.memory_space<vmem>>, vector<1x64xbf16>
    %21 = arith.extf %20 : vector<1x64xbf16> to vector<1x64xf32>
    %22 = vector.broadcast %21 : vector<1x64xf32> to vector<34x64xf32>
    %23 = arith.mulf %19, %22 : vector<34x64xf32>
    %c0_7 = arith.constant 0 : index
    %c0_8 = arith.constant 0 : index
    %24 = vector.load %arg3[%c0_7, %c0_8] : memref<1x64xbf16, #tpu.memory_space<vmem>>, vector<1x64xbf16>
    %25 = arith.extf %24 : vector<1x64xbf16> to vector<1x64xf32>
    %26 = vector.broadcast %25 : vector<1x64xf32> to vector<34x64xf32>
    %27 = arith.addf %23, %26 : vector<34x64xf32>
    %28 = arith.truncf %27 : vector<34x64xf32> to vector<34x64xbf16>
    %c0_9 = arith.constant 0 : index
    %c0_10 = arith.constant 0 : index
    %29 = vector.load %arg4[%c0_9, %c0_10] : memref<34x64xbf16, #tpu.memory_space<vmem>>, vector<34x64xbf16>
    tpu.vector_store %arg4[%c0_9, %c0_10], %28 {strides = array<i32>} : memref<34x64xbf16, #tpu.memory_space<vmem>>, vector<34x64xbf16>,
    return
  }
  func.func @transform_0(%arg0: i32) -> (i32, i32) {
    %c0_i32 = arith.constant 0 : i32
    %c0_i32_0 = arith.constant 0 : i32
    return %arg0, %c0_i32 : i32, i32
  }
  func.func @transform_1(%arg0: i32) -> (i32, i32) {
    %c0_i32 = arith.constant 0 : i32
    %c0_i32_0 = arith.constant 0 : i32
    %c0_i32_1 = arith.constant 0 : i32
    return %c0_i32, %c0_i32_0 : i32, i32
  }
  func.func @transform_2(%arg0: i32) -> (i32, i32) {
    %c0_i32 = arith.constant 0 : i32
    %c0_i32_0 = arith.constant 0 : i32
    %c0_i32_1 = arith.constant 0 : i32
    return %c0_i32, %c0_i32_0 : i32, i32
  }
  func.func @transform_3(%arg0: i32) -> (i32, i32) {
    %c0_i32 = arith.constant 0 : i32
    %c0_i32_0 = arith.constant 0 : i32
    return %arg0, %c0_i32 : i32, i32
  }
}

module attributes {stable_mosaic.version = 11 : i64} {
  func.func @_mha_kernel(%arg0: i32, %arg1: memref<2x17x192xbf16, #tpu.memory_space<vmem>>, %arg2: memref<2x17x64xbf16, #tpu.memory_space<vmem>>) attributes {dimension_semantics = [#tpu.dimension_semantics<parallel>], iteration_bounds = array<i64: 1>, scalar_prefetch = 0 : i64, scratch_operands = 0 : i64, tpu.core_type = #tpu.core_type<tc>, window_params = [{transform_indices = @transform_0, window_bounds = array<i64: 2, 17, 192>}, {transform_indices = @transform_1, window_bounds = array<i64: 2, 17, 64>}]} {
    %c0 = arith.constant 0 : index
    %c0_0 = arith.constant 0 : index
    %c0_1 = arith.constant 0 : index
    %0 = vector.load %arg1[%c0, %c0_0, %c0_1] : memref<2x17x192xbf16, #tpu.memory_space<vmem>>, vector<2x17x16xbf16>
    %cst = arith.constant 2.500000e-01 : bf16
    %1 = vector.broadcast %cst : bf16 to vector<2x17x16xbf16>
    %2 = arith.mulf %0, %1 : vector<2x17x16xbf16>
    %c0_2 = arith.constant 0 : index
    %c0_3 = arith.constant 0 : index
    %c64 = arith.constant 64 : index
    %3 = vector.load %arg1[%c0_2, %c0_3, %c64] : memref<2x17x192xbf16, #tpu.memory_space<vmem>>, vector<2x17x16xbf16>
    %c0_4 = arith.constant 0 : index
    %c0_5 = arith.constant 0 : index
    %c128 = arith.constant 128 : index
    %4 = vector.load %arg1[%c0_4, %c0_5, %c128] : memref<2x17x192xbf16, #tpu.memory_space<vmem>>, vector<2x17x16xbf16>
    %cst_6 = arith.constant dense<0.000000e+00> : vector<2x17x17xf32>
    %5 = tpu.matmul %2, %3, %cst_6 {dimension_numbers = #tpu.dot_dimension_numbers<[2], [2], [1], [1], [0, 0, 0, 1, 1, 1], [0], [0]>} : vector<2x17x16xbf16>, vector<2x17x16xbf16>, vector<2x17x17xf32> -> vector<2x17x17xf32>
    %cst_7 = arith.constant dense<0xFF800000> : vector<2x17xf32>
    %6 = vector.multi_reduction <maximumf>, %5, %cst_7 [2] : vector<2x17x17xf32> to vector<2x17xf32>
    %7 = vector.shape_cast %6 : vector<2x17xf32> to vector<2x17x1xf32>
    %8 = vector.broadcast %7 : vector<2x17x1xf32> to vector<2x17x17xf32>
    %9 = arith.subf %5, %8 : vector<2x17x17xf32>
    %10 = math.exp %9 : vector<2x17x17xf32>
    %cst_8 = arith.constant dense<0.000000e+00> : vector<2x17xf32>
    %11 = vector.multi_reduction <add>, %10, %cst_8 [2] : vector<2x17x17xf32> to vector<2x17xf32>
    %12 = vector.shape_cast %11 : vector<2x17xf32> to vector<2x17x1xf32>
    %13 = tpu.reciprocal %12 {approx = true} : vector<2x17x1xf32> -> vector<2x17x1xf32>
    %14 = vector.broadcast %13 : vector<2x17x1xf32> to vector<2x17x17xf32>
    %15 = arith.mulf %10, %14 : vector<2x17x17xf32>
    %16 = arith.truncf %15 : vector<2x17x17xf32> to vector<2x17x17xbf16>
    %cst_9 = arith.constant dense<0.000000e+00> : vector<2x17x16xf32>
    %17 = tpu.matmul %16, %4, %cst_9 {dimension_numbers = #tpu.dot_dimension_numbers<[2], [1], [1], [2], [0, 0, 0, 1, 1, 2], [0], [0]>} : vector<2x17x17xbf16>, vector<2x17x16xbf16>, vector<2x17x16xf32> -> vector<2x17x16xf32>
    %18 = arith.truncf %17 : vector<2x17x16xf32> to vector<2x17x16xbf16>
    %c0_10 = arith.constant 0 : index
    %c0_11 = arith.constant 0 : index
    %c0_12 = arith.constant 0 : index
    %19 = vector.load %arg2[%c0_10, %c0_11, %c0_12] : memref<2x17x64xbf16, #tpu.memory_space<vmem>>, vector<2x17x16xbf16>
    tpu.vector_store %arg2[%c0_10, %c0_11, %c0_12], %18 {strides = array<i32>} : memref<2x17x64xbf16, #tpu.memory_space<vmem>>, vector<2x17x16xbf16>,
    %c0_13 = arith.constant 0 : index
    %c0_14 = arith.constant 0 : index
    %c16 = arith.constant 16 : index
    %20 = vector.load %arg1[%c0_13, %c0_14, %c16] : memref<2x17x192xbf16, #tpu.memory_space<vmem>>, vector<2x17x16xbf16>
    %cst_15 = arith.constant 2.500000e-01 : bf16
    %21 = vector.broadcast %cst_15 : bf16 to vector<2x17x16xbf16>
    %22 = arith.mulf %20, %21 : vector<2x17x16xbf16>
    %c0_16 = arith.constant 0 : index
    %c0_17 = arith.constant 0 : index
    %c80 = arith.constant 80 : index
    %23 = vector.load %arg1[%c0_16, %c0_17, %c80] : memref<2x17x192xbf16, #tpu.memory_space<vmem>>, vector<2x17x16xbf16>
    %c0_18 = arith.constant 0 : index
    %c0_19 = arith.constant 0 : index
    %c144 = arith.constant 144 : index
    %24 = vector.load %arg1[%c0_18, %c0_19, %c144] : memref<2x17x192xbf16, #tpu.memory_space<vmem>>, vector<2x17x16xbf16>
    %cst_20 = arith.constant dense<0.000000e+00> : vector<2x17x17xf32>
    %25 = tpu.matmul %22, %23, %cst_20 {dimension_numbers = #tpu.dot_dimension_numbers<[2], [2], [1], [1], [0, 0, 0, 1, 1, 1], [0], [0]>} : vector<2x17x16xbf16>, vector<2x17x16xbf16>, vector<2x17x17xf32> -> vector<2x17x17xf32>
    %cst_21 = arith.constant dense<0xFF800000> : vector<2x17xf32>
    %26 = vector.multi_reduction <maximumf>, %25, %cst_21 [2] : vector<2x17x17xf32> to vector<2x17xf32>
    %27 = vector.shape_cast %26 : vector<2x17xf32> to vector<2x17x1xf32>
    %28 = vector.broadcast %27 : vector<2x17x1xf32> to vector<2x17x17xf32>
    %29 = arith.subf %25, %28 : vector<2x17x17xf32>
    %30 = math.exp %29 : vector<2x17x17xf32>
    %cst_22 = arith.constant dense<0.000000e+00> : vector<2x17xf32>
    %31 = vector.multi_reduction <add>, %30, %cst_22 [2] : vector<2x17x17xf32> to vector<2x17xf32>
    %32 = vector.shape_cast %31 : vector<2x17xf32> to vector<2x17x1xf32>
    %33 = tpu.reciprocal %32 {approx = true} : vector<2x17x1xf32> -> vector<2x17x1xf32>
    %34 = vector.broadcast %33 : vector<2x17x1xf32> to vector<2x17x17xf32>
    %35 = arith.mulf %30, %34 : vector<2x17x17xf32>
    %36 = arith.truncf %35 : vector<2x17x17xf32> to vector<2x17x17xbf16>
    %cst_23 = arith.constant dense<0.000000e+00> : vector<2x17x16xf32>
    %37 = tpu.matmul %36, %24, %cst_23 {dimension_numbers = #tpu.dot_dimension_numbers<[2], [1], [1], [2], [0, 0, 0, 1, 1, 2], [0], [0]>} : vector<2x17x17xbf16>, vector<2x17x16xbf16>, vector<2x17x16xf32> -> vector<2x17x16xf32>
    %38 = arith.truncf %37 : vector<2x17x16xf32> to vector<2x17x16xbf16>
    %c0_24 = arith.constant 0 : index
    %c0_25 = arith.constant 0 : index
    %c16_26 = arith.constant 16 : index
    %39 = vector.load %arg2[%c0_24, %c0_25, %c16_26] : memref<2x17x64xbf16, #tpu.memory_space<vmem>>, vector<2x17x16xbf16>
    tpu.vector_store %arg2[%c0_24, %c0_25, %c16_26], %38 {strides = array<i32>} : memref<2x17x64xbf16, #tpu.memory_space<vmem>>, vector<2x17x16xbf16>,
    %c0_27 = arith.constant 0 : index
    %c0_28 = arith.constant 0 : index
    %c32 = arith.constant 32 : index
    %40 = vector.load %arg1[%c0_27, %c0_28, %c32] : memref<2x17x192xbf16, #tpu.memory_space<vmem>>, vector<2x17x16xbf16>
    %cst_29 = arith.constant 2.500000e-01 : bf16
    %41 = vector.broadcast %cst_29 : bf16 to vector<2x17x16xbf16>
    %42 = arith.mulf %40, %41 : vector<2x17x16xbf16>
    %c0_30 = arith.constant 0 : index
    %c0_31 = arith.constant 0 : index
    %c96 = arith.constant 96 : index
    %43 = vector.load %arg1[%c0_30, %c0_31, %c96] : memref<2x17x192xbf16, #tpu.memory_space<vmem>>, vector<2x17x16xbf16>
    %c0_32 = arith.constant 0 : index
    %c0_33 = arith.constant 0 : index
    %c160 = arith.constant 160 : index
    %44 = vector.load %arg1[%c0_32, %c0_33, %c160] : memref<2x17x192xbf16, #tpu.memory_space<vmem>>, vector<2x17x16xbf16>
    %cst_34 = arith.constant dense<0.000000e+00> : vector<2x17x17xf32>
    %45 = tpu.matmul %42, %43, %cst_34 {dimension_numbers = #tpu.dot_dimension_numbers<[2], [2], [1], [1], [0, 0, 0, 1, 1, 1], [0], [0]>} : vector<2x17x16xbf16>, vector<2x17x16xbf16>, vector<2x17x17xf32> -> vector<2x17x17xf32>
    %cst_35 = arith.constant dense<0xFF800000> : vector<2x17xf32>
    %46 = vector.multi_reduction <maximumf>, %45, %cst_35 [2] : vector<2x17x17xf32> to vector<2x17xf32>
    %47 = vector.shape_cast %46 : vector<2x17xf32> to vector<2x17x1xf32>
    %48 = vector.broadcast %47 : vector<2x17x1xf32> to vector<2x17x17xf32>
    %49 = arith.subf %45, %48 : vector<2x17x17xf32>
    %50 = math.exp %49 : vector<2x17x17xf32>
    %cst_36 = arith.constant dense<0.000000e+00> : vector<2x17xf32>
    %51 = vector.multi_reduction <add>, %50, %cst_36 [2] : vector<2x17x17xf32> to vector<2x17xf32>
    %52 = vector.shape_cast %51 : vector<2x17xf32> to vector<2x17x1xf32>
    %53 = tpu.reciprocal %52 {approx = true} : vector<2x17x1xf32> -> vector<2x17x1xf32>
    %54 = vector.broadcast %53 : vector<2x17x1xf32> to vector<2x17x17xf32>
    %55 = arith.mulf %50, %54 : vector<2x17x17xf32>
    %56 = arith.truncf %55 : vector<2x17x17xf32> to vector<2x17x17xbf16>
    %cst_37 = arith.constant dense<0.000000e+00> : vector<2x17x16xf32>
    %57 = tpu.matmul %56, %44, %cst_37 {dimension_numbers = #tpu.dot_dimension_numbers<[2], [1], [1], [2], [0, 0, 0, 1, 1, 2], [0], [0]>} : vector<2x17x17xbf16>, vector<2x17x16xbf16>, vector<2x17x16xf32> -> vector<2x17x16xf32>
    %58 = arith.truncf %57 : vector<2x17x16xf32> to vector<2x17x16xbf16>
    %c0_38 = arith.constant 0 : index
    %c0_39 = arith.constant 0 : index
    %c32_40 = arith.constant 32 : index
    %59 = vector.load %arg2[%c0_38, %c0_39, %c32_40] : memref<2x17x64xbf16, #tpu.memory_space<vmem>>, vector<2x17x16xbf16>
    tpu.vector_store %arg2[%c0_38, %c0_39, %c32_40], %58 {strides = array<i32>} : memref<2x17x64xbf16, #tpu.memory_space<vmem>>, vector<2x17x16xbf16>,
    %c0_41 = arith.constant 0 : index
    %c0_42 = arith.constant 0 : index
    %c48 = arith.constant 48 : index
    %60 = vector.load %arg1[%c0_41, %c0_42, %c48] : memref<2x17x192xbf16, #tpu.memory_space<vmem>>, vector<2x17x16xbf16>
    %cst_43 = arith.constant 2.500000e-01 : bf16
    %61 = vector.broadcast %cst_43 : bf16 to vector<2x17x16xbf16>
    %62 = arith.mulf %60, %61 : vector<2x17x16xbf16>
    %c0_44 = arith.constant 0 : index
    %c0_45 = arith.constant 0 : index
    %c112 = arith.constant 112 : index
    %63 = vector.load %arg1[%c0_44, %c0_45, %c112] : memref<2x17x192xbf16, #tpu.memory_space<vmem>>, vector<2x17x16xbf16>
    %c0_46 = arith.constant 0 : index
    %c0_47 = arith.constant 0 : index
    %c176 = arith.constant 176 : index
    %64 = vector.load %arg1[%c0_46, %c0_47, %c176] : memref<2x17x192xbf16, #tpu.memory_space<vmem>>, vector<2x17x16xbf16>
    %cst_48 = arith.constant dense<0.000000e+00> : vector<2x17x17xf32>
    %65 = tpu.matmul %62, %63, %cst_48 {dimension_numbers = #tpu.dot_dimension_numbers<[2], [2], [1], [1], [0, 0, 0, 1, 1, 1], [0], [0]>} : vector<2x17x16xbf16>, vector<2x17x16xbf16>, vector<2x17x17xf32> -> vector<2x17x17xf32>
    %cst_49 = arith.constant dense<0xFF800000> : vector<2x17xf32>
    %66 = vector.multi_reduction <maximumf>, %65, %cst_49 [2] : vector<2x17x17xf32> to vector<2x17xf32>
    %67 = vector.shape_cast %66 : vector<2x17xf32> to vector<2x17x1xf32>
    %68 = vector.broadcast %67 : vector<2x17x1xf32> to vector<2x17x17xf32>
    %69 = arith.subf %65, %68 : vector<2x17x17xf32>
    %70 = math.exp %69 : vector<2x17x17xf32>
    %cst_50 = arith.constant dense<0.000000e+00> : vector<2x17xf32>
    %71 = vector.multi_reduction <add>, %70, %cst_50 [2] : vector<2x17x17xf32> to vector<2x17xf32>
    %72 = vector.shape_cast %71 : vector<2x17xf32> to vector<2x17x1xf32>
    %73 = tpu.reciprocal %72 {approx = true} : vector<2x17x1xf32> -> vector<2x17x1xf32>
    %74 = vector.broadcast %73 : vector<2x17x1xf32> to vector<2x17x17xf32>
    %75 = arith.mulf %70, %74 : vector<2x17x17xf32>
    %76 = arith.truncf %75 : vector<2x17x17xf32> to vector<2x17x17xbf16>
    %cst_51 = arith.constant dense<0.000000e+00> : vector<2x17x16xf32>
    %77 = tpu.matmul %76, %64, %cst_51 {dimension_numbers = #tpu.dot_dimension_numbers<[2], [1], [1], [2], [0, 0, 0, 1, 1, 2], [0], [0]>} : vector<2x17x17xbf16>, vector<2x17x16xbf16>, vector<2x17x16xf32> -> vector<2x17x16xf32>
    %78 = arith.truncf %77 : vector<2x17x16xf32> to vector<2x17x16xbf16>
    %c0_52 = arith.constant 0 : index
    %c0_53 = arith.constant 0 : index
    %c48_54 = arith.constant 48 : index
    %79 = vector.load %arg2[%c0_52, %c0_53, %c48_54] : memref<2x17x64xbf16, #tpu.memory_space<vmem>>, vector<2x17x16xbf16>
    tpu.vector_store %arg2[%c0_52, %c0_53, %c48_54], %78 {strides = array<i32>} : memref<2x17x64xbf16, #tpu.memory_space<vmem>>, vector<2x17x16xbf16>,
    return
  }
  func.func @transform_0(%arg0: i32) -> (i32, i32, i32) {
    %c0_i32 = arith.constant 0 : i32
    %c0_i32_0 = arith.constant 0 : i32
    %c0_i32_1 = arith.constant 0 : i32
    return %arg0, %c0_i32, %c0_i32_0 : i32, i32, i32
  }
  func.func @transform_1(%arg0: i32) -> (i32, i32, i32) {
    %c0_i32 = arith.constant 0 : i32
    %c0_i32_0 = arith.constant 0 : i32
    %c0_i32_1 = arith.constant 0 : i32
    return %arg0, %c0_i32, %c0_i32_0 : i32, i32, i32
  }
}

module attributes {stable_mosaic.version = 11 : i64} {
  func.func @_fused_linear_kernel(%arg0: i32, %arg1: i32, %arg2: i32, %arg3: memref<34x64xbf16, #tpu.memory_space<vmem>>, %arg4: memref<64x64xbf16, #tpu.memory_space<vmem>>, %arg5: memref<34x64xbf16, #tpu.memory_space<vmem>>, %arg6: memref<1x64xbf16, #tpu.memory_space<vmem>>, %arg7: memref<34x64xbf16, #tpu.memory_space<vmem>>) attributes {dimension_semantics = [#tpu.dimension_semantics<parallel>, #tpu.dimension_semantics<parallel>, #tpu.dimension_semantics<arbitrary>], iteration_bounds = array<i64: 1, 1, 1>, scalar_prefetch = 0 : i64, scratch_operands = 0 : i64, tpu.core_type = #tpu.core_type<tc>, window_params = [{transform_indices = @transform_0, window_bounds = array<i64: 34, 64>}, {transform_indices = @transform_1, window_bounds = array<i64: 64, 64>}, {transform_indices = @transform_2, window_bounds = array<i64: 34, 64>}, {transform_indices = @transform_3, window_bounds = array<i64: 1, 64>}, {transform_indices = @transform_4, window_bounds = array<i64: 34, 64>}]} {
    %c0 = arith.constant 0 : index
    %c0_0 = arith.constant 0 : index
    %0 = vector.load %arg3[%c0, %c0_0] : memref<34x64xbf16, #tpu.memory_space<vmem>>, vector<34x64xbf16>
    %c0_1 = arith.constant 0 : index
    %c0_2 = arith.constant 0 : index
    %1 = vector.load %arg4[%c0_1, %c0_2] : memref<64x64xbf16, #tpu.memory_space<vmem>>, vector<64x64xbf16>
    %cst = arith.constant dense<0.000000e+00> : vector<34x64xf32>
    %2 = tpu.matmul %0, %1, %cst {dimension_numbers = #tpu.dot_dimension_numbers<[1], [0], [0], [1], [0, 0, 1, 1], [], []>} : vector<34x64xbf16>, vector<64x64xbf16>, vector<34x64xf32> -> vector<34x64xf32>
    %c0_3 = arith.constant 0 : index
    %c0_4 = arith.constant 0 : index
    %3 = vector.load %arg6[%c0_3, %c0_4] : memref<1x64xbf16, #tpu.memory_space<vmem>>, vector<1x64xbf16>
    %4 = arith.extf %3 : vector<1x64xbf16> to vector<1x64xf32>
    %5 = vector.broadcast %4 : vector<1x64xf32> to vector<34x64xf32>
    %6 = arith.addf %2, %5 : vector<34x64xf32>
    %c0_5 = arith.constant 0 : index
    %c0_6 = arith.constant 0 : index
    %7 = vector.load %arg5[%c0_5, %c0_6] : memref<34x64xbf16, #tpu.memory_space<vmem>>, vector<34x64xbf16>
    %8 = arith.extf %7 : vector<34x64xbf16> to vector<34x64xf32>
    %9 = arith.addf %6, %8 : vector<34x64xf32>
    %10 = arith.truncf %9 : vector<34x64xf32> to vector<34x64xbf16>
    %c0_7 = arith.constant 0 : index
    %c0_8 = arith.constant 0 : index
    %11 = vector.load %arg7[%c0_7, %c0_8] : memref<34x64xbf16, #tpu.memory_space<vmem>>, vector<34x64xbf16>
    tpu.vector_store %arg7[%c0_7, %c0_8], %10 {strides = array<i32>} : memref<34x64xbf16, #tpu.memory_space<vmem>>, vector<34x64xbf16>,
    return
  }
  func.func @transform_0(%arg0: i32, %arg1: i32, %arg2: i32) -> (i32, i32) {
    %c0_i32 = arith.constant 0 : i32
    return %arg0, %arg2 : i32, i32
  }
  func.func @transform_1(%arg0: i32, %arg1: i32, %arg2: i32) -> (i32, i32) {
    %c0_i32 = arith.constant 0 : i32
    return %arg2, %arg1 : i32, i32
  }
  func.func @transform_2(%arg0: i32, %arg1: i32, %arg2: i32) -> (i32, i32) {
    %c0_i32 = arith.constant 0 : i32
    return %arg0, %arg1 : i32, i32
  }
  func.func @transform_3(%arg0: i32, %arg1: i32, %arg2: i32) -> (i32, i32) {
    %c0_i32 = arith.constant 0 : i32
    %c0_i32_0 = arith.constant 0 : i32
    return %c0_i32, %arg1 : i32, i32
  }
  func.func @transform_4(%arg0: i32, %arg1: i32, %arg2: i32) -> (i32, i32) {
    %c0_i32 = arith.constant 0 : i32
    return %arg0, %arg1 : i32, i32
  }
}

module attributes {stable_mosaic.version = 11 : i64} {
  func.func @_fused_linear_kernel(%arg0: i32, %arg1: i32, %arg2: i32, %arg3: memref<34x64xbf16, #tpu.memory_space<vmem>>, %arg4: memref<64x256xbf16, #tpu.memory_space<vmem>>, %arg5: memref<1x256xbf16, #tpu.memory_space<vmem>>, %arg6: memref<1x64xbf16, #tpu.memory_space<vmem>>, %arg7: memref<1x64xbf16, #tpu.memory_space<vmem>>, %arg8: memref<34x256xbf16, #tpu.memory_space<vmem>>) attributes {dimension_semantics = [#tpu.dimension_semantics<parallel>, #tpu.dimension_semantics<parallel>, #tpu.dimension_semantics<arbitrary>], iteration_bounds = array<i64: 1, 1, 1>, scalar_prefetch = 0 : i64, scratch_operands = 0 : i64, tpu.core_type = #tpu.core_type<tc>, window_params = [{transform_indices = @transform_0, window_bounds = array<i64: 34, 64>}, {transform_indices = @transform_1, window_bounds = array<i64: 64, 256>}, {transform_indices = @transform_2, window_bounds = array<i64: 1, 256>}, {transform_indices = @transform_3, window_bounds = array<i64: 1, 64>}, {transform_indices = @transform_4, window_bounds = array<i64: 1, 64>}, {transform_indices = @transform_5, window_bounds = array<i64: 34, 256>}]} {
    %c0 = arith.constant 0 : index
    %c0_0 = arith.constant 0 : index
    %0 = vector.load %arg3[%c0, %c0_0] : memref<34x64xbf16, #tpu.memory_space<vmem>>, vector<34x64xbf16>
    %1 = arith.extf %0 : vector<34x64xbf16> to vector<34x64xf32>
    %cst = arith.constant dense<0.000000e+00> : vector<34xf32>
    %2 = vector.multi_reduction <add>, %1, %cst [1] : vector<34x64xf32> to vector<34xf32>
    %3 = vector.shape_cast %2 : vector<34xf32> to vector<34x1xf32>
    %cst_1 = arith.constant 6.400000e+01 : f32
    %4 = vector.broadcast %cst_1 : f32 to vector<34x1xf32>
    %5 = arith.divf %3, %4 : vector<34x1xf32>
    %6 = vector.broadcast %5 : vector<34x1xf32> to vector<34x64xf32>
    %7 = arith.subf %1, %6 : vector<34x64xf32>
    %8 = arith.mulf %7, %7 : vector<34x64xf32>
    %cst_2 = arith.constant dense<0.000000e+00> : vector<34xf32>
    %9 = vector.multi_reduction <add>, %8, %cst_2 [1] : vector<34x64xf32> to vector<34xf32>
    %10 = vector.shape_cast %9 : vector<34xf32> to vector<34x1xf32>
    %cst_3 = arith.constant 6.400000e+01 : f32
    %11 = vector.broadcast %cst_3 : f32 to vector<34x1xf32>
    %12 = arith.divf %10, %11 : vector<34x1xf32>
    %13 = vector.broadcast %5 : vector<34x1xf32> to vector<34x64xf32>
    %14 = arith.subf %1, %13 : vector<34x64xf32>
    %cst_4 = arith.constant 9.99999974E-6 : f32
    %15 = vector.broadcast %cst_4 : f32 to vector<34x1xf32>
    %16 = arith.addf %12, %15 : vector<34x1xf32>
    %17 = math.rsqrt %16 : vector<34x1xf32>
    %18 = vector.broadcast %17 : vector<34x1xf32> to vector<34x64xf32>
    %19 = arith.mulf %14, %18 : vector<34x64xf32>
    %c0_5 = arith.constant 0 : index
    %c0_6 = arith.constant 0 : index
    %20 = vector.load %arg6[%c0_5, %c0_6] : memref<1x64xbf16, #tpu.memory_space<vmem>>, vector<1x64xbf16>
    %21 = arith.extf %20 : vector<1x64xbf16> to vector<1x64xf32>
    %22 = vector.broadcast %21 : vector<1x64xf32> to vector<34x64xf32>
    %23 = arith.mulf %19, %22 : vector<34x64xf32>
    %c0_7 = arith.constant 0 : index
    %c0_8 = arith.constant 0 : index
    %24 = vector.load %arg7[%c0_7, %c0_8] : memref<1x64xbf16, #tpu.memory_space<vmem>>, vector<1x64xbf16>
    %25 = arith.extf %24 : vector<1x64xbf16> to vector<1x64xf32>
    %26 = vector.broadcast %25 : vector<1x64xf32> to vector<34x64xf32>
    %27 = arith.addf %23, %26 : vector<34x64xf32>
    %28 = arith.truncf %27 : vector<34x64xf32> to vector<34x64xbf16>
    %c0_9 = arith.constant 0 : index
    %c0_10 = arith.constant 0 : index
    %29 = vector.load %arg4[%c0_9, %c0_10] : memref<64x256xbf16, #tpu.memory_space<vmem>>, vector<64x256xbf16>
    %cst_11 = arith.constant dense<0.000000e+00> : vector<34x256xf32>
    %30 = tpu.matmul %28, %29, %cst_11 {dimension_numbers = #tpu.dot_dimension_numbers<[1], [0], [0], [1], [0, 0, 1, 1], [], []>} : vector<34x64xbf16>, vector<64x256xbf16>, vector<34x256xf32> -> vector<34x256xf32>
    %c0_12 = arith.constant 0 : index
    %c0_13 = arith.constant 0 : index
    %31 = vector.load %arg5[%c0_12, %c0_13] : memref<1x256xbf16, #tpu.memory_space<vmem>>, vector<1x256xbf16>
    %32 = arith.extf %31 : vector<1x256xbf16> to vector<1x256xf32>
    %33 = vector.broadcast %32 : vector<1x256xf32> to vector<34x256xf32>
    %34 = arith.addf %30, %33 : vector<34x256xf32>
    %cst_14 = arith.constant 1.702000e+00 : f32
    %35 = vector.broadcast %cst_14 : f32 to vector<34x256xf32>
    %36 = arith.mulf %35, %34 : vector<34x256xf32>
    %37 = arith.negf %36 : vector<34x256xf32>
    %38 = math.exp %37 : vector<34x256xf32>
    %cst_15 = arith.constant 1.000000e+00 : f32
    %39 = vector.broadcast %cst_15 : f32 to vector<34x256xf32>
    %40 = arith.addf %39, %38 : vector<34x256xf32>
    %41 = arith.divf %39, %40 : vector<34x256xf32>
    %42 = arith.mulf %34, %41 : vector<34x256xf32>
    %43 = arith.truncf %42 : vector<34x256xf32> to vector<34x256xbf16>
    %c0_16 = arith.constant 0 : index
    %c0_17 = arith.constant 0 : index
    %44 = vector.load %arg8[%c0_16, %c0_17] : memref<34x256xbf16, #tpu.memory_space<vmem>>, vector<34x256xbf16>
    tpu.vector_store %arg8[%c0_16, %c0_17], %43 {strides = array<i32>} : memref<34x256xbf16, #tpu.memory_space<vmem>>, vector<34x256xbf16>,
    return
  }
  func.func @transform_0(%arg0: i32, %arg1: i32, %arg2: i32) -> (i32, i32) {
    %c0_i32 = arith.constant 0 : i32
    return %arg0, %arg2 : i32, i32
  }
  func.func @transform_1(%arg0: i32, %arg1: i32, %arg2: i32) -> (i32, i32) {
    %c0_i32 = arith.constant 0 : i32
    return %arg2, %arg1 : i32, i32
  }
  func.func @transform_2(%arg0: i32, %arg1: i32, %arg2: i32) -> (i32, i32) {
    %c0_i32 = arith.constant 0 : i32
    %c0_i32_0 = arith.constant 0 : i32
    return %c0_i32, %arg1 : i32, i32
  }
  func.func @transform_3(%arg0: i32, %arg1: i32, %arg2: i32) -> (i32, i32) {
    %c0_i32 = arith.constant 0 : i32
    %c0_i32_0 = arith.constant 0 : i32
    return %c0_i32, %arg2 : i32, i32
  }
  func.func @transform_4(%arg0: i32, %arg1: i32, %arg2: i32) -> (i32, i32) {
    %c0_i32 = arith.constant 0 : i32
    %c0_i32_0 = arith.constant 0 : i32
    return %c0_i32, %arg2 : i32, i32
  }
  func.func @transform_5(%arg0: i32, %arg1: i32, %arg2: i32) -> (i32, i32) {
    %c0_i32 = arith.constant 0 : i32
    return %arg0, %arg1 : i32, i32
  }
}

module attributes {stable_mosaic.version = 11 : i64} {
  func.func @_fused_linear_kernel(%arg0: i32, %arg1: i32, %arg2: i32, %arg3: memref<34x256xbf16, #tpu.memory_space<vmem>>, %arg4: memref<256x64xbf16, #tpu.memory_space<vmem>>, %arg5: memref<34x64xbf16, #tpu.memory_space<vmem>>, %arg6: memref<1x64xbf16, #tpu.memory_space<vmem>>, %arg7: memref<34x64xbf16, #tpu.memory_space<vmem>>) attributes {dimension_semantics = [#tpu.dimension_semantics<parallel>, #tpu.dimension_semantics<parallel>, #tpu.dimension_semantics<arbitrary>], iteration_bounds = array<i64: 1, 1, 1>, scalar_prefetch = 0 : i64, scratch_operands = 0 : i64, tpu.core_type = #tpu.core_type<tc>, window_params = [{transform_indices = @transform_0, window_bounds = array<i64: 34, 256>}, {transform_indices = @transform_1, window_bounds = array<i64: 256, 64>}, {transform_indices = @transform_2, window_bounds = array<i64: 34, 64>}, {transform_indices = @transform_3, window_bounds = array<i64: 1, 64>}, {transform_indices = @transform_4, window_bounds = array<i64: 34, 64>}]} {
    %c0 = arith.constant 0 : index
    %c0_0 = arith.constant 0 : index
    %0 = vector.load %arg3[%c0, %c0_0] : memref<34x256xbf16, #tpu.memory_space<vmem>>, vector<34x256xbf16>
    %c0_1 = arith.constant 0 : index
    %c0_2 = arith.constant 0 : index
    %1 = vector.load %arg4[%c0_1, %c0_2] : memref<256x64xbf16, #tpu.memory_space<vmem>>, vector<256x64xbf16>
    %cst = arith.constant dense<0.000000e+00> : vector<34x64xf32>
    %2 = tpu.matmul %0, %1, %cst {dimension_numbers = #tpu.dot_dimension_numbers<[1], [0], [0], [1], [0, 0, 1, 1], [], []>} : vector<34x256xbf16>, vector<256x64xbf16>, vector<34x64xf32> -> vector<34x64xf32>
    %c0_3 = arith.constant 0 : index
    %c0_4 = arith.constant 0 : index
    %3 = vector.load %arg6[%c0_3, %c0_4] : memref<1x64xbf16, #tpu.memory_space<vmem>>, vector<1x64xbf16>
    %4 = arith.extf %3 : vector<1x64xbf16> to vector<1x64xf32>
    %5 = vector.broadcast %4 : vector<1x64xf32> to vector<34x64xf32>
    %6 = arith.addf %2, %5 : vector<34x64xf32>
    %c0_5 = arith.constant 0 : index
    %c0_6 = arith.constant 0 : index
    %7 = vector.load %arg5[%c0_5, %c0_6] : memref<34x64xbf16, #tpu.memory_space<vmem>>, vector<34x64xbf16>
    %8 = arith.extf %7 : vector<34x64xbf16> to vector<34x64xf32>
    %9 = arith.addf %6, %8 : vector<34x64xf32>
    %10 = arith.truncf %9 : vector<34x64xf32> to vector<34x64xbf16>
    %c0_7 = arith.constant 0 : index
    %c0_8 = arith.constant 0 : index
    %11 = vector.load %arg7[%c0_7, %c0_8] : memref<34x64xbf16, #tpu.memory_space<vmem>>, vector<34x64xbf16>
    tpu.vector_store %arg7[%c0_7, %c0_8], %10 {strides = array<i32>} : memref<34x64xbf16, #tpu.memory_space<vmem>>, vector<34x64xbf16>,
    return
  }
  func.func @transform_0(%arg0: i32, %arg1: i32, %arg2: i32) -> (i32, i32) {
    %c0_i32 = arith.constant 0 : i32
    return %arg0, %arg2 : i32, i32
  }
  func.func @transform_1(%arg0: i32, %arg1: i32, %arg2: i32) -> (i32, i32) {
    %c0_i32 = arith.constant 0 : i32
    return %arg2, %arg1 : i32, i32
  }
  func.func @transform_2(%arg0: i32, %arg1: i32, %arg2: i32) -> (i32, i32) {
    %c0_i32 = arith.constant 0 : i32
    return %arg0, %arg1 : i32, i32
  }
  func.func @transform_3(%arg0: i32, %arg1: i32, %arg2: i32) -> (i32, i32) {
    %c0_i32 = arith.constant 0 : i32
    %c0_i32_0 = arith.constant 0 : i32
    return %c0_i32, %arg1 : i32, i32
  }
  func.func @transform_4(%arg0: i32, %arg1: i32, %arg2: i32) -> (i32, i32) {
    %c0_i32 = arith.constant 0 : i32
    return %arg0, %arg1 : i32, i32
  }
}

module attributes {stable_mosaic.version = 11 : i64} {
  func.func @_fused_linear_kernel(%arg0: i32, %arg1: i32, %arg2: i32, %arg3: memref<2x64xbf16, #tpu.memory_space<vmem>>, %arg4: memref<64x64xbf16, #tpu.memory_space<vmem>>, %arg5: memref<1x64xbf16, #tpu.memory_space<vmem>>, %arg6: memref<1x64xbf16, #tpu.memory_space<vmem>>, %arg7: memref<2x64xf32, #tpu.memory_space<vmem>>) attributes {dimension_semantics = [#tpu.dimension_semantics<parallel>, #tpu.dimension_semantics<parallel>, #tpu.dimension_semantics<arbitrary>], iteration_bounds = array<i64: 1, 1, 1>, scalar_prefetch = 0 : i64, scratch_operands = 0 : i64, tpu.core_type = #tpu.core_type<tc>, window_params = [{transform_indices = @transform_0, window_bounds = array<i64: 2, 64>}, {transform_indices = @transform_1, window_bounds = array<i64: 64, 64>}, {transform_indices = @transform_2, window_bounds = array<i64: 1, 64>}, {transform_indices = @transform_3, window_bounds = array<i64: 1, 64>}, {transform_indices = @transform_4, window_bounds = array<i64: 2, 64>}]} {
    %c0 = arith.constant 0 : index
    %c0_0 = arith.constant 0 : index
    %0 = vector.load %arg3[%c0, %c0_0] : memref<2x64xbf16, #tpu.memory_space<vmem>>, vector<2x64xbf16>
    %1 = arith.extf %0 : vector<2x64xbf16> to vector<2x64xf32>
    %cst = arith.constant dense<0.000000e+00> : vector<2xf32>
    %2 = vector.multi_reduction <add>, %1, %cst [1] : vector<2x64xf32> to vector<2xf32>
    %3 = vector.shape_cast %2 : vector<2xf32> to vector<2x1xf32>
    %cst_1 = arith.constant 6.400000e+01 : f32
    %4 = vector.broadcast %cst_1 : f32 to vector<2x1xf32>
    %5 = arith.divf %3, %4 : vector<2x1xf32>
    %6 = vector.broadcast %5 : vector<2x1xf32> to vector<2x64xf32>
    %7 = arith.subf %1, %6 : vector<2x64xf32>
    %8 = arith.mulf %7, %7 : vector<2x64xf32>
    %cst_2 = arith.constant dense<0.000000e+00> : vector<2xf32>
    %9 = vector.multi_reduction <add>, %8, %cst_2 [1] : vector<2x64xf32> to vector<2xf32>
    %10 = vector.shape_cast %9 : vector<2xf32> to vector<2x1xf32>
    %cst_3 = arith.constant 6.400000e+01 : f32
    %11 = vector.broadcast %cst_3 : f32 to vector<2x1xf32>
    %12 = arith.divf %10, %11 : vector<2x1xf32>
    %13 = vector.broadcast %5 : vector<2x1xf32> to vector<2x64xf32>
    %14 = arith.subf %1, %13 : vector<2x64xf32>
    %cst_4 = arith.constant 9.99999974E-6 : f32
    %15 = vector.broadcast %cst_4 : f32 to vector<2x1xf32>
    %16 = arith.addf %12, %15 : vector<2x1xf32>
    %17 = math.rsqrt %16 : vector<2x1xf32>
    %18 = vector.broadcast %17 : vector<2x1xf32> to vector<2x64xf32>
    %19 = arith.mulf %14, %18 : vector<2x64xf32>
    %c0_5 = arith.constant 0 : index
    %c0_6 = arith.constant 0 : index
    %20 = vector.load %arg5[%c0_5, %c0_6] : memref<1x64xbf16, #tpu.memory_space<vmem>>, vector<1x64xbf16>
    %21 = arith.extf %20 : vector<1x64xbf16> to vector<1x64xf32>
    %22 = vector.broadcast %21 : vector<1x64xf32> to vector<2x64xf32>
    %23 = arith.mulf %19, %22 : vector<2x64xf32>
    %c0_7 = arith.constant 0 : index
    %c0_8 = arith.constant 0 : index
    %24 = vector.load %arg6[%c0_7, %c0_8] : memref<1x64xbf16, #tpu.memory_space<vmem>>, vector<1x64xbf16>
    %25 = arith.extf %24 : vector<1x64xbf16> to vector<1x64xf32>
    %26 = vector.broadcast %25 : vector<1x64xf32> to vector<2x64xf32>
    %27 = arith.addf %23, %26 : vector<2x64xf32>
    %28 = arith.truncf %27 : vector<2x64xf32> to vector<2x64xbf16>
    %c0_9 = arith.constant 0 : index
    %c0_10 = arith.constant 0 : index
    %29 = vector.load %arg4[%c0_9, %c0_10] : memref<64x64xbf16, #tpu.memory_space<vmem>>, vector<64x64xbf16>
    %cst_11 = arith.constant dense<0.000000e+00> : vector<2x64xf32>
    %30 = tpu.matmul %28, %29, %cst_11 {dimension_numbers = #tpu.dot_dimension_numbers<[1], [0], [0], [1], [0, 0, 1, 1], [], []>} : vector<2x64xbf16>, vector<64x64xbf16>, vector<2x64xf32> -> vector<2x64xf32>
    %31 = arith.mulf %30, %30 : vector<2x64xf32>
    %cst_12 = arith.constant dense<0.000000e+00> : vector<2xf32>
    %32 = vector.multi_reduction <add>, %31, %cst_12 [1] : vector<2x64xf32> to vector<2xf32>
    %33 = vector.shape_cast %32 : vector<2xf32> to vector<2x1xf32>
    %cst_13 = arith.constant 1.000000e-24 : f32
    %34 = vector.broadcast %cst_13 : f32 to vector<2x1xf32>
    %35 = arith.maximumf %33, %34 : vector<2x1xf32>
    %36 = math.rsqrt %35 : vector<2x1xf32>
    %37 = vector.broadcast %36 : vector<2x1xf32> to vector<2x64xf32>
    %38 = arith.mulf %30, %37 : vector<2x64xf32>
    %c0_14 = arith.constant 0 : index
    %c0_15 = arith.constant 0 : index
    %39 = vector.load %arg7[%c0_14, %c0_15] : memref<2x64xf32, #tpu.memory_space<vmem>>, vector<2x64xf32>
    tpu.vector_store %arg7[%c0_14, %c0_15], %38 {strides = array<i32>} : memref<2x64xf32, #tpu.memory_space<vmem>>, vector<2x64xf32>,
    return
  }
  func.func @transform_0(%arg0: i32, %arg1: i32, %arg2: i32) -> (i32, i32) {
    %c0_i32 = arith.constant 0 : i32
    return %arg0, %arg2 : i32, i32
  }
  func.func @transform_1(%arg0: i32, %arg1: i32, %arg2: i32) -> (i32, i32) {
    %c0_i32 = arith.constant 0 : i32
    return %arg2, %arg1 : i32, i32
  }
  func.func @transform_2(%arg0: i32, %arg1: i32, %arg2: i32) -> (i32, i32) {
    %c0_i32 = arith.constant 0 : i32
    %c0_i32_0 = arith.constant 0 : i32
    return %c0_i32, %arg2 : i32, i32
  }
  func.func @transform_3(%arg0: i32, %arg1: i32, %arg2: i32) -> (i32, i32) {
    %c0_i32 = arith.constant 0 : i32
    %c0_i32_0 = arith.constant 0 : i32
    return %c0_i32, %arg2 : i32, i32
  }
  func.func @transform_4(%arg0: i32, %arg1: i32, %arg2: i32) -> (i32, i32) {
    %c0_i32 = arith.constant 0 : i32
    return %arg0, %arg1 : i32, i32
  }
}

module attributes {stable_mosaic.version = 11 : i64} {
  func.func @_fused_linear_kernel(%arg0: i32, %arg1: i32, %arg2: i32, %arg3: memref<96x64xbf16, #tpu.memory_space<vmem>>, %arg4: memref<64x192xbf16, #tpu.memory_space<vmem>>, %arg5: memref<1x192xbf16, #tpu.memory_space<vmem>>, %arg6: memref<1x64xbf16, #tpu.memory_space<vmem>>, %arg7: memref<1x64xbf16, #tpu.memory_space<vmem>>, %arg8: memref<96x192xbf16, #tpu.memory_space<vmem>>) attributes {dimension_semantics = [#tpu.dimension_semantics<parallel>, #tpu.dimension_semantics<parallel>, #tpu.dimension_semantics<arbitrary>], iteration_bounds = array<i64: 1, 1, 1>, scalar_prefetch = 0 : i64, scratch_operands = 0 : i64, tpu.core_type = #tpu.core_type<tc>, window_params = [{transform_indices = @transform_0, window_bounds = array<i64: 96, 64>}, {transform_indices = @transform_1, window_bounds = array<i64: 64, 192>}, {transform_indices = @transform_2, window_bounds = array<i64: 1, 192>}, {transform_indices = @transform_3, window_bounds = array<i64: 1, 64>}, {transform_indices = @transform_4, window_bounds = array<i64: 1, 64>}, {transform_indices = @transform_5, window_bounds = array<i64: 96, 192>}]} {
    %c0 = arith.constant 0 : index
    %c0_0 = arith.constant 0 : index
    %0 = vector.load %arg3[%c0, %c0_0] : memref<96x64xbf16, #tpu.memory_space<vmem>>, vector<96x64xbf16>
    %1 = arith.extf %0 : vector<96x64xbf16> to vector<96x64xf32>
    %cst = arith.constant dense<0.000000e+00> : vector<96xf32>
    %2 = vector.multi_reduction <add>, %1, %cst [1] : vector<96x64xf32> to vector<96xf32>
    %3 = vector.shape_cast %2 : vector<96xf32> to vector<96x1xf32>
    %cst_1 = arith.constant 6.400000e+01 : f32
    %4 = vector.broadcast %cst_1 : f32 to vector<96x1xf32>
    %5 = arith.divf %3, %4 : vector<96x1xf32>
    %6 = vector.broadcast %5 : vector<96x1xf32> to vector<96x64xf32>
    %7 = arith.subf %1, %6 : vector<96x64xf32>
    %8 = arith.mulf %7, %7 : vector<96x64xf32>
    %cst_2 = arith.constant dense<0.000000e+00> : vector<96xf32>
    %9 = vector.multi_reduction <add>, %8, %cst_2 [1] : vector<96x64xf32> to vector<96xf32>
    %10 = vector.shape_cast %9 : vector<96xf32> to vector<96x1xf32>
    %cst_3 = arith.constant 6.400000e+01 : f32
    %11 = vector.broadcast %cst_3 : f32 to vector<96x1xf32>
    %12 = arith.divf %10, %11 : vector<96x1xf32>
    %13 = vector.broadcast %5 : vector<96x1xf32> to vector<96x64xf32>
    %14 = arith.subf %1, %13 : vector<96x64xf32>
    %cst_4 = arith.constant 9.99999974E-6 : f32
    %15 = vector.broadcast %cst_4 : f32 to vector<96x1xf32>
    %16 = arith.addf %12, %15 : vector<96x1xf32>
    %17 = math.rsqrt %16 : vector<96x1xf32>
    %18 = vector.broadcast %17 : vector<96x1xf32> to vector<96x64xf32>
    %19 = arith.mulf %14, %18 : vector<96x64xf32>
    %c0_5 = arith.constant 0 : index
    %c0_6 = arith.constant 0 : index
    %20 = vector.load %arg6[%c0_5, %c0_6] : memref<1x64xbf16, #tpu.memory_space<vmem>>, vector<1x64xbf16>
    %21 = arith.extf %20 : vector<1x64xbf16> to vector<1x64xf32>
    %22 = vector.broadcast %21 : vector<1x64xf32> to vector<96x64xf32>
    %23 = arith.mulf %19, %22 : vector<96x64xf32>
    %c0_7 = arith.constant 0 : index
    %c0_8 = arith.constant 0 : index
    %24 = vector.load %arg7[%c0_7, %c0_8] : memref<1x64xbf16, #tpu.memory_space<vmem>>, vector<1x64xbf16>
    %25 = arith.extf %24 : vector<1x64xbf16> to vector<1x64xf32>
    %26 = vector.broadcast %25 : vector<1x64xf32> to vector<96x64xf32>
    %27 = arith.addf %23, %26 : vector<96x64xf32>
    %28 = arith.truncf %27 : vector<96x64xf32> to vector<96x64xbf16>
    %c0_9 = arith.constant 0 : index
    %c0_10 = arith.constant 0 : index
    %29 = vector.load %arg4[%c0_9, %c0_10] : memref<64x192xbf16, #tpu.memory_space<vmem>>, vector<64x192xbf16>
    %cst_11 = arith.constant dense<0.000000e+00> : vector<96x192xf32>
    %30 = tpu.matmul %28, %29, %cst_11 {dimension_numbers = #tpu.dot_dimension_numbers<[1], [0], [0], [1], [0, 0, 1, 1], [], []>} : vector<96x64xbf16>, vector<64x192xbf16>, vector<96x192xf32> -> vector<96x192xf32>
    %c0_12 = arith.constant 0 : index
    %c0_13 = arith.constant 0 : index
    %31 = vector.load %arg5[%c0_12, %c0_13] : memref<1x192xbf16, #tpu.memory_space<vmem>>, vector<1x192xbf16>
    %32 = arith.extf %31 : vector<1x192xbf16> to vector<1x192xf32>
    %33 = vector.broadcast %32 : vector<1x192xf32> to vector<96x192xf32>
    %34 = arith.addf %30, %33 : vector<96x192xf32>
    %35 = arith.truncf %34 : vector<96x192xf32> to vector<96x192xbf16>
    %c0_14 = arith.constant 0 : index
    %c0_15 = arith.constant 0 : index
    %36 = vector.load %arg8[%c0_14, %c0_15] : memref<96x192xbf16, #tpu.memory_space<vmem>>, vector<96x192xbf16>
    tpu.vector_store %arg8[%c0_14, %c0_15], %35 {strides = array<i32>} : memref<96x192xbf16, #tpu.memory_space<vmem>>, vector<96x192xbf16>,
    return
  }
  func.func @transform_0(%arg0: i32, %arg1: i32, %arg2: i32) -> (i32, i32) {
    %c0_i32 = arith.constant 0 : i32
    return %arg0, %arg2 : i32, i32
  }
  func.func @transform_1(%arg0: i32, %arg1: i32, %arg2: i32) -> (i32, i32) {
    %c0_i32 = arith.constant 0 : i32
    return %arg2, %arg1 : i32, i32
  }
  func.func @transform_2(%arg0: i32, %arg1: i32, %arg2: i32) -> (i32, i32) {
    %c0_i32 = arith.constant 0 : i32
    %c0_i32_0 = arith.constant 0 : i32
    return %c0_i32, %arg1 : i32, i32
  }
  func.func @transform_3(%arg0: i32, %arg1: i32, %arg2: i32) -> (i32, i32) {
    %c0_i32 = arith.constant 0 : i32
    %c0_i32_0 = arith.constant 0 : i32
    return %c0_i32, %arg2 : i32, i32
  }
  func.func @transform_4(%arg0: i32, %arg1: i32, %arg2: i32) -> (i32, i32) {
    %c0_i32 = arith.constant 0 : i32
    %c0_i32_0 = arith.constant 0 : i32
    return %c0_i32, %arg2 : i32, i32
  }
  func.func @transform_5(%arg0: i32, %arg1: i32, %arg2: i32) -> (i32, i32) {
    %c0_i32 = arith.constant 0 : i32
    return %arg0, %arg1 : i32, i32
  }
}

module attributes {stable_mosaic.version = 11 : i64} {
  func.func @_fused_linear_kernel(%arg0: i32, %arg1: i32, %arg2: i32, %arg3: memref<96x64xbf16, #tpu.memory_space<vmem>>, %arg4: memref<64x64xbf16, #tpu.memory_space<vmem>>, %arg5: memref<96x64xbf16, #tpu.memory_space<vmem>>, %arg6: memref<1x64xbf16, #tpu.memory_space<vmem>>, %arg7: memref<96x64xbf16, #tpu.memory_space<vmem>>) attributes {dimension_semantics = [#tpu.dimension_semantics<parallel>, #tpu.dimension_semantics<parallel>, #tpu.dimension_semantics<arbitrary>], iteration_bounds = array<i64: 1, 1, 1>, scalar_prefetch = 0 : i64, scratch_operands = 0 : i64, tpu.core_type = #tpu.core_type<tc>, window_params = [{transform_indices = @transform_0, window_bounds = array<i64: 96, 64>}, {transform_indices = @transform_1, window_bounds = array<i64: 64, 64>}, {transform_indices = @transform_2, window_bounds = array<i64: 96, 64>}, {transform_indices = @transform_3, window_bounds = array<i64: 1, 64>}, {transform_indices = @transform_4, window_bounds = array<i64: 96, 64>}]} {
    %c0 = arith.constant 0 : index
    %c0_0 = arith.constant 0 : index
    %0 = vector.load %arg3[%c0, %c0_0] : memref<96x64xbf16, #tpu.memory_space<vmem>>, vector<96x64xbf16>
    %c0_1 = arith.constant 0 : index
    %c0_2 = arith.constant 0 : index
    %1 = vector.load %arg4[%c0_1, %c0_2] : memref<64x64xbf16, #tpu.memory_space<vmem>>, vector<64x64xbf16>
    %cst = arith.constant dense<0.000000e+00> : vector<96x64xf32>
    %2 = tpu.matmul %0, %1, %cst {dimension_numbers = #tpu.dot_dimension_numbers<[1], [0], [0], [1], [0, 0, 1, 1], [], []>} : vector<96x64xbf16>, vector<64x64xbf16>, vector<96x64xf32> -> vector<96x64xf32>
    %c0_3 = arith.constant 0 : index
    %c0_4 = arith.constant 0 : index
    %3 = vector.load %arg6[%c0_3, %c0_4] : memref<1x64xbf16, #tpu.memory_space<vmem>>, vector<1x64xbf16>
    %4 = arith.extf %3 : vector<1x64xbf16> to vector<1x64xf32>
    %5 = vector.broadcast %4 : vector<1x64xf32> to vector<96x64xf32>
    %6 = arith.addf %2, %5 : vector<96x64xf32>
    %c0_5 = arith.constant 0 : index
    %c0_6 = arith.constant 0 : index
    %7 = vector.load %arg5[%c0_5, %c0_6] : memref<96x64xbf16, #tpu.memory_space<vmem>>, vector<96x64xbf16>
    %8 = arith.extf %7 : vector<96x64xbf16> to vector<96x64xf32>
    %9 = arith.addf %6, %8 : vector<96x64xf32>
    %10 = arith.truncf %9 : vector<96x64xf32> to vector<96x64xbf16>
    %c0_7 = arith.constant 0 : index
    %c0_8 = arith.constant 0 : index
    %11 = vector.load %arg7[%c0_7, %c0_8] : memref<96x64xbf16, #tpu.memory_space<vmem>>, vector<96x64xbf16>
    tpu.vector_store %arg7[%c0_7, %c0_8], %10 {strides = array<i32>} : memref<96x64xbf16, #tpu.memory_space<vmem>>, vector<96x64xbf16>,
    return
  }
  func.func @transform_0(%arg0: i32, %arg1: i32, %arg2: i32) -> (i32, i32) {
    %c0_i32 = arith.constant 0 : i32
    return %arg0, %arg2 : i32, i32
  }
  func.func @transform_1(%arg0: i32, %arg1: i32, %arg2: i32) -> (i32, i32) {
    %c0_i32 = arith.constant 0 : i32
    return %arg2, %arg1 : i32, i32
  }
  func.func @transform_2(%arg0: i32, %arg1: i32, %arg2: i32) -> (i32, i32) {
    %c0_i32 = arith.constant 0 : i32
    return %arg0, %arg1 : i32, i32
  }
  func.func @transform_3(%arg0: i32, %arg1: i32, %arg2: i32) -> (i32, i32) {
    %c0_i32 = arith.constant 0 : i32
    %c0_i32_0 = arith.constant 0 : i32
    return %c0_i32, %arg1 : i32, i32
  }
  func.func @transform_4(%arg0: i32, %arg1: i32, %arg2: i32) -> (i32, i32) {
    %c0_i32 = arith.constant 0 : i32
    return %arg0, %arg1 : i32, i32
  }
}

module attributes {stable_mosaic.version = 11 : i64} {
  func.func @_mha_kernel(%arg0: i32, %arg1: memref<2x16x192xbf16, #tpu.memory_space<vmem>>, %arg2: memref<2x16x64xbf16, #tpu.memory_space<vmem>>) attributes {dimension_semantics = [#tpu.dimension_semantics<parallel>], iteration_bounds = array<i64: 3>, scalar_prefetch = 0 : i64, scratch_operands = 0 : i64, tpu.core_type = #tpu.core_type<tc>, window_params = [{transform_indices = @transform_0, window_bounds = array<i64: 2, 16, 192>}, {transform_indices = @transform_1, window_bounds = array<i64: 2, 16, 64>}]} {
    %0 = tpu.iota {dimensions = array<i32: 0>} : vector<16x16xi32>
    %1 = tpu.iota {dimensions = array<i32: 1>} : vector<16x16xi32>
    %2 = arith.cmpi sle, %1, %0 : vector<16x16xi32>
    %3 = vector.shape_cast %2 : vector<16x16xi1> to vector<1x16x16xi1>
    %c0 = arith.constant 0 : index
    %c0_0 = arith.constant 0 : index
    %c0_1 = arith.constant 0 : index
    %4 = vector.load %arg1[%c0, %c0_0, %c0_1] : memref<2x16x192xbf16, #tpu.memory_space<vmem>>, vector<2x16x16xbf16>
    %cst = arith.constant 2.500000e-01 : bf16
    %5 = vector.broadcast %cst : bf16 to vector<2x16x16xbf16>
    %6 = arith.mulf %4, %5 : vector<2x16x16xbf16>
    %c0_2 = arith.constant 0 : index
    %c0_3 = arith.constant 0 : index
    %c64 = arith.constant 64 : index
    %7 = vector.load %arg1[%c0_2, %c0_3, %c64] : memref<2x16x192xbf16, #tpu.memory_space<vmem>>, vector<2x16x16xbf16>
    %c0_4 = arith.constant 0 : index
    %c0_5 = arith.constant 0 : index
    %c128 = arith.constant 128 : index
    %8 = vector.load %arg1[%c0_4, %c0_5, %c128] : memref<2x16x192xbf16, #tpu.memory_space<vmem>>, vector<2x16x16xbf16>
    %cst_6 = arith.constant dense<0.000000e+00> : vector<2x16x16xf32>
    %9 = tpu.matmul %6, %7, %cst_6 {dimension_numbers = #tpu.dot_dimension_numbers<[2], [2], [1], [1], [0, 0, 0, 1, 1, 1], [0], [0]>} : vector<2x16x16xbf16>, vector<2x16x16xbf16>, vector<2x16x16xf32> -> vector<2x16x16xf32>
    %cst_7 = arith.constant -1.000000e+30 : f32
    %10 = vector.shape_cast %3 : vector<1x16x16xi1> to vector<1x16x16xi1>
    %11 = vector.broadcast %10 : vector<1x16x16xi1> to vector<2x16x16xi1>
    %12 = vector.broadcast %cst_7 : f32 to vector<2x16x16xf32>
    %13 = arith.select %11, %9, %12 : vector<2x16x16xi1>, vector<2x16x16xf32>
    %cst_8 = arith.constant dense<0xFF800000> : vector<2x16xf32>
    %14 = vector.multi_reduction <maximumf>, %13, %cst_8 [2] : vector<2x16x16xf32> to vector<2x16xf32>
    %15 = vector.shape_cast %14 : vector<2x16xf32> to vector<2x16x1xf32>
    %16 = vector.broadcast %15 : vector<2x16x1xf32> to vector<2x16x16xf32>
    %17 = arith.subf %13, %16 : vector<2x16x16xf32>
    %18 = math.exp %17 : vector<2x16x16xf32>
    %cst_9 = arith.constant dense<0.000000e+00> : vector<2x16xf32>
    %19 = vector.multi_reduction <add>, %18, %cst_9 [2] : vector<2x16x16xf32> to vector<2x16xf32>
    %20 = vector.shape_cast %19 : vector<2x16xf32> to vector<2x16x1xf32>
    %21 = tpu.reciprocal %20 {approx = true} : vector<2x16x1xf32> -> vector<2x16x1xf32>
    %22 = vector.broadcast %21 : vector<2x16x1xf32> to vector<2x16x16xf32>
    %23 = arith.mulf %18, %22 : vector<2x16x16xf32>
    %24 = arith.truncf %23 : vector<2x16x16xf32> to vector<2x16x16xbf16>
    %cst_10 = arith.constant dense<0.000000e+00> : vector<2x16x16xf32>
    %25 = tpu.matmul %24, %8, %cst_10 {dimension_numbers = #tpu.dot_dimension_numbers<[2], [1], [1], [2], [0, 0, 0, 1, 1, 2], [0], [0]>} : vector<2x16x16xbf16>, vector<2x16x16xbf16>, vector<2x16x16xf32> -> vector<2x16x16xf32>
    %26 = arith.truncf %25 : vector<2x16x16xf32> to vector<2x16x16xbf16>
    %c0_11 = arith.constant 0 : index
    %c0_12 = arith.constant 0 : index
    %c0_13 = arith.constant 0 : index
    %27 = vector.load %arg2[%c0_11, %c0_12, %c0_13] : memref<2x16x64xbf16, #tpu.memory_space<vmem>>, vector<2x16x16xbf16>
    tpu.vector_store %arg2[%c0_11, %c0_12, %c0_13], %26 {strides = array<i32>} : memref<2x16x64xbf16, #tpu.memory_space<vmem>>, vector<2x16x16xbf16>,
    %c0_14 = arith.constant 0 : index
    %c0_15 = arith.constant 0 : index
    %c16 = arith.constant 16 : index
    %28 = vector.load %arg1[%c0_14, %c0_15, %c16] : memref<2x16x192xbf16, #tpu.memory_space<vmem>>, vector<2x16x16xbf16>
    %cst_16 = arith.constant 2.500000e-01 : bf16
    %29 = vector.broadcast %cst_16 : bf16 to vector<2x16x16xbf16>
    %30 = arith.mulf %28, %29 : vector<2x16x16xbf16>
    %c0_17 = arith.constant 0 : index
    %c0_18 = arith.constant 0 : index
    %c80 = arith.constant 80 : index
    %31 = vector.load %arg1[%c0_17, %c0_18, %c80] : memref<2x16x192xbf16, #tpu.memory_space<vmem>>, vector<2x16x16xbf16>
    %c0_19 = arith.constant 0 : index
    %c0_20 = arith.constant 0 : index
    %c144 = arith.constant 144 : index
    %32 = vector.load %arg1[%c0_19, %c0_20, %c144] : memref<2x16x192xbf16, #tpu.memory_space<vmem>>, vector<2x16x16xbf16>
    %cst_21 = arith.constant dense<0.000000e+00> : vector<2x16x16xf32>
    %33 = tpu.matmul %30, %31, %cst_21 {dimension_numbers = #tpu.dot_dimension_numbers<[2], [2], [1], [1], [0, 0, 0, 1, 1, 1], [0], [0]>} : vector<2x16x16xbf16>, vector<2x16x16xbf16>, vector<2x16x16xf32> -> vector<2x16x16xf32>
    %cst_22 = arith.constant -1.000000e+30 : f32
    %34 = vector.shape_cast %3 : vector<1x16x16xi1> to vector<1x16x16xi1>
    %35 = vector.broadcast %34 : vector<1x16x16xi1> to vector<2x16x16xi1>
    %36 = vector.broadcast %cst_22 : f32 to vector<2x16x16xf32>
    %37 = arith.select %35, %33, %36 : vector<2x16x16xi1>, vector<2x16x16xf32>
    %cst_23 = arith.constant dense<0xFF800000> : vector<2x16xf32>
    %38 = vector.multi_reduction <maximumf>, %37, %cst_23 [2] : vector<2x16x16xf32> to vector<2x16xf32>
    %39 = vector.shape_cast %38 : vector<2x16xf32> to vector<2x16x1xf32>
    %40 = vector.broadcast %39 : vector<2x16x1xf32> to vector<2x16x16xf32>
    %41 = arith.subf %37, %40 : vector<2x16x16xf32>
    %42 = math.exp %41 : vector<2x16x16xf32>
    %cst_24 = arith.constant dense<0.000000e+00> : vector<2x16xf32>
    %43 = vector.multi_reduction <add>, %42, %cst_24 [2] : vector<2x16x16xf32> to vector<2x16xf32>
    %44 = vector.shape_cast %43 : vector<2x16xf32> to vector<2x16x1xf32>
    %45 = tpu.reciprocal %44 {approx = true} : vector<2x16x1xf32> -> vector<2x16x1xf32>
    %46 = vector.broadcast %45 : vector<2x16x1xf32> to vector<2x16x16xf32>
    %47 = arith.mulf %42, %46 : vector<2x16x16xf32>
    %48 = arith.truncf %47 : vector<2x16x16xf32> to vector<2x16x16xbf16>
    %cst_25 = arith.constant dense<0.000000e+00> : vector<2x16x16xf32>
    %49 = tpu.matmul %48, %32, %cst_25 {dimension_numbers = #tpu.dot_dimension_numbers<[2], [1], [1], [2], [0, 0, 0, 1, 1, 2], [0], [0]>} : vector<2x16x16xbf16>, vector<2x16x16xbf16>, vector<2x16x16xf32> -> vector<2x16x16xf32>
    %50 = arith.truncf %49 : vector<2x16x16xf32> to vector<2x16x16xbf16>
    %c0_26 = arith.constant 0 : index
    %c0_27 = arith.constant 0 : index
    %c16_28 = arith.constant 16 : index
    %51 = vector.load %arg2[%c0_26, %c0_27, %c16_28] : memref<2x16x64xbf16, #tpu.memory_space<vmem>>, vector<2x16x16xbf16>
    tpu.vector_store %arg2[%c0_26, %c0_27, %c16_28], %50 {strides = array<i32>} : memref<2x16x64xbf16, #tpu.memory_space<vmem>>, vector<2x16x16xbf16>,
    %c0_29 = arith.constant 0 : index
    %c0_30 = arith.constant 0 : index
    %c32 = arith.constant 32 : index
    %52 = vector.load %arg1[%c0_29, %c0_30, %c32] : memref<2x16x192xbf16, #tpu.memory_space<vmem>>, vector<2x16x16xbf16>
    %cst_31 = arith.constant 2.500000e-01 : bf16
    %53 = vector.broadcast %cst_31 : bf16 to vector<2x16x16xbf16>
    %54 = arith.mulf %52, %53 : vector<2x16x16xbf16>
    %c0_32 = arith.constant 0 : index
    %c0_33 = arith.constant 0 : index
    %c96 = arith.constant 96 : index
    %55 = vector.load %arg1[%c0_32, %c0_33, %c96] : memref<2x16x192xbf16, #tpu.memory_space<vmem>>, vector<2x16x16xbf16>
    %c0_34 = arith.constant 0 : index
    %c0_35 = arith.constant 0 : index
    %c160 = arith.constant 160 : index
    %56 = vector.load %arg1[%c0_34, %c0_35, %c160] : memref<2x16x192xbf16, #tpu.memory_space<vmem>>, vector<2x16x16xbf16>
    %cst_36 = arith.constant dense<0.000000e+00> : vector<2x16x16xf32>
    %57 = tpu.matmul %54, %55, %cst_36 {dimension_numbers = #tpu.dot_dimension_numbers<[2], [2], [1], [1], [0, 0, 0, 1, 1, 1], [0], [0]>} : vector<2x16x16xbf16>, vector<2x16x16xbf16>, vector<2x16x16xf32> -> vector<2x16x16xf32>
    %cst_37 = arith.constant -1.000000e+30 : f32
    %58 = vector.shape_cast %3 : vector<1x16x16xi1> to vector<1x16x16xi1>
    %59 = vector.broadcast %58 : vector<1x16x16xi1> to vector<2x16x16xi1>
    %60 = vector.broadcast %cst_37 : f32 to vector<2x16x16xf32>
    %61 = arith.select %59, %57, %60 : vector<2x16x16xi1>, vector<2x16x16xf32>
    %cst_38 = arith.constant dense<0xFF800000> : vector<2x16xf32>
    %62 = vector.multi_reduction <maximumf>, %61, %cst_38 [2] : vector<2x16x16xf32> to vector<2x16xf32>
    %63 = vector.shape_cast %62 : vector<2x16xf32> to vector<2x16x1xf32>
    %64 = vector.broadcast %63 : vector<2x16x1xf32> to vector<2x16x16xf32>
    %65 = arith.subf %61, %64 : vector<2x16x16xf32>
    %66 = math.exp %65 : vector<2x16x16xf32>
    %cst_39 = arith.constant dense<0.000000e+00> : vector<2x16xf32>
    %67 = vector.multi_reduction <add>, %66, %cst_39 [2] : vector<2x16x16xf32> to vector<2x16xf32>
    %68 = vector.shape_cast %67 : vector<2x16xf32> to vector<2x16x1xf32>
    %69 = tpu.reciprocal %68 {approx = true} : vector<2x16x1xf32> -> vector<2x16x1xf32>
    %70 = vector.broadcast %69 : vector<2x16x1xf32> to vector<2x16x16xf32>
    %71 = arith.mulf %66, %70 : vector<2x16x16xf32>
    %72 = arith.truncf %71 : vector<2x16x16xf32> to vector<2x16x16xbf16>
    %cst_40 = arith.constant dense<0.000000e+00> : vector<2x16x16xf32>
    %73 = tpu.matmul %72, %56, %cst_40 {dimension_numbers = #tpu.dot_dimension_numbers<[2], [1], [1], [2], [0, 0, 0, 1, 1, 2], [0], [0]>} : vector<2x16x16xbf16>, vector<2x16x16xbf16>, vector<2x16x16xf32> -> vector<2x16x16xf32>
    %74 = arith.truncf %73 : vector<2x16x16xf32> to vector<2x16x16xbf16>
    %c0_41 = arith.constant 0 : index
    %c0_42 = arith.constant 0 : index
    %c32_43 = arith.constant 32 : index
    %75 = vector.load %arg2[%c0_41, %c0_42, %c32_43] : memref<2x16x64xbf16, #tpu.memory_space<vmem>>, vector<2x16x16xbf16>
    tpu.vector_store %arg2[%c0_41, %c0_42, %c32_43], %74 {strides = array<i32>} : memref<2x16x64xbf16, #tpu.memory_space<vmem>>, vector<2x16x16xbf16>,
    %c0_44 = arith.constant 0 : index
    %c0_45 = arith.constant 0 : index
    %c48 = arith.constant 48 : index
    %76 = vector.load %arg1[%c0_44, %c0_45, %c48] : memref<2x16x192xbf16, #tpu.memory_space<vmem>>, vector<2x16x16xbf16>
    %cst_46 = arith.constant 2.500000e-01 : bf16
    %77 = vector.broadcast %cst_46 : bf16 to vector<2x16x16xbf16>
    %78 = arith.mulf %76, %77 : vector<2x16x16xbf16>
    %c0_47 = arith.constant 0 : index
    %c0_48 = arith.constant 0 : index
    %c112 = arith.constant 112 : index
    %79 = vector.load %arg1[%c0_47, %c0_48, %c112] : memref<2x16x192xbf16, #tpu.memory_space<vmem>>, vector<2x16x16xbf16>
    %c0_49 = arith.constant 0 : index
    %c0_50 = arith.constant 0 : index
    %c176 = arith.constant 176 : index
    %80 = vector.load %arg1[%c0_49, %c0_50, %c176] : memref<2x16x192xbf16, #tpu.memory_space<vmem>>, vector<2x16x16xbf16>
    %cst_51 = arith.constant dense<0.000000e+00> : vector<2x16x16xf32>
    %81 = tpu.matmul %78, %79, %cst_51 {dimension_numbers = #tpu.dot_dimension_numbers<[2], [2], [1], [1], [0, 0, 0, 1, 1, 1], [0], [0]>} : vector<2x16x16xbf16>, vector<2x16x16xbf16>, vector<2x16x16xf32> -> vector<2x16x16xf32>
    %cst_52 = arith.constant -1.000000e+30 : f32
    %82 = vector.shape_cast %3 : vector<1x16x16xi1> to vector<1x16x16xi1>
    %83 = vector.broadcast %82 : vector<1x16x16xi1> to vector<2x16x16xi1>
    %84 = vector.broadcast %cst_52 : f32 to vector<2x16x16xf32>
    %85 = arith.select %83, %81, %84 : vector<2x16x16xi1>, vector<2x16x16xf32>
    %cst_53 = arith.constant dense<0xFF800000> : vector<2x16xf32>
    %86 = vector.multi_reduction <maximumf>, %85, %cst_53 [2] : vector<2x16x16xf32> to vector<2x16xf32>
    %87 = vector.shape_cast %86 : vector<2x16xf32> to vector<2x16x1xf32>
    %88 = vector.broadcast %87 : vector<2x16x1xf32> to vector<2x16x16xf32>
    %89 = arith.subf %85, %88 : vector<2x16x16xf32>
    %90 = math.exp %89 : vector<2x16x16xf32>
    %cst_54 = arith.constant dense<0.000000e+00> : vector<2x16xf32>
    %91 = vector.multi_reduction <add>, %90, %cst_54 [2] : vector<2x16x16xf32> to vector<2x16xf32>
    %92 = vector.shape_cast %91 : vector<2x16xf32> to vector<2x16x1xf32>
    %93 = tpu.reciprocal %92 {approx = true} : vector<2x16x1xf32> -> vector<2x16x1xf32>
    %94 = vector.broadcast %93 : vector<2x16x1xf32> to vector<2x16x16xf32>
    %95 = arith.mulf %90, %94 : vector<2x16x16xf32>
    %96 = arith.truncf %95 : vector<2x16x16xf32> to vector<2x16x16xbf16>
    %cst_55 = arith.constant dense<0.000000e+00> : vector<2x16x16xf32>
    %97 = tpu.matmul %96, %80, %cst_55 {dimension_numbers = #tpu.dot_dimension_numbers<[2], [1], [1], [2], [0, 0, 0, 1, 1, 2], [0], [0]>} : vector<2x16x16xbf16>, vector<2x16x16xbf16>, vector<2x16x16xf32> -> vector<2x16x16xf32>
    %98 = arith.truncf %97 : vector<2x16x16xf32> to vector<2x16x16xbf16>
    %c0_56 = arith.constant 0 : index
    %c0_57 = arith.constant 0 : index
    %c48_58 = arith.constant 48 : index
    %99 = vector.load %arg2[%c0_56, %c0_57, %c48_58] : memref<2x16x64xbf16, #tpu.memory_space<vmem>>, vector<2x16x16xbf16>
    tpu.vector_store %arg2[%c0_56, %c0_57, %c48_58], %98 {strides = array<i32>} : memref<2x16x64xbf16, #tpu.memory_space<vmem>>, vector<2x16x16xbf16>,
    return
  }
  func.func @transform_0(%arg0: i32) -> (i32, i32, i32) {
    %c0_i32 = arith.constant 0 : i32
    %c0_i32_0 = arith.constant 0 : i32
    %c0_i32_1 = arith.constant 0 : i32
    return %arg0, %c0_i32, %c0_i32_0 : i32, i32, i32
  }
  func.func @transform_1(%arg0: i32) -> (i32, i32, i32) {
    %c0_i32 = arith.constant 0 : i32
    %c0_i32_0 = arith.constant 0 : i32
    %c0_i32_1 = arith.constant 0 : i32
    return %arg0, %c0_i32, %c0_i32_0 : i32, i32, i32
  }
}

module attributes {stable_mosaic.version = 11 : i64} {
  func.func @_fused_linear_kernel(%arg0: i32, %arg1: i32, %arg2: i32, %arg3: memref<96x64xbf16, #tpu.memory_space<vmem>>, %arg4: memref<64x256xbf16, #tpu.memory_space<vmem>>, %arg5: memref<1x256xbf16, #tpu.memory_space<vmem>>, %arg6: memref<1x64xbf16, #tpu.memory_space<vmem>>, %arg7: memref<1x64xbf16, #tpu.memory_space<vmem>>, %arg8: memref<96x256xbf16, #tpu.memory_space<vmem>>) attributes {dimension_semantics = [#tpu.dimension_semantics<parallel>, #tpu.dimension_semantics<parallel>, #tpu.dimension_semantics<arbitrary>], iteration_bounds = array<i64: 1, 1, 1>, scalar_prefetch = 0 : i64, scratch_operands = 0 : i64, tpu.core_type = #tpu.core_type<tc>, window_params = [{transform_indices = @transform_0, window_bounds = array<i64: 96, 64>}, {transform_indices = @transform_1, window_bounds = array<i64: 64, 256>}, {transform_indices = @transform_2, window_bounds = array<i64: 1, 256>}, {transform_indices = @transform_3, window_bounds = array<i64: 1, 64>}, {transform_indices = @transform_4, window_bounds = array<i64: 1, 64>}, {transform_indices = @transform_5, window_bounds = array<i64: 96, 256>}]} {
    %c0 = arith.constant 0 : index
    %c0_0 = arith.constant 0 : index
    %0 = vector.load %arg3[%c0, %c0_0] : memref<96x64xbf16, #tpu.memory_space<vmem>>, vector<96x64xbf16>
    %1 = arith.extf %0 : vector<96x64xbf16> to vector<96x64xf32>
    %cst = arith.constant dense<0.000000e+00> : vector<96xf32>
    %2 = vector.multi_reduction <add>, %1, %cst [1] : vector<96x64xf32> to vector<96xf32>
    %3 = vector.shape_cast %2 : vector<96xf32> to vector<96x1xf32>
    %cst_1 = arith.constant 6.400000e+01 : f32
    %4 = vector.broadcast %cst_1 : f32 to vector<96x1xf32>
    %5 = arith.divf %3, %4 : vector<96x1xf32>
    %6 = vector.broadcast %5 : vector<96x1xf32> to vector<96x64xf32>
    %7 = arith.subf %1, %6 : vector<96x64xf32>
    %8 = arith.mulf %7, %7 : vector<96x64xf32>
    %cst_2 = arith.constant dense<0.000000e+00> : vector<96xf32>
    %9 = vector.multi_reduction <add>, %8, %cst_2 [1] : vector<96x64xf32> to vector<96xf32>
    %10 = vector.shape_cast %9 : vector<96xf32> to vector<96x1xf32>
    %cst_3 = arith.constant 6.400000e+01 : f32
    %11 = vector.broadcast %cst_3 : f32 to vector<96x1xf32>
    %12 = arith.divf %10, %11 : vector<96x1xf32>
    %13 = vector.broadcast %5 : vector<96x1xf32> to vector<96x64xf32>
    %14 = arith.subf %1, %13 : vector<96x64xf32>
    %cst_4 = arith.constant 9.99999974E-6 : f32
    %15 = vector.broadcast %cst_4 : f32 to vector<96x1xf32>
    %16 = arith.addf %12, %15 : vector<96x1xf32>
    %17 = math.rsqrt %16 : vector<96x1xf32>
    %18 = vector.broadcast %17 : vector<96x1xf32> to vector<96x64xf32>
    %19 = arith.mulf %14, %18 : vector<96x64xf32>
    %c0_5 = arith.constant 0 : index
    %c0_6 = arith.constant 0 : index
    %20 = vector.load %arg6[%c0_5, %c0_6] : memref<1x64xbf16, #tpu.memory_space<vmem>>, vector<1x64xbf16>
    %21 = arith.extf %20 : vector<1x64xbf16> to vector<1x64xf32>
    %22 = vector.broadcast %21 : vector<1x64xf32> to vector<96x64xf32>
    %23 = arith.mulf %19, %22 : vector<96x64xf32>
    %c0_7 = arith.constant 0 : index
    %c0_8 = arith.constant 0 : index
    %24 = vector.load %arg7[%c0_7, %c0_8] : memref<1x64xbf16, #tpu.memory_space<vmem>>, vector<1x64xbf16>
    %25 = arith.extf %24 : vector<1x64xbf16> to vector<1x64xf32>
    %26 = vector.broadcast %25 : vector<1x64xf32> to vector<96x64xf32>
    %27 = arith.addf %23, %26 : vector<96x64xf32>
    %28 = arith.truncf %27 : vector<96x64xf32> to vector<96x64xbf16>
    %c0_9 = arith.constant 0 : index
    %c0_10 = arith.constant 0 : index
    %29 = vector.load %arg4[%c0_9, %c0_10] : memref<64x256xbf16, #tpu.memory_space<vmem>>, vector<64x256xbf16>
    %cst_11 = arith.constant dense<0.000000e+00> : vector<96x256xf32>
    %30 = tpu.matmul %28, %29, %cst_11 {dimension_numbers = #tpu.dot_dimension_numbers<[1], [0], [0], [1], [0, 0, 1, 1], [], []>} : vector<96x64xbf16>, vector<64x256xbf16>, vector<96x256xf32> -> vector<96x256xf32>
    %c0_12 = arith.constant 0 : index
    %c0_13 = arith.constant 0 : index
    %31 = vector.load %arg5[%c0_12, %c0_13] : memref<1x256xbf16, #tpu.memory_space<vmem>>, vector<1x256xbf16>
    %32 = arith.extf %31 : vector<1x256xbf16> to vector<1x256xf32>
    %33 = vector.broadcast %32 : vector<1x256xf32> to vector<96x256xf32>
    %34 = arith.addf %30, %33 : vector<96x256xf32>
    %cst_14 = arith.constant 1.702000e+00 : f32
    %35 = vector.broadcast %cst_14 : f32 to vector<96x256xf32>
    %36 = arith.mulf %35, %34 : vector<96x256xf32>
    %37 = arith.negf %36 : vector<96x256xf32>
    %38 = math.exp %37 : vector<96x256xf32>
    %cst_15 = arith.constant 1.000000e+00 : f32
    %39 = vector.broadcast %cst_15 : f32 to vector<96x256xf32>
    %40 = arith.addf %39, %38 : vector<96x256xf32>
    %41 = arith.divf %39, %40 : vector<96x256xf32>
    %42 = arith.mulf %34, %41 : vector<96x256xf32>
    %43 = arith.truncf %42 : vector<96x256xf32> to vector<96x256xbf16>
    %c0_16 = arith.constant 0 : index
    %c0_17 = arith.constant 0 : index
    %44 = vector.load %arg8[%c0_16, %c0_17] : memref<96x256xbf16, #tpu.memory_space<vmem>>, vector<96x256xbf16>
    tpu.vector_store %arg8[%c0_16, %c0_17], %43 {strides = array<i32>} : memref<96x256xbf16, #tpu.memory_space<vmem>>, vector<96x256xbf16>,
    return
  }
  func.func @transform_0(%arg0: i32, %arg1: i32, %arg2: i32) -> (i32, i32) {
    %c0_i32 = arith.constant 0 : i32
    return %arg0, %arg2 : i32, i32
  }
  func.func @transform_1(%arg0: i32, %arg1: i32, %arg2: i32) -> (i32, i32) {
    %c0_i32 = arith.constant 0 : i32
    return %arg2, %arg1 : i32, i32
  }
  func.func @transform_2(%arg0: i32, %arg1: i32, %arg2: i32) -> (i32, i32) {
    %c0_i32 = arith.constant 0 : i32
    %c0_i32_0 = arith.constant 0 : i32
    return %c0_i32, %arg1 : i32, i32
  }
  func.func @transform_3(%arg0: i32, %arg1: i32, %arg2: i32) -> (i32, i32) {
    %c0_i32 = arith.constant 0 : i32
    %c0_i32_0 = arith.constant 0 : i32
    return %c0_i32, %arg2 : i32, i32
  }
  func.func @transform_4(%arg0: i32, %arg1: i32, %arg2: i32) -> (i32, i32) {
    %c0_i32 = arith.constant 0 : i32
    %c0_i32_0 = arith.constant 0 : i32
    return %c0_i32, %arg2 : i32, i32
  }
  func.func @transform_5(%arg0: i32, %arg1: i32, %arg2: i32) -> (i32, i32) {
    %c0_i32 = arith.constant 0 : i32
    return %arg0, %arg1 : i32, i32
  }
}

module attributes {stable_mosaic.version = 11 : i64} {
  func.func @_fused_linear_kernel(%arg0: i32, %arg1: i32, %arg2: i32, %arg3: memref<96x256xbf16, #tpu.memory_space<vmem>>, %arg4: memref<256x64xbf16, #tpu.memory_space<vmem>>, %arg5: memref<96x64xbf16, #tpu.memory_space<vmem>>, %arg6: memref<1x64xbf16, #tpu.memory_space<vmem>>, %arg7: memref<96x64xbf16, #tpu.memory_space<vmem>>) attributes {dimension_semantics = [#tpu.dimension_semantics<parallel>, #tpu.dimension_semantics<parallel>, #tpu.dimension_semantics<arbitrary>], iteration_bounds = array<i64: 1, 1, 1>, scalar_prefetch = 0 : i64, scratch_operands = 0 : i64, tpu.core_type = #tpu.core_type<tc>, window_params = [{transform_indices = @transform_0, window_bounds = array<i64: 96, 256>}, {transform_indices = @transform_1, window_bounds = array<i64: 256, 64>}, {transform_indices = @transform_2, window_bounds = array<i64: 96, 64>}, {transform_indices = @transform_3, window_bounds = array<i64: 1, 64>}, {transform_indices = @transform_4, window_bounds = array<i64: 96, 64>}]} {
    %c0 = arith.constant 0 : index
    %c0_0 = arith.constant 0 : index
    %0 = vector.load %arg3[%c0, %c0_0] : memref<96x256xbf16, #tpu.memory_space<vmem>>, vector<96x256xbf16>
    %c0_1 = arith.constant 0 : index
    %c0_2 = arith.constant 0 : index
    %1 = vector.load %arg4[%c0_1, %c0_2] : memref<256x64xbf16, #tpu.memory_space<vmem>>, vector<256x64xbf16>
    %cst = arith.constant dense<0.000000e+00> : vector<96x64xf32>
    %2 = tpu.matmul %0, %1, %cst {dimension_numbers = #tpu.dot_dimension_numbers<[1], [0], [0], [1], [0, 0, 1, 1], [], []>} : vector<96x256xbf16>, vector<256x64xbf16>, vector<96x64xf32> -> vector<96x64xf32>
    %c0_3 = arith.constant 0 : index
    %c0_4 = arith.constant 0 : index
    %3 = vector.load %arg6[%c0_3, %c0_4] : memref<1x64xbf16, #tpu.memory_space<vmem>>, vector<1x64xbf16>
    %4 = arith.extf %3 : vector<1x64xbf16> to vector<1x64xf32>
    %5 = vector.broadcast %4 : vector<1x64xf32> to vector<96x64xf32>
    %6 = arith.addf %2, %5 : vector<96x64xf32>
    %c0_5 = arith.constant 0 : index
    %c0_6 = arith.constant 0 : index
    %7 = vector.load %arg5[%c0_5, %c0_6] : memref<96x64xbf16, #tpu.memory_space<vmem>>, vector<96x64xbf16>
    %8 = arith.extf %7 : vector<96x64xbf16> to vector<96x64xf32>
    %9 = arith.addf %6, %8 : vector<96x64xf32>
    %10 = arith.truncf %9 : vector<96x64xf32> to vector<96x64xbf16>
    %c0_7 = arith.constant 0 : index
    %c0_8 = arith.constant 0 : index
    %11 = vector.load %arg7[%c0_7, %c0_8] : memref<96x64xbf16, #tpu.memory_space<vmem>>, vector<96x64xbf16>
    tpu.vector_store %arg7[%c0_7, %c0_8], %10 {strides = array<i32>} : memref<96x64xbf16, #tpu.memory_space<vmem>>, vector<96x64xbf16>,
    return
  }
  func.func @transform_0(%arg0: i32, %arg1: i32, %arg2: i32) -> (i32, i32) {
    %c0_i32 = arith.constant 0 : i32
    return %arg0, %arg2 : i32, i32
  }
  func.func @transform_1(%arg0: i32, %arg1: i32, %arg2: i32) -> (i32, i32) {
    %c0_i32 = arith.constant 0 : i32
    return %arg2, %arg1 : i32, i32
  }
  func.func @transform_2(%arg0: i32, %arg1: i32, %arg2: i32) -> (i32, i32) {
    %c0_i32 = arith.constant 0 : i32
    return %arg0, %arg1 : i32, i32
  }
  func.func @transform_3(%arg0: i32, %arg1: i32, %arg2: i32) -> (i32, i32) {
    %c0_i32 = arith.constant 0 : i32
    %c0_i32_0 = arith.constant 0 : i32
    return %c0_i32, %arg1 : i32, i32
  }
  func.func @transform_4(%arg0: i32, %arg1: i32, %arg2: i32) -> (i32, i32) {
    %c0_i32 = arith.constant 0 : i32
    return %arg0, %arg1 : i32, i32
  }
}

module attributes {stable_mosaic.version = 11 : i64} {
  func.func @_fused_linear_kernel(%arg0: i32, %arg1: i32, %arg2: i32, %arg3: memref<2x64xf32, #tpu.memory_space<vmem>>, %arg4: memref<6x64xf32, #tpu.memory_space<vmem>>, %arg5: memref<1x1xf32, #tpu.memory_space<smem>>, %arg6: memref<2x6xf32, #tpu.memory_space<vmem>>) attributes {dimension_semantics = [#tpu.dimension_semantics<parallel>, #tpu.dimension_semantics<parallel>, #tpu.dimension_semantics<arbitrary>], iteration_bounds = array<i64: 1, 1, 1>, scalar_prefetch = 0 : i64, scratch_operands = 0 : i64, tpu.core_type = #tpu.core_type<tc>, window_params = [{transform_indices = @transform_0, window_bounds = array<i64: 2, 64>}, {transform_indices = @transform_1, window_bounds = array<i64: 6, 64>}, {transform_indices = @transform_2, window_bounds = array<i64: 1, 1>}, {transform_indices = @transform_3, window_bounds = array<i64: 2, 6>}]} {
    %c0 = arith.constant 0 : index
    %c0_0 = arith.constant 0 : index
    %0 = vector.load %arg3[%c0, %c0_0] : memref<2x64xf32, #tpu.memory_space<vmem>>, vector<2x64xf32>
    %c0_1 = arith.constant 0 : index
    %c0_2 = arith.constant 0 : index
    %1 = vector.load %arg4[%c0_1, %c0_2] : memref<6x64xf32, #tpu.memory_space<vmem>>, vector<6x64xf32>
    %2 = arith.truncf %0 : vector<2x64xf32> to vector<2x64xbf16>
    %3 = arith.truncf %1 : vector<6x64xf32> to vector<6x64xbf16>
    %cst = arith.constant dense<0.000000e+00> : vector<2x6xf32>
    %4 = tpu.matmul %2, %3, %cst {dimension_numbers = #tpu.dot_dimension_numbers<[1], [1], [0], [0], [0, 0, 1, 0], [], []>} : vector<2x64xbf16>, vector<6x64xbf16>, vector<2x6xf32> -> vector<2x6xf32>
    %c0_3 = arith.constant 0 : index
    %c0_4 = arith.constant 0 : index
    %5 = memref.load %arg5[%c0_3, %c0_4] : memref<1x1xf32, #tpu.memory_space<smem>>
    %6 = vector.broadcast %5 : f32 to vector<2x6xf32>
    %7 = arith.mulf %4, %6 : vector<2x6xf32>
    %c0_5 = arith.constant 0 : index
    %c0_6 = arith.constant 0 : index
    %8 = vector.load %arg6[%c0_5, %c0_6] : memref<2x6xf32, #tpu.memory_space<vmem>>, vector<2x6xf32>
    tpu.vector_store %arg6[%c0_5, %c0_6], %7 {strides = array<i32>} : memref<2x6xf32, #tpu.memory_space<vmem>>, vector<2x6xf32>,
    return
  }
  func.func @transform_0(%arg0: i32, %arg1: i32, %arg2: i32) -> (i32, i32) {
    %c0_i32 = arith.constant 0 : i32
    return %arg0, %arg2 : i32, i32
  }
  func.func @transform_1(%arg0: i32, %arg1: i32, %arg2: i32) -> (i32, i32) {
    %c0_i32 = arith.constant 0 : i32
    return %arg1, %arg2 : i32, i32
  }
  func.func @transform_2(%arg0: i32, %arg1: i32, %arg2: i32) -> (i32, i32) {
    %c0_i32 = arith.constant 0 : i32
    %c0_i32_0 = arith.constant 0 : i32
    %c0_i32_1 = arith.constant 0 : i32
    return %c0_i32, %c0_i32_0 : i32, i32
  }
  func.func @transform_3(%arg0: i32, %arg1: i32, %arg2: i32) -> (i32, i32) {
    %c0_i32 = arith.constant 0 : i32
    return %arg0, %arg1 : i32, i32
  }
}

module attributes {stable_mosaic.version = 11 : i64} {
  func.func @_fused_linear_kernel(%arg0: i32, %arg1: i32, %arg2: i32, %arg3: memref<6x64xbf16, #tpu.memory_space<vmem>>, %arg4: memref<64x64xbf16, #tpu.memory_space<vmem>>, %arg5: memref<1x64xbf16, #tpu.memory_space<vmem>>, %arg6: memref<1x64xbf16, #tpu.memory_space<vmem>>, %arg7: memref<6x64xf32, #tpu.memory_space<vmem>>) attributes {dimension_semantics = [#tpu.dimension_semantics<parallel>, #tpu.dimension_semantics<parallel>, #tpu.dimension_semantics<arbitrary>], iteration_bounds = array<i64: 1, 1, 1>, scalar_prefetch = 0 : i64, scratch_operands = 0 : i64, tpu.core_type = #tpu.core_type<tc>, window_params = [{transform_indices = @transform_0, window_bounds = array<i64: 6, 64>}, {transform_indices = @transform_1, window_bounds = array<i64: 64, 64>}, {transform_indices = @transform_2, window_bounds = array<i64: 1, 64>}, {transform_indices = @transform_3, window_bounds = array<i64: 1, 64>}, {transform_indices = @transform_4, window_bounds = array<i64: 6, 64>}]} {
    %c0 = arith.constant 0 : index
    %c0_0 = arith.constant 0 : index
    %0 = vector.load %arg3[%c0, %c0_0] : memref<6x64xbf16, #tpu.memory_space<vmem>>, vector<6x64xbf16>
    %1 = arith.extf %0 : vector<6x64xbf16> to vector<6x64xf32>
    %cst = arith.constant dense<0.000000e+00> : vector<6xf32>
    %2 = vector.multi_reduction <add>, %1, %cst [1] : vector<6x64xf32> to vector<6xf32>
    %3 = vector.shape_cast %2 : vector<6xf32> to vector<6x1xf32>
    %cst_1 = arith.constant 6.400000e+01 : f32
    %4 = vector.broadcast %cst_1 : f32 to vector<6x1xf32>
    %5 = arith.divf %3, %4 : vector<6x1xf32>
    %6 = vector.broadcast %5 : vector<6x1xf32> to vector<6x64xf32>
    %7 = arith.subf %1, %6 : vector<6x64xf32>
    %8 = arith.mulf %7, %7 : vector<6x64xf32>
    %cst_2 = arith.constant dense<0.000000e+00> : vector<6xf32>
    %9 = vector.multi_reduction <add>, %8, %cst_2 [1] : vector<6x64xf32> to vector<6xf32>
    %10 = vector.shape_cast %9 : vector<6xf32> to vector<6x1xf32>
    %cst_3 = arith.constant 6.400000e+01 : f32
    %11 = vector.broadcast %cst_3 : f32 to vector<6x1xf32>
    %12 = arith.divf %10, %11 : vector<6x1xf32>
    %13 = vector.broadcast %5 : vector<6x1xf32> to vector<6x64xf32>
    %14 = arith.subf %1, %13 : vector<6x64xf32>
    %cst_4 = arith.constant 9.99999974E-6 : f32
    %15 = vector.broadcast %cst_4 : f32 to vector<6x1xf32>
    %16 = arith.addf %12, %15 : vector<6x1xf32>
    %17 = math.rsqrt %16 : vector<6x1xf32>
    %18 = vector.broadcast %17 : vector<6x1xf32> to vector<6x64xf32>
    %19 = arith.mulf %14, %18 : vector<6x64xf32>
    %c0_5 = arith.constant 0 : index
    %c0_6 = arith.constant 0 : index
    %20 = vector.load %arg5[%c0_5, %c0_6] : memref<1x64xbf16, #tpu.memory_space<vmem>>, vector<1x64xbf16>
    %21 = arith.extf %20 : vector<1x64xbf16> to vector<1x64xf32>
    %22 = vector.broadcast %21 : vector<1x64xf32> to vector<6x64xf32>
    %23 = arith.mulf %19, %22 : vector<6x64xf32>
    %c0_7 = arith.constant 0 : index
    %c0_8 = arith.constant 0 : index
    %24 = vector.load %arg6[%c0_7, %c0_8] : memref<1x64xbf16, #tpu.memory_space<vmem>>, vector<1x64xbf16>
    %25 = arith.extf %24 : vector<1x64xbf16> to vector<1x64xf32>
    %26 = vector.broadcast %25 : vector<1x64xf32> to vector<6x64xf32>
    %27 = arith.addf %23, %26 : vector<6x64xf32>
    %28 = arith.truncf %27 : vector<6x64xf32> to vector<6x64xbf16>
    %c0_9 = arith.constant 0 : index
    %c0_10 = arith.constant 0 : index
    %29 = vector.load %arg4[%c0_9, %c0_10] : memref<64x64xbf16, #tpu.memory_space<vmem>>, vector<64x64xbf16>
    %cst_11 = arith.constant dense<0.000000e+00> : vector<6x64xf32>
    %30 = tpu.matmul %28, %29, %cst_11 {dimension_numbers = #tpu.dot_dimension_numbers<[1], [0], [0], [1], [0, 0, 1, 1], [], []>} : vector<6x64xbf16>, vector<64x64xbf16>, vector<6x64xf32> -> vector<6x64xf32>
    %31 = arith.mulf %30, %30 : vector<6x64xf32>
    %cst_12 = arith.constant dense<0.000000e+00> : vector<6xf32>
    %32 = vector.multi_reduction <add>, %31, %cst_12 [1] : vector<6x64xf32> to vector<6xf32>
    %33 = vector.shape_cast %32 : vector<6xf32> to vector<6x1xf32>
    %cst_13 = arith.constant 1.000000e-24 : f32
    %34 = vector.broadcast %cst_13 : f32 to vector<6x1xf32>
    %35 = arith.maximumf %33, %34 : vector<6x1xf32>
    %36 = math.rsqrt %35 : vector<6x1xf32>
    %37 = vector.broadcast %36 : vector<6x1xf32> to vector<6x64xf32>
    %38 = arith.mulf %30, %37 : vector<6x64xf32>
    %c0_14 = arith.constant 0 : index
    %c0_15 = arith.constant 0 : index
    %39 = vector.load %arg7[%c0_14, %c0_15] : memref<6x64xf32, #tpu.memory_space<vmem>>, vector<6x64xf32>
    tpu.vector_store %arg7[%c0_14, %c0_15], %38 {strides = array<i32>} : memref<6x64xf32, #tpu.memory_space<vmem>>, vector<6x64xf32>,
    return
  }
  func.func @transform_0(%arg0: i32, %arg1: i32, %arg2: i32) -> (i32, i32) {
    %c0_i32 = arith.constant 0 : i32
    return %arg0, %arg2 : i32, i32
  }
  func.func @transform_1(%arg0: i32, %arg1: i32, %arg2: i32) -> (i32, i32) {
    %c0_i32 = arith.constant 0 : i32
    return %arg2, %arg1 : i32, i32
  }
  func.func @transform_2(%arg0: i32, %arg1: i32, %arg2: i32) -> (i32, i32) {
    %c0_i32 = arith.constant 0 : i32
    %c0_i32_0 = arith.constant 0 : i32
    return %c0_i32, %arg2 : i32, i32
  }
  func.func @transform_3(%arg0: i32, %arg1: i32, %arg2: i32) -> (i32, i32) {
    %c0_i32 = arith.constant 0 : i32
    %c0_i32_0 = arith.constant 0 : i32
    return %c0_i32, %arg2 : i32, i32
  }
  func.func @transform_4(%arg0: i32, %arg1: i32, %arg2: i32) -> (i32, i32) {
    %c0_i32 = arith.constant 0 : i32
    return %arg0, %arg1 : i32, i32
  }
}

</mosaic_0001>

<llo_original>
// kernel: custom_clip_matrix_forward.26
$region0: #{custom_clip_matrix_forward.26}
  #allocation0 [shape = 'u32[]', space=smem, size = 0x4, offset = 0x4, fixed_abs, tag = 'smem constant byte address 0x4 - core index']
  #allocation1 [shape = 'u32[144,128]{1,0:T(1,128)}', space=vmem, size = 0x12000, scoped, tag = 'internal scratch']
  %s0 = inlined_call_operand.vmem [shape: bf16[34,64], index: 0, kind: input, shape index: {}]
  %s1 = inlined_call_operand.vmem [shape: bf16[1,64], index: 1, kind: input, shape index: {}]
  %s2 = inlined_call_operand.vmem [shape: bf16[1,64], index: 2, kind: input, shape index: {}]
  %s3 = inlined_call_operand.hbm [shape: bf16[34,64], index: 3, kind: output, shape index: {}]
  %s4 = sld [smem:[#allocation0]]
  $region22: #{custom_clip_matrix_forward.26} parent=0
    _
  %s6 = ssub.s32 1, %s4
  %s7 = scalar_select 0, %s6, %s4
  $region1: #{custom_clip_matrix_forward.26} parent=0
    #allocation2 [shape = 'u8[10240]{0}', space=vmem, size = 0x2800, scoped, tag = 'output window, operand 0, single buffered']
    #allocation3 [shape = 's32[1]{0}', space=sflag, size = 0x4, scoped, tag = 'scoped memory for custom_clip_matrix_forward.26']
    %8 = vsyncpa [#allocation3], 0
    // Predicated region
    $region2: #{custom_clip_matrix_forward.26} parent=1 // pred_check
      _
    $region3: #{custom_clip_matrix_forward.26} parent=1 // pred_check_branch
      %10 = sbr.rel (0) target = $region5
    $region4: #{custom_clip_matrix_forward.26} parent=1 // pred_region
      _
    $region5: #{custom_clip_matrix_forward.26} parent=1 // pred_fallthru
      _
    // Predicated region
    $region6: #{custom_clip_matrix_forward.26} parent=1 // pred_check
      _
    $region7: #{custom_clip_matrix_forward.26} parent=1 // pred_check_branch
      %12 = sbr.rel (0) target = $region9
    $region8: #{custom_clip_matrix_forward.26} parent=1 // pred_region
      _
    $region9: #{custom_clip_matrix_forward.26} parent=1 // pred_fallthru
      _
    // Predicated region
    $region10: #{custom_clip_matrix_forward.26} parent=1 // pred_check
      _
    $region11: #{custom_clip_matrix_forward.26} parent=1 // pred_check_branch
      %14 = sbr.rel (0) target = $region13
    $region12: #{custom_clip_matrix_forward.26} parent=1 // pred_region
      _
    $region13: #{custom_clip_matrix_forward.26} parent=1 // pred_fallthru
      _
    %v15 = vld [vmem:[%s0] sm:$0xf]
    %v16 = vld [vmem:[%s0 + $0x4] sm:$0xf]
    %v17 = vld [vmem:[%s0 + $0x8] sm:$0xf]
    %v18 = vld [vmem:[%s0 + $0xc] sm:$0xf]
    %v19 = vld [vmem:[%s0 + $0x10] sm:$0x1]
    %v20 = vunpack.c.l.bf16 %v15
    %v21 = vunpack.c.l.bf16 %v16
    %v22 = vunpack.c.l.bf16 %v17
    %v23 = vunpack.c.l.bf16 %v18
    %v24 = vunpack.c.l.bf16 %v19
    %vm25 = vcmask 523264
    %v26 = vsel %vm25, %v20, 0.0
    %27 = vadd.xlane.f32.xlu0 %v26
    %v28 = vpop.xlane.xlu0 %27
    %v29 = vsel %vm25, %v21, 0.0
    %30 = vadd.xlane.f32.xlu0 %v29
    %v31 = vpop.xlane.xlu0 %30
    %v32 = vsel %vm25, %v22, 0.0
    %33 = vadd.xlane.f32.xlu0 %v32
    %v34 = vpop.xlane.xlu0 %33
    %v35 = vsel %vm25, %v23, 0.0
    %36 = vadd.xlane.f32.xlu0 %v35
    %v37 = vpop.xlane.xlu0 %36
    %vm38 = vcmask 517120
    %v39 = vsel %vm38, %v24, 0.0
    %40 = vadd.xlane.f32.xlu0 %v39
    %v41 = vpop.xlane.xlu0 %40
    %v42 = vrcp.pop 64.0
    %v43 = vmul.f32 %v28, %v42
    %v44 = vmul.f32 %v31, %v42
    %v45 = vmul.f32 %v34, %v42
    %v46 = vmul.f32 %v37, %v42
    %v47 = vmul.f32 %v41, %v42
    %v48 = vsub.f32 %v20, %v43
    %v49 = vsub.f32 %v21, %v44
    %v50 = vsub.f32 %v22, %v45
    %v51 = vsub.f32 %v23, %v46
    %v52 = vsub.f32 %v24, %v47
    %v53 = vmul.f32 %v48, %v48
    %v54 = vmul.f32 %v49, %v49
    %v55 = vmul.f32 %v50, %v50
    %v56 = vmul.f32 %v51, %v51
    %v57 = vmul.f32 %v52, %v52
    %v58 = vsel %vm25, %v53, 0.0
    %59 = vadd.xlane.f32.xlu0 %v58
    %v60 = vpop.xlane.xlu0 %59
    %v61 = vsel %vm25, %v54, 0.0
    %62 = vadd.xlane.f32.xlu0 %v61
    %v63 = vpop.xlane.xlu0 %62
    %v64 = vsel %vm25, %v55, 0.0
    %65 = vadd.xlane.f32.xlu0 %v64
    %v66 = vpop.xlane.xlu0 %65
    %v67 = vsel %vm25, %v56, 0.0
    %68 = vadd.xlane.f32.xlu0 %v67
    %v69 = vpop.xlane.xlu0 %68
    %v70 = vsel %vm38, %v57, 0.0
    %71 = vadd.xlane.f32.xlu0 %v70
    %v72 = vpop.xlane.xlu0 %71
    %v73 = vmul.f32 %v60, %v42
    %v74 = vmul.f32 %v63, %v42
    %v75 = vmul.f32 %v66, %v42
    %v76 = vmul.f32 %v69, %v42
    %v77 = vmul.f32 %v72, %v42
    %v78 = vadd.f32 %v73, 1e-05
    %v79 = vadd.f32 %v74, 1e-05
    %v80 = vadd.f32 %v75, 1e-05
    %v81 = vadd.f32 %v76, 1e-05
    %v82 = vadd.f32 %v77, 1e-05
    %v83 = vrsqrt.pop %v78
    %v84 = vrsqrt.pop %v79
    %v85 = vrsqrt.pop %v80
    %v86 = vrsqrt.pop %v81
    %v87 = vrsqrt.pop %v82
    %v88 = vmul.f32 %v48, %v83
    %v89 = vmul.f32 %v49, %v84
    %v90 = vmul.f32 %v50, %v85
    %v91 = vmul.f32 %v51, %v86
    %v92 = vmul.f32 %v52, %v87
    %v93 = vld [vmem:[%s1] sm:$0x1]
    %v94 = vunpack.c.l.bf16 %v93
    %v95 = vlaneseq
    %v96 = vshrl.u32 %v95, 7
    %v97 = vsub.s32 0, %v96
    %v98 = vrot.slane %v94, %v97
    %v99 = vmul.f32 %v88, %v98
    %v100 = vmul.f32 %v89, %v98
    %v101 = vmul.f32 %v90, %v98
    %v102 = vmul.f32 %v91, %v98
    %v103 = vmul.f32 %v92, %v98
    %v104 = vld [vmem:[%s2] sm:$0x1]
    %v105 = vunpack.c.l.bf16 %v104
    %v106 = vlaneseq
    %v107 = vshrl.u32 %v106, 7
    %v108 = vsub.s32 0, %v107
    %v109 = vrot.slane %v105, %v108
    %v110 = vadd.f32 %v99, %v109
    %v111 = vadd.f32 %v100, %v109
    %v112 = vadd.f32 %v101, %v109
    %v113 = vadd.f32 %v102, %v109
    %v114 = vadd.f32 %v103, %v109
    %v115 = vpack.c.bf16 %v111, %v110
    %v116 = vpack.c.bf16 %v113, %v112
    %v117 = vpack.c.bf16 %v114, %v114
    %v121 = vunpack.c.l.b16 %v115
    %v122 = vunpack.c.h.b16 %v115
    %v123 = vunpack.c.l.b16 %v116
    %v124 = vunpack.c.h.b16 %v116
    %v125 = vunpack.c.l.b16 %v117
    %v126 = vpack.c.b16 %v121, %v121
    %v127 = vpack.c.b16 %v122, %v122
    %v128 = vpack.c.b16 %v123, %v123
    %v129 = vpack.c.b16 %v124, %v124
    %v130 = vpack.c.b16 %v125, %v125
    %vm136 = vcmask 519168
    %137 = vst.msk [vmem:[#allocation2] sm:$0xf] %vm136, %v126
    %138 = vst.msk [vmem:[#allocation2 + $0x4] sm:$0xf] %vm136, %v127
    %139 = vst.msk [vmem:[#allocation2 + $0x8] sm:$0xf] %vm136, %v128
    %140 = vst.msk [vmem:[#allocation2 + $0xc] sm:$0xf] %vm136, %v129
    %vm141 = vcmask 516096
    %142 = vst.msk [vmem:[#allocation2 + $0x10] sm:$0x1] %vm141, %v130
    // Predicated region
    $region14: #{custom_clip_matrix_forward.26} parent=1 // pred_check
      _
    $region15: #{custom_clip_matrix_forward.26} parent=1 // pred_check_branch
      %144 = sbr.rel (0) target = $region17
    $region16: #{custom_clip_matrix_forward.26} parent=1 // pred_region
      %s146 = ssub.s32 320, 320
      %147 = vsyncadd [#allocation3], %s146
      %s148 = sshll.u32 [#allocation2], 4
      %s149 = int_to_ptr.vmem [resolvable:$true] %s148
      %154 = dma.vmem_to_hbm [thread:$0]  %s149, 320, %s3, [#allocation3], 64, 64, 4
    $region17: #{custom_clip_matrix_forward.26} parent=1 // pred_fallthru
      _
    // Predicated region
    $region18: #{custom_clip_matrix_forward.26} parent=1 // pred_check
      _
    $region19: #{custom_clip_matrix_forward.26} parent=1 // pred_check_branch
      %156 = sbr.rel (0) target = $region21
    $region20: #{custom_clip_matrix_forward.26} parent=1 // pred_region
      %157 = dma.done [#allocation3], 320
    $region21: #{custom_clip_matrix_forward.26} parent=1 // pred_fallthru
      _
    %158 = vsyncpa [#allocation3], 1

// kernel: custom_clip_matrix_forward.25
$region0: #{custom_clip_matrix_forward.25}
  #allocation0 [shape = 'u32[]', space=smem, size = 0x4, offset = 0x4, fixed_abs, tag = 'smem constant byte address 0x4 - core index']
  #allocation1 [shape = 'u32[144,128]{1,0:T(1,128)}', space=vmem, size = 0x12000, scoped, tag = 'internal scratch']
  %s0 = inlined_call_operand.hbm [shape: bf16[32,192], index: 0, kind: input, shape index: {}]
  %s1 = inlined_call_operand.hbm [shape: bf16[192,64], index: 1, kind: input, shape index: {}]
  %s2 = inlined_call_operand.hbm [shape: bf16[32,64], index: 2, kind: output, shape index: {}]
  %s3 = sld [smem:[#allocation0]]
  $region26: #{custom_clip_matrix_forward.25} parent=0
    _
  %s5 = ssub.s32 1, %s3
  %s6 = scalar_select 0, %s5, %s3
  $region1: #{custom_clip_matrix_forward.25} parent=0
    #allocation2 [shape = 'u8[16384]{0}', space=vmem, size = 0x4000, scoped, tag = 'input window, operand 0, single buffered']
    #allocation3 [shape = 's32[1]{0}', space=sflag, size = 0x4, scoped, tag = 'scoped memory for custom_clip_matrix_forward.25']
    #allocation4 [shape = 's32[1]{0}', space=sflag, size = 0x4, scoped, tag = 'scoped memory for custom_clip_matrix_forward.25']
    #allocation5 [shape = 'u8[49152]{0}', space=vmem, size = 0xc000, scoped, tag = 'input window, operand 1, single buffered']
    #allocation6 [shape = 's32[1]{0}', space=sflag, size = 0x4, scoped, tag = 'scoped memory for custom_clip_matrix_forward.25']
    #allocation7 [shape = 'u8[8192]{0}', space=vmem, size = 0x2000, scoped, tag = 'output window, operand 0, single buffered']
    %7 = vsyncpa [#allocation3], 0
    %8 = vsyncpa [#allocation6], 0
    %9 = vsyncpa [#allocation4], 0
    // Predicated region
    $region2: #{custom_clip_matrix_forward.25} parent=1 // pred_check
      _
    $region3: #{custom_clip_matrix_forward.25} parent=1 // pred_check_branch
      %11 = sbr.rel (0) target = $region5
    $region4: #{custom_clip_matrix_forward.25} parent=1 // pred_region
      %s13 = ssub.s32 512, 512
      %14 = vsyncadd [#allocation3], %s13
      %s15 = sshll.u32 [#allocation2], 4
      %s16 = int_to_ptr.vmem [resolvable:$true] %s15
      %21 = dma.hbm_to_vmem [thread:$0]  %s0, 512, %s16, [#allocation3], 128, 128, 8
    $region5: #{custom_clip_matrix_forward.25} parent=1 // pred_fallthru
      _
    // Predicated region
    $region6: #{custom_clip_matrix_forward.25} parent=1 // pred_check
      _
    $region7: #{custom_clip_matrix_forward.25} parent=1 // pred_check_branch
      %23 = sbr.rel (0) target = $region9
    $region8: #{custom_clip_matrix_forward.25} parent=1 // pred_region
      %s25 = ssub.s32 1536, 1536
      %26 = vsyncadd [#allocation6], %s25
      %s27 = sshll.u32 [#allocation5], 4
      %s28 = int_to_ptr.vmem [resolvable:$true] %s27
      %33 = dma.hbm_to_vmem [thread:$0]  %s1, 1536, %s28, [#allocation6], 64, 64, 4
    $region9: #{custom_clip_matrix_forward.25} parent=1 // pred_fallthru
      _
    // Predicated region
    $region10: #{custom_clip_matrix_forward.25} parent=1 // pred_check
      _
    $region11: #{custom_clip_matrix_forward.25} parent=1 // pred_check_branch
      %35 = sbr.rel (0) target = $region13
    $region12: #{custom_clip_matrix_forward.25} parent=1 // pred_region
      %36 = dma.done [#allocation3], 512
    $region13: #{custom_clip_matrix_forward.25} parent=1 // pred_fallthru
      _
    // Predicated region
    $region14: #{custom_clip_matrix_forward.25} parent=1 // pred_check
      _
    $region15: #{custom_clip_matrix_forward.25} parent=1 // pred_check_branch
      %38 = sbr.rel (0) target = $region17
    $region16: #{custom_clip_matrix_forward.25} parent=1 // pred_region
      %39 = dma.done [#allocation6], 1536
    $region17: #{custom_clip_matrix_forward.25} parent=1 // pred_fallthru
      _
    %v41 = vld [vmem:[#allocation2] sm:$0xff]
    %v42 = vld [vmem:[#allocation2 + $0x8] sm:$0xff]
    %v43 = vld [vmem:[#allocation2 + $0x10] sm:$0xff]
    %v44 = vld [vmem:[#allocation2 + $0x18] sm:$0xff]
    %v45 = vld [vmem:[#allocation5] sm:$0xf]
    %v46 = vld [vmem:[#allocation5 + $0x4] sm:$0xf]
    %v47 = vld [vmem:[#allocation5 + $0x8] sm:$0xf]
    %v48 = vld [vmem:[#allocation5 + $0xc] sm:$0xf]
    %v49 = vld [vmem:[#allocation5 + $0x10] sm:$0xf]
    %v50 = vld [vmem:[#allocation5 + $0x14] sm:$0xf]
    %v51 = vld [vmem:[#allocation5 + $0x18] sm:$0xf]
    %v52 = vld [vmem:[#allocation5 + $0x1c] sm:$0xf]
    %v53 = vld [vmem:[#allocation5 + $0x20] sm:$0xf]
    %v54 = vld [vmem:[#allocation5 + $0x24] sm:$0xf]
    %v55 = vld [vmem:[#allocation5 + $0x28] sm:$0xf]
    %v56 = vld [vmem:[#allocation5 + $0x2c] sm:$0xf]
    %v57 = vld [vmem:[#allocation5 + $0x30] sm:$0xf]
    %v58 = vld [vmem:[#allocation5 + $0x34] sm:$0xf]
    %v59 = vld [vmem:[#allocation5 + $0x38] sm:$0xf]
    %v60 = vld [vmem:[#allocation5 + $0x3c] sm:$0xf]
    %v61 = vld [vmem:[#allocation5 + $0x40] sm:$0xf]
    %v62 = vld [vmem:[#allocation5 + $0x44] sm:$0xf]
    %v63 = vld [vmem:[#allocation5 + $0x48] sm:$0xf]
    %v64 = vld [vmem:[#allocation5 + $0x4c] sm:$0xf]
    %v65 = vld [vmem:[#allocation5 + $0x50] sm:$0xf]
    %v66 = vld [vmem:[#allocation5 + $0x54] sm:$0xf]
    %v67 = vld [vmem:[#allocation5 + $0x58] sm:$0xf]
    %v68 = vld [vmem:[#allocation5 + $0x5c] sm:$0xf]
    %v73 = vunpack.c.l.b16 %v41
    %v74 = vunpack.c.h.b16 %v41
    %v75 = vunpack.c.l.b16 %v42
    %v76 = vunpack.c.h.b16 %v42
    %v77 = vunpack.c.l.b16 %v43
    %v78 = vunpack.c.h.b16 %v43
    %v79 = vunpack.c.l.b16 %v44
    %v80 = vunpack.c.h.b16 %v44
    %v81 = vpack.c.b16 %v75, %v73
    %v82 = vpack.c.b16 %v76, %v74
    %v83 = vpack.c.b16 %v79, %v77
    %v84 = vpack.c.b16 %v80, %v78
    %v111 = vunpack.c.l.b16 %v45
    %v112 = vunpack.c.l.b16 %v46
    %v113 = vunpack.c.l.b16 %v47
    %v114 = vunpack.c.l.b16 %v48
    %v115 = vunpack.c.l.b16 %v49
    %v116 = vunpack.c.l.b16 %v50
    %v117 = vunpack.c.l.b16 %v51
    %v118 = vunpack.c.l.b16 %v52
    %v119 = vunpack.c.l.b16 %v53
    %v120 = vunpack.c.l.b16 %v54
    %v121 = vunpack.c.l.b16 %v55
    %v122 = vunpack.c.l.b16 %v56
    %v123 = vunpack.c.l.b16 %v57
    %v124 = vunpack.c.l.b16 %v58
    %v125 = vunpack.c.l.b16 %v59
    %v126 = vunpack.c.l.b16 %v60
    %v127 = vunpack.c.l.b16 %v61
    %v128 = vunpack.c.l.b16 %v62
    %v129 = vunpack.c.l.b16 %v63
    %v130 = vunpack.c.l.b16 %v64
    %v131 = vunpack.c.l.b16 %v65
    %v132 = vunpack.c.l.b16 %v66
    %v133 = vunpack.c.l.b16 %v67
    %v134 = vunpack.c.l.b16 %v68
    %v135 = vpack.c.b16 %v112, %v111
    %v136 = vpack.c.b16 %v114, %v113
    %v137 = vpack.c.b16 %v116, %v115
    %v138 = vpack.c.b16 %v118, %v117
    %v139 = vpack.c.b16 %v120, %v119
    %v140 = vpack.c.b16 %v122, %v121
    %v141 = vpack.c.b16 %v124, %v123
    %v142 = vpack.c.b16 %v126, %v125
    %v143 = vpack.c.b16 %v128, %v127
    %v144 = vpack.c.b16 %v130, %v129
    %v145 = vpack.c.b16 %v132, %v131
    %v146 = vpack.c.b16 %v134, %v133
    %vm159 = vcmask 523264
    %v161 = vsel %vm159, %v82, 0
    %v164 = vsel %vm159, %v84, 0
    %166 = vmatprep.subr.bf16.mxu0 0
    %167 = vmatpush1.bf16.msra.mxu0 %v135
    %168 = vmatprep.subr.bf16.mxu0 0
    %169 = vmatpush1.bf16.msra.mxu0 %v136
    %170 = vmatprep.subr.bf16.mxu0 0
    %171 = vmatpush1.bf16.msra.mxu0 %v137
    %172 = vmatprep.subr.bf16.mxu0 0
    %173 = vmatpush1.bf16.msra.mxu0 %v138
    %174 = vmatprep.subr.bf16.mxu0 0
    %175 = vmatpush1.bf16.msra.mxu0 %v139
    %176 = vmatprep.subr.bf16.mxu0 0
    %177 = vmatpush1.bf16.msra.mxu0 %v140
    %178 = vmatprep.subr.bf16.mxu0 0
    %179 = vmatpush1.bf16.msra.mxu0 %v141
    %180 = vmatprep.subr.bf16.mxu0 0
    %181 = vmatpush1.bf16.msra.mxu0 %v142
    %182 = vmatprep.subr.bf16.mxu0 0
    %183 = vmatpush1.bf16.msra.mxu0 %v143
    %184 = vmatprep.subr.bf16.mxu0 0
    %185 = vmatpush1.bf16.msra.mxu0 %v144
    %186 = vmatprep.subr.bf16.mxu0 0
    %187 = vmatpush1.bf16.msra.mxu0 %v145
    %188 = vmatprep.subr.bf16.mxu0 0
    %189 = vmatpush1.bf16.msra.mxu0 %v146
    %190 = vmatprep.subr.bf16.mxu0 0
    %191 = vmatpush1.bf16.msra.mxu0 0
    %192 = vmatprep.subr.bf16.mxu0 0
    %193 = vmatpush1.bf16.msra.mxu0 0
    %194 = vmatprep.subr.bf16.mxu0 0
    %195 = vmatpush1.bf16.msra.mxu0 0
    %196 = vmatprep.subr.bf16.mxu0 0
    %197 = vmatpush1.bf16.msra.mxu0 0
    %198 = vmatprep.mubr.bf16.mxu0 %v161
    %199 = vmatmul.mubr.bf16.gmra.mrb[0].mxu0 %v81
    %v200 = vpop.f32.mrb[0].mxu0
    %v201 = vadd.f32 0.0, %v200
    %v202 = vpop.f32.mrb[0].mxu0
    %v203 = vpop.f32.mrb[0].mxu0
    %v204 = vadd.f32 0.0, %v203
    %v205 = vpop.f32.mrb[0].mxu0
    %206 = vmatprep.mubr.bf16.mxu0 %v164
    %207 = vmatmul.mubr.bf16.gmra.mrb[0].mxu0 %v83
    %v208 = vpop.f32.mrb[0].mxu0
    %v209 = vadd.f32 0.0, %v208
    %v210 = vpop.f32.mrb[0].mxu0
    %v211 = vpop.f32.mrb[0].mxu0
    %v212 = vadd.f32 0.0, %v211
    %v213 = vpop.f32.mrb[0].mxu0
    %214 = vdwg.mxu0
    %v215 = vpack.c.bf16 %v204, %v201
    %v216 = vpack.c.bf16 %v212, %v209
    %v219 = vunpack.c.l.b16 %v215
    %v220 = vunpack.c.h.b16 %v215
    %v221 = vunpack.c.l.b16 %v216
    %v222 = vunpack.c.h.b16 %v216
    %v223 = vpack.c.b16 %v219, %v219
    %v224 = vpack.c.b16 %v220, %v220
    %v225 = vpack.c.b16 %v221, %v221
    %v226 = vpack.c.b16 %v222, %v222
    %vm231 = vcmask 519168
    %232 = vst.msk [vmem:[#allocation7] sm:$0xf] %vm231, %v223
    %233 = vst.msk [vmem:[#allocation7 + $0x4] sm:$0xf] %vm231, %v224
    %234 = vst.msk [vmem:[#allocation7 + $0x8] sm:$0xf] %vm231, %v225
    %235 = vst.msk [vmem:[#allocation7 + $0xc] sm:$0xf] %vm231, %v226
    // Predicated region
    $region18: #{custom_clip_matrix_forward.25} parent=1 // pred_check
      _
    $region19: #{custom_clip_matrix_forward.25} parent=1 // pred_check_branch
      %237 = sbr.rel (0) target = $region21
    $region20: #{custom_clip_matrix_forward.25} parent=1 // pred_region
      %s239 = ssub.s32 256, 256
      %240 = vsyncadd [#allocation4], %s239
      %s241 = sshll.u32 [#allocation7], 4
      %s242 = int_to_ptr.vmem [resolvable:$true] %s241
      %247 = dma.vmem_to_hbm [thread:$0]  %s242, 256, %s2, [#allocation4], 64, 64, 4
    $region21: #{custom_clip_matrix_forward.25} parent=1 // pred_fallthru
      _
    // Predicated region
    $region22: #{custom_clip_matrix_forward.25} parent=1 // pred_check
      _
    $region23: #{custom_clip_matrix_forward.25} parent=1 // pred_check_branch
      %249 = sbr.rel (0) target = $region25
    $region24: #{custom_clip_matrix_forward.25} parent=1 // pred_region
      %250 = dma.done [#allocation4], 256
    $region25: #{custom_clip_matrix_forward.25} parent=1 // pred_fallthru
      _
    %251 = vsyncpa [#allocation3], 1
    %252 = vsyncpa [#allocation6], 1
    %253 = vsyncpa [#allocation4], 1

// kernel: custom_clip_matrix_forward.27
$region0: #{custom_clip_matrix_forward.27}
  #allocation0 [shape = 'u32[]', space=smem, size = 0x4, offset = 0x4, fixed_abs, tag = 'smem constant byte address 0x4 - core index']
  #allocation1 [shape = 'u32[144,128]{1,0:T(1,128)}', space=vmem, size = 0x12000, scoped, tag = 'internal scratch']
  %s0 = inlined_call_operand.hbm [shape: bf16[34,64], index: 0, kind: input, shape index: {}]
  %s1 = inlined_call_operand.hbm [shape: bf16[64,192], index: 1, kind: input, shape index: {}]
  %s2 = inlined_call_operand.hbm [shape: bf16[1,192], index: 2, kind: input, shape index: {}]
  %s3 = inlined_call_operand.hbm [shape: bf16[1,64], index: 3, kind: input, shape index: {}]
  %s4 = inlined_call_operand.hbm [shape: bf16[1,64], index: 4, kind: input, shape index: {}]
  %s5 = inlined_call_operand.hbm [shape: bf16[34,192], index: 5, kind: output, shape index: {}]
  %s6 = sld [smem:[#allocation0]]
  $region50: #{custom_clip_matrix_forward.27} parent=0
    _
  %s8 = ssub.s32 1, %s6
  %s9 = scalar_select 0, %s8, %s6
  $region1: #{custom_clip_matrix_forward.27} parent=0
    #allocation2 [shape = 'u8[10240]{0}', space=vmem, size = 0x2800, scoped, tag = 'input window, operand 0, single buffered']
    #allocation3 [shape = 's32[1]{0}', space=sflag, size = 0x4, scoped, tag = 'scoped memory for custom_clip_matrix_forward.27']
    #allocation4 [shape = 's32[1]{0}', space=sflag, size = 0x4, scoped, tag = 'scoped memory for custom_clip_matrix_forward.27']
    #allocation5 [shape = 'u8[32768]{0}', space=vmem, size = 0x8000, scoped, tag = 'input window, operand 1, single buffered']
    #allocation6 [shape = 's32[1]{0}', space=sflag, size = 0x4, scoped, tag = 'scoped memory for custom_clip_matrix_forward.27']
    #allocation7 [shape = 'u8[1024]{0}', space=vmem, size = 0x400, scoped, tag = 'input window, operand 2, single buffered']
    #allocation8 [shape = 'u8[512]{0}', space=vmem, size = 0x400, scoped, tag = 'input window, operand 3, single buffered']
    #allocation9 [shape = 's32[1]{0}', space=sflag, size = 0x4, scoped, tag = 'scoped memory for custom_clip_matrix_forward.27']
    #allocation10 [shape = 'u8[512]{0}', space=vmem, size = 0x400, scoped, tag = 'input window, operand 4, single buffered']
    #allocation11 [shape = 'u8[20480]{0}', space=vmem, size = 0x5000, scoped, tag = 'output window, operand 0, single buffered']
    %10 = vsyncpa [#allocation3], 0
    %11 = vsyncpa [#allocation6], 0
    %12 = vsyncpa [#allocation9], 0
    %13 = vsyncpa [#allocation4], 0
    // Predicated region
    $region2: #{custom_clip_matrix_forward.27} parent=1 // pred_check
      _
    $region3: #{custom_clip_matrix_forward.27} parent=1 // pred_check_branch
      %15 = sbr.rel (0) target = $region5
    $region4: #{custom_clip_matrix_forward.27} parent=1 // pred_region
      %s17 = ssub.s32 320, 320
      %18 = vsyncadd [#allocation3], %s17
      %s19 = sshll.u32 [#allocation2], 4
      %s20 = int_to_ptr.vmem [resolvable:$true] %s19
      %25 = dma.hbm_to_vmem [thread:$0]  %s0, 320, %s20, [#allocation3], 64, 64, 4
    $region5: #{custom_clip_matrix_forward.27} parent=1 // pred_fallthru
      _
    // Predicated region
    $region6: #{custom_clip_matrix_forward.27} parent=1 // pred_check
      _
    $region7: #{custom_clip_matrix_forward.27} parent=1 // pred_check_branch
      %27 = sbr.rel (0) target = $region9
    $region8: #{custom_clip_matrix_forward.27} parent=1 // pred_region
      %s29 = ssub.s32 1024, 1024
      %30 = vsyncadd [#allocation6], %s29
      %s31 = sshll.u32 [#allocation5], 4
      %s32 = int_to_ptr.vmem [resolvable:$true] %s31
      %37 = dma.hbm_to_vmem [thread:$0]  %s1, 1024, %s32, [#allocation6], 128, 128, 8
    $region9: #{custom_clip_matrix_forward.27} parent=1 // pred_fallthru
      _
    // Predicated region
    $region10: #{custom_clip_matrix_forward.27} parent=1 // pred_check
      _
    $region11: #{custom_clip_matrix_forward.27} parent=1 // pred_check_branch
      %39 = sbr.rel (0) target = $region13
    $region12: #{custom_clip_matrix_forward.27} parent=1 // pred_region
      %s41 = ssub.s32 32, 32
      %42 = vsyncadd [#allocation6], %s41
      %s44 = sshll.u32 [#allocation7], 4
      %s45 = int_to_ptr.vmem [resolvable:$true] %s44
      %47 = dma.hbm_to_vmem [thread:$0]  %s2, 32, %s45, [#allocation6]
    $region13: #{custom_clip_matrix_forward.27} parent=1 // pred_fallthru
      _
    // Predicated region
    $region14: #{custom_clip_matrix_forward.27} parent=1 // pred_check
      _
    $region15: #{custom_clip_matrix_forward.27} parent=1 // pred_check_branch
      %49 = sbr.rel (0) target = $region17
    $region16: #{custom_clip_matrix_forward.27} parent=1 // pred_region
      %s51 = ssub.s32 16, 16
      %52 = vsyncadd [#allocation9], %s51
      %s54 = sshll.u32 [#allocation8], 4
      %s55 = int_to_ptr.vmem [resolvable:$true] %s54
      %57 = dma.hbm_to_vmem [thread:$0]  %s3, 16, %s55, [#allocation9]
    $region17: #{custom_clip_matrix_forward.27} parent=1 // pred_fallthru
      _
    // Predicated region
    $region18: #{custom_clip_matrix_forward.27} parent=1 // pred_check
      _
    $region19: #{custom_clip_matrix_forward.27} parent=1 // pred_check_branch
      %59 = sbr.rel (0) target = $region21
    $region20: #{custom_clip_matrix_forward.27} parent=1 // pred_region
      %s61 = ssub.s32 16, 16
      %62 = vsyncadd [#allocation9], %s61
      %s64 = sshll.u32 [#allocation10], 4
      %s65 = int_to_ptr.vmem [resolvable:$true] %s64
      %67 = dma.hbm_to_vmem [thread:$0]  %s4, 16, %s65, [#allocation9]
    $region21: #{custom_clip_matrix_forward.27} parent=1 // pred_fallthru
      _
    // Predicated region
    $region22: #{custom_clip_matrix_forward.27} parent=1 // pred_check
      _
    $region23: #{custom_clip_matrix_forward.27} parent=1 // pred_check_branch
      %69 = sbr.rel (0) target = $region25
    $region24: #{custom_clip_matrix_forward.27} parent=1 // pred_region
      %70 = dma.done [#allocation3], 320
    $region25: #{custom_clip_matrix_forward.27} parent=1 // pred_fallthru
      _
    // Predicated region
    $region26: #{custom_clip_matrix_forward.27} parent=1 // pred_check
      _
    $region27: #{custom_clip_matrix_forward.27} parent=1 // pred_check_branch
      %72 = sbr.rel (0) target = $region29
    $region28: #{custom_clip_matrix_forward.27} parent=1 // pred_region
      %73 = dma.done [#allocation6], 1024
    $region29: #{custom_clip_matrix_forward.27} parent=1 // pred_fallthru
      _
    // Predicated region
    $region30: #{custom_clip_matrix_forward.27} parent=1 // pred_check
      _
    $region31: #{custom_clip_matrix_forward.27} parent=1 // pred_check_branch
      %75 = sbr.rel (0) target = $region33
    $region32: #{custom_clip_matrix_forward.27} parent=1 // pred_region
      %76 = dma.done [#allocation6], 32
    $region33: #{custom_clip_matrix_forward.27} parent=1 // pred_fallthru
      _
    // Predicated region
    $region34: #{custom_clip_matrix_forward.27} parent=1 // pred_check
      _
    $region35: #{custom_clip_matrix_forward.27} parent=1 // pred_check_branch
      %78 = sbr.rel (0) target = $region37
    $region36: #{custom_clip_matrix_forward.27} parent=1 // pred_region
      %79 = dma.done [#allocation9], 16
    $region37: #{custom_clip_matrix_forward.27} parent=1 // pred_fallthru
      _
    // Predicated region
    $region38: #{custom_clip_matrix_forward.27} parent=1 // pred_check
      _
    $region39: #{custom_clip_matrix_forward.27} parent=1 // pred_check_branch
      %81 = sbr.rel (0) target = $region41
    $region40: #{custom_clip_matrix_forward.27} parent=1 // pred_region
      %82 = dma.done [#allocation9], 16
    $region41: #{custom_clip_matrix_forward.27} parent=1 // pred_fallthru
      _
    %v84 = vld [vmem:[#allocation2] sm:$0xf]
    %v85 = vld [vmem:[#allocation2 + $0x4] sm:$0xf]
    %v86 = vld [vmem:[#allocation2 + $0x8] sm:$0xf]
    %v87 = vld [vmem:[#allocation2 + $0xc] sm:$0xf]
    %v88 = vld [vmem:[#allocation2 + $0x10] sm:$0x1]
    %v89 = vunpack.c.l.bf16 %v84
    %v90 = vunpack.c.l.bf16 %v85
    %v91 = vunpack.c.l.bf16 %v86
    %v92 = vunpack.c.l.bf16 %v87
    %v93 = vunpack.c.l.bf16 %v88
    %vm94 = vcmask 523264
    %v95 = vsel %vm94, %v89, 0.0
    %96 = vadd.xlane.f32.xlu0 %v95
    %v97 = vpop.xlane.xlu0 %96
    %v98 = vsel %vm94, %v90, 0.0
    %99 = vadd.xlane.f32.xlu0 %v98
    %v100 = vpop.xlane.xlu0 %99
    %v101 = vsel %vm94, %v91, 0.0
    %102 = vadd.xlane.f32.xlu0 %v101
    %v103 = vpop.xlane.xlu0 %102
    %v104 = vsel %vm94, %v92, 0.0
    %105 = vadd.xlane.f32.xlu0 %v104
    %v106 = vpop.xlane.xlu0 %105
    %vm107 = vcmask 517120
    %v108 = vsel %vm107, %v93, 0.0
    %109 = vadd.xlane.f32.xlu0 %v108
    %v110 = vpop.xlane.xlu0 %109
    %v111 = vrcp.pop 64.0
    %v112 = vmul.f32 %v97, %v111
    %v113 = vmul.f32 %v100, %v111
    %v114 = vmul.f32 %v103, %v111
    %v115 = vmul.f32 %v106, %v111
    %v116 = vmul.f32 %v110, %v111
    %v117 = vsub.f32 %v89, %v112
    %v118 = vsub.f32 %v90, %v113
    %v119 = vsub.f32 %v91, %v114
    %v120 = vsub.f32 %v92, %v115
    %v121 = vsub.f32 %v93, %v116
    %v122 = vmul.f32 %v117, %v117
    %v123 = vmul.f32 %v118, %v118
    %v124 = vmul.f32 %v119, %v119
    %v125 = vmul.f32 %v120, %v120
    %v126 = vmul.f32 %v121, %v121
    %v127 = vsel %vm94, %v122, 0.0
    %128 = vadd.xlane.f32.xlu0 %v127
    %v129 = vpop.xlane.xlu0 %128
    %v130 = vsel %vm94, %v123, 0.0
    %131 = vadd.xlane.f32.xlu0 %v130
    %v132 = vpop.xlane.xlu0 %131
    %v133 = vsel %vm94, %v124, 0.0
    %134 = vadd.xlane.f32.xlu0 %v133
    %v135 = vpop.xlane.xlu0 %134
    %v136 = vsel %vm94, %v125, 0.0
    %137 = vadd.xlane.f32.xlu0 %v136
    %v138 = vpop.xlane.xlu0 %137
    %v139 = vsel %vm107, %v126, 0.0
    %140 = vadd.xlane.f32.xlu0 %v139
    %v141 = vpop.xlane.xlu0 %140
    %v142 = vmul.f32 %v129, %v111
    %v143 = vmul.f32 %v132, %v111
    %v144 = vmul.f32 %v135, %v111
    %v145 = vmul.f32 %v138, %v111
    %v146 = vmul.f32 %v141, %v111
    %v147 = vadd.f32 %v142, 1e-05
    %v148 = vadd.f32 %v143, 1e-05
    %v149 = vadd.f32 %v144, 1e-05
    %v150 = vadd.f32 %v145, 1e-05
    %v151 = vadd.f32 %v146, 1e-05
    %v152 = vrsqrt.pop %v147
    %v153 = vrsqrt.pop %v148
    %v154 = vrsqrt.pop %v149
    %v155 = vrsqrt.pop %v150
    %v156 = vrsqrt.pop %v151
    %v157 = vmul.f32 %v117, %v152
    %v158 = vmul.f32 %v118, %v153
    %v159 = vmul.f32 %v119, %v154
    %v160 = vmul.f32 %v120, %v155
    %v161 = vmul.f32 %v121, %v156
    %v162 = vld [vmem:[#allocation8] sm:$0x1]
    %v163 = vunpack.c.l.bf16 %v162
    %v164 = vlaneseq
    %v165 = vshrl.u32 %v164, 7
    %v166 = vsub.s32 0, %v165
    %v167 = vrot.slane %v163, %v166
    %v168 = vmul.f32 %v157, %v167
    %v169 = vmul.f32 %v158, %v167
    %v170 = vmul.f32 %v159, %v167
    %v171 = vmul.f32 %v160, %v167
    %v172 = vmul.f32 %v161, %v167
    %v173 = vld [vmem:[#allocation10] sm:$0x1]
    %v174 = vunpack.c.l.bf16 %v173
    %v175 = vlaneseq
    %v176 = vshrl.u32 %v175, 7
    %v177 = vsub.s32 0, %v176
    %v178 = vrot.slane %v174, %v177
    %v179 = vadd.f32 %v168, %v178
    %v180 = vadd.f32 %v169, %v178
    %v181 = vadd.f32 %v170, %v178
    %v182 = vadd.f32 %v171, %v178
    %v183 = vadd.f32 %v172, %v178
    %v184 = vpack.c.bf16 %v180, %v179
    %v185 = vpack.c.bf16 %v182, %v181
    %v186 = vpack.c.bf16 %v183, %v183
    %v187 = vld [vmem:[#allocation5] sm:$0xff]
    %v188 = vld [vmem:[#allocation5 + $0x8] sm:$0xff]
    %v189 = vld [vmem:[#allocation5 + $0x10] sm:$0xff]
    %v190 = vld [vmem:[#allocation5 + $0x18] sm:$0xff]
    %v191 = vld [vmem:[#allocation5 + $0x20] sm:$0xff]
    %v192 = vld [vmem:[#allocation5 + $0x28] sm:$0xff]
    %v193 = vld [vmem:[#allocation5 + $0x30] sm:$0xff]
    %v194 = vld [vmem:[#allocation5 + $0x38] sm:$0xff]
    %v195 = vld [vmem:[#allocation7] sm:$0x3]
    %v196 = vunpack.c.l.bf16 %v195
    %v198 = vlaneseq
    %v199 = vshrl.u32 %v198, 7
    %v200 = vsub.s32 0, %v199
    %v201 = vrot.slane %v196, %v200
    %v202 = vlaneseq
    %v203 = vshrl.u32 %v202, 7
    %v204 = vsub.s32 2, %v203
    %v205 = vrot.slane %v196, %v204
    %v208 = vlaneseq
    %v209 = vshrl.u32 %v208, 7
    %v210 = vsub.s32 0, %v209
    %v211 = vrot.slane %v201, %v210
    %v212 = vlaneseq
    %v213 = vshrl.u32 %v212, 7
    %v214 = vsub.s32 0, %v213
    %v215 = vrot.slane %v205, %v214
    %v224 = vunpack.c.l.b16 %v187
    %v225 = vunpack.c.h.b16 %v187
    %v226 = vunpack.c.l.b16 %v188
    %v227 = vunpack.c.h.b16 %v188
    %v228 = vunpack.c.l.b16 %v189
    %v229 = vunpack.c.h.b16 %v189
    %v230 = vunpack.c.l.b16 %v190
    %v231 = vunpack.c.h.b16 %v190
    %v232 = vunpack.c.l.b16 %v191
    %v233 = vunpack.c.h.b16 %v191
    %v234 = vunpack.c.l.b16 %v192
    %v235 = vunpack.c.h.b16 %v192
    %v236 = vunpack.c.l.b16 %v193
    %v237 = vunpack.c.h.b16 %v193
    %v238 = vunpack.c.l.b16 %v194
    %v239 = vunpack.c.h.b16 %v194
    %v240 = vpack.c.b16 %v226, %v224
    %v241 = vpack.c.b16 %v227, %v225
    %v242 = vpack.c.b16 %v230, %v228
    %v243 = vpack.c.b16 %v231, %v229
    %v244 = vpack.c.b16 %v234, %v232
    %v245 = vpack.c.b16 %v235, %v233
    %v246 = vpack.c.b16 %v238, %v236
    %v247 = vpack.c.b16 %v239, %v237
    %v257 = vsel %vm94, %v184, 0
    %v260 = vsel %vm94, %v185, 0
    %v263 = vsel %vm94, %v186, 0
    %265 = vmatprep.subr.bf16.mxu0 %v241
    %266 = vmatpush1.bf16.msra.mxu0 %v240
    %267 = vmatprep.subr.bf16.mxu0 %v243
    %268 = vmatpush1.bf16.msra.mxu0 %v242
    %269 = vmatprep.subr.bf16.mxu0 %v245
    %270 = vmatpush1.bf16.msra.mxu0 %v244
    %271 = vmatprep.subr.bf16.mxu0 %v247
    %272 = vmatpush1.bf16.msra.mxu0 %v246
    %273 = vmatprep.subr.bf16.mxu0 0
    %274 = vmatpush1.bf16.msra.mxu0 0
    %275 = vmatprep.subr.bf16.mxu0 0
    %276 = vmatpush1.bf16.msra.mxu0 0
    %277 = vmatprep.subr.bf16.mxu0 0
    %278 = vmatpush1.bf16.msra.mxu0 0
    %279 = vmatprep.subr.bf16.mxu0 0
    %280 = vmatpush1.bf16.msra.mxu0 0
    %281 = vmatprep.subr.bf16.mxu0 0
    %282 = vmatpush1.bf16.msra.mxu0 0
    %283 = vmatprep.subr.bf16.mxu0 0
    %284 = vmatpush1.bf16.msra.mxu0 0
    %285 = vmatprep.subr.bf16.mxu0 0
    %286 = vmatpush1.bf16.msra.mxu0 0
    %287 = vmatprep.subr.bf16.mxu0 0
    %288 = vmatpush1.bf16.msra.mxu0 0
    %289 = vmatprep.subr.bf16.mxu0 0
    %290 = vmatpush1.bf16.msra.mxu0 0
    %291 = vmatprep.subr.bf16.mxu0 0
    %292 = vmatpush1.bf16.msra.mxu0 0
    %293 = vmatprep.subr.bf16.mxu0 0
    %294 = vmatpush1.bf16.msra.mxu0 0
    %295 = vmatprep.subr.bf16.mxu0 0
    %296 = vmatpush1.bf16.msra.mxu0 0
    %297 = vmatprep.mubr.bf16.mxu0 0
    %298 = vmatmul.mubr.bf16.gmra.mrb[0].mxu0 %v257
    %v299 = vpop.f32.mrb[0].mxu0
    %v300 = vadd.f32 %v211, %v299
    %v301 = vpop.f32.mrb[0].mxu0
    %v302 = vadd.f32 %v215, %v301
    %v303 = vpop.f32.mrb[0].mxu0
    %v304 = vadd.f32 %v211, %v303
    %v305 = vpop.f32.mrb[0].mxu0
    %v306 = vadd.f32 %v215, %v305
    %307 = vmatprep.mubr.bf16.mxu0 0
    %308 = vmatmul.mubr.bf16.gmra.mrb[0].mxu0 %v260
    %v309 = vpop.f32.mrb[0].mxu0
    %v310 = vadd.f32 %v211, %v309
    %v311 = vpop.f32.mrb[0].mxu0
    %v312 = vadd.f32 %v215, %v311
    %v313 = vpop.f32.mrb[0].mxu0
    %v314 = vadd.f32 %v211, %v313
    %v315 = vpop.f32.mrb[0].mxu0
    %v316 = vadd.f32 %v215, %v315
    %317 = vmatprep.mubr.bf16.mxu0 0
    %318 = vmatmul.mubr.bf16.gmra.mrb[0].mxu0 %v263
    %v319 = vpop.f32.mrb[0].mxu0
    %v320 = vadd.f32 %v211, %v319
    %v321 = vpop.f32.mrb[0].mxu0
    %v322 = vadd.f32 %v215, %v321
    %v323 = vpop.f32.mrb[0].mxu0
    %v324 = vpop.f32.mrb[0].mxu0
    %325 = vdwg.mxu0
    %v326 = vpack.c.bf16 %v304, %v300
    %v327 = vpack.c.bf16 %v306, %v302
    %v328 = vpack.c.bf16 %v314, %v310
    %v329 = vpack.c.bf16 %v316, %v312
    %v330 = vpack.c.bf16 %v320, %v320
    %v331 = vpack.c.bf16 %v322, %v322
    %v338 = vunpack.c.l.b16 %v326
    %v339 = vunpack.c.l.b16 %v327
    %v340 = vunpack.c.h.b16 %v326
    %v341 = vunpack.c.h.b16 %v327
    %v342 = vunpack.c.l.b16 %v328
    %v343 = vunpack.c.l.b16 %v329
    %v344 = vunpack.c.h.b16 %v328
    %v345 = vunpack.c.h.b16 %v329
    %v346 = vunpack.c.l.b16 %v330
    %v347 = vunpack.c.l.b16 %v331
    %v348 = vpack.c.b16 %v339, %v338
    %v349 = vpack.c.b16 %v341, %v340
    %v350 = vpack.c.b16 %v343, %v342
    %v351 = vpack.c.b16 %v345, %v344
    %v352 = vpack.c.b16 %v347, %v346
    %vm358 = vcmask 1043456
    %vm359 = vcmask 523268
    %vm360 = vmor %vm359, %vm358
    %361 = vst.msk [vmem:[#allocation11] sm:$0xff] %vm360, %v348
    %362 = vst.msk [vmem:[#allocation11 + $0x8] sm:$0xff] %vm360, %v349
    %363 = vst.msk [vmem:[#allocation11 + $0x10] sm:$0xff] %vm360, %v350
    %364 = vst.msk [vmem:[#allocation11 + $0x18] sm:$0xff] %vm360, %v351
    %vm365 = vcmask 1040384
    %vm366 = vcmask 520196
    %vm367 = vmor %vm366, %vm365
    %368 = vst.msk [vmem:[#allocation11 + $0x20] sm:$0x11] %vm367, %v352
    // Predicated region
    $region42: #{custom_clip_matrix_forward.27} parent=1 // pred_check
      _
    $region43: #{custom_clip_matrix_forward.27} parent=1 // pred_check_branch
      %370 = sbr.rel (0) target = $region45
    $region44: #{custom_clip_matrix_forward.27} parent=1 // pred_region
      %s372 = ssub.s32 640, 640
      %373 = vsyncadd [#allocation4], %s372
      %s374 = sshll.u32 [#allocation11], 4
      %s375 = int_to_ptr.vmem [resolvable:$true] %s374
      %380 = dma.vmem_to_hbm [thread:$0]  %s375, 640, %s5, [#allocation4], 128, 128, 8
    $region45: #{custom_clip_matrix_forward.27} parent=1 // pred_fallthru
      _
    // Predicated region
    $region46: #{custom_clip_matrix_forward.27} parent=1 // pred_check
      _
    $region47: #{custom_clip_matrix_forward.27} parent=1 // pred_check_branch
      %382 = sbr.rel (0) target = $region49
    $region48: #{custom_clip_matrix_forward.27} parent=1 // pred_region
      %383 = dma.done [#allocation4], 640
    $region49: #{custom_clip_matrix_forward.27} parent=1 // pred_fallthru
      _
    %384 = vsyncpa [#allocation3], 1
    %385 = vsyncpa [#allocation6], 1
    %386 = vsyncpa [#allocation9], 1
    %387 = vsyncpa [#allocation4], 1

// kernel: custom_clip_matrix_forward.29
$region0: #{custom_clip_matrix_forward.29}
  #allocation0 [shape = 'u32[]', space=smem, size = 0x4, offset = 0x4, fixed_abs, tag = 'smem constant byte address 0x4 - core index']
  #allocation1 [shape = 'u32[144,128]{1,0:T(1,128)}', space=vmem, size = 0x12000, scoped, tag = 'internal scratch']
  %s0 = inlined_call_operand.hbm [shape: bf16[34,64], index: 0, kind: input, shape index: {}]
  %s1 = inlined_call_operand.hbm [shape: bf16[64,64], index: 1, kind: input, shape index: {}]
  %s2 = inlined_call_operand.hbm [shape: bf16[34,64], index: 2, kind: input, shape index: {}]
  %s3 = inlined_call_operand.hbm [shape: bf16[1,64], index: 3, kind: input, shape index: {}]
  %s4 = inlined_call_operand.hbm [shape: bf16[34,64], index: 4, kind: output, shape index: {}]
  %s5 = sld [smem:[#allocation0]]
  $region42: #{custom_clip_matrix_forward.29} parent=0
    _
  %s7 = ssub.s32 1, %s5
  %s8 = scalar_select 0, %s7, %s5
  $region1: #{custom_clip_matrix_forward.29} parent=0
    #allocation2 [shape = 'u8[10240]{0}', space=vmem, size = 0x2800, scoped, tag = 'input window, operand 0, single buffered']
    #allocation3 [shape = 's32[1]{0}', space=sflag, size = 0x4, scoped, tag = 'scoped memory for custom_clip_matrix_forward.29']
    #allocation4 [shape = 's32[1]{0}', space=sflag, size = 0x4, scoped, tag = 'scoped memory for custom_clip_matrix_forward.29']
    #allocation5 [shape = 'u8[16384]{0}', space=vmem, size = 0x4000, scoped, tag = 'input window, operand 1, single buffered']
    #allocation6 [shape = 's32[1]{0}', space=sflag, size = 0x4, scoped, tag = 'scoped memory for custom_clip_matrix_forward.29']
    #allocation7 [shape = 'u8[10240]{0}', space=vmem, size = 0x2800, scoped, tag = 'input window, operand 2, single buffered']
    #allocation8 [shape = 'u8[512]{0}', space=vmem, size = 0x400, scoped, tag = 'input window, operand 3, single buffered']
    #allocation9 [shape = 's32[1]{0}', space=sflag, size = 0x4, scoped, tag = 'scoped memory for custom_clip_matrix_forward.29']
    #allocation10 [shape = 'u8[10240]{0}', space=vmem, size = 0x2800, scoped, tag = 'output window, operand 0, single buffered']
    %9 = vsyncpa [#allocation3], 0
    %10 = vsyncpa [#allocation6], 0
    %11 = vsyncpa [#allocation9], 0
    %12 = vsyncpa [#allocation4], 0
    // Predicated region
    $region2: #{custom_clip_matrix_forward.29} parent=1 // pred_check
      _
    $region3: #{custom_clip_matrix_forward.29} parent=1 // pred_check_branch
      %14 = sbr.rel (0) target = $region5
    $region4: #{custom_clip_matrix_forward.29} parent=1 // pred_region
      %s16 = ssub.s32 320, 320
      %17 = vsyncadd [#allocation3], %s16
      %s18 = sshll.u32 [#allocation2], 4
      %s19 = int_to_ptr.vmem [resolvable:$true] %s18
      %24 = dma.hbm_to_vmem [thread:$0]  %s0, 320, %s19, [#allocation3], 64, 64, 4
    $region5: #{custom_clip_matrix_forward.29} parent=1 // pred_fallthru
      _
    // Predicated region
    $region6: #{custom_clip_matrix_forward.29} parent=1 // pred_check
      _
    $region7: #{custom_clip_matrix_forward.29} parent=1 // pred_check_branch
      %26 = sbr.rel (0) target = $region9
    $region8: #{custom_clip_matrix_forward.29} parent=1 // pred_region
      %s28 = ssub.s32 512, 512
      %29 = vsyncadd [#allocation6], %s28
      %s30 = sshll.u32 [#allocation5], 4
      %s31 = int_to_ptr.vmem [resolvable:$true] %s30
      %36 = dma.hbm_to_vmem [thread:$0]  %s1, 512, %s31, [#allocation6], 64, 64, 4
    $region9: #{custom_clip_matrix_forward.29} parent=1 // pred_fallthru
      _
    // Predicated region
    $region10: #{custom_clip_matrix_forward.29} parent=1 // pred_check
      _
    $region11: #{custom_clip_matrix_forward.29} parent=1 // pred_check_branch
      %38 = sbr.rel (0) target = $region13
    $region12: #{custom_clip_matrix_forward.29} parent=1 // pred_region
      %s40 = ssub.s32 320, 320
      %41 = vsyncadd [#allocation6], %s40
      %s42 = sshll.u32 [#allocation7], 4
      %s43 = int_to_ptr.vmem [resolvable:$true] %s42
      %48 = dma.hbm_to_vmem [thread:$0]  %s2, 320, %s43, [#allocation6], 64, 64, 4
    $region13: #{custom_clip_matrix_forward.29} parent=1 // pred_fallthru
      _
    // Predicated region
    $region14: #{custom_clip_matrix_forward.29} parent=1 // pred_check
      _
    $region15: #{custom_clip_matrix_forward.29} parent=1 // pred_check_branch
      %50 = sbr.rel (0) target = $region17
    $region16: #{custom_clip_matrix_forward.29} parent=1 // pred_region
      %s52 = ssub.s32 16, 16
      %53 = vsyncadd [#allocation9], %s52
      %s55 = sshll.u32 [#allocation8], 4
      %s56 = int_to_ptr.vmem [resolvable:$true] %s55
      %58 = dma.hbm_to_vmem [thread:$0]  %s3, 16, %s56, [#allocation9]
    $region17: #{custom_clip_matrix_forward.29} parent=1 // pred_fallthru
      _
    // Predicated region
    $region18: #{custom_clip_matrix_forward.29} parent=1 // pred_check
      _
    $region19: #{custom_clip_matrix_forward.29} parent=1 // pred_check_branch
      %60 = sbr.rel (0) target = $region21
    $region20: #{custom_clip_matrix_forward.29} parent=1 // pred_region
      %61 = dma.done [#allocation3], 320
    $region21: #{custom_clip_matrix_forward.29} parent=1 // pred_fallthru
      _
    // Predicated region
    $region22: #{custom_clip_matrix_forward.29} parent=1 // pred_check
      _
    $region23: #{custom_clip_matrix_forward.29} parent=1 // pred_check_branch
      %63 = sbr.rel (0) target = $region25
    $region24: #{custom_clip_matrix_forward.29} parent=1 // pred_region
      %64 = dma.done [#allocation6], 512
    $region25: #{custom_clip_matrix_forward.29} parent=1 // pred_fallthru
      _
    // Predicated region
    $region26: #{custom_clip_matrix_forward.29} parent=1 // pred_check
      _
    $region27: #{custom_clip_matrix_forward.29} parent=1 // pred_check_branch
      %66 = sbr.rel (0) target = $region29
    $region28: #{custom_clip_matrix_forward.29} parent=1 // pred_region
      %67 = dma.done [#allocation6], 320
    $region29: #{custom_clip_matrix_forward.29} parent=1 // pred_fallthru
      _
    // Predicated region
    $region30: #{custom_clip_matrix_forward.29} parent=1 // pred_check
      _
    $region31: #{custom_clip_matrix_forward.29} parent=1 // pred_check_branch
      %69 = sbr.rel (0) target = $region33
    $region32: #{custom_clip_matrix_forward.29} parent=1 // pred_region
      %70 = dma.done [#allocation9], 16
    $region33: #{custom_clip_matrix_forward.29} parent=1 // pred_fallthru
      _
    %v72 = vld [vmem:[#allocation2] sm:$0xf]
    %v73 = vld [vmem:[#allocation2 + $0x4] sm:$0xf]
    %v74 = vld [vmem:[#allocation2 + $0x8] sm:$0xf]
    %v75 = vld [vmem:[#allocation2 + $0xc] sm:$0xf]
    %v76 = vld [vmem:[#allocation2 + $0x10] sm:$0x1]
    %v77 = vld [vmem:[#allocation5] sm:$0xf]
    %v78 = vld [vmem:[#allocation5 + $0x4] sm:$0xf]
    %v79 = vld [vmem:[#allocation5 + $0x8] sm:$0xf]
    %v80 = vld [vmem:[#allocation5 + $0xc] sm:$0xf]
    %v81 = vld [vmem:[#allocation5 + $0x10] sm:$0xf]
    %v82 = vld [vmem:[#allocation5 + $0x14] sm:$0xf]
    %v83 = vld [vmem:[#allocation5 + $0x18] sm:$0xf]
    %v84 = vld [vmem:[#allocation5 + $0x1c] sm:$0xf]
    %v85 = vld [vmem:[#allocation8] sm:$0x1]
    %v86 = vunpack.c.l.bf16 %v85
    %v87 = vlaneseq
    %v88 = vshrl.u32 %v87, 7
    %v89 = vsub.s32 0, %v88
    %v90 = vrot.slane %v86, %v89
    %v96 = vunpack.c.l.b16 %v72
    %v97 = vunpack.c.l.b16 %v73
    %v98 = vunpack.c.l.b16 %v74
    %v99 = vunpack.c.l.b16 %v75
    %v100 = vunpack.c.l.b16 %v76
    %v101 = vpack.c.b16 %v97, %v96
    %v102 = vpack.c.b16 %v99, %v98
    %v103 = vpack.c.b16 %v100, %v100
    %v112 = vunpack.c.l.b16 %v77
    %v113 = vunpack.c.l.b16 %v78
    %v114 = vunpack.c.l.b16 %v79
    %v115 = vunpack.c.l.b16 %v80
    %v116 = vunpack.c.l.b16 %v81
    %v117 = vunpack.c.l.b16 %v82
    %v118 = vunpack.c.l.b16 %v83
    %v119 = vunpack.c.l.b16 %v84
    %v120 = vpack.c.b16 %v113, %v112
    %v121 = vpack.c.b16 %v115, %v114
    %v122 = vpack.c.b16 %v117, %v116
    %v123 = vpack.c.b16 %v119, %v118
    %vm128 = vcmask 523264
    %v130 = vsel %vm128, %v101, 0
    %v133 = vsel %vm128, %v102, 0
    %v136 = vsel %vm128, %v103, 0
    %138 = vmatprep.subr.bf16.mxu0 0
    %139 = vmatpush1.bf16.msra.mxu0 %v120
    %140 = vmatprep.subr.bf16.mxu0 0
    %141 = vmatpush1.bf16.msra.mxu0 %v121
    %142 = vmatprep.subr.bf16.mxu0 0
    %143 = vmatpush1.bf16.msra.mxu0 %v122
    %144 = vmatprep.subr.bf16.mxu0 0
    %145 = vmatpush1.bf16.msra.mxu0 %v123
    %146 = vmatprep.subr.bf16.mxu0 0
    %147 = vmatpush1.bf16.msra.mxu0 0
    %148 = vmatprep.subr.bf16.mxu0 0
    %149 = vmatpush1.bf16.msra.mxu0 0
    %150 = vmatprep.subr.bf16.mxu0 0
    %151 = vmatpush1.bf16.msra.mxu0 0
    %152 = vmatprep.subr.bf16.mxu0 0
    %153 = vmatpush1.bf16.msra.mxu0 0
    %154 = vmatprep.subr.bf16.mxu0 0
    %155 = vmatpush1.bf16.msra.mxu0 0
    %156 = vmatprep.subr.bf16.mxu0 0
    %157 = vmatpush1.bf16.msra.mxu0 0
    %158 = vmatprep.subr.bf16.mxu0 0
    %159 = vmatpush1.bf16.msra.mxu0 0
    %160 = vmatprep.subr.bf16.mxu0 0
    %161 = vmatpush1.bf16.msra.mxu0 0
    %162 = vmatprep.subr.bf16.mxu0 0
    %163 = vmatpush1.bf16.msra.mxu0 0
    %164 = vmatprep.subr.bf16.mxu0 0
    %165 = vmatpush1.bf16.msra.mxu0 0
    %166 = vmatprep.subr.bf16.mxu0 0
    %167 = vmatpush1.bf16.msra.mxu0 0
    %168 = vmatprep.subr.bf16.mxu0 0
    %169 = vmatpush1.bf16.msra.mxu0 0
    %170 = vmatprep.mubr.bf16.mxu0 0
    %171 = vmatmul.mubr.bf16.gmra.mrb[0].mxu0 %v130
    %v172 = vpop.f32.mrb[0].mxu0
    %v173 = vadd.f32 %v90, %v172
    %v174 = vpop.f32.mrb[0].mxu0
    %v175 = vpop.f32.mrb[0].mxu0
    %v176 = vadd.f32 %v90, %v175
    %v177 = vpop.f32.mrb[0].mxu0
    %178 = vmatprep.mubr.bf16.mxu0 0
    %179 = vmatmul.mubr.bf16.gmra.mrb[0].mxu0 %v133
    %v180 = vpop.f32.mrb[0].mxu0
    %v181 = vadd.f32 %v90, %v180
    %v182 = vpop.f32.mrb[0].mxu0
    %v183 = vpop.f32.mrb[0].mxu0
    %v184 = vadd.f32 %v90, %v183
    %v185 = vpop.f32.mrb[0].mxu0
    %186 = vmatprep.mubr.bf16.mxu0 0
    %187 = vmatmul.mubr.bf16.gmra.mrb[0].mxu0 %v136
    %v188 = vpop.f32.mrb[0].mxu0
    %v189 = vadd.f32 %v90, %v188
    %v190 = vpop.f32.mrb[0].mxu0
    %v191 = vpop.f32.mrb[0].mxu0
    %v192 = vpop.f32.mrb[0].mxu0
    %193 = vdwg.mxu0
    %v194 = vld [vmem:[#allocation7] sm:$0xf]
    %v195 = vld [vmem:[#allocation7 + $0x4] sm:$0xf]
    %v196 = vld [vmem:[#allocation7 + $0x8] sm:$0xf]
    %v197 = vld [vmem:[#allocation7 + $0xc] sm:$0xf]
    %v198 = vld [vmem:[#allocation7 + $0x10] sm:$0x1]
    %v199 = vunpack.c.l.bf16 %v194
    %v200 = vunpack.c.l.bf16 %v195
    %v201 = vunpack.c.l.bf16 %v196
    %v202 = vunpack.c.l.bf16 %v197
    %v203 = vunpack.c.l.bf16 %v198
    %v204 = vadd.f32 %v173, %v199
    %v205 = vadd.f32 %v176, %v200
    %v206 = vadd.f32 %v181, %v201
    %v207 = vadd.f32 %v184, %v202
    %v208 = vadd.f32 %v189, %v203
    %v209 = vpack.c.bf16 %v205, %v204
    %v210 = vpack.c.bf16 %v207, %v206
    %v211 = vpack.c.bf16 %v208, %v208
    %v215 = vunpack.c.l.b16 %v209
    %v216 = vunpack.c.h.b16 %v209
    %v217 = vunpack.c.l.b16 %v210
    %v218 = vunpack.c.h.b16 %v210
    %v219 = vunpack.c.l.b16 %v211
    %v220 = vpack.c.b16 %v215, %v215
    %v221 = vpack.c.b16 %v216, %v216
    %v222 = vpack.c.b16 %v217, %v217
    %v223 = vpack.c.b16 %v218, %v218
    %v224 = vpack.c.b16 %v219, %v219
    %vm230 = vcmask 519168
    %231 = vst.msk [vmem:[#allocation10] sm:$0xf] %vm230, %v220
    %232 = vst.msk [vmem:[#allocation10 + $0x4] sm:$0xf] %vm230, %v221
    %233 = vst.msk [vmem:[#allocation10 + $0x8] sm:$0xf] %vm230, %v222
    %234 = vst.msk [vmem:[#allocation10 + $0xc] sm:$0xf] %vm230, %v223
    %vm235 = vcmask 516096
    %236 = vst.msk [vmem:[#allocation10 + $0x10] sm:$0x1] %vm235, %v224
    // Predicated region
    $region34: #{custom_clip_matrix_forward.29} parent=1 // pred_check
      _
    $region35: #{custom_clip_matrix_forward.29} parent=1 // pred_check_branch
      %238 = sbr.rel (0) target = $region37
    $region36: #{custom_clip_matrix_forward.29} parent=1 // pred_region
      %s240 = ssub.s32 320, 320
      %241 = vsyncadd [#allocation4], %s240
      %s242 = sshll.u32 [#allocation10], 4
      %s243 = int_to_ptr.vmem [resolvable:$true] %s242
      %248 = dma.vmem_to_hbm [thread:$0]  %s243, 320, %s4, [#allocation4], 64, 64, 4
    $region37: #{custom_clip_matrix_forward.29} parent=1 // pred_fallthru
      _
    // Predicated region
    $region38: #{custom_clip_matrix_forward.29} parent=1 // pred_check
      _
    $region39: #{custom_clip_matrix_forward.29} parent=1 // pred_check_branch
      %250 = sbr.rel (0) target = $region41
    $region40: #{custom_clip_matrix_forward.29} parent=1 // pred_region
      %251 = dma.done [#allocation4], 320
    $region41: #{custom_clip_matrix_forward.29} parent=1 // pred_fallthru
      _
    %252 = vsyncpa [#allocation3], 1
    %253 = vsyncpa [#allocation6], 1
    %254 = vsyncpa [#allocation9], 1
    %255 = vsyncpa [#allocation4], 1

// kernel: custom_clip_matrix_forward.28
$region0: #{custom_clip_matrix_forward.28}
  #allocation0 [shape = 'u32[]', space=smem, size = 0x4, offset = 0x4, fixed_abs, tag = 'smem constant byte address 0x4 - core index']
  #allocation1 [shape = 'u32[144,128]{1,0:T(1,128)}', space=vmem, size = 0x12000, scoped, tag = 'internal scratch']
  %s0 = inlined_call_operand.vmem [shape: bf16[2,17,192], index: 0, kind: input, shape index: {}]
  %s1 = inlined_call_operand.vmem [shape: bf16[2,17,64], index: 1, kind: output, shape index: {}]
  %s2 = sld [smem:[#allocation0]]
  $region14: #{custom_clip_matrix_forward.28} parent=0
    _
  %s4 = ssub.s32 1, %s2
  %s5 = scalar_select 0, %s4, %s2
  // Predicated region
  $region2: #{custom_clip_matrix_forward.28} parent=0 // pred_check
    _
  $region3: #{custom_clip_matrix_forward.28} parent=0 // pred_check_branch
    %7 = sbr.rel (0) target = $region5
  $region4: #{custom_clip_matrix_forward.28} parent=0 // pred_region
    _
  $region5: #{custom_clip_matrix_forward.28} parent=0 // pred_fallthru
    _
  %v10 = vld [vmem:[%s0] sm:$0xf]
  %v11 = vld [vmem:[%s0 + $0x8] sm:$0xf]
  %v12 = vld [vmem:[%s0 + $0x10] sm:$0x1]
  %v13 = vld [vmem:[%s0 + $0x18] sm:$0xf]
  %v14 = vld [vmem:[%s0 + $0x20] sm:$0xf]
  %v15 = vld [vmem:[%s0 + $0x28] sm:$0x1]
  %v16 = vmul.bf16 %v10, 1048592000
  %v17 = vmul.bf16 %v11, 1048592000
  %v18 = vmul.bf16 %v12, 1048592000
  %v19 = vmul.bf16 %v13, 1048592000
  %v20 = vmul.bf16 %v14, 1048592000
  %v21 = vmul.bf16 %v15, 1048592000
  %v22 = vld [vmem:[%s0 + $0x4] sm:$0xf]
  %v23 = vld [vmem:[%s0 + $0xc] sm:$0xf]
  %v24 = vld [vmem:[%s0 + $0x14] sm:$0x1]
  %v25 = vld [vmem:[%s0 + $0x1c] sm:$0xf]
  %v26 = vld [vmem:[%s0 + $0x24] sm:$0xf]
  %v27 = vld [vmem:[%s0 + $0x2c] sm:$0x1]
  %v31 = vunpack.c.l.b16 %v16
  %v32 = vunpack.c.l.b16 %v17
  %v33 = vunpack.c.l.b16 %v18
  %v34 = vpack.c.b16 %v32, %v31
  %v35 = vpack.c.b16 %v33, %v33
  %v39 = vunpack.c.l.b16 %v10
  %v40 = vunpack.c.l.b16 %v11
  %v41 = vunpack.c.l.b16 %v12
  %v42 = vpack.c.b16 %v40, %v39
  %v43 = vpack.c.b16 %v41, %v41
  %44 = vrot.lane.b32.xlu0 %v42, 64
  %v45 = vpop.permute.xlu0 %44
  %46 = vrot.lane.b32.xlu0 %v43, 64
  %v47 = vpop.permute.xlu0 %46
  %vm48 = vcmask 130048
  %v50 = vsel %vm48, %v34, 0
  %v53 = vsel %vm48, %v35, 0
  %v56 = vsel %vm48, %v45, 0
  %v59 = vsel %vm48, %v47, 0
  %61 = vmatprep.subr.bf16.mxu0 0
  %62 = vmatpush1.bf16.xpose.msra.mxu0 %v56
  %63 = vmatprep.subr.bf16.mxu0 0
  %64 = vmatpush1.bf16.xpose.msra.mxu0 %v59
  %65 = vmatprep.subr.bf16.mxu0 0
  %66 = vmatpush1.bf16.xpose.msra.mxu0 0
  %67 = vmatprep.subr.bf16.mxu0 0
  %68 = vmatpush1.bf16.xpose.msra.mxu0 0
  %69 = vmatprep.subr.bf16.mxu0 0
  %70 = vmatpush1.bf16.xpose.msra.mxu0 0
  %71 = vmatprep.subr.bf16.mxu0 0
  %72 = vmatpush1.bf16.xpose.msra.mxu0 0
  %73 = vmatprep.subr.bf16.mxu0 0
  %74 = vmatpush1.bf16.xpose.msra.mxu0 0
  %75 = vmatprep.subr.bf16.mxu0 0
  %76 = vmatpush1.bf16.xpose.msra.mxu0 0
  %77 = vmatprep.subr.bf16.mxu0 0
  %78 = vmatpush1.bf16.xpose.msra.mxu0 0
  %79 = vmatprep.subr.bf16.mxu0 0
  %80 = vmatpush1.bf16.xpose.msra.mxu0 0
  %81 = vmatprep.subr.bf16.mxu0 0
  %82 = vmatpush1.bf16.xpose.msra.mxu0 0
  %83 = vmatprep.subr.bf16.mxu0 0
  %84 = vmatpush1.bf16.xpose.msra.mxu0 0
  %85 = vmatprep.subr.bf16.mxu0 0
  %86 = vmatpush1.bf16.xpose.msra.mxu0 0
  %87 = vmatprep.subr.bf16.mxu0 0
  %88 = vmatpush1.bf16.xpose.msra.mxu0 0
  %89 = vmatprep.subr.bf16.mxu0 0
  %90 = vmatpush1.bf16.xpose.msra.mxu0 0
  %91 = vmatprep.subr.bf16.mxu0 0
  %92 = vmatpush1.bf16.xpose.msra.mxu0 0
  %93 = vmatprep.mubr.bf16.mxu0 0
  %94 = vmatmul.mubr.bf16.gmra.mrb[0].mxu0 %v50
  %v95 = vpop.f32.mrb[0].mxu0
  %v96 = vadd.f32 0.0, %v95
  %v97 = vpop.f32.mrb[0].mxu0
  %v98 = vpop.f32.mrb[0].mxu0
  %v99 = vadd.f32 0.0, %v98
  %v100 = vpop.f32.mrb[0].mxu0
  %101 = vmatprep.mubr.bf16.mxu0 0
  %102 = vmatmul.mubr.bf16.gmra.mrb[0].mxu0 %v53
  %v103 = vpop.f32.mrb[0].mxu0
  %v104 = vadd.f32 0.0, %v103
  %v105 = vpop.f32.mrb[0].mxu0
  %v106 = vpop.f32.mrb[0].mxu0
  %v107 = vpop.f32.mrb[0].mxu0
  %108 = vdwg.mxu0
  %v112 = vunpack.c.l.b16 %v19
  %v113 = vunpack.c.l.b16 %v20
  %v114 = vunpack.c.l.b16 %v21
  %v115 = vpack.c.b16 %v113, %v112
  %v116 = vpack.c.b16 %v114, %v114
  %v120 = vunpack.c.l.b16 %v13
  %v121 = vunpack.c.l.b16 %v14
  %v122 = vunpack.c.l.b16 %v15
  %v123 = vpack.c.b16 %v121, %v120
  %v124 = vpack.c.b16 %v122, %v122
  %125 = vrot.lane.b32.xlu0 %v123, 64
  %v126 = vpop.permute.xlu0 %125
  %127 = vrot.lane.b32.xlu0 %v124, 64
  %v128 = vpop.permute.xlu0 %127
  %v130 = vsel %vm48, %v115, 0
  %v133 = vsel %vm48, %v116, 0
  %v136 = vsel %vm48, %v126, 0
  %v139 = vsel %vm48, %v128, 0
  %141 = vmatprep.subr.bf16.mxu0 0
  %142 = vmatpush1.bf16.xpose.msra.mxu0 %v136
  %143 = vmatprep.subr.bf16.mxu0 0
  %144 = vmatpush1.bf16.xpose.msra.mxu0 %v139
  %145 = vmatprep.subr.bf16.mxu0 0
  %146 = vmatpush1.bf16.xpose.msra.mxu0 0
  %147 = vmatprep.subr.bf16.mxu0 0
  %148 = vmatpush1.bf16.xpose.msra.mxu0 0
  %149 = vmatprep.subr.bf16.mxu0 0
  %150 = vmatpush1.bf16.xpose.msra.mxu0 0
  %151 = vmatprep.subr.bf16.mxu0 0
  %152 = vmatpush1.bf16.xpose.msra.mxu0 0
  %153 = vmatprep.subr.bf16.mxu0 0
  %154 = vmatpush1.bf16.xpose.msra.mxu0 0
  %155 = vmatprep.subr.bf16.mxu0 0
  %156 = vmatpush1.bf16.xpose.msra.mxu0 0
  %157 = vmatprep.subr.bf16.mxu0 0
  %158 = vmatpush1.bf16.xpose.msra.mxu0 0
  %159 = vmatprep.subr.bf16.mxu0 0
  %160 = vmatpush1.bf16.xpose.msra.mxu0 0
  %161 = vmatprep.subr.bf16.mxu0 0
  %162 = vmatpush1.bf16.xpose.msra.mxu0 0
  %163 = vmatprep.subr.bf16.mxu0 0
  %164 = vmatpush1.bf16.xpose.msra.mxu0 0
  %165 = vmatprep.subr.bf16.mxu0 0
  %166 = vmatpush1.bf16.xpose.msra.mxu0 0
  %167 = vmatprep.subr.bf16.mxu0 0
  %168 = vmatpush1.bf16.xpose.msra.mxu0 0
  %169 = vmatprep.subr.bf16.mxu0 0
  %170 = vmatpush1.bf16.xpose.msra.mxu0 0
  %171 = vmatprep.subr.bf16.mxu0 0
  %172 = vmatpush1.bf16.xpose.msra.mxu0 0
  %173 = vmatprep.mubr.bf16.mxu0 0
  %174 = vmatmul.mubr.bf16.gmra.mrb[0].mxu0 %v130
  %v175 = vpop.f32.mrb[0].mxu0
  %v176 = vadd.f32 0.0, %v175
  %v177 = vpop.f32.mrb[0].mxu0
  %v178 = vpop.f32.mrb[0].mxu0
  %v179 = vadd.f32 0.0, %v178
  %v180 = vpop.f32.mrb[0].mxu0
  %181 = vmatprep.mubr.bf16.mxu0 0
  %182 = vmatmul.mubr.bf16.gmra.mrb[0].mxu0 %v133
  %v183 = vpop.f32.mrb[0].mxu0
  %v184 = vadd.f32 0.0, %v183
  %v185 = vpop.f32.mrb[0].mxu0
  %v186 = vpop.f32.mrb[0].mxu0
  %v187 = vpop.f32.mrb[0].mxu0
  %188 = vdwg.mxu0
  %vm189 = vcmask 138240
  %v190 = vsel %vm189, %v96, -inf
  %191 = vmax.xlane.f32.xlu0 %v190
  %v192 = vpop.xlane.xlu0 %191
  %v193 = vsel %vm189, %v99, -inf
  %194 = vmax.xlane.f32.xlu0 %v193
  %v195 = vpop.xlane.xlu0 %194
  %vm196 = vcmask 131072
  %v197 = vsel %vm196, %v104, -inf
  %198 = vmax.xlane.f32.xlu0 %v197
  %v199 = vpop.xlane.xlu0 %198
  %v200 = vsel %vm189, %v176, -inf
  %201 = vmax.xlane.f32.xlu0 %v200
  %v202 = vpop.xlane.xlu0 %201
  %v203 = vsel %vm189, %v179, -inf
  %204 = vmax.xlane.f32.xlu0 %v203
  %v205 = vpop.xlane.xlu0 %204
  %v206 = vsel %vm196, %v184, -inf
  %207 = vmax.xlane.f32.xlu0 %v206
  %v208 = vpop.xlane.xlu0 %207
  %v209 = vsub.f32 %v96, %v192
  %v210 = vsub.f32 %v99, %v195
  %v211 = vsub.f32 %v104, %v199
  %v212 = vsub.f32 %v176, %v202
  %v213 = vsub.f32 %v179, %v205
  %v214 = vsub.f32 %v184, %v208
  %v215 = vmul.f32 %v209, 1.442695
  %v216 = vpow.pop %v215
  %v217 = vmul.f32 %v210, 1.442695
  %v218 = vpow.pop %v217
  %v219 = vmul.f32 %v211, 1.442695
  %v220 = vpow.pop %v219
  %v221 = vmul.f32 %v212, 1.442695
  %v222 = vpow.pop %v221
  %v223 = vmul.f32 %v213, 1.442695
  %v224 = vpow.pop %v223
  %v225 = vmul.f32 %v214, 1.442695
  %v226 = vpow.pop %v225
  %v227 = vsel %vm189, %v216, 0.0
  %228 = vadd.xlane.f32.xlu0 %v227
  %v229 = vpop.xlane.xlu0 %228
  %v230 = vsel %vm189, %v218, 0.0
  %231 = vadd.xlane.f32.xlu0 %v230
  %v232 = vpop.xlane.xlu0 %231
  %v233 = vsel %vm196, %v220, 0.0
  %234 = vadd.xlane.f32.xlu0 %v233
  %v235 = vpop.xlane.xlu0 %234
  %v236 = vsel %vm189, %v222, 0.0
  %237 = vadd.xlane.f32.xlu0 %v236
  %v238 = vpop.xlane.xlu0 %237
  %v239 = vsel %vm189, %v224, 0.0
  %240 = vadd.xlane.f32.xlu0 %v239
  %v241 = vpop.xlane.xlu0 %240
  %v242 = vsel %vm196, %v226, 0.0
  %243 = vadd.xlane.f32.xlu0 %v242
  %v244 = vpop.xlane.xlu0 %243
  %v245 = vrcp.pop %v229
  %v246 = vrcp.pop %v232
  %v247 = vrcp.pop %v235
  %v248 = vrcp.pop %v238
  %v249 = vrcp.pop %v241
  %v250 = vrcp.pop %v244
  %v251 = vmul.f32 %v216, %v245
  %v252 = vmul.f32 %v218, %v246
  %v253 = vmul.f32 %v220, %v247
  %v254 = vmul.f32 %v222, %v248
  %v255 = vmul.f32 %v224, %v249
  %v256 = vmul.f32 %v226, %v250
  %v257 = vpack.c.bf16 %v252, %v251
  %v258 = vpack.c.bf16 %v253, %v253
  %v259 = vpack.c.bf16 %v255, %v254
  %v260 = vpack.c.bf16 %v256, %v256
  %v264 = vunpack.c.l.b16 %v22
  %v265 = vunpack.c.l.b16 %v23
  %v266 = vunpack.c.l.b16 %v24
  %v267 = vpack.c.b16 %v265, %v264
  %v268 = vpack.c.b16 %v266, %v266
  %v271 = vsel %vm189, %v257, 0
  %v274 = vsel %vm189, %v258, 0
  %vm276 = vcmask 1040384
  %v277 = vsel 0, 4294967295, 65535
  %v278 = vsel %vm276, %v277, 0
  %v280 = vand.u32 %v268, %v278
  %282 = vmatprep.subr.bf16.mxu0 0
  %283 = vmatpush1.bf16.msra.mxu0 %v267
  %284 = vmatprep.subr.bf16.mxu0 0
  %285 = vmatpush1.bf16.msra.mxu0 %v280
  %286 = vmatprep.subr.bf16.mxu0 0
  %287 = vmatpush1.bf16.msra.mxu0 0
  %288 = vmatprep.subr.bf16.mxu0 0
  %289 = vmatpush1.bf16.msra.mxu0 0
  %290 = vmatprep.subr.bf16.mxu0 0
  %291 = vmatpush1.bf16.msra.mxu0 0
  %292 = vmatprep.subr.bf16.mxu0 0
  %293 = vmatpush1.bf16.msra.mxu0 0
  %294 = vmatprep.subr.bf16.mxu0 0
  %295 = vmatpush1.bf16.msra.mxu0 0
  %296 = vmatprep.subr.bf16.mxu0 0
  %297 = vmatpush1.bf16.msra.mxu0 0
  %298 = vmatprep.subr.bf16.mxu0 0
  %299 = vmatpush1.bf16.msra.mxu0 0
  %300 = vmatprep.subr.bf16.mxu0 0
  %301 = vmatpush1.bf16.msra.mxu0 0
  %302 = vmatprep.subr.bf16.mxu0 0
  %303 = vmatpush1.bf16.msra.mxu0 0
  %304 = vmatprep.subr.bf16.mxu0 0
  %305 = vmatpush1.bf16.msra.mxu0 0
  %306 = vmatprep.subr.bf16.mxu0 0
  %307 = vmatpush1.bf16.msra.mxu0 0
  %308 = vmatprep.subr.bf16.mxu0 0
  %309 = vmatpush1.bf16.msra.mxu0 0
  %310 = vmatprep.subr.bf16.mxu0 0
  %311 = vmatpush1.bf16.msra.mxu0 0
  %312 = vmatprep.subr.bf16.mxu0 0
  %313 = vmatpush1.bf16.msra.mxu0 0
  %314 = vmatprep.mubr.bf16.mxu0 0
  %315 = vmatmul.mubr.bf16.gmra.mrb[0].mxu0 %v271
  %v316 = vpop.f32.mrb[0].mxu0
  %v317 = vadd.f32 0.0, %v316
  %v318 = vpop.f32.mrb[0].mxu0
  %v319 = vpop.f32.mrb[0].mxu0
  %v320 = vadd.f32 0.0, %v319
  %v321 = vpop.f32.mrb[0].mxu0
  %322 = vmatprep.mubr.bf16.mxu0 0
  %323 = vmatmul.mubr.bf16.gmra.mrb[0].mxu0 %v274
  %v324 = vpop.f32.mrb[0].mxu0
  %v325 = vadd.f32 0.0, %v324
  %v326 = vpop.f32.mrb[0].mxu0
  %v327 = vpop.f32.mrb[0].mxu0
  %v328 = vpop.f32.mrb[0].mxu0
  %329 = vdwg.mxu0
  %v333 = vunpack.c.l.b16 %v25
  %v334 = vunpack.c.l.b16 %v26
  %v335 = vunpack.c.l.b16 %v27
  %v336 = vpack.c.b16 %v334, %v333
  %v337 = vpack.c.b16 %v335, %v335
  %v340 = vsel %vm189, %v259, 0
  %v343 = vsel %vm189, %v260, 0
  %v346 = vand.u32 %v337, %v278
  %348 = vmatprep.subr.bf16.mxu0 0
  %349 = vmatpush1.bf16.msra.mxu0 %v336
  %350 = vmatprep.subr.bf16.mxu0 0
  %351 = vmatpush1.bf16.msra.mxu0 %v346
  %352 = vmatprep.subr.bf16.mxu0 0
  %353 = vmatpush1.bf16.msra.mxu0 0
  %354 = vmatprep.subr.bf16.mxu0 0
  %355 = vmatpush1.bf16.msra.mxu0 0
  %356 = vmatprep.subr.bf16.mxu0 0
  %357 = vmatpush1.bf16.msra.mxu0 0
  %358 = vmatprep.subr.bf16.mxu0 0
  %359 = vmatpush1.bf16.msra.mxu0 0
  %360 = vmatprep.subr.bf16.mxu0 0
  %361 = vmatpush1.bf16.msra.mxu0 0
  %362 = vmatprep.subr.bf16.mxu0 0
  %363 = vmatpush1.bf16.msra.mxu0 0
  %364 = vmatprep.subr.bf16.mxu0 0
  %365 = vmatpush1.bf16.msra.mxu0 0
  %366 = vmatprep.subr.bf16.mxu0 0
  %367 = vmatpush1.bf16.msra.mxu0 0
  %368 = vmatprep.subr.bf16.mxu0 0
  %369 = vmatpush1.bf16.msra.mxu0 0
  %370 = vmatprep.subr.bf16.mxu0 0
  %371 = vmatpush1.bf16.msra.mxu0 0
  %372 = vmatprep.subr.bf16.mxu0 0
  %373 = vmatpush1.bf16.msra.mxu0 0
  %374 = vmatprep.subr.bf16.mxu0 0
  %375 = vmatpush1.bf16.msra.mxu0 0
  %376 = vmatprep.subr.bf16.mxu0 0
  %377 = vmatpush1.bf16.msra.mxu0 0
  %378 = vmatprep.subr.bf16.mxu0 0
  %379 = vmatpush1.bf16.msra.mxu0 0
  %380 = vmatprep.mubr.bf16.mxu0 0
  %381 = vmatmul.mubr.bf16.gmra.mrb[0].mxu0 %v340
  %v382 = vpop.f32.mrb[0].mxu0
  %v383 = vadd.f32 0.0, %v382
  %v384 = vpop.f32.mrb[0].mxu0
  %v385 = vpop.f32.mrb[0].mxu0
  %v386 = vadd.f32 0.0, %v385
  %v387 = vpop.f32.mrb[0].mxu0
  %388 = vmatprep.mubr.bf16.mxu0 0
  %389 = vmatmul.mubr.bf16.gmra.mrb[0].mxu0 %v343
  %v390 = vpop.f32.mrb[0].mxu0
  %v391 = vadd.f32 0.0, %v390
  %v392 = vpop.f32.mrb[0].mxu0
  %v393 = vpop.f32.mrb[0].mxu0
  %v394 = vpop.f32.mrb[0].mxu0
  %395 = vdwg.mxu0
  %v396 = vpack.c.bf16 %v320, %v317
  %v397 = vpack.c.bf16 %v325, %v325
  %v398 = vpack.c.bf16 %v386, %v383
  %v399 = vpack.c.bf16 %v391, %v391
  %v404 = vunpack.c.l.b16 %v396
  %v405 = vunpack.c.h.b16 %v396
  %v406 = vunpack.c.l.b16 %v397
  %v407 = vunpack.c.l.b16 %v398
  %v408 = vunpack.c.h.b16 %v398
  %v409 = vunpack.c.l.b16 %v399
  %v410 = vpack.c.b16 %v404, %v404
  %v411 = vpack.c.b16 %v405, %v405
  %v412 = vpack.c.b16 %v406, %v406
  %v413 = vpack.c.b16 %v407, %v407
  %v414 = vpack.c.b16 %v408, %v408
  %v415 = vpack.c.b16 %v409, %v409
  %vm422 = vcmask 125952
  %423 = vst.msk [vmem:[%s1] sm:$0xf] %vm422, %v410
  %424 = vst.msk [vmem:[%s1 + $0x4] sm:$0xf] %vm422, %v411
  %vm425 = vcmask 122880
  %vm426 = vsmask.f32 256
  %vm427 = vmand %vm425, %vm426
  %v428 = vld [vmem:[%s1 + $0x8] sm:$0x1]
  %v429 = vsel %vm427, %v412, %v428
  %430 = vst [vmem:[%s1 + $0x8] sm:$0x1] %v429
  %431 = vst.msk [vmem:[%s1 + $0xc] sm:$0xf] %vm422, %v413
  %432 = vst.msk [vmem:[%s1 + $0x10] sm:$0xf] %vm422, %v414
  %v433 = vld [vmem:[%s1 + $0x14] sm:$0x1]
  %v434 = vsel %vm427, %v415, %v433
  %435 = vst [vmem:[%s1 + $0x14] sm:$0x1] %v434
  %v436 = vld [vmem:[%s0] sm:$0xf]
  %v437 = vld [vmem:[%s0 + $0x8] sm:$0xf]
  %v438 = vld [vmem:[%s0 + $0x10] sm:$0x1]
  %v439 = vld [vmem:[%s0 + $0x18] sm:$0xf]
  %v440 = vld [vmem:[%s0 + $0x20] sm:$0xf]
  %v441 = vld [vmem:[%s0 + $0x28] sm:$0x1]
  %v442 = vmul.bf16 %v436, 1048592000
  %v443 = vmul.bf16 %v437, 1048592000
  %v444 = vmul.bf16 %v438, 1048592000
  %v445 = vmul.bf16 %v439, 1048592000
  %v446 = vmul.bf16 %v440, 1048592000
  %v447 = vmul.bf16 %v441, 1048592000
  %v448 = vld [vmem:[%s0 + $0x4] sm:$0xf]
  %v449 = vld [vmem:[%s0 + $0xc] sm:$0xf]
  %v450 = vld [vmem:[%s0 + $0x14] sm:$0x1]
  %v451 = vld [vmem:[%s0 + $0x1c] sm:$0xf]
  %v452 = vld [vmem:[%s0 + $0x24] sm:$0xf]
  %v453 = vld [vmem:[%s0 + $0x2c] sm:$0x1]
  %v457 = vunpack.c.l.b16 %v442
  %v458 = vunpack.c.l.b16 %v443
  %v459 = vunpack.c.l.b16 %v444
  %v460 = vpack.c.b16 %v458, %v457
  %v461 = vpack.c.b16 %v459, %v459
  %462 = vrot.lane.b32.xlu0 %v460, 112
  %v463 = vpop.permute.xlu0 %462
  %464 = vrot.lane.b32.xlu0 %v461, 112
  %v465 = vpop.permute.xlu0 %464
  %v469 = vunpack.c.l.b16 %v436
  %v470 = vunpack.c.l.b16 %v437
  %v471 = vunpack.c.l.b16 %v438
  %v472 = vpack.c.b16 %v470, %v469
  %v473 = vpack.c.b16 %v471, %v471
  %474 = vrot.lane.b32.xlu0 %v472, 48
  %v475 = vpop.permute.xlu0 %474
  %476 = vrot.lane.b32.xlu0 %v473, 48
  %v477 = vpop.permute.xlu0 %476
  %v479 = vsel %vm48, %v463, 0
  %v482 = vsel %vm48, %v465, 0
  %v485 = vsel %vm48, %v475, 0
  %v488 = vsel %vm48, %v477, 0
  %490 = vmatprep.subr.bf16.mxu0 0
  %491 = vmatpush1.bf16.xpose.msra.mxu0 %v485
  %492 = vmatprep.subr.bf16.mxu0 0
  %493 = vmatpush1.bf16.xpose.msra.mxu0 %v488
  %494 = vmatprep.subr.bf16.mxu0 0
  %495 = vmatpush1.bf16.xpose.msra.mxu0 0
  %496 = vmatprep.subr.bf16.mxu0 0
  %497 = vmatpush1.bf16.xpose.msra.mxu0 0
  %498 = vmatprep.subr.bf16.mxu0 0
  %499 = vmatpush1.bf16.xpose.msra.mxu0 0
  %500 = vmatprep.subr.bf16.mxu0 0
  %501 = vmatpush1.bf16.xpose.msra.mxu0 0
  %502 = vmatprep.subr.bf16.mxu0 0
  %503 = vmatpush1.bf16.xpose.msra.mxu0 0
  %504 = vmatprep.subr.bf16.mxu0 0
  %505 = vmatpush1.bf16.xpose.msra.mxu0 0
  %506 = vmatprep.subr.bf16.mxu0 0
  %507 = vmatpush1.bf16.xpose.msra.mxu0 0
  %508 = vmatprep.subr.bf16.mxu0 0
  %509 = vmatpush1.bf16.xpose.msra.mxu0 0
  %510 = vmatprep.subr.bf16.mxu0 0
  %511 = vmatpush1.bf16.xpose.msra.mxu0 0
  %512 = vmatprep.subr.bf16.mxu0 0
  %513 = vmatpush1.bf16.xpose.msra.mxu0 0
  %514 = vmatprep.subr.bf16.mxu0 0
  %515 = vmatpush1.bf16.xpose.msra.mxu0 0
  %516 = vmatprep.subr.bf16.mxu0 0
  %517 = vmatpush1.bf16.xpose.msra.mxu0 0
  %518 = vmatprep.subr.bf16.mxu0 0
  %519 = vmatpush1.bf16.xpose.msra.mxu0 0
  %520 = vmatprep.subr.bf16.mxu0 0
  %521 = vmatpush1.bf16.xpose.msra.mxu0 0
  %522 = vmatprep.mubr.bf16.mxu0 0
  %523 = vmatmul.mubr.bf16.gmra.mrb[0].mxu0 %v479
  %v524 = vpop.f32.mrb[0].mxu0
  %v525 = vadd.f32 0.0, %v524
  %v526 = vpop.f32.mrb[0].mxu0
  %v527 = vpop.f32.mrb[0].mxu0
  %v528 = vadd.f32 0.0, %v527
  %v529 = vpop.f32.mrb[0].mxu0
  %530 = vmatprep.mubr.bf16.mxu0 0
  %531 = vmatmul.mubr.bf16.gmra.mrb[0].mxu0 %v482
  %v532 = vpop.f32.mrb[0].mxu0
  %v533 = vadd.f32 0.0, %v532
  %v534 = vpop.f32.mrb[0].mxu0
  %v535 = vpop.f32.mrb[0].mxu0
  %v536 = vpop.f32.mrb[0].mxu0
  %537 = vdwg.mxu0
  %v541 = vunpack.c.l.b16 %v445
  %v542 = vunpack.c.l.b16 %v446
  %v543 = vunpack.c.l.b16 %v447
  %v544 = vpack.c.b16 %v542, %v541
  %v545 = vpack.c.b16 %v543, %v543
  %546 = vrot.lane.b32.xlu0 %v544, 112
  %v547 = vpop.permute.xlu0 %546
  %548 = vrot.lane.b32.xlu0 %v545, 112
  %v549 = vpop.permute.xlu0 %548
  %v553 = vunpack.c.l.b16 %v439
  %v554 = vunpack.c.l.b16 %v440
  %v555 = vunpack.c.l.b16 %v441
  %v556 = vpack.c.b16 %v554, %v553
  %v557 = vpack.c.b16 %v555, %v555
  %558 = vrot.lane.b32.xlu0 %v556, 48
  %v559 = vpop.permute.xlu0 %558
  %560 = vrot.lane.b32.xlu0 %v557, 48
  %v561 = vpop.permute.xlu0 %560
  %v563 = vsel %vm48, %v547, 0
  %v566 = vsel %vm48, %v549, 0
  %v569 = vsel %vm48, %v559, 0
  %v572 = vsel %vm48, %v561, 0
  %574 = vmatprep.subr.bf16.mxu0 0
  %575 = vmatpush1.bf16.xpose.msra.mxu0 %v569
  %576 = vmatprep.subr.bf16.mxu0 0
  %577 = vmatpush1.bf16.xpose.msra.mxu0 %v572
  %578 = vmatprep.subr.bf16.mxu0 0
  %579 = vmatpush1.bf16.xpose.msra.mxu0 0
  %580 = vmatprep.subr.bf16.mxu0 0
  %581 = vmatpush1.bf16.xpose.msra.mxu0 0
  %582 = vmatprep.subr.bf16.mxu0 0
  %583 = vmatpush1.bf16.xpose.msra.mxu0 0
  %584 = vmatprep.subr.bf16.mxu0 0
  %585 = vmatpush1.bf16.xpose.msra.mxu0 0
  %586 = vmatprep.subr.bf16.mxu0 0
  %587 = vmatpush1.bf16.xpose.msra.mxu0 0
  %588 = vmatprep.subr.bf16.mxu0 0
  %589 = vmatpush1.bf16.xpose.msra.mxu0 0
  %590 = vmatprep.subr.bf16.mxu0 0
  %591 = vmatpush1.bf16.xpose.msra.mxu0 0
  %592 = vmatprep.subr.bf16.mxu0 0
  %593 = vmatpush1.bf16.xpose.msra.mxu0 0
  %594 = vmatprep.subr.bf16.mxu0 0
  %595 = vmatpush1.bf16.xpose.msra.mxu0 0
  %596 = vmatprep.subr.bf16.mxu0 0
  %597 = vmatpush1.bf16.xpose.msra.mxu0 0
  %598 = vmatprep.subr.bf16.mxu0 0
  %599 = vmatpush1.bf16.xpose.msra.mxu0 0
  %600 = vmatprep.subr.bf16.mxu0 0
  %601 = vmatpush1.bf16.xpose.msra.mxu0 0
  %602 = vmatprep.subr.bf16.mxu0 0
  %603 = vmatpush1.bf16.xpose.msra.mxu0 0
  %604 = vmatprep.subr.bf16.mxu0 0
  %605 = vmatpush1.bf16.xpose.msra.mxu0 0
  %606 = vmatprep.mubr.bf16.mxu0 0
  %607 = vmatmul.mubr.bf16.gmra.mrb[0].mxu0 %v563
  %v608 = vpop.f32.mrb[0].mxu0
  %v609 = vadd.f32 0.0, %v608
  %v610 = vpop.f32.mrb[0].mxu0
  %v611 = vpop.f32.mrb[0].mxu0
  %v612 = vadd.f32 0.0, %v611
  %v613 = vpop.f32.mrb[0].mxu0
  %614 = vmatprep.mubr.bf16.mxu0 0
  %615 = vmatmul.mubr.bf16.gmra.mrb[0].mxu0 %v566
  %v616 = vpop.f32.mrb[0].mxu0
  %v617 = vadd.f32 0.0, %v616
  %v618 = vpop.f32.mrb[0].mxu0
  %v619 = vpop.f32.mrb[0].mxu0
  %v620 = vpop.f32.mrb[0].mxu0
  %621 = vdwg.mxu0
  %v622 = vsel %vm189, %v525, -inf
  %623 = vmax.xlane.f32.xlu0 %v622
  %v624 = vpop.xlane.xlu0 %623
  %v625 = vsel %vm189, %v528, -inf
  %626 = vmax.xlane.f32.xlu0 %v625
  %v627 = vpop.xlane.xlu0 %626
  %v628 = vsel %vm196, %v533, -inf
  %629 = vmax.xlane.f32.xlu0 %v628
  %v630 = vpop.xlane.xlu0 %629
  %v631 = vsel %vm189, %v609, -inf
  %632 = vmax.xlane.f32.xlu0 %v631
  %v633 = vpop.xlane.xlu0 %632
  %v634 = vsel %vm189, %v612, -inf
  %635 = vmax.xlane.f32.xlu0 %v634
  %v636 = vpop.xlane.xlu0 %635
  %v637 = vsel %vm196, %v617, -inf
  %638 = vmax.xlane.f32.xlu0 %v637
  %v639 = vpop.xlane.xlu0 %638
  %v640 = vsub.f32 %v525, %v624
  %v641 = vsub.f32 %v528, %v627
  %v642 = vsub.f32 %v533, %v630
  %v643 = vsub.f32 %v609, %v633
  %v644 = vsub.f32 %v612, %v636
  %v645 = vsub.f32 %v617, %v639
  %v646 = vmul.f32 %v640, 1.442695
  %v647 = vpow.pop %v646
  %v648 = vmul.f32 %v641, 1.442695
  %v649 = vpow.pop %v648
  %v650 = vmul.f32 %v642, 1.442695
  %v651 = vpow.pop %v650
  %v652 = vmul.f32 %v643, 1.442695
  %v653 = vpow.pop %v652
  %v654 = vmul.f32 %v644, 1.442695
  %v655 = vpow.pop %v654
  %v656 = vmul.f32 %v645, 1.442695
  %v657 = vpow.pop %v656
  %v658 = vsel %vm189, %v647, 0.0
  %659 = vadd.xlane.f32.xlu0 %v658
  %v660 = vpop.xlane.xlu0 %659
  %v661 = vsel %vm189, %v649, 0.0
  %662 = vadd.xlane.f32.xlu0 %v661
  %v663 = vpop.xlane.xlu0 %662
  %v664 = vsel %vm196, %v651, 0.0
  %665 = vadd.xlane.f32.xlu0 %v664
  %v666 = vpop.xlane.xlu0 %665
  %v667 = vsel %vm189, %v653, 0.0
  %668 = vadd.xlane.f32.xlu0 %v667
  %v669 = vpop.xlane.xlu0 %668
  %v670 = vsel %vm189, %v655, 0.0
  %671 = vadd.xlane.f32.xlu0 %v670
  %v672 = vpop.xlane.xlu0 %671
  %v673 = vsel %vm196, %v657, 0.0
  %674 = vadd.xlane.f32.xlu0 %v673
  %v675 = vpop.xlane.xlu0 %674
  %v676 = vrcp.pop %v660
  %v677 = vrcp.pop %v663
  %v678 = vrcp.pop %v666
  %v679 = vrcp.pop %v669
  %v680 = vrcp.pop %v672
  %v681 = vrcp.pop %v675
  %v682 = vmul.f32 %v647, %v676
  %v683 = vmul.f32 %v649, %v677
  %v684 = vmul.f32 %v651, %v678
  %v685 = vmul.f32 %v653, %v679
  %v686 = vmul.f32 %v655, %v680
  %v687 = vmul.f32 %v657, %v681
  %v688 = vpack.c.bf16 %v683, %v682
  %v689 = vpack.c.bf16 %v684, %v684
  %v690 = vpack.c.bf16 %v686, %v685
  %v691 = vpack.c.bf16 %v687, %v687
  %v695 = vunpack.c.l.b16 %v448
  %v696 = vunpack.c.l.b16 %v449
  %v697 = vunpack.c.l.b16 %v450
  %v698 = vpack.c.b16 %v696, %v695
  %v699 = vpack.c.b16 %v697, %v697
  %700 = vrot.lane.b32.xlu0 %v698, 112
  %v701 = vpop.permute.xlu0 %700
  %702 = vrot.lane.b32.xlu0 %v699, 112
  %v703 = vpop.permute.xlu0 %702
  %v706 = vsel %vm189, %v688, 0
  %v709 = vsel %vm189, %v689, 0
  %v712 = vand.u32 %v703, %v278
  %714 = vmatprep.subr.bf16.mxu0 0
  %715 = vmatpush1.bf16.msra.mxu0 %v701
  %716 = vmatprep.subr.bf16.mxu0 0
  %717 = vmatpush1.bf16.msra.mxu0 %v712
  %718 = vmatprep.subr.bf16.mxu0 0
  %719 = vmatpush1.bf16.msra.mxu0 0
  %720 = vmatprep.subr.bf16.mxu0 0
  %721 = vmatpush1.bf16.msra.mxu0 0
  %722 = vmatprep.subr.bf16.mxu0 0
  %723 = vmatpush1.bf16.msra.mxu0 0
  %724 = vmatprep.subr.bf16.mxu0 0
  %725 = vmatpush1.bf16.msra.mxu0 0
  %726 = vmatprep.subr.bf16.mxu0 0
  %727 = vmatpush1.bf16.msra.mxu0 0
  %728 = vmatprep.subr.bf16.mxu0 0
  %729 = vmatpush1.bf16.msra.mxu0 0
  %730 = vmatprep.subr.bf16.mxu0 0
  %731 = vmatpush1.bf16.msra.mxu0 0
  %732 = vmatprep.subr.bf16.mxu0 0
  %733 = vmatpush1.bf16.msra.mxu0 0
  %734 = vmatprep.subr.bf16.mxu0 0
  %735 = vmatpush1.bf16.msra.mxu0 0
  %736 = vmatprep.subr.bf16.mxu0 0
  %737 = vmatpush1.bf16.msra.mxu0 0
  %738 = vmatprep.subr.bf16.mxu0 0
  %739 = vmatpush1.bf16.msra.mxu0 0
  %740 = vmatprep.subr.bf16.mxu0 0
  %741 = vmatpush1.bf16.msra.mxu0 0
  %742 = vmatprep.subr.bf16.mxu0 0
  %743 = vmatpush1.bf16.msra.mxu0 0
  %744 = vmatprep.subr.bf16.mxu0 0
  %745 = vmatpush1.bf16.msra.mxu0 0
  %746 = vmatprep.mubr.bf16.mxu0 0
  %747 = vmatmul.mubr.bf16.gmra.mrb[0].mxu0 %v706
  %v748 = vpop.f32.mrb[0].mxu0
  %v749 = vadd.f32 0.0, %v748
  %v750 = vpop.f32.mrb[0].mxu0
  %v751 = vpop.f32.mrb[0].mxu0
  %v752 = vadd.f32 0.0, %v751
  %v753 = vpop.f32.mrb[0].mxu0
  %754 = vmatprep.mubr.bf16.mxu0 0
  %755 = vmatmul.mubr.bf16.gmra.mrb[0].mxu0 %v709
  %v756 = vpop.f32.mrb[0].mxu0
  %v757 = vadd.f32 0.0, %v756
  %v758 = vpop.f32.mrb[0].mxu0
  %v759 = vpop.f32.mrb[0].mxu0
  %v760 = vpop.f32.mrb[0].mxu0
  %761 = vdwg.mxu0
  %v765 = vunpack.c.l.b16 %v451
  %v766 = vunpack.c.l.b16 %v452
  %v767 = vunpack.c.l.b16 %v453
  %v768 = vpack.c.b16 %v766, %v765
  %v769 = vpack.c.b16 %v767, %v767
  %770 = vrot.lane.b32.xlu0 %v768, 112
  %v771 = vpop.permute.xlu0 %770
  %772 = vrot.lane.b32.xlu0 %v769, 112
  %v773 = vpop.permute.xlu0 %772
  %v776 = vsel %vm189, %v690, 0
  %v779 = vsel %vm189, %v691, 0
  %v782 = vand.u32 %v773, %v278
  %784 = vmatprep.subr.bf16.mxu0 0
  %785 = vmatpush1.bf16.msra.mxu0 %v771
  %786 = vmatprep.subr.bf16.mxu0 0
  %787 = vmatpush1.bf16.msra.mxu0 %v782
  %788 = vmatprep.subr.bf16.mxu0 0
  %789 = vmatpush1.bf16.msra.mxu0 0
  %790 = vmatprep.subr.bf16.mxu0 0
  %791 = vmatpush1.bf16.msra.mxu0 0
  %792 = vmatprep.subr.bf16.mxu0 0
  %793 = vmatpush1.bf16.msra.mxu0 0
  %794 = vmatprep.subr.bf16.mxu0 0
  %795 = vmatpush1.bf16.msra.mxu0 0
  %796 = vmatprep.subr.bf16.mxu0 0
  %797 = vmatpush1.bf16.msra.mxu0 0
  %798 = vmatprep.subr.bf16.mxu0 0
  %799 = vmatpush1.bf16.msra.mxu0 0
  %800 = vmatprep.subr.bf16.mxu0 0
  %801 = vmatpush1.bf16.msra.mxu0 0
  %802 = vmatprep.subr.bf16.mxu0 0
  %803 = vmatpush1.bf16.msra.mxu0 0
  %804 = vmatprep.subr.bf16.mxu0 0
  %805 = vmatpush1.bf16.msra.mxu0 0
  %806 = vmatprep.subr.bf16.mxu0 0
  %807 = vmatpush1.bf16.msra.mxu0 0
  %808 = vmatprep.subr.bf16.mxu0 0
  %809 = vmatpush1.bf16.msra.mxu0 0
  %810 = vmatprep.subr.bf16.mxu0 0
  %811 = vmatpush1.bf16.msra.mxu0 0
  %812 = vmatprep.subr.bf16.mxu0 0
  %813 = vmatpush1.bf16.msra.mxu0 0
  %814 = vmatprep.subr.bf16.mxu0 0
  %815 = vmatpush1.bf16.msra.mxu0 0
  %816 = vmatprep.mubr.bf16.mxu0 0
  %817 = vmatmul.mubr.bf16.gmra.mrb[0].mxu0 %v776
  %v818 = vpop.f32.mrb[0].mxu0
  %v819 = vadd.f32 0.0, %v818
  %v820 = vpop.f32.mrb[0].mxu0
  %v821 = vpop.f32.mrb[0].mxu0
  %v822 = vadd.f32 0.0, %v821
  %v823 = vpop.f32.mrb[0].mxu0
  %824 = vmatprep.mubr.bf16.mxu0 0
  %825 = vmatmul.mubr.bf16.gmra.mrb[0].mxu0 %v779
  %v826 = vpop.f32.mrb[0].mxu0
  %v827 = vadd.f32 0.0, %v826
  %v828 = vpop.f32.mrb[0].mxu0
  %v829 = vpop.f32.mrb[0].mxu0
  %v830 = vpop.f32.mrb[0].mxu0
  %831 = vdwg.mxu0
  %v832 = vpack.c.bf16 %v752, %v749
  %v833 = vpack.c.bf16 %v757, %v757
  %v834 = vpack.c.bf16 %v822, %v819
  %v835 = vpack.c.bf16 %v827, %v827
  %v840 = vunpack.c.l.b16 %v832
  %v841 = vunpack.c.h.b16 %v832
  %v842 = vunpack.c.l.b16 %v833
  %v843 = vunpack.c.l.b16 %v834
  %v844 = vunpack.c.h.b16 %v834
  %v845 = vunpack.c.l.b16 %v835
  %v846 = vpack.c.b16 %v840, %v840
  %v847 = vpack.c.b16 %v841, %v841
  %v848 = vpack.c.b16 %v842, %v842
  %v849 = vpack.c.b16 %v843, %v843
  %v850 = vpack.c.b16 %v844, %v844
  %v851 = vpack.c.b16 %v845, %v845
  %852 = vrot.lane.b32.xlu0 %v846, 16
  %v853 = vpop.permute.xlu0 %852
  %854 = vrot.lane.b32.xlu0 %v847, 16
  %v855 = vpop.permute.xlu0 %854
  %856 = vrot.lane.b32.xlu0 %v848, 16
  %v857 = vpop.permute.xlu0 %856
  %858 = vrot.lane.b32.xlu0 %v849, 16
  %v859 = vpop.permute.xlu0 %858
  %860 = vrot.lane.b32.xlu0 %v850, 16
  %v861 = vpop.permute.xlu0 %860
  %862 = vrot.lane.b32.xlu0 %v851, 16
  %v863 = vpop.permute.xlu0 %862
  %vm870 = vcmask 257152
  %871 = vst.msk [vmem:[%s1] sm:$0xf] %vm870, %v853
  %872 = vst.msk [vmem:[%s1 + $0x4] sm:$0xf] %vm870, %v855
  %vm873 = vcmask 254080
  %vm874 = vmand %vm873, %vm426
  %v875 = vld [vmem:[%s1 + $0x8] sm:$0x1]
  %v876 = vsel %vm874, %v857, %v875
  %877 = vst [vmem:[%s1 + $0x8] sm:$0x1] %v876
  %878 = vst.msk [vmem:[%s1 + $0xc] sm:$0xf] %vm870, %v859
  %879 = vst.msk [vmem:[%s1 + $0x10] sm:$0xf] %vm870, %v861
  %v880 = vld [vmem:[%s1 + $0x14] sm:$0x1]
  %v881 = vsel %vm874, %v863, %v880
  %882 = vst [vmem:[%s1 + $0x14] sm:$0x1] %v881
  %v883 = vld [vmem:[%s0] sm:$0xf]
  %v884 = vld [vmem:[%s0 + $0x8] sm:$0xf]
  %v885 = vld [vmem:[%s0 + $0x10] sm:$0x1]
  %v886 = vld [vmem:[%s0 + $0x18] sm:$0xf]
  %v887 = vld [vmem:[%s0 + $0x20] sm:$0xf]
  %v888 = vld [vmem:[%s0 + $0x28] sm:$0x1]
  %v889 = vmul.bf16 %v883, 1048592000
  %v890 = vmul.bf16 %v884, 1048592000
  %v891 = vmul.bf16 %v885, 1048592000
  %v892 = vmul.bf16 %v886, 1048592000
  %v893 = vmul.bf16 %v887, 1048592000
  %v894 = vmul.bf16 %v888, 1048592000
  %v895 = vld [vmem:[%s0 + $0x4] sm:$0xf]
  %v896 = vld [vmem:[%s0 + $0xc] sm:$0xf]
  %v897 = vld [vmem:[%s0 + $0x14] sm:$0x1]
  %v898 = vld [vmem:[%s0 + $0x1c] sm:$0xf]
  %v899 = vld [vmem:[%s0 + $0x24] sm:$0xf]
  %v900 = vld [vmem:[%s0 + $0x2c] sm:$0x1]
  %v904 = vunpack.c.l.b16 %v889
  %v905 = vunpack.c.l.b16 %v890
  %v906 = vunpack.c.l.b16 %v891
  %v907 = vpack.c.b16 %v905, %v904
  %v908 = vpack.c.b16 %v906, %v906
  %909 = vrot.lane.b32.xlu0 %v907, 96
  %v910 = vpop.permute.xlu0 %909
  %911 = vrot.lane.b32.xlu0 %v908, 96
  %v912 = vpop.permute.xlu0 %911
  %v916 = vunpack.c.l.b16 %v883
  %v917 = vunpack.c.l.b16 %v884
  %v918 = vunpack.c.l.b16 %v885
  %v919 = vpack.c.b16 %v917, %v916
  %v920 = vpack.c.b16 %v918, %v918
  %921 = vrot.lane.b32.xlu0 %v919, 32
  %v922 = vpop.permute.xlu0 %921
  %923 = vrot.lane.b32.xlu0 %v920, 32
  %v924 = vpop.permute.xlu0 %923
  %v926 = vsel %vm48, %v910, 0
  %v929 = vsel %vm48, %v912, 0
  %v932 = vsel %vm48, %v922, 0
  %v935 = vsel %vm48, %v924, 0
  %937 = vmatprep.subr.bf16.mxu0 0
  %938 = vmatpush1.bf16.xpose.msra.mxu0 %v932
  %939 = vmatprep.subr.bf16.mxu0 0
  %940 = vmatpush1.bf16.xpose.msra.mxu0 %v935
  %941 = vmatprep.subr.bf16.mxu0 0
  %942 = vmatpush1.bf16.xpose.msra.mxu0 0
  %943 = vmatprep.subr.bf16.mxu0 0
  %944 = vmatpush1.bf16.xpose.msra.mxu0 0
  %945 = vmatprep.subr.bf16.mxu0 0
  %946 = vmatpush1.bf16.xpose.msra.mxu0 0
  %947 = vmatprep.subr.bf16.mxu0 0
  %948 = vmatpush1.bf16.xpose.msra.mxu0 0
  %949 = vmatprep.subr.bf16.mxu0 0
  %950 = vmatpush1.bf16.xpose.msra.mxu0 0
  %951 = vmatprep.subr.bf16.mxu0 0
  %952 = vmatpush1.bf16.xpose.msra.mxu0 0
  %953 = vmatprep.subr.bf16.mxu0 0
  %954 = vmatpush1.bf16.xpose.msra.mxu0 0
  %955 = vmatprep.subr.bf16.mxu0 0
  %956 = vmatpush1.bf16.xpose.msra.mxu0 0
  %957 = vmatprep.subr.bf16.mxu0 0
  %958 = vmatpush1.bf16.xpose.msra.mxu0 0
  %959 = vmatprep.subr.bf16.mxu0 0
  %960 = vmatpush1.bf16.xpose.msra.mxu0 0
  %961 = vmatprep.subr.bf16.mxu0 0
  %962 = vmatpush1.bf16.xpose.msra.mxu0 0
  %963 = vmatprep.subr.bf16.mxu0 0
  %964 = vmatpush1.bf16.xpose.msra.mxu0 0
  %965 = vmatprep.subr.bf16.mxu0 0
  %966 = vmatpush1.bf16.xpose.msra.mxu0 0
  %967 = vmatprep.subr.bf16.mxu0 0
  %968 = vmatpush1.bf16.xpose.msra.mxu0 0
  %969 = vmatprep.mubr.bf16.mxu0 0
  %970 = vmatmul.mubr.bf16.gmra.mrb[0].mxu0 %v926
  %v971 = vpop.f32.mrb[0].mxu0
  %v972 = vadd.f32 0.0, %v971
  %v973 = vpop.f32.mrb[0].mxu0
  %v974 = vpop.f32.mrb[0].mxu0
  %v975 = vadd.f32 0.0, %v974
  %v976 = vpop.f32.mrb[0].mxu0
  %977 = vmatprep.mubr.bf16.mxu0 0
  %978 = vmatmul.mubr.bf16.gmra.mrb[0].mxu0 %v929
  %v979 = vpop.f32.mrb[0].mxu0
  %v980 = vadd.f32 0.0, %v979
  %v981 = vpop.f32.mrb[0].mxu0
  %v982 = vpop.f32.mrb[0].mxu0
  %v983 = vpop.f32.mrb[0].mxu0
  %984 = vdwg.mxu0
  %v988 = vunpack.c.l.b16 %v892
  %v989 = vunpack.c.l.b16 %v893
  %v990 = vunpack.c.l.b16 %v894
  %v991 = vpack.c.b16 %v989, %v988
  %v992 = vpack.c.b16 %v990, %v990
  %993 = vrot.lane.b32.xlu0 %v991, 96
  %v994 = vpop.permute.xlu0 %993
  %995 = vrot.lane.b32.xlu0 %v992, 96
  %v996 = vpop.permute.xlu0 %995
  %v1000 = vunpack.c.l.b16 %v886
  %v1001 = vunpack.c.l.b16 %v887
  %v1002 = vunpack.c.l.b16 %v888
  %v1003 = vpack.c.b16 %v1001, %v1000
  %v1004 = vpack.c.b16 %v1002, %v1002
  %1005 = vrot.lane.b32.xlu0 %v1003, 32
  %v1006 = vpop.permute.xlu0 %1005
  %1007 = vrot.lane.b32.xlu0 %v1004, 32
  %v1008 = vpop.permute.xlu0 %1007
  %v1010 = vsel %vm48, %v994, 0
  %v1013 = vsel %vm48, %v996, 0
  %v1016 = vsel %vm48, %v1006, 0
  %v1019 = vsel %vm48, %v1008, 0
  %1021 = vmatprep.subr.bf16.mxu0 0
  %1022 = vmatpush1.bf16.xpose.msra.mxu0 %v1016
  %1023 = vmatprep.subr.bf16.mxu0 0
  %1024 = vmatpush1.bf16.xpose.msra.mxu0 %v1019
  %1025 = vmatprep.subr.bf16.mxu0 0
  %1026 = vmatpush1.bf16.xpose.msra.mxu0 0
  %1027 = vmatprep.subr.bf16.mxu0 0
  %1028 = vmatpush1.bf16.xpose.msra.mxu0 0
  %1029 = vmatprep.subr.bf16.mxu0 0
  %1030 = vmatpush1.bf16.xpose.msra.mxu0 0
  %1031 = vmatprep.subr.bf16.mxu0 0
  %1032 = vmatpush1.bf16.xpose.msra.mxu0 0
  %1033 = vmatprep.subr.bf16.mxu0 0
  %1034 = vmatpush1.bf16.xpose.msra.mxu0 0
  %1035 = vmatprep.subr.bf16.mxu0 0
  %1036 = vmatpush1.bf16.xpose.msra.mxu0 0
  %1037 = vmatprep.subr.bf16.mxu0 0
  %1038 = vmatpush1.bf16.xpose.msra.mxu0 0
  %1039 = vmatprep.subr.bf16.mxu0 0
  %1040 = vmatpush1.bf16.xpose.msra.mxu0 0
  %1041 = vmatprep.subr.bf16.mxu0 0
  %1042 = vmatpush1.bf16.xpose.msra.mxu0 0
  %1043 = vmatprep.subr.bf16.mxu0 0
  %1044 = vmatpush1.bf16.xpose.msra.mxu0 0
  %1045 = vmatprep.subr.bf16.mxu0 0
  %1046 = vmatpush1.bf16.xpose.msra.mxu0 0
  %1047 = vmatprep.subr.bf16.mxu0 0
  %1048 = vmatpush1.bf16.xpose.msra.mxu0 0
  %1049 = vmatprep.subr.bf16.mxu0 0
  %1050 = vmatpush1.bf16.xpose.msra.mxu0 0
  %1051 = vmatprep.subr.bf16.mxu0 0
  %1052 = vmatpush1.bf16.xpose.msra.mxu0 0
  %1053 = vmatprep.mubr.bf16.mxu0 0
  %1054 = vmatmul.mubr.bf16.gmra.mrb[0].mxu0 %v1010
  %v1055 = vpop.f32.mrb[0].mxu0
  %v1056 = vadd.f32 0.0, %v1055
  %v1057 = vpop.f32.mrb[0].mxu0
  %v1058 = vpop.f32.mrb[0].mxu0
  %v1059 = vadd.f32 0.0, %v1058
  %v1060 = vpop.f32.mrb[0].mxu0
  %1061 = vmatprep.mubr.bf16.mxu0 0
  %1062 = vmatmul.mubr.bf16.gmra.mrb[0].mxu0 %v1013
  %v1063 = vpop.f32.mrb[0].mxu0
  %v1064 = vadd.f32 0.0, %v1063
  %v1065 = vpop.f32.mrb[0].mxu0
  %v1066 = vpop.f32.mrb[0].mxu0
  %v1067 = vpop.f32.mrb[0].mxu0
  %1068 = vdwg.mxu0
  %v1069 = vsel %vm189, %v972, -inf
  %1070 = vmax.xlane.f32.xlu0 %v1069
  %v1071 = vpop.xlane.xlu0 %1070
  %v1072 = vsel %vm189, %v975, -inf
  %1073 = vmax.xlane.f32.xlu0 %v1072
  %v1074 = vpop.xlane.xlu0 %1073
  %v1075 = vsel %vm196, %v980, -inf
  %1076 = vmax.xlane.f32.xlu0 %v1075
  %v1077 = vpop.xlane.xlu0 %1076
  %v1078 = vsel %vm189, %v1056, -inf
  %1079 = vmax.xlane.f32.xlu0 %v1078
  %v1080 = vpop.xlane.xlu0 %1079
  %v1081 = vsel %vm189, %v1059, -inf
  %1082 = vmax.xlane.f32.xlu0 %v1081
  %v1083 = vpop.xlane.xlu0 %1082
  %v1084 = vsel %vm196, %v1064, -inf
  %1085 = vmax.xlane.f32.xlu0 %v1084
  %v1086 = vpop.xlane.xlu0 %1085
  %v1087 = vsub.f32 %v972, %v1071
  %v1088 = vsub.f32 %v975, %v1074
  %v1089 = vsub.f32 %v980, %v1077
  %v1090 = vsub.f32 %v1056, %v1080
  %v1091 = vsub.f32 %v1059, %v1083
  %v1092 = vsub.f32 %v1064, %v1086
  %v1093 = vmul.f32 %v1087, 1.442695
  %v1094 = vpow.pop %v1093
  %v1095 = vmul.f32 %v1088, 1.442695
  %v1096 = vpow.pop %v1095
  %v1097 = vmul.f32 %v1089, 1.442695
  %v1098 = vpow.pop %v1097
  %v1099 = vmul.f32 %v1090, 1.442695
  %v1100 = vpow.pop %v1099
  %v1101 = vmul.f32 %v1091, 1.442695
  %v1102 = vpow.pop %v1101
  %v1103 = vmul.f32 %v1092, 1.442695
  %v1104 = vpow.pop %v1103
  %v1105 = vsel %vm189, %v1094, 0.0
  %1106 = vadd.xlane.f32.xlu0 %v1105
  %v1107 = vpop.xlane.xlu0 %1106
  %v1108 = vsel %vm189, %v1096, 0.0
  %1109 = vadd.xlane.f32.xlu0 %v1108
  %v1110 = vpop.xlane.xlu0 %1109
  %v1111 = vsel %vm196, %v1098, 0.0
  %1112 = vadd.xlane.f32.xlu0 %v1111
  %v1113 = vpop.xlane.xlu0 %1112
  %v1114 = vsel %vm189, %v1100, 0.0
  %1115 = vadd.xlane.f32.xlu0 %v1114
  %v1116 = vpop.xlane.xlu0 %1115
  %v1117 = vsel %vm189, %v1102, 0.0
  %1118 = vadd.xlane.f32.xlu0 %v1117
  %v1119 = vpop.xlane.xlu0 %1118
  %v1120 = vsel %vm196, %v1104, 0.0
  %1121 = vadd.xlane.f32.xlu0 %v1120
  %v1122 = vpop.xlane.xlu0 %1121
  %v1123 = vrcp.pop %v1107
  %v1124 = vrcp.pop %v1110
  %v1125 = vrcp.pop %v1113
  %v1126 = vrcp.pop %v1116
  %v1127 = vrcp.pop %v1119
  %v1128 = vrcp.pop %v1122
  %v1129 = vmul.f32 %v1094, %v1123
  %v1130 = vmul.f32 %v1096, %v1124
  %v1131 = vmul.f32 %v1098, %v1125
  %v1132 = vmul.f32 %v1100, %v1126
  %v1133 = vmul.f32 %v1102, %v1127
  %v1134 = vmul.f32 %v1104, %v1128
  %v1135 = vpack.c.bf16 %v1130, %v1129
  %v1136 = vpack.c.bf16 %v1131, %v1131
  %v1137 = vpack.c.bf16 %v1133, %v1132
  %v1138 = vpack.c.bf16 %v1134, %v1134
  %v1142 = vunpack.c.l.b16 %v895
  %v1143 = vunpack.c.l.b16 %v896
  %v1144 = vunpack.c.l.b16 %v897
  %v1145 = vpack.c.b16 %v1143, %v1142
  %v1146 = vpack.c.b16 %v1144, %v1144
  %1147 = vrot.lane.b32.xlu0 %v1145, 96
  %v1148 = vpop.permute.xlu0 %1147
  %1149 = vrot.lane.b32.xlu0 %v1146, 96
  %v1150 = vpop.permute.xlu0 %1149
  %v1153 = vsel %vm189, %v1135, 0
  %v1156 = vsel %vm189, %v1136, 0
  %v1159 = vand.u32 %v1150, %v278
  %1161 = vmatprep.subr.bf16.mxu0 0
  %1162 = vmatpush1.bf16.msra.mxu0 %v1148
  %1163 = vmatprep.subr.bf16.mxu0 0
  %1164 = vmatpush1.bf16.msra.mxu0 %v1159
  %1165 = vmatprep.subr.bf16.mxu0 0
  %1166 = vmatpush1.bf16.msra.mxu0 0
  %1167 = vmatprep.subr.bf16.mxu0 0
  %1168 = vmatpush1.bf16.msra.mxu0 0
  %1169 = vmatprep.subr.bf16.mxu0 0
  %1170 = vmatpush1.bf16.msra.mxu0 0
  %1171 = vmatprep.subr.bf16.mxu0 0
  %1172 = vmatpush1.bf16.msra.mxu0 0
  %1173 = vmatprep.subr.bf16.mxu0 0
  %1174 = vmatpush1.bf16.msra.mxu0 0
  %1175 = vmatprep.subr.bf16.mxu0 0
  %1176 = vmatpush1.bf16.msra.mxu0 0
  %1177 = vmatprep.subr.bf16.mxu0 0
  %1178 = vmatpush1.bf16.msra.mxu0 0
  %1179 = vmatprep.subr.bf16.mxu0 0
  %1180 = vmatpush1.bf16.msra.mxu0 0
  %1181 = vmatprep.subr.bf16.mxu0 0
  %1182 = vmatpush1.bf16.msra.mxu0 0
  %1183 = vmatprep.subr.bf16.mxu0 0
  %1184 = vmatpush1.bf16.msra.mxu0 0
  %1185 = vmatprep.subr.bf16.mxu0 0
  %1186 = vmatpush1.bf16.msra.mxu0 0
  %1187 = vmatprep.subr.bf16.mxu0 0
  %1188 = vmatpush1.bf16.msra.mxu0 0
  %1189 = vmatprep.subr.bf16.mxu0 0
  %1190 = vmatpush1.bf16.msra.mxu0 0
  %1191 = vmatprep.subr.bf16.mxu0 0
  %1192 = vmatpush1.bf16.msra.mxu0 0
  %1193 = vmatprep.mubr.bf16.mxu0 0
  %1194 = vmatmul.mubr.bf16.gmra.mrb[0].mxu0 %v1153
  %v1195 = vpop.f32.mrb[0].mxu0
  %v1196 = vadd.f32 0.0, %v1195
  %v1197 = vpop.f32.mrb[0].mxu0
  %v1198 = vpop.f32.mrb[0].mxu0
  %v1199 = vadd.f32 0.0, %v1198
  %v1200 = vpop.f32.mrb[0].mxu0
  %1201 = vmatprep.mubr.bf16.mxu0 0
  %1202 = vmatmul.mubr.bf16.gmra.mrb[0].mxu0 %v1156
  %v1203 = vpop.f32.mrb[0].mxu0
  %v1204 = vadd.f32 0.0, %v1203
  %v1205 = vpop.f32.mrb[0].mxu0
  %v1206 = vpop.f32.mrb[0].mxu0
  %v1207 = vpop.f32.mrb[0].mxu0
  %1208 = vdwg.mxu0
  %v1212 = vunpack.c.l.b16 %v898
  %v1213 = vunpack.c.l.b16 %v899
  %v1214 = vunpack.c.l.b16 %v900
  %v1215 = vpack.c.b16 %v1213, %v1212
  %v1216 = vpack.c.b16 %v1214, %v1214
  %1217 = vrot.lane.b32.xlu0 %v1215, 96
  %v1218 = vpop.permute.xlu0 %1217
  %1219 = vrot.lane.b32.xlu0 %v1216, 96
  %v1220 = vpop.permute.xlu0 %1219
  %v1223 = vsel %vm189, %v1137, 0
  %v1226 = vsel %vm189, %v1138, 0
  %v1229 = vand.u32 %v1220, %v278
  %1231 = vmatprep.subr.bf16.mxu0 0
  %1232 = vmatpush1.bf16.msra.mxu0 %v1218
  %1233 = vmatprep.subr.bf16.mxu0 0
  %1234 = vmatpush1.bf16.msra.mxu0 %v1229
  %1235 = vmatprep.subr.bf16.mxu0 0
  %1236 = vmatpush1.bf16.msra.mxu0 0
  %1237 = vmatprep.subr.bf16.mxu0 0
  %1238 = vmatpush1.bf16.msra.mxu0 0
  %1239 = vmatprep.subr.bf16.mxu0 0
  %1240 = vmatpush1.bf16.msra.mxu0 0
  %1241 = vmatprep.subr.bf16.mxu0 0
  %1242 = vmatpush1.bf16.msra.mxu0 0
  %1243 = vmatprep.subr.bf16.mxu0 0
  %1244 = vmatpush1.bf16.msra.mxu0 0
  %1245 = vmatprep.subr.bf16.mxu0 0
  %1246 = vmatpush1.bf16.msra.mxu0 0
  %1247 = vmatprep.subr.bf16.mxu0 0
  %1248 = vmatpush1.bf16.msra.mxu0 0
  %1249 = vmatprep.subr.bf16.mxu0 0
  %1250 = vmatpush1.bf16.msra.mxu0 0
  %1251 = vmatprep.subr.bf16.mxu0 0
  %1252 = vmatpush1.bf16.msra.mxu0 0
  %1253 = vmatprep.subr.bf16.mxu0 0
  %1254 = vmatpush1.bf16.msra.mxu0 0
  %1255 = vmatprep.subr.bf16.mxu0 0
  %1256 = vmatpush1.bf16.msra.mxu0 0
  %1257 = vmatprep.subr.bf16.mxu0 0
  %1258 = vmatpush1.bf16.msra.mxu0 0
  %1259 = vmatprep.subr.bf16.mxu0 0
  %1260 = vmatpush1.bf16.msra.mxu0 0
  %1261 = vmatprep.subr.bf16.mxu0 0
  %1262 = vmatpush1.bf16.msra.mxu0 0
  %1263 = vmatprep.mubr.bf16.mxu0 0
  %1264 = vmatmul.mubr.bf16.gmra.mrb[0].mxu0 %v1223
  %v1265 = vpop.f32.mrb[0].mxu0
  %v1266 = vadd.f32 0.0, %v1265
  %v1267 = vpop.f32.mrb[0].mxu0
  %v1268 = vpop.f32.mrb[0].mxu0
  %v1269 = vadd.f32 0.0, %v1268
  %v1270 = vpop.f32.mrb[0].mxu0
  %1271 = vmatprep.mubr.bf16.mxu0 0
  %1272 = vmatmul.mubr.bf16.gmra.mrb[0].mxu0 %v1226
  %v1273 = vpop.f32.mrb[0].mxu0
  %v1274 = vadd.f32 0.0, %v1273
  %v1275 = vpop.f32.mrb[0].mxu0
  %v1276 = vpop.f32.mrb[0].mxu0
  %v1277 = vpop.f32.mrb[0].mxu0
  %1278 = vdwg.mxu0
  %v1279 = vpack.c.bf16 %v1199, %v1196
  %v1280 = vpack.c.bf16 %v1204, %v1204
  %v1281 = vpack.c.bf16 %v1269, %v1266
  %v1282 = vpack.c.bf16 %v1274, %v1274
  %v1287 = vunpack.c.l.b16 %v1279
  %v1288 = vunpack.c.h.b16 %v1279
  %v1289 = vunpack.c.l.b16 %v1280
  %v1290 = vunpack.c.l.b16 %v1281
  %v1291 = vunpack.c.h.b16 %v1281
  %v1292 = vunpack.c.l.b16 %v1282
  %v1293 = vpack.c.b16 %v1287, %v1287
  %v1294 = vpack.c.b16 %v1288, %v1288
  %v1295 = vpack.c.b16 %v1289, %v1289
  %v1296 = vpack.c.b16 %v1290, %v1290
  %v1297 = vpack.c.b16 %v1291, %v1291
  %v1298 = vpack.c.b16 %v1292, %v1292
  %1299 = vrot.lane.b32.xlu0 %v1293, 32
  %v1300 = vpop.permute.xlu0 %1299
  %1301 = vrot.lane.b32.xlu0 %v1294, 32
  %v1302 = vpop.permute.xlu0 %1301
  %1303 = vrot.lane.b32.xlu0 %v1295, 32
  %v1304 = vpop.permute.xlu0 %1303
  %1305 = vrot.lane.b32.xlu0 %v1296, 32
  %v1306 = vpop.permute.xlu0 %1305
  %1307 = vrot.lane.b32.xlu0 %v1297, 32
  %v1308 = vpop.permute.xlu0 %1307
  %1309 = vrot.lane.b32.xlu0 %v1298, 32
  %v1310 = vpop.permute.xlu0 %1309
  %vm1317 = vcmask 388352
  %1318 = vst.msk [vmem:[%s1] sm:$0xf] %vm1317, %v1300
  %1319 = vst.msk [vmem:[%s1 + $0x4] sm:$0xf] %vm1317, %v1302
  %vm1320 = vcmask 385280
  %vm1321 = vmand %vm1320, %vm426
  %v1322 = vld [vmem:[%s1 + $0x8] sm:$0x1]
  %v1323 = vsel %vm1321, %v1304, %v1322
  %1324 = vst [vmem:[%s1 + $0x8] sm:$0x1] %v1323
  %1325 = vst.msk [vmem:[%s1 + $0xc] sm:$0xf] %vm1317, %v1306
  %1326 = vst.msk [vmem:[%s1 + $0x10] sm:$0xf] %vm1317, %v1308
  %v1327 = vld [vmem:[%s1 + $0x14] sm:$0x1]
  %v1328 = vsel %vm1321, %v1310, %v1327
  %1329 = vst [vmem:[%s1 + $0x14] sm:$0x1] %v1328
  %v1330 = vld [vmem:[%s0] sm:$0xf]
  %v1331 = vld [vmem:[%s0 + $0x8] sm:$0xf]
  %v1332 = vld [vmem:[%s0 + $0x10] sm:$0x1]
  %v1333 = vld [vmem:[%s0 + $0x18] sm:$0xf]
  %v1334 = vld [vmem:[%s0 + $0x20] sm:$0xf]
  %v1335 = vld [vmem:[%s0 + $0x28] sm:$0x1]
  %v1336 = vmul.bf16 %v1330, 1048592000
  %v1337 = vmul.bf16 %v1331, 1048592000
  %v1338 = vmul.bf16 %v1332, 1048592000
  %v1339 = vmul.bf16 %v1333, 1048592000
  %v1340 = vmul.bf16 %v1334, 1048592000
  %v1341 = vmul.bf16 %v1335, 1048592000
  %v1342 = vld [vmem:[%s0 + $0x4] sm:$0xf]
  %v1343 = vld [vmem:[%s0 + $0xc] sm:$0xf]
  %v1344 = vld [vmem:[%s0 + $0x14] sm:$0x1]
  %v1345 = vld [vmem:[%s0 + $0x1c] sm:$0xf]
  %v1346 = vld [vmem:[%s0 + $0x24] sm:$0xf]
  %v1347 = vld [vmem:[%s0 + $0x2c] sm:$0x1]
  %v1351 = vunpack.c.l.b16 %v1336
  %v1352 = vunpack.c.l.b16 %v1337
  %v1353 = vunpack.c.l.b16 %v1338
  %v1354 = vpack.c.b16 %v1352, %v1351
  %v1355 = vpack.c.b16 %v1353, %v1353
  %1356 = vrot.lane.b32.xlu0 %v1354, 80
  %v1357 = vpop.permute.xlu0 %1356
  %1358 = vrot.lane.b32.xlu0 %v1355, 80
  %v1359 = vpop.permute.xlu0 %1358
  %v1363 = vunpack.c.l.b16 %v1330
  %v1364 = vunpack.c.l.b16 %v1331
  %v1365 = vunpack.c.l.b16 %v1332
  %v1366 = vpack.c.b16 %v1364, %v1363
  %v1367 = vpack.c.b16 %v1365, %v1365
  %1368 = vrot.lane.b32.xlu0 %v1366, 16
  %v1369 = vpop.permute.xlu0 %1368
  %1370 = vrot.lane.b32.xlu0 %v1367, 16
  %v1371 = vpop.permute.xlu0 %1370
  %v1373 = vsel %vm48, %v1357, 0
  %v1376 = vsel %vm48, %v1359, 0
  %v1379 = vsel %vm48, %v1369, 0
  %v1382 = vsel %vm48, %v1371, 0
  %1384 = vmatprep.subr.bf16.mxu0 0
  %1385 = vmatpush1.bf16.xpose.msra.mxu0 %v1379
  %1386 = vmatprep.subr.bf16.mxu0 0
  %1387 = vmatpush1.bf16.xpose.msra.mxu0 %v1382
  %1388 = vmatprep.subr.bf16.mxu0 0
  %1389 = vmatpush1.bf16.xpose.msra.mxu0 0
  %1390 = vmatprep.subr.bf16.mxu0 0
  %1391 = vmatpush1.bf16.xpose.msra.mxu0 0
  %1392 = vmatprep.subr.bf16.mxu0 0
  %1393 = vmatpush1.bf16.xpose.msra.mxu0 0
  %1394 = vmatprep.subr.bf16.mxu0 0
  %1395 = vmatpush1.bf16.xpose.msra.mxu0 0
  %1396 = vmatprep.subr.bf16.mxu0 0
  %1397 = vmatpush1.bf16.xpose.msra.mxu0 0
  %1398 = vmatprep.subr.bf16.mxu0 0
  %1399 = vmatpush1.bf16.xpose.msra.mxu0 0
  %1400 = vmatprep.subr.bf16.mxu0 0
  %1401 = vmatpush1.bf16.xpose.msra.mxu0 0
  %1402 = vmatprep.subr.bf16.mxu0 0
  %1403 = vmatpush1.bf16.xpose.msra.mxu0 0
  %1404 = vmatprep.subr.bf16.mxu0 0
  %1405 = vmatpush1.bf16.xpose.msra.mxu0 0
  %1406 = vmatprep.subr.bf16.mxu0 0
  %1407 = vmatpush1.bf16.xpose.msra.mxu0 0
  %1408 = vmatprep.subr.bf16.mxu0 0
  %1409 = vmatpush1.bf16.xpose.msra.mxu0 0
  %1410 = vmatprep.subr.bf16.mxu0 0
  %1411 = vmatpush1.bf16.xpose.msra.mxu0 0
  %1412 = vmatprep.subr.bf16.mxu0 0
  %1413 = vmatpush1.bf16.xpose.msra.mxu0 0
  %1414 = vmatprep.subr.bf16.mxu0 0
  %1415 = vmatpush1.bf16.xpose.msra.mxu0 0
  %1416 = vmatprep.mubr.bf16.mxu0 0
  %1417 = vmatmul.mubr.bf16.gmra.mrb[0].mxu0 %v1373
  %v1418 = vpop.f32.mrb[0].mxu0
  %v1419 = vadd.f32 0.0, %v1418
  %v1420 = vpop.f32.mrb[0].mxu0
  %v1421 = vpop.f32.mrb[0].mxu0
  %v1422 = vadd.f32 0.0, %v1421
  %v1423 = vpop.f32.mrb[0].mxu0
  %1424 = vmatprep.mubr.bf16.mxu0 0
  %1425 = vmatmul.mubr.bf16.gmra.mrb[0].mxu0 %v1376
  %v1426 = vpop.f32.mrb[0].mxu0
  %v1427 = vadd.f32 0.0, %v1426
  %v1428 = vpop.f32.mrb[0].mxu0
  %v1429 = vpop.f32.mrb[0].mxu0
  %v1430 = vpop.f32.mrb[0].mxu0
  %1431 = vdwg.mxu0
  %v1435 = vunpack.c.l.b16 %v1339
  %v1436 = vunpack.c.l.b16 %v1340
  %v1437 = vunpack.c.l.b16 %v1341
  %v1438 = vpack.c.b16 %v1436, %v1435
  %v1439 = vpack.c.b16 %v1437, %v1437
  %1440 = vrot.lane.b32.xlu0 %v1438, 80
  %v1441 = vpop.permute.xlu0 %1440
  %1442 = vrot.lane.b32.xlu0 %v1439, 80
  %v1443 = vpop.permute.xlu0 %1442
  %v1447 = vunpack.c.l.b16 %v1333
  %v1448 = vunpack.c.l.b16 %v1334
  %v1449 = vunpack.c.l.b16 %v1335
  %v1450 = vpack.c.b16 %v1448, %v1447
  %v1451 = vpack.c.b16 %v1449, %v1449
  %1452 = vrot.lane.b32.xlu0 %v1450, 16
  %v1453 = vpop.permute.xlu0 %1452
  %1454 = vrot.lane.b32.xlu0 %v1451, 16
  %v1455 = vpop.permute.xlu0 %1454
  %v1457 = vsel %vm48, %v1441, 0
  %v1460 = vsel %vm48, %v1443, 0
  %v1463 = vsel %vm48, %v1453, 0
  %v1466 = vsel %vm48, %v1455, 0
  %1468 = vmatprep.subr.bf16.mxu0 0
  %1469 = vmatpush1.bf16.xpose.msra.mxu0 %v1463
  %1470 = vmatprep.subr.bf16.mxu0 0
  %1471 = vmatpush1.bf16.xpose.msra.mxu0 %v1466
  %1472 = vmatprep.subr.bf16.mxu0 0
  %1473 = vmatpush1.bf16.xpose.msra.mxu0 0
  %1474 = vmatprep.subr.bf16.mxu0 0
  %1475 = vmatpush1.bf16.xpose.msra.mxu0 0
  %1476 = vmatprep.subr.bf16.mxu0 0
  %1477 = vmatpush1.bf16.xpose.msra.mxu0 0
  %1478 = vmatprep.subr.bf16.mxu0 0
  %1479 = vmatpush1.bf16.xpose.msra.mxu0 0
  %1480 = vmatprep.subr.bf16.mxu0 0
  %1481 = vmatpush1.bf16.xpose.msra.mxu0 0
  %1482 = vmatprep.subr.bf16.mxu0 0
  %1483 = vmatpush1.bf16.xpose.msra.mxu0 0
  %1484 = vmatprep.subr.bf16.mxu0 0
  %1485 = vmatpush1.bf16.xpose.msra.mxu0 0
  %1486 = vmatprep.subr.bf16.mxu0 0
  %1487 = vmatpush1.bf16.xpose.msra.mxu0 0
  %1488 = vmatprep.subr.bf16.mxu0 0
  %1489 = vmatpush1.bf16.xpose.msra.mxu0 0
  %1490 = vmatprep.subr.bf16.mxu0 0
  %1491 = vmatpush1.bf16.xpose.msra.mxu0 0
  %1492 = vmatprep.subr.bf16.mxu0 0
  %1493 = vmatpush1.bf16.xpose.msra.mxu0 0
  %1494 = vmatprep.subr.bf16.mxu0 0
  %1495 = vmatpush1.bf16.xpose.msra.mxu0 0
  %1496 = vmatprep.subr.bf16.mxu0 0
  %1497 = vmatpush1.bf16.xpose.msra.mxu0 0
  %1498 = vmatprep.subr.bf16.mxu0 0
  %1499 = vmatpush1.bf16.xpose.msra.mxu0 0
  %1500 = vmatprep.mubr.bf16.mxu0 0
  %1501 = vmatmul.mubr.bf16.gmra.mrb[0].mxu0 %v1457
  %v1502 = vpop.f32.mrb[0].mxu0
  %v1503 = vadd.f32 0.0, %v1502
  %v1504 = vpop.f32.mrb[0].mxu0
  %v1505 = vpop.f32.mrb[0].mxu0
  %v1506 = vadd.f32 0.0, %v1505
  %v1507 = vpop.f32.mrb[0].mxu0
  %1508 = vmatprep.mubr.bf16.mxu0 0
  %1509 = vmatmul.mubr.bf16.gmra.mrb[0].mxu0 %v1460
  %v1510 = vpop.f32.mrb[0].mxu0
  %v1511 = vadd.f32 0.0, %v1510
  %v1512 = vpop.f32.mrb[0].mxu0
  %v1513 = vpop.f32.mrb[0].mxu0
  %v1514 = vpop.f32.mrb[0].mxu0
  %1515 = vdwg.mxu0
  %v1516 = vsel %vm189, %v1419, -inf
  %1517 = vmax.xlane.f32.xlu0 %v1516
  %v1518 = vpop.xlane.xlu0 %1517
  %v1519 = vsel %vm189, %v1422, -inf
  %1520 = vmax.xlane.f32.xlu0 %v1519
  %v1521 = vpop.xlane.xlu0 %1520
  %v1522 = vsel %vm196, %v1427, -inf
  %1523 = vmax.xlane.f32.xlu0 %v1522
  %v1524 = vpop.xlane.xlu0 %1523
  %v1525 = vsel %vm189, %v1503, -inf
  %1526 = vmax.xlane.f32.xlu0 %v1525
  %v1527 = vpop.xlane.xlu0 %1526
  %v1528 = vsel %vm189, %v1506, -inf
  %1529 = vmax.xlane.f32.xlu0 %v1528
  %v1530 = vpop.xlane.xlu0 %1529
  %v1531 = vsel %vm196, %v1511, -inf
  %1532 = vmax.xlane.f32.xlu0 %v1531
  %v1533 = vpop.xlane.xlu0 %1532
  %v1534 = vsub.f32 %v1419, %v1518
  %v1535 = vsub.f32 %v1422, %v1521
  %v1536 = vsub.f32 %v1427, %v1524
  %v1537 = vsub.f32 %v1503, %v1527
  %v1538 = vsub.f32 %v1506, %v1530
  %v1539 = vsub.f32 %v1511, %v1533
  %v1540 = vmul.f32 %v1534, 1.442695
  %v1541 = vpow.pop %v1540
  %v1542 = vmul.f32 %v1535, 1.442695
  %v1543 = vpow.pop %v1542
  %v1544 = vmul.f32 %v1536, 1.442695
  %v1545 = vpow.pop %v1544
  %v1546 = vmul.f32 %v1537, 1.442695
  %v1547 = vpow.pop %v1546
  %v1548 = vmul.f32 %v1538, 1.442695
  %v1549 = vpow.pop %v1548
  %v1550 = vmul.f32 %v1539, 1.442695
  %v1551 = vpow.pop %v1550
  %v1552 = vsel %vm189, %v1541, 0.0
  %1553 = vadd.xlane.f32.xlu0 %v1552
  %v1554 = vpop.xlane.xlu0 %1553
  %v1555 = vsel %vm189, %v1543, 0.0
  %1556 = vadd.xlane.f32.xlu0 %v1555
  %v1557 = vpop.xlane.xlu0 %1556
  %v1558 = vsel %vm196, %v1545, 0.0
  %1559 = vadd.xlane.f32.xlu0 %v1558
  %v1560 = vpop.xlane.xlu0 %1559
  %v1561 = vsel %vm189, %v1547, 0.0
  %1562 = vadd.xlane.f32.xlu0 %v1561
  %v1563 = vpop.xlane.xlu0 %1562
  %v1564 = vsel %vm189, %v1549, 0.0
  %1565 = vadd.xlane.f32.xlu0 %v1564
  %v1566 = vpop.xlane.xlu0 %1565
  %v1567 = vsel %vm196, %v1551, 0.0
  %1568 = vadd.xlane.f32.xlu0 %v1567
  %v1569 = vpop.xlane.xlu0 %1568
  %v1570 = vrcp.pop %v1554
  %v1571 = vrcp.pop %v1557
  %v1572 = vrcp.pop %v1560
  %v1573 = vrcp.pop %v1563
  %v1574 = vrcp.pop %v1566
  %v1575 = vrcp.pop %v1569
  %v1576 = vmul.f32 %v1541, %v1570
  %v1577 = vmul.f32 %v1543, %v1571
  %v1578 = vmul.f32 %v1545, %v1572
  %v1579 = vmul.f32 %v1547, %v1573
  %v1580 = vmul.f32 %v1549, %v1574
  %v1581 = vmul.f32 %v1551, %v1575
  %v1582 = vpack.c.bf16 %v1577, %v1576
  %v1583 = vpack.c.bf16 %v1578, %v1578
  %v1584 = vpack.c.bf16 %v1580, %v1579
  %v1585 = vpack.c.bf16 %v1581, %v1581
  %v1589 = vunpack.c.l.b16 %v1342
  %v1590 = vunpack.c.l.b16 %v1343
  %v1591 = vunpack.c.l.b16 %v1344
  %v1592 = vpack.c.b16 %v1590, %v1589
  %v1593 = vpack.c.b16 %v1591, %v1591
  %1594 = vrot.lane.b32.xlu0 %v1592, 80
  %v1595 = vpop.permute.xlu0 %1594
  %1596 = vrot.lane.b32.xlu0 %v1593, 80
  %v1597 = vpop.permute.xlu0 %1596
  %v1600 = vsel %vm189, %v1582, 0
  %v1603 = vsel %vm189, %v1583, 0
  %v1606 = vand.u32 %v1597, %v278
  %1608 = vmatprep.subr.bf16.mxu0 0
  %1609 = vmatpush1.bf16.msra.mxu0 %v1595
  %1610 = vmatprep.subr.bf16.mxu0 0
  %1611 = vmatpush1.bf16.msra.mxu0 %v1606
  %1612 = vmatprep.subr.bf16.mxu0 0
  %1613 = vmatpush1.bf16.msra.mxu0 0
  %1614 = vmatprep.subr.bf16.mxu0 0
  %1615 = vmatpush1.bf16.msra.mxu0 0
  %1616 = vmatprep.subr.bf16.mxu0 0
  %1617 = vmatpush1.bf16.msra.mxu0 0
  %1618 = vmatprep.subr.bf16.mxu0 0
  %1619 = vmatpush1.bf16.msra.mxu0 0
  %1620 = vmatprep.subr.bf16.mxu0 0
  %1621 = vmatpush1.bf16.msra.mxu0 0
  %1622 = vmatprep.subr.bf16.mxu0 0
  %1623 = vmatpush1.bf16.msra.mxu0 0
  %1624 = vmatprep.subr.bf16.mxu0 0
  %1625 = vmatpush1.bf16.msra.mxu0 0
  %1626 = vmatprep.subr.bf16.mxu0 0
  %1627 = vmatpush1.bf16.msra.mxu0 0
  %1628 = vmatprep.subr.bf16.mxu0 0
  %1629 = vmatpush1.bf16.msra.mxu0 0
  %1630 = vmatprep.subr.bf16.mxu0 0
  %1631 = vmatpush1.bf16.msra.mxu0 0
  %1632 = vmatprep.subr.bf16.mxu0 0
  %1633 = vmatpush1.bf16.msra.mxu0 0
  %1634 = vmatprep.subr.bf16.mxu0 0
  %1635 = vmatpush1.bf16.msra.mxu0 0
  %1636 = vmatprep.subr.bf16.mxu0 0
  %1637 = vmatpush1.bf16.msra.mxu0 0
  %1638 = vmatprep.subr.bf16.mxu0 0
  %1639 = vmatpush1.bf16.msra.mxu0 0
  %1640 = vmatprep.mubr.bf16.mxu0 0
  %1641 = vmatmul.mubr.bf16.gmra.mrb[0].mxu0 %v1600
  %v1642 = vpop.f32.mrb[0].mxu0
  %v1643 = vadd.f32 0.0, %v1642
  %v1644 = vpop.f32.mrb[0].mxu0
  %v1645 = vpop.f32.mrb[0].mxu0
  %v1646 = vadd.f32 0.0, %v1645
  %v1647 = vpop.f32.mrb[0].mxu0
  %1648 = vmatprep.mubr.bf16.mxu0 0
  %1649 = vmatmul.mubr.bf16.gmra.mrb[0].mxu0 %v1603
  %v1650 = vpop.f32.mrb[0].mxu0
  %v1651 = vadd.f32 0.0, %v1650
  %v1652 = vpop.f32.mrb[0].mxu0
  %v1653 = vpop.f32.mrb[0].mxu0
  %v1654 = vpop.f32.mrb[0].mxu0
  %1655 = vdwg.mxu0
  %v1659 = vunpack.c.l.b16 %v1345
  %v1660 = vunpack.c.l.b16 %v1346
  %v1661 = vunpack.c.l.b16 %v1347
  %v1662 = vpack.c.b16 %v1660, %v1659
  %v1663 = vpack.c.b16 %v1661, %v1661
  %1664 = vrot.lane.b32.xlu0 %v1662, 80
  %v1665 = vpop.permute.xlu0 %1664
  %1666 = vrot.lane.b32.xlu0 %v1663, 80
  %v1667 = vpop.permute.xlu0 %1666
  %v1670 = vsel %vm189, %v1584, 0
  %v1673 = vsel %vm189, %v1585, 0
  %v1676 = vand.u32 %v1667, %v278
  %1678 = vmatprep.subr.bf16.mxu0 0
  %1679 = vmatpush1.bf16.msra.mxu0 %v1665
  %1680 = vmatprep.subr.bf16.mxu0 0
  %1681 = vmatpush1.bf16.msra.mxu0 %v1676
  %1682 = vmatprep.subr.bf16.mxu0 0
  %1683 = vmatpush1.bf16.msra.mxu0 0
  %1684 = vmatprep.subr.bf16.mxu0 0
  %1685 = vmatpush1.bf16.msra.mxu0 0
  %1686 = vmatprep.subr.bf16.mxu0 0
  %1687 = vmatpush1.bf16.msra.mxu0 0
  %1688 = vmatprep.subr.bf16.mxu0 0
  %1689 = vmatpush1.bf16.msra.mxu0 0
  %1690 = vmatprep.subr.bf16.mxu0 0
  %1691 = vmatpush1.bf16.msra.mxu0 0
  %1692 = vmatprep.subr.bf16.mxu0 0
  %1693 = vmatpush1.bf16.msra.mxu0 0
  %1694 = vmatprep.subr.bf16.mxu0 0
  %1695 = vmatpush1.bf16.msra.mxu0 0
  %1696 = vmatprep.subr.bf16.mxu0 0
  %1697 = vmatpush1.bf16.msra.mxu0 0
  %1698 = vmatprep.subr.bf16.mxu0 0
  %1699 = vmatpush1.bf16.msra.mxu0 0
  %1700 = vmatprep.subr.bf16.mxu0 0
  %1701 = vmatpush1.bf16.msra.mxu0 0
  %1702 = vmatprep.subr.bf16.mxu0 0
  %1703 = vmatpush1.bf16.msra.mxu0 0
  %1704 = vmatprep.subr.bf16.mxu0 0
  %1705 = vmatpush1.bf16.msra.mxu0 0
  %1706 = vmatprep.subr.bf16.mxu0 0
  %1707 = vmatpush1.bf16.msra.mxu0 0
  %1708 = vmatprep.subr.bf16.mxu0 0
  %1709 = vmatpush1.bf16.msra.mxu0 0
  %1710 = vmatprep.mubr.bf16.mxu0 0
  %1711 = vmatmul.mubr.bf16.gmra.mrb[0].mxu0 %v1670
  %v1712 = vpop.f32.mrb[0].mxu0
  %v1713 = vadd.f32 0.0, %v1712
  %v1714 = vpop.f32.mrb[0].mxu0
  %v1715 = vpop.f32.mrb[0].mxu0
  %v1716 = vadd.f32 0.0, %v1715
  %v1717 = vpop.f32.mrb[0].mxu0
  %1718 = vmatprep.mubr.bf16.mxu0 0
  %1719 = vmatmul.mubr.bf16.gmra.mrb[0].mxu0 %v1673
  %v1720 = vpop.f32.mrb[0].mxu0
  %v1721 = vadd.f32 0.0, %v1720
  %v1722 = vpop.f32.mrb[0].mxu0
  %v1723 = vpop.f32.mrb[0].mxu0
  %v1724 = vpop.f32.mrb[0].mxu0
  %1725 = vdwg.mxu0
  %v1726 = vpack.c.bf16 %v1646, %v1643
  %v1727 = vpack.c.bf16 %v1651, %v1651
  %v1728 = vpack.c.bf16 %v1716, %v1713
  %v1729 = vpack.c.bf16 %v1721, %v1721
  %v1734 = vunpack.c.l.b16 %v1726
  %v1735 = vunpack.c.h.b16 %v1726
  %v1736 = vunpack.c.l.b16 %v1727
  %v1737 = vunpack.c.l.b16 %v1728
  %v1738 = vunpack.c.h.b16 %v1728
  %v1739 = vunpack.c.l.b16 %v1729
  %v1740 = vpack.c.b16 %v1734, %v1734
  %v1741 = vpack.c.b16 %v1735, %v1735
  %v1742 = vpack.c.b16 %v1736, %v1736
  %v1743 = vpack.c.b16 %v1737, %v1737
  %v1744 = vpack.c.b16 %v1738, %v1738
  %v1745 = vpack.c.b16 %v1739, %v1739
  %1746 = vrot.lane.b32.xlu0 %v1740, 48
  %v1747 = vpop.permute.xlu0 %1746
  %1748 = vrot.lane.b32.xlu0 %v1741, 48
  %v1749 = vpop.permute.xlu0 %1748
  %1750 = vrot.lane.b32.xlu0 %v1742, 48
  %v1751 = vpop.permute.xlu0 %1750
  %1752 = vrot.lane.b32.xlu0 %v1743, 48
  %v1753 = vpop.permute.xlu0 %1752
  %1754 = vrot.lane.b32.xlu0 %v1744, 48
  %v1755 = vpop.permute.xlu0 %1754
  %1756 = vrot.lane.b32.xlu0 %v1745, 48
  %v1757 = vpop.permute.xlu0 %1756
  %vm1764 = vcmask 519552
  %1765 = vst.msk [vmem:[%s1] sm:$0xf] %vm1764, %v1747
  %1766 = vst.msk [vmem:[%s1 + $0x4] sm:$0xf] %vm1764, %v1749
  %vm1767 = vcmask 516480
  %vm1768 = vmand %vm1767, %vm426
  %v1769 = vld [vmem:[%s1 + $0x8] sm:$0x1]
  %v1770 = vsel %vm1768, %v1751, %v1769
  %1771 = vst [vmem:[%s1 + $0x8] sm:$0x1] %v1770
  %1772 = vst.msk [vmem:[%s1 + $0xc] sm:$0xf] %vm1764, %v1753
  %1773 = vst.msk [vmem:[%s1 + $0x10] sm:$0xf] %vm1764, %v1755
  %v1774 = vld [vmem:[%s1 + $0x14] sm:$0x1]
  %v1775 = vsel %vm1768, %v1757, %v1774
  %1776 = vst [vmem:[%s1 + $0x14] sm:$0x1] %v1775
  // Predicated region
  $region6: #{custom_clip_matrix_forward.28} parent=0 // pred_check
    _
  $region7: #{custom_clip_matrix_forward.28} parent=0 // pred_check_branch
    %1778 = sbr.rel (0) target = $region9
  $region8: #{custom_clip_matrix_forward.28} parent=0 // pred_region
    _
  $region9: #{custom_clip_matrix_forward.28} parent=0 // pred_fallthru
    _
  // Predicated region
  $region10: #{custom_clip_matrix_forward.28} parent=0 // pred_check
    _
  $region11: #{custom_clip_matrix_forward.28} parent=0 // pred_check_branch
    %1780 = sbr.rel (0) target = $region13
  $region12: #{custom_clip_matrix_forward.28} parent=0 // pred_region
    _
  $region13: #{custom_clip_matrix_forward.28} parent=0 // pred_fallthru
    _

// kernel: custom_clip_matrix_forward.30
$region0: #{custom_clip_matrix_forward.30}
  #allocation0 [shape = 'u32[]', space=smem, size = 0x4, offset = 0x4, fixed_abs, tag = 'smem constant byte address 0x4 - core index']
  #allocation1 [shape = 'u32[144,128]{1,0:T(1,128)}', space=vmem, size = 0x12000, scoped, tag = 'internal scratch']
  %s0 = inlined_call_operand.hbm [shape: bf16[34,64], index: 0, kind: input, shape index: {}]
  %s1 = inlined_call_operand.hbm [shape: bf16[64,256], index: 1, kind: input, shape index: {}]
  %s2 = inlined_call_operand.hbm [shape: bf16[1,256], index: 2, kind: input, shape index: {}]
  %s3 = inlined_call_operand.hbm [shape: bf16[1,64], index: 3, kind: input, shape index: {}]
  %s4 = inlined_call_operand.hbm [shape: bf16[1,64], index: 4, kind: input, shape index: {}]
  %s5 = inlined_call_operand.hbm [shape: bf16[34,256], index: 5, kind: output, shape index: {}]
  %s6 = sld [smem:[#allocation0]]
  $region50: #{custom_clip_matrix_forward.30} parent=0
    _
  %s8 = ssub.s32 1, %s6
  %s9 = scalar_select 0, %s8, %s6
  $region1: #{custom_clip_matrix_forward.30} parent=0
    #allocation2 [shape = 'u8[10240]{0}', space=vmem, size = 0x2800, scoped, tag = 'input window, operand 0, single buffered']
    #allocation3 [shape = 's32[1]{0}', space=sflag, size = 0x4, scoped, tag = 'scoped memory for custom_clip_matrix_forward.30']
    #allocation4 [shape = 's32[1]{0}', space=sflag, size = 0x4, scoped, tag = 'scoped memory for custom_clip_matrix_forward.30']
    #allocation5 [shape = 'u8[32768]{0}', space=vmem, size = 0x8000, scoped, tag = 'input window, operand 1, single buffered']
    #allocation6 [shape = 's32[1]{0}', space=sflag, size = 0x4, scoped, tag = 'scoped memory for custom_clip_matrix_forward.30']
    #allocation7 [shape = 'u8[1024]{0}', space=vmem, size = 0x400, scoped, tag = 'input window, operand 2, single buffered']
    #allocation8 [shape = 'u8[512]{0}', space=vmem, size = 0x400, scoped, tag = 'input window, operand 3, single buffered']
    #allocation9 [shape = 's32[1]{0}', space=sflag, size = 0x4, scoped, tag = 'scoped memory for custom_clip_matrix_forward.30']
    #allocation10 [shape = 'u8[512]{0}', space=vmem, size = 0x400, scoped, tag = 'input window, operand 4, single buffered']
    #allocation11 [shape = 'u8[20480]{0}', space=vmem, size = 0x5000, scoped, tag = 'output window, operand 0, single buffered']
    %10 = vsyncpa [#allocation3], 0
    %11 = vsyncpa [#allocation6], 0
    %12 = vsyncpa [#allocation9], 0
    %13 = vsyncpa [#allocation4], 0
    // Predicated region
    $region2: #{custom_clip_matrix_forward.30} parent=1 // pred_check
      _
    $region3: #{custom_clip_matrix_forward.30} parent=1 // pred_check_branch
      %15 = sbr.rel (0) target = $region5
    $region4: #{custom_clip_matrix_forward.30} parent=1 // pred_region
      %s17 = ssub.s32 320, 320
      %18 = vsyncadd [#allocation3], %s17
      %s19 = sshll.u32 [#allocation2], 4
      %s20 = int_to_ptr.vmem [resolvable:$true] %s19
      %25 = dma.hbm_to_vmem [thread:$0]  %s0, 320, %s20, [#allocation3], 64, 64, 4
    $region5: #{custom_clip_matrix_forward.30} parent=1 // pred_fallthru
      _
    // Predicated region
    $region6: #{custom_clip_matrix_forward.30} parent=1 // pred_check
      _
    $region7: #{custom_clip_matrix_forward.30} parent=1 // pred_check_branch
      %27 = sbr.rel (0) target = $region9
    $region8: #{custom_clip_matrix_forward.30} parent=1 // pred_region
      %s29 = ssub.s32 1024, 1024
      %30 = vsyncadd [#allocation6], %s29
      %s31 = sshll.u32 [#allocation5], 4
      %s32 = int_to_ptr.vmem [resolvable:$true] %s31
      %37 = dma.hbm_to_vmem [thread:$0]  %s1, 1024, %s32, [#allocation6], 128, 128, 8
    $region9: #{custom_clip_matrix_forward.30} parent=1 // pred_fallthru
      _
    // Predicated region
    $region10: #{custom_clip_matrix_forward.30} parent=1 // pred_check
      _
    $region11: #{custom_clip_matrix_forward.30} parent=1 // pred_check_branch
      %39 = sbr.rel (0) target = $region13
    $region12: #{custom_clip_matrix_forward.30} parent=1 // pred_region
      %s41 = ssub.s32 32, 32
      %42 = vsyncadd [#allocation6], %s41
      %s44 = sshll.u32 [#allocation7], 4
      %s45 = int_to_ptr.vmem [resolvable:$true] %s44
      %47 = dma.hbm_to_vmem [thread:$0]  %s2, 32, %s45, [#allocation6]
    $region13: #{custom_clip_matrix_forward.30} parent=1 // pred_fallthru
      _
    // Predicated region
    $region14: #{custom_clip_matrix_forward.30} parent=1 // pred_check
      _
    $region15: #{custom_clip_matrix_forward.30} parent=1 // pred_check_branch
      %49 = sbr.rel (0) target = $region17
    $region16: #{custom_clip_matrix_forward.30} parent=1 // pred_region
      %s51 = ssub.s32 16, 16
      %52 = vsyncadd [#allocation9], %s51
      %s54 = sshll.u32 [#allocation8], 4
      %s55 = int_to_ptr.vmem [resolvable:$true] %s54
      %57 = dma.hbm_to_vmem [thread:$0]  %s3, 16, %s55, [#allocation9]
    $region17: #{custom_clip_matrix_forward.30} parent=1 // pred_fallthru
      _
    // Predicated region
    $region18: #{custom_clip_matrix_forward.30} parent=1 // pred_check
      _
    $region19: #{custom_clip_matrix_forward.30} parent=1 // pred_check_branch
      %59 = sbr.rel (0) target = $region21
    $region20: #{custom_clip_matrix_forward.30} parent=1 // pred_region
      %s61 = ssub.s32 16, 16
      %62 = vsyncadd [#allocation9], %s61
      %s64 = sshll.u32 [#allocation10], 4
      %s65 = int_to_ptr.vmem [resolvable:$true] %s64
      %67 = dma.hbm_to_vmem [thread:$0]  %s4, 16, %s65, [#allocation9]
    $region21: #{custom_clip_matrix_forward.30} parent=1 // pred_fallthru
      _
    // Predicated region
    $region22: #{custom_clip_matrix_forward.30} parent=1 // pred_check
      _
    $region23: #{custom_clip_matrix_forward.30} parent=1 // pred_check_branch
      %69 = sbr.rel (0) target = $region25
    $region24: #{custom_clip_matrix_forward.30} parent=1 // pred_region
      %70 = dma.done [#allocation3], 320
    $region25: #{custom_clip_matrix_forward.30} parent=1 // pred_fallthru
      _
    // Predicated region
    $region26: #{custom_clip_matrix_forward.30} parent=1 // pred_check
      _
    $region27: #{custom_clip_matrix_forward.30} parent=1 // pred_check_branch
      %72 = sbr.rel (0) target = $region29
    $region28: #{custom_clip_matrix_forward.30} parent=1 // pred_region
      %73 = dma.done [#allocation6], 1024
    $region29: #{custom_clip_matrix_forward.30} parent=1 // pred_fallthru
      _
    // Predicated region
    $region30: #{custom_clip_matrix_forward.30} parent=1 // pred_check
      _
    $region31: #{custom_clip_matrix_forward.30} parent=1 // pred_check_branch
      %75 = sbr.rel (0) target = $region33
    $region32: #{custom_clip_matrix_forward.30} parent=1 // pred_region
      %76 = dma.done [#allocation6], 32
    $region33: #{custom_clip_matrix_forward.30} parent=1 // pred_fallthru
      _
    // Predicated region
    $region34: #{custom_clip_matrix_forward.30} parent=1 // pred_check
      _
    $region35: #{custom_clip_matrix_forward.30} parent=1 // pred_check_branch
      %78 = sbr.rel (0) target = $region37
    $region36: #{custom_clip_matrix_forward.30} parent=1 // pred_region
      %79 = dma.done [#allocation9], 16
    $region37: #{custom_clip_matrix_forward.30} parent=1 // pred_fallthru
      _
    // Predicated region
    $region38: #{custom_clip_matrix_forward.30} parent=1 // pred_check
      _
    $region39: #{custom_clip_matrix_forward.30} parent=1 // pred_check_branch
      %81 = sbr.rel (0) target = $region41
    $region40: #{custom_clip_matrix_forward.30} parent=1 // pred_region
      %82 = dma.done [#allocation9], 16
    $region41: #{custom_clip_matrix_forward.30} parent=1 // pred_fallthru
      _
    %v84 = vld [vmem:[#allocation2] sm:$0xf]
    %v85 = vld [vmem:[#allocation2 + $0x4] sm:$0xf]
    %v86 = vld [vmem:[#allocation2 + $0x8] sm:$0xf]
    %v87 = vld [vmem:[#allocation2 + $0xc] sm:$0xf]
    %v88 = vld [vmem:[#allocation2 + $0x10] sm:$0x1]
    %v89 = vunpack.c.l.bf16 %v84
    %v90 = vunpack.c.l.bf16 %v85
    %v91 = vunpack.c.l.bf16 %v86
    %v92 = vunpack.c.l.bf16 %v87
    %v93 = vunpack.c.l.bf16 %v88
    %vm94 = vcmask 523264
    %v95 = vsel %vm94, %v89, 0.0
    %96 = vadd.xlane.f32.xlu0 %v95
    %v97 = vpop.xlane.xlu0 %96
    %v98 = vsel %vm94, %v90, 0.0
    %99 = vadd.xlane.f32.xlu0 %v98
    %v100 = vpop.xlane.xlu0 %99
    %v101 = vsel %vm94, %v91, 0.0
    %102 = vadd.xlane.f32.xlu0 %v101
    %v103 = vpop.xlane.xlu0 %102
    %v104 = vsel %vm94, %v92, 0.0
    %105 = vadd.xlane.f32.xlu0 %v104
    %v106 = vpop.xlane.xlu0 %105
    %vm107 = vcmask 517120
    %v108 = vsel %vm107, %v93, 0.0
    %109 = vadd.xlane.f32.xlu0 %v108
    %v110 = vpop.xlane.xlu0 %109
    %v111 = vrcp.pop 64.0
    %v112 = vmul.f32 %v97, %v111
    %v113 = vmul.f32 %v100, %v111
    %v114 = vmul.f32 %v103, %v111
    %v115 = vmul.f32 %v106, %v111
    %v116 = vmul.f32 %v110, %v111
    %v117 = vsub.f32 %v89, %v112
    %v118 = vsub.f32 %v90, %v113
    %v119 = vsub.f32 %v91, %v114
    %v120 = vsub.f32 %v92, %v115
    %v121 = vsub.f32 %v93, %v116
    %v122 = vmul.f32 %v117, %v117
    %v123 = vmul.f32 %v118, %v118
    %v124 = vmul.f32 %v119, %v119
    %v125 = vmul.f32 %v120, %v120
    %v126 = vmul.f32 %v121, %v121
    %v127 = vsel %vm94, %v122, 0.0
    %128 = vadd.xlane.f32.xlu0 %v127
    %v129 = vpop.xlane.xlu0 %128
    %v130 = vsel %vm94, %v123, 0.0
    %131 = vadd.xlane.f32.xlu0 %v130
    %v132 = vpop.xlane.xlu0 %131
    %v133 = vsel %vm94, %v124, 0.0
    %134 = vadd.xlane.f32.xlu0 %v133
    %v135 = vpop.xlane.xlu0 %134
    %v136 = vsel %vm94, %v125, 0.0
    %137 = vadd.xlane.f32.xlu0 %v136
    %v138 = vpop.xlane.xlu0 %137
    %v139 = vsel %vm107, %v126, 0.0
    %140 = vadd.xlane.f32.xlu0 %v139
    %v141 = vpop.xlane.xlu0 %140
    %v142 = vmul.f32 %v129, %v111
    %v143 = vmul.f32 %v132, %v111
    %v144 = vmul.f32 %v135, %v111
    %v145 = vmul.f32 %v138, %v111
    %v146 = vmul.f32 %v141, %v111
    %v147 = vadd.f32 %v142, 1e-05
    %v148 = vadd.f32 %v143, 1e-05
    %v149 = vadd.f32 %v144, 1e-05
    %v150 = vadd.f32 %v145, 1e-05
    %v151 = vadd.f32 %v146, 1e-05
    %v152 = vrsqrt.pop %v147
    %v153 = vrsqrt.pop %v148
    %v154 = vrsqrt.pop %v149
    %v155 = vrsqrt.pop %v150
    %v156 = vrsqrt.pop %v151
    %v157 = vmul.f32 %v117, %v152
    %v158 = vmul.f32 %v118, %v153
    %v159 = vmul.f32 %v119, %v154
    %v160 = vmul.f32 %v120, %v155
    %v161 = vmul.f32 %v121, %v156
    %v162 = vld [vmem:[#allocation8] sm:$0x1]
    %v163 = vunpack.c.l.bf16 %v162
    %v164 = vlaneseq
    %v165 = vshrl.u32 %v164, 7
    %v166 = vsub.s32 0, %v165
    %v167 = vrot.slane %v163, %v166
    %v168 = vmul.f32 %v157, %v167
    %v169 = vmul.f32 %v158, %v167
    %v170 = vmul.f32 %v159, %v167
    %v171 = vmul.f32 %v160, %v167
    %v172 = vmul.f32 %v161, %v167
    %v173 = vld [vmem:[#allocation10] sm:$0x1]
    %v174 = vunpack.c.l.bf16 %v173
    %v175 = vlaneseq
    %v176 = vshrl.u32 %v175, 7
    %v177 = vsub.s32 0, %v176
    %v178 = vrot.slane %v174, %v177
    %v179 = vadd.f32 %v168, %v178
    %v180 = vadd.f32 %v169, %v178
    %v181 = vadd.f32 %v170, %v178
    %v182 = vadd.f32 %v171, %v178
    %v183 = vadd.f32 %v172, %v178
    %v184 = vpack.c.bf16 %v180, %v179
    %v185 = vpack.c.bf16 %v182, %v181
    %v186 = vpack.c.bf16 %v183, %v183
    %v187 = vld [vmem:[#allocation5] sm:$0xff]
    %v188 = vld [vmem:[#allocation5 + $0x8] sm:$0xff]
    %v189 = vld [vmem:[#allocation5 + $0x10] sm:$0xff]
    %v190 = vld [vmem:[#allocation5 + $0x18] sm:$0xff]
    %v191 = vld [vmem:[#allocation5 + $0x20] sm:$0xff]
    %v192 = vld [vmem:[#allocation5 + $0x28] sm:$0xff]
    %v193 = vld [vmem:[#allocation5 + $0x30] sm:$0xff]
    %v194 = vld [vmem:[#allocation5 + $0x38] sm:$0xff]
    %v195 = vld [vmem:[#allocation7] sm:$0x3]
    %v196 = vunpack.c.l.bf16 %v195
    %v198 = vlaneseq
    %v199 = vshrl.u32 %v198, 7
    %v200 = vsub.s32 0, %v199
    %v201 = vrot.slane %v196, %v200
    %v202 = vlaneseq
    %v203 = vshrl.u32 %v202, 7
    %v204 = vsub.s32 2, %v203
    %v205 = vrot.slane %v196, %v204
    %v208 = vlaneseq
    %v209 = vshrl.u32 %v208, 7
    %v210 = vsub.s32 0, %v209
    %v211 = vrot.slane %v201, %v210
    %v212 = vlaneseq
    %v213 = vshrl.u32 %v212, 7
    %v214 = vsub.s32 0, %v213
    %v215 = vrot.slane %v205, %v214
    %v224 = vunpack.c.l.b16 %v187
    %v225 = vunpack.c.h.b16 %v187
    %v226 = vunpack.c.l.b16 %v188
    %v227 = vunpack.c.h.b16 %v188
    %v228 = vunpack.c.l.b16 %v189
    %v229 = vunpack.c.h.b16 %v189
    %v230 = vunpack.c.l.b16 %v190
    %v231 = vunpack.c.h.b16 %v190
    %v232 = vunpack.c.l.b16 %v191
    %v233 = vunpack.c.h.b16 %v191
    %v234 = vunpack.c.l.b16 %v192
    %v235 = vunpack.c.h.b16 %v192
    %v236 = vunpack.c.l.b16 %v193
    %v237 = vunpack.c.h.b16 %v193
    %v238 = vunpack.c.l.b16 %v194
    %v239 = vunpack.c.h.b16 %v194
    %v240 = vpack.c.b16 %v226, %v224
    %v241 = vpack.c.b16 %v227, %v225
    %v242 = vpack.c.b16 %v230, %v228
    %v243 = vpack.c.b16 %v231, %v229
    %v244 = vpack.c.b16 %v234, %v232
    %v245 = vpack.c.b16 %v235, %v233
    %v246 = vpack.c.b16 %v238, %v236
    %v247 = vpack.c.b16 %v239, %v237
    %v257 = vsel %vm94, %v184, 0
    %v260 = vsel %vm94, %v185, 0
    %v263 = vsel %vm94, %v186, 0
    %265 = vmatprep.subr.bf16.mxu0 %v241
    %266 = vmatpush1.bf16.msra.mxu0 %v240
    %267 = vmatprep.subr.bf16.mxu0 %v243
    %268 = vmatpush1.bf16.msra.mxu0 %v242
    %269 = vmatprep.subr.bf16.mxu0 %v245
    %270 = vmatpush1.bf16.msra.mxu0 %v244
    %271 = vmatprep.subr.bf16.mxu0 %v247
    %272 = vmatpush1.bf16.msra.mxu0 %v246
    %273 = vmatprep.subr.bf16.mxu0 0
    %274 = vmatpush1.bf16.msra.mxu0 0
    %275 = vmatprep.subr.bf16.mxu0 0
    %276 = vmatpush1.bf16.msra.mxu0 0
    %277 = vmatprep.subr.bf16.mxu0 0
    %278 = vmatpush1.bf16.msra.mxu0 0
    %279 = vmatprep.subr.bf16.mxu0 0
    %280 = vmatpush1.bf16.msra.mxu0 0
    %281 = vmatprep.subr.bf16.mxu0 0
    %282 = vmatpush1.bf16.msra.mxu0 0
    %283 = vmatprep.subr.bf16.mxu0 0
    %284 = vmatpush1.bf16.msra.mxu0 0
    %285 = vmatprep.subr.bf16.mxu0 0
    %286 = vmatpush1.bf16.msra.mxu0 0
    %287 = vmatprep.subr.bf16.mxu0 0
    %288 = vmatpush1.bf16.msra.mxu0 0
    %289 = vmatprep.subr.bf16.mxu0 0
    %290 = vmatpush1.bf16.msra.mxu0 0
    %291 = vmatprep.subr.bf16.mxu0 0
    %292 = vmatpush1.bf16.msra.mxu0 0
    %293 = vmatprep.subr.bf16.mxu0 0
    %294 = vmatpush1.bf16.msra.mxu0 0
    %295 = vmatprep.subr.bf16.mxu0 0
    %296 = vmatpush1.bf16.msra.mxu0 0
    %297 = vmatprep.mubr.bf16.mxu0 0
    %298 = vmatmul.mubr.bf16.gmra.mrb[0].mxu0 %v257
    %v299 = vpop.f32.mrb[0].mxu0
    %v300 = vadd.f32 %v211, %v299
    %v301 = vpop.f32.mrb[0].mxu0
    %v302 = vadd.f32 %v215, %v301
    %v303 = vpop.f32.mrb[0].mxu0
    %v304 = vadd.f32 %v211, %v303
    %v305 = vpop.f32.mrb[0].mxu0
    %v306 = vadd.f32 %v215, %v305
    %307 = vmatprep.mubr.bf16.mxu0 0
    %308 = vmatmul.mubr.bf16.gmra.mrb[0].mxu0 %v260
    %v309 = vpop.f32.mrb[0].mxu0
    %v310 = vadd.f32 %v211, %v309
    %v311 = vpop.f32.mrb[0].mxu0
    %v312 = vadd.f32 %v215, %v311
    %v313 = vpop.f32.mrb[0].mxu0
    %v314 = vadd.f32 %v211, %v313
    %v315 = vpop.f32.mrb[0].mxu0
    %v316 = vadd.f32 %v215, %v315
    %317 = vmatprep.mubr.bf16.mxu0 0
    %318 = vmatmul.mubr.bf16.gmra.mrb[0].mxu0 %v263
    %v319 = vpop.f32.mrb[0].mxu0
    %v320 = vadd.f32 %v211, %v319
    %v321 = vpop.f32.mrb[0].mxu0
    %v322 = vadd.f32 %v215, %v321
    %v323 = vpop.f32.mrb[0].mxu0
    %v324 = vpop.f32.mrb[0].mxu0
    %325 = vdwg.mxu0
    %v326 = vmul.f32 %v300, 1.702
    %v327 = vmul.f32 %v302, 1.702
    %v328 = vmul.f32 %v304, 1.702
    %v329 = vmul.f32 %v306, 1.702
    %v330 = vmul.f32 %v310, 1.702
    %v331 = vmul.f32 %v312, 1.702
    %v332 = vmul.f32 %v314, 1.702
    %v333 = vmul.f32 %v316, 1.702
    %v334 = vmul.f32 %v320, 1.702
    %v335 = vmul.f32 %v322, 1.702
    %v336 = vxor.u32 %v326, 2147483648
    %v337 = vxor.u32 %v327, 2147483648
    %v338 = vxor.u32 %v328, 2147483648
    %v339 = vxor.u32 %v329, 2147483648
    %v340 = vxor.u32 %v330, 2147483648
    %v341 = vxor.u32 %v331, 2147483648
    %v342 = vxor.u32 %v332, 2147483648
    %v343 = vxor.u32 %v333, 2147483648
    %v344 = vxor.u32 %v334, 2147483648
    %v345 = vxor.u32 %v335, 2147483648
    %v346 = vmul.f32 %v336, 1.442695
    %v347 = vpow.pop %v346
    %v348 = vmul.f32 %v337, 1.442695
    %v349 = vpow.pop %v348
    %v350 = vmul.f32 %v338, 1.442695
    %v351 = vpow.pop %v350
    %v352 = vmul.f32 %v339, 1.442695
    %v353 = vpow.pop %v352
    %v354 = vmul.f32 %v340, 1.442695
    %v355 = vpow.pop %v354
    %v356 = vmul.f32 %v341, 1.442695
    %v357 = vpow.pop %v356
    %v358 = vmul.f32 %v342, 1.442695
    %v359 = vpow.pop %v358
    %v360 = vmul.f32 %v343, 1.442695
    %v361 = vpow.pop %v360
    %v362 = vmul.f32 %v344, 1.442695
    %v363 = vpow.pop %v362
    %v364 = vmul.f32 %v345, 1.442695
    %v365 = vpow.pop %v364
    %v366 = vadd.f32 %v347, 1.0
    %v367 = vadd.f32 %v349, 1.0
    %v368 = vadd.f32 %v351, 1.0
    %v369 = vadd.f32 %v353, 1.0
    %v370 = vadd.f32 %v355, 1.0
    %v371 = vadd.f32 %v357, 1.0
    %v372 = vadd.f32 %v359, 1.0
    %v373 = vadd.f32 %v361, 1.0
    %v374 = vadd.f32 %v363, 1.0
    %v375 = vadd.f32 %v365, 1.0
    %v376 = vrcp.pop %v366
    %v377 = vmul.f32 1.0, %v376
    %v378 = vrcp.pop %v367
    %v379 = vmul.f32 1.0, %v378
    %v380 = vrcp.pop %v368
    %v381 = vmul.f32 1.0, %v380
    %v382 = vrcp.pop %v369
    %v383 = vmul.f32 1.0, %v382
    %v384 = vrcp.pop %v370
    %v385 = vmul.f32 1.0, %v384
    %v386 = vrcp.pop %v371
    %v387 = vmul.f32 1.0, %v386
    %v388 = vrcp.pop %v372
    %v389 = vmul.f32 1.0, %v388
    %v390 = vrcp.pop %v373
    %v391 = vmul.f32 1.0, %v390
    %v392 = vrcp.pop %v374
    %v393 = vmul.f32 1.0, %v392
    %v394 = vrcp.pop %v375
    %v395 = vmul.f32 1.0, %v394
    %v396 = vmul.f32 %v300, %v377
    %v397 = vmul.f32 %v302, %v379
    %v398 = vmul.f32 %v304, %v381
    %v399 = vmul.f32 %v306, %v383
    %v400 = vmul.f32 %v310, %v385
    %v401 = vmul.f32 %v312, %v387
    %v402 = vmul.f32 %v314, %v389
    %v403 = vmul.f32 %v316, %v391
    %v404 = vmul.f32 %v320, %v393
    %v405 = vmul.f32 %v322, %v395
    %v406 = vpack.c.bf16 %v398, %v396
    %v407 = vpack.c.bf16 %v399, %v397
    %v408 = vpack.c.bf16 %v402, %v400
    %v409 = vpack.c.bf16 %v403, %v401
    %v410 = vpack.c.bf16 %v404, %v404
    %v411 = vpack.c.bf16 %v405, %v405
    %v418 = vunpack.c.l.b16 %v406
    %v419 = vunpack.c.l.b16 %v407
    %v420 = vunpack.c.h.b16 %v406
    %v421 = vunpack.c.h.b16 %v407
    %v422 = vunpack.c.l.b16 %v408
    %v423 = vunpack.c.l.b16 %v409
    %v424 = vunpack.c.h.b16 %v408
    %v425 = vunpack.c.h.b16 %v409
    %v426 = vunpack.c.l.b16 %v410
    %v427 = vunpack.c.l.b16 %v411
    %v428 = vpack.c.b16 %v419, %v418
    %v429 = vpack.c.b16 %v421, %v420
    %v430 = vpack.c.b16 %v423, %v422
    %v431 = vpack.c.b16 %v425, %v424
    %v432 = vpack.c.b16 %v427, %v426
    %438 = vst [vmem:[#allocation11] sm:$0xff] %v428
    %439 = vst [vmem:[#allocation11 + $0x8] sm:$0xff] %v429
    %440 = vst [vmem:[#allocation11 + $0x10] sm:$0xff] %v430
    %441 = vst [vmem:[#allocation11 + $0x18] sm:$0xff] %v431
    %442 = vst [vmem:[#allocation11 + $0x20] sm:$0x11] %v432
    // Predicated region
    $region42: #{custom_clip_matrix_forward.30} parent=1 // pred_check
      _
    $region43: #{custom_clip_matrix_forward.30} parent=1 // pred_check_branch
      %444 = sbr.rel (0) target = $region45
    $region44: #{custom_clip_matrix_forward.30} parent=1 // pred_region
      %s446 = ssub.s32 640, 640
      %447 = vsyncadd [#allocation4], %s446
      %s448 = sshll.u32 [#allocation11], 4
      %s449 = int_to_ptr.vmem [resolvable:$true] %s448
      %454 = dma.vmem_to_hbm [thread:$0]  %s449, 640, %s5, [#allocation4], 128, 128, 8
    $region45: #{custom_clip_matrix_forward.30} parent=1 // pred_fallthru
      _
    // Predicated region
    $region46: #{custom_clip_matrix_forward.30} parent=1 // pred_check
      _
    $region47: #{custom_clip_matrix_forward.30} parent=1 // pred_check_branch
      %456 = sbr.rel (0) target = $region49
    $region48: #{custom_clip_matrix_forward.30} parent=1 // pred_region
      %457 = dma.done [#allocation4], 640
    $region49: #{custom_clip_matrix_forward.30} parent=1 // pred_fallthru
      _
    %458 = vsyncpa [#allocation3], 1
    %459 = vsyncpa [#allocation6], 1
    %460 = vsyncpa [#allocation9], 1
    %461 = vsyncpa [#allocation4], 1

// kernel: custom_clip_matrix_forward.31
$region0: #{custom_clip_matrix_forward.31}
  #allocation0 [shape = 'u32[]', space=smem, size = 0x4, offset = 0x4, fixed_abs, tag = 'smem constant byte address 0x4 - core index']
  #allocation1 [shape = 'u32[144,128]{1,0:T(1,128)}', space=vmem, size = 0x12000, scoped, tag = 'internal scratch']
  %s0 = inlined_call_operand.hbm [shape: bf16[34,256], index: 0, kind: input, shape index: {}]
  %s1 = inlined_call_operand.hbm [shape: bf16[256,64], index: 1, kind: input, shape index: {}]
  %s2 = inlined_call_operand.hbm [shape: bf16[34,64], index: 2, kind: input, shape index: {}]
  %s3 = inlined_call_operand.hbm [shape: bf16[1,64], index: 3, kind: input, shape index: {}]
  %s4 = inlined_call_operand.hbm [shape: bf16[34,64], index: 4, kind: output, shape index: {}]
  %s5 = sld [smem:[#allocation0]]
  $region42: #{custom_clip_matrix_forward.31} parent=0
    _
  %s7 = ssub.s32 1, %s5
  %s8 = scalar_select 0, %s7, %s5
  $region1: #{custom_clip_matrix_forward.31} parent=0
    #allocation2 [shape = 'u8[20480]{0}', space=vmem, size = 0x5000, scoped, tag = 'input window, operand 0, single buffered']
    #allocation3 [shape = 's32[1]{0}', space=sflag, size = 0x4, scoped, tag = 'scoped memory for custom_clip_matrix_forward.31']
    #allocation4 [shape = 's32[1]{0}', space=sflag, size = 0x4, scoped, tag = 'scoped memory for custom_clip_matrix_forward.31']
    #allocation5 [shape = 'u8[65536]{0}', space=vmem, size = 0x10000, scoped, tag = 'input window, operand 1, single buffered']
    #allocation6 [shape = 's32[1]{0}', space=sflag, size = 0x4, scoped, tag = 'scoped memory for custom_clip_matrix_forward.31']
    #allocation7 [shape = 'u8[10240]{0}', space=vmem, size = 0x2800, scoped, tag = 'input window, operand 2, single buffered']
    #allocation8 [shape = 'u8[512]{0}', space=vmem, size = 0x400, scoped, tag = 'input window, operand 3, single buffered']
    #allocation9 [shape = 's32[1]{0}', space=sflag, size = 0x4, scoped, tag = 'scoped memory for custom_clip_matrix_forward.31']
    #allocation10 [shape = 'u8[10240]{0}', space=vmem, size = 0x2800, scoped, tag = 'output window, operand 0, single buffered']
    %9 = vsyncpa [#allocation3], 0
    %10 = vsyncpa [#allocation6], 0
    %11 = vsyncpa [#allocation9], 0
    %12 = vsyncpa [#allocation4], 0
    // Predicated region
    $region2: #{custom_clip_matrix_forward.31} parent=1 // pred_check
      _
    $region3: #{custom_clip_matrix_forward.31} parent=1 // pred_check_branch
      %14 = sbr.rel (0) target = $region5
    $region4: #{custom_clip_matrix_forward.31} parent=1 // pred_region
      %s16 = ssub.s32 640, 640
      %17 = vsyncadd [#allocation3], %s16
      %s18 = sshll.u32 [#allocation2], 4
      %s19 = int_to_ptr.vmem [resolvable:$true] %s18
      %24 = dma.hbm_to_vmem [thread:$0]  %s0, 640, %s19, [#allocation3], 128, 128, 8
    $region5: #{custom_clip_matrix_forward.31} parent=1 // pred_fallthru
      _
    // Predicated region
    $region6: #{custom_clip_matrix_forward.31} parent=1 // pred_check
      _
    $region7: #{custom_clip_matrix_forward.31} parent=1 // pred_check_branch
      %26 = sbr.rel (0) target = $region9
    $region8: #{custom_clip_matrix_forward.31} parent=1 // pred_region
      %s28 = ssub.s32 2048, 2048
      %29 = vsyncadd [#allocation6], %s28
      %s30 = sshll.u32 [#allocation5], 4
      %s31 = int_to_ptr.vmem [resolvable:$true] %s30
      %36 = dma.hbm_to_vmem [thread:$0]  %s1, 2048, %s31, [#allocation6], 64, 64, 4
    $region9: #{custom_clip_matrix_forward.31} parent=1 // pred_fallthru
      _
    // Predicated region
    $region10: #{custom_clip_matrix_forward.31} parent=1 // pred_check
      _
    $region11: #{custom_clip_matrix_forward.31} parent=1 // pred_check_branch
      %38 = sbr.rel (0) target = $region13
    $region12: #{custom_clip_matrix_forward.31} parent=1 // pred_region
      %s40 = ssub.s32 320, 320
      %41 = vsyncadd [#allocation6], %s40
      %s42 = sshll.u32 [#allocation7], 4
      %s43 = int_to_ptr.vmem [resolvable:$true] %s42
      %48 = dma.hbm_to_vmem [thread:$0]  %s2, 320, %s43, [#allocation6], 64, 64, 4
    $region13: #{custom_clip_matrix_forward.31} parent=1 // pred_fallthru
      _
    // Predicated region
    $region14: #{custom_clip_matrix_forward.31} parent=1 // pred_check
      _
    $region15: #{custom_clip_matrix_forward.31} parent=1 // pred_check_branch
      %50 = sbr.rel (0) target = $region17
    $region16: #{custom_clip_matrix_forward.31} parent=1 // pred_region
      %s52 = ssub.s32 16, 16
      %53 = vsyncadd [#allocation9], %s52
      %s55 = sshll.u32 [#allocation8], 4
      %s56 = int_to_ptr.vmem [resolvable:$true] %s55
      %58 = dma.hbm_to_vmem [thread:$0]  %s3, 16, %s56, [#allocation9]
    $region17: #{custom_clip_matrix_forward.31} parent=1 // pred_fallthru
      _
    // Predicated region
    $region18: #{custom_clip_matrix_forward.31} parent=1 // pred_check
      _
    $region19: #{custom_clip_matrix_forward.31} parent=1 // pred_check_branch
      %60 = sbr.rel (0) target = $region21
    $region20: #{custom_clip_matrix_forward.31} parent=1 // pred_region
      %61 = dma.done [#allocation3], 640
    $region21: #{custom_clip_matrix_forward.31} parent=1 // pred_fallthru
      _
    // Predicated region
    $region22: #{custom_clip_matrix_forward.31} parent=1 // pred_check
      _
    $region23: #{custom_clip_matrix_forward.31} parent=1 // pred_check_branch
      %63 = sbr.rel (0) target = $region25
    $region24: #{custom_clip_matrix_forward.31} parent=1 // pred_region
      %64 = dma.done [#allocation6], 2048
    $region25: #{custom_clip_matrix_forward.31} parent=1 // pred_fallthru
      _
    // Predicated region
    $region26: #{custom_clip_matrix_forward.31} parent=1 // pred_check
      _
    $region27: #{custom_clip_matrix_forward.31} parent=1 // pred_check_branch
      %66 = sbr.rel (0) target = $region29
    $region28: #{custom_clip_matrix_forward.31} parent=1 // pred_region
      %67 = dma.done [#allocation6], 320
    $region29: #{custom_clip_matrix_forward.31} parent=1 // pred_fallthru
      _
    // Predicated region
    $region30: #{custom_clip_matrix_forward.31} parent=1 // pred_check
      _
    $region31: #{custom_clip_matrix_forward.31} parent=1 // pred_check_branch
      %69 = sbr.rel (0) target = $region33
    $region32: #{custom_clip_matrix_forward.31} parent=1 // pred_region
      %70 = dma.done [#allocation9], 16
    $region33: #{custom_clip_matrix_forward.31} parent=1 // pred_fallthru
      _
    %v72 = vld [vmem:[#allocation2] sm:$0xff]
    %v73 = vld [vmem:[#allocation2 + $0x8] sm:$0xff]
    %v74 = vld [vmem:[#allocation2 + $0x10] sm:$0xff]
    %v75 = vld [vmem:[#allocation2 + $0x18] sm:$0xff]
    %v76 = vld [vmem:[#allocation2 + $0x20] sm:$0x11]
    %v77 = vld [vmem:[#allocation5] sm:$0xf]
    %v78 = vld [vmem:[#allocation5 + $0x4] sm:$0xf]
    %v79 = vld [vmem:[#allocation5 + $0x8] sm:$0xf]
    %v80 = vld [vmem:[#allocation5 + $0xc] sm:$0xf]
    %v81 = vld [vmem:[#allocation5 + $0x10] sm:$0xf]
    %v82 = vld [vmem:[#allocation5 + $0x14] sm:$0xf]
    %v83 = vld [vmem:[#allocation5 + $0x18] sm:$0xf]
    %v84 = vld [vmem:[#allocation5 + $0x1c] sm:$0xf]
    %v85 = vld [vmem:[#allocation5 + $0x20] sm:$0xf]
    %v86 = vld [vmem:[#allocation5 + $0x24] sm:$0xf]
    %v87 = vld [vmem:[#allocation5 + $0x28] sm:$0xf]
    %v88 = vld [vmem:[#allocation5 + $0x2c] sm:$0xf]
    %v89 = vld [vmem:[#allocation5 + $0x30] sm:$0xf]
    %v90 = vld [vmem:[#allocation5 + $0x34] sm:$0xf]
    %v91 = vld [vmem:[#allocation5 + $0x38] sm:$0xf]
    %v92 = vld [vmem:[#allocation5 + $0x3c] sm:$0xf]
    %v93 = vld [vmem:[#allocation5 + $0x40] sm:$0xf]
    %v94 = vld [vmem:[#allocation5 + $0x44] sm:$0xf]
    %v95 = vld [vmem:[#allocation5 + $0x48] sm:$0xf]
    %v96 = vld [vmem:[#allocation5 + $0x4c] sm:$0xf]
    %v97 = vld [vmem:[#allocation5 + $0x50] sm:$0xf]
    %v98 = vld [vmem:[#allocation5 + $0x54] sm:$0xf]
    %v99 = vld [vmem:[#allocation5 + $0x58] sm:$0xf]
    %v100 = vld [vmem:[#allocation5 + $0x5c] sm:$0xf]
    %v101 = vld [vmem:[#allocation5 + $0x60] sm:$0xf]
    %v102 = vld [vmem:[#allocation5 + $0x64] sm:$0xf]
    %v103 = vld [vmem:[#allocation5 + $0x68] sm:$0xf]
    %v104 = vld [vmem:[#allocation5 + $0x6c] sm:$0xf]
    %v105 = vld [vmem:[#allocation5 + $0x70] sm:$0xf]
    %v106 = vld [vmem:[#allocation5 + $0x74] sm:$0xf]
    %v107 = vld [vmem:[#allocation5 + $0x78] sm:$0xf]
    %v108 = vld [vmem:[#allocation5 + $0x7c] sm:$0xf]
    %v109 = vld [vmem:[#allocation8] sm:$0x1]
    %v110 = vunpack.c.l.bf16 %v109
    %v111 = vlaneseq
    %v112 = vshrl.u32 %v111, 7
    %v113 = vsub.s32 0, %v112
    %v114 = vrot.slane %v110, %v113
    %v120 = vunpack.c.l.b16 %v72
    %v121 = vunpack.c.h.b16 %v72
    %v122 = vunpack.c.l.b16 %v73
    %v123 = vunpack.c.h.b16 %v73
    %v124 = vunpack.c.l.b16 %v74
    %v125 = vunpack.c.h.b16 %v74
    %v126 = vunpack.c.l.b16 %v75
    %v127 = vunpack.c.h.b16 %v75
    %v128 = vunpack.c.l.b16 %v76
    %v129 = vunpack.c.h.b16 %v76
    %v130 = vpack.c.b16 %v122, %v120
    %v131 = vpack.c.b16 %v123, %v121
    %v132 = vpack.c.b16 %v126, %v124
    %v133 = vpack.c.b16 %v127, %v125
    %v134 = vpack.c.b16 %v128, %v128
    %v135 = vpack.c.b16 %v129, %v129
    %v174 = vunpack.c.l.b16 %v77
    %v175 = vunpack.c.l.b16 %v78
    %v176 = vunpack.c.l.b16 %v79
    %v177 = vunpack.c.l.b16 %v80
    %v178 = vunpack.c.l.b16 %v81
    %v179 = vunpack.c.l.b16 %v82
    %v180 = vunpack.c.l.b16 %v83
    %v181 = vunpack.c.l.b16 %v84
    %v182 = vunpack.c.l.b16 %v85
    %v183 = vunpack.c.l.b16 %v86
    %v184 = vunpack.c.l.b16 %v87
    %v185 = vunpack.c.l.b16 %v88
    %v186 = vunpack.c.l.b16 %v89
    %v187 = vunpack.c.l.b16 %v90
    %v188 = vunpack.c.l.b16 %v91
    %v189 = vunpack.c.l.b16 %v92
    %v190 = vunpack.c.l.b16 %v93
    %v191 = vunpack.c.l.b16 %v94
    %v192 = vunpack.c.l.b16 %v95
    %v193 = vunpack.c.l.b16 %v96
    %v194 = vunpack.c.l.b16 %v97
    %v195 = vunpack.c.l.b16 %v98
    %v196 = vunpack.c.l.b16 %v99
    %v197 = vunpack.c.l.b16 %v100
    %v198 = vunpack.c.l.b16 %v101
    %v199 = vunpack.c.l.b16 %v102
    %v200 = vunpack.c.l.b16 %v103
    %v201 = vunpack.c.l.b16 %v104
    %v202 = vunpack.c.l.b16 %v105
    %v203 = vunpack.c.l.b16 %v106
    %v204 = vunpack.c.l.b16 %v107
    %v205 = vunpack.c.l.b16 %v108
    %v206 = vpack.c.b16 %v175, %v174
    %v207 = vpack.c.b16 %v177, %v176
    %v208 = vpack.c.b16 %v179, %v178
    %v209 = vpack.c.b16 %v181, %v180
    %v210 = vpack.c.b16 %v183, %v182
    %v211 = vpack.c.b16 %v185, %v184
    %v212 = vpack.c.b16 %v187, %v186
    %v213 = vpack.c.b16 %v189, %v188
    %v214 = vpack.c.b16 %v191, %v190
    %v215 = vpack.c.b16 %v193, %v192
    %v216 = vpack.c.b16 %v195, %v194
    %v217 = vpack.c.b16 %v197, %v196
    %v218 = vpack.c.b16 %v199, %v198
    %v219 = vpack.c.b16 %v201, %v200
    %v220 = vpack.c.b16 %v203, %v202
    %v221 = vpack.c.b16 %v205, %v204
    %238 = vmatprep.subr.bf16.mxu0 0
    %239 = vmatpush1.bf16.msra.mxu0 %v206
    %240 = vmatprep.subr.bf16.mxu0 0
    %241 = vmatpush1.bf16.msra.mxu0 %v207
    %242 = vmatprep.subr.bf16.mxu0 0
    %243 = vmatpush1.bf16.msra.mxu0 %v208
    %244 = vmatprep.subr.bf16.mxu0 0
    %245 = vmatpush1.bf16.msra.mxu0 %v209
    %246 = vmatprep.subr.bf16.mxu0 0
    %247 = vmatpush1.bf16.msra.mxu0 %v210
    %248 = vmatprep.subr.bf16.mxu0 0
    %249 = vmatpush1.bf16.msra.mxu0 %v211
    %250 = vmatprep.subr.bf16.mxu0 0
    %251 = vmatpush1.bf16.msra.mxu0 %v212
    %252 = vmatprep.subr.bf16.mxu0 0
    %253 = vmatpush1.bf16.msra.mxu0 %v213
    %254 = vmatprep.subr.bf16.mxu0 0
    %255 = vmatpush1.bf16.msra.mxu0 %v214
    %256 = vmatprep.subr.bf16.mxu0 0
    %257 = vmatpush1.bf16.msra.mxu0 %v215
    %258 = vmatprep.subr.bf16.mxu0 0
    %259 = vmatpush1.bf16.msra.mxu0 %v216
    %260 = vmatprep.subr.bf16.mxu0 0
    %261 = vmatpush1.bf16.msra.mxu0 %v217
    %262 = vmatprep.subr.bf16.mxu0 0
    %263 = vmatpush1.bf16.msra.mxu0 %v218
    %264 = vmatprep.subr.bf16.mxu0 0
    %265 = vmatpush1.bf16.msra.mxu0 %v219
    %266 = vmatprep.subr.bf16.mxu0 0
    %267 = vmatpush1.bf16.msra.mxu0 %v220
    %268 = vmatprep.subr.bf16.mxu0 0
    %269 = vmatpush1.bf16.msra.mxu0 %v221
    %270 = vmatprep.mubr.bf16.mxu0 %v131
    %271 = vmatmul.mubr.bf16.gmra.mrb[0].mxu0 %v130
    %v272 = vpop.f32.mrb[0].mxu0
    %v273 = vadd.f32 %v114, %v272
    %v274 = vpop.f32.mrb[0].mxu0
    %v275 = vpop.f32.mrb[0].mxu0
    %v276 = vadd.f32 %v114, %v275
    %v277 = vpop.f32.mrb[0].mxu0
    %278 = vmatprep.mubr.bf16.mxu0 %v133
    %279 = vmatmul.mubr.bf16.gmra.mrb[0].mxu0 %v132
    %v280 = vpop.f32.mrb[0].mxu0
    %v281 = vadd.f32 %v114, %v280
    %v282 = vpop.f32.mrb[0].mxu0
    %v283 = vpop.f32.mrb[0].mxu0
    %v284 = vadd.f32 %v114, %v283
    %v285 = vpop.f32.mrb[0].mxu0
    %286 = vmatprep.mubr.bf16.mxu0 %v135
    %287 = vmatmul.mubr.bf16.gmra.mrb[0].mxu0 %v134
    %v288 = vpop.f32.mrb[0].mxu0
    %v289 = vadd.f32 %v114, %v288
    %v290 = vpop.f32.mrb[0].mxu0
    %v291 = vpop.f32.mrb[0].mxu0
    %v292 = vpop.f32.mrb[0].mxu0
    %293 = vdwg.mxu0
    %v294 = vld [vmem:[#allocation7] sm:$0xf]
    %v295 = vld [vmem:[#allocation7 + $0x4] sm:$0xf]
    %v296 = vld [vmem:[#allocation7 + $0x8] sm:$0xf]
    %v297 = vld [vmem:[#allocation7 + $0xc] sm:$0xf]
    %v298 = vld [vmem:[#allocation7 + $0x10] sm:$0x1]
    %v299 = vunpack.c.l.bf16 %v294
    %v300 = vunpack.c.l.bf16 %v295
    %v301 = vunpack.c.l.bf16 %v296
    %v302 = vunpack.c.l.bf16 %v297
    %v303 = vunpack.c.l.bf16 %v298
    %v304 = vadd.f32 %v273, %v299
    %v305 = vadd.f32 %v276, %v300
    %v306 = vadd.f32 %v281, %v301
    %v307 = vadd.f32 %v284, %v302
    %v308 = vadd.f32 %v289, %v303
    %v309 = vpack.c.bf16 %v305, %v304
    %v310 = vpack.c.bf16 %v307, %v306
    %v311 = vpack.c.bf16 %v308, %v308
    %v315 = vunpack.c.l.b16 %v309
    %v316 = vunpack.c.h.b16 %v309
    %v317 = vunpack.c.l.b16 %v310
    %v318 = vunpack.c.h.b16 %v310
    %v319 = vunpack.c.l.b16 %v311
    %v320 = vpack.c.b16 %v315, %v315
    %v321 = vpack.c.b16 %v316, %v316
    %v322 = vpack.c.b16 %v317, %v317
    %v323 = vpack.c.b16 %v318, %v318
    %v324 = vpack.c.b16 %v319, %v319
    %vm330 = vcmask 519168
    %331 = vst.msk [vmem:[#allocation10] sm:$0xf] %vm330, %v320
    %332 = vst.msk [vmem:[#allocation10 + $0x4] sm:$0xf] %vm330, %v321
    %333 = vst.msk [vmem:[#allocation10 + $0x8] sm:$0xf] %vm330, %v322
    %334 = vst.msk [vmem:[#allocation10 + $0xc] sm:$0xf] %vm330, %v323
    %vm335 = vcmask 516096
    %336 = vst.msk [vmem:[#allocation10 + $0x10] sm:$0x1] %vm335, %v324
    // Predicated region
    $region34: #{custom_clip_matrix_forward.31} parent=1 // pred_check
      _
    $region35: #{custom_clip_matrix_forward.31} parent=1 // pred_check_branch
      %338 = sbr.rel (0) target = $region37
    $region36: #{custom_clip_matrix_forward.31} parent=1 // pred_region
      %s340 = ssub.s32 320, 320
      %341 = vsyncadd [#allocation4], %s340
      %s342 = sshll.u32 [#allocation10], 4
      %s343 = int_to_ptr.vmem [resolvable:$true] %s342
      %348 = dma.vmem_to_hbm [thread:$0]  %s343, 320, %s4, [#allocation4], 64, 64, 4
    $region37: #{custom_clip_matrix_forward.31} parent=1 // pred_fallthru
      _
    // Predicated region
    $region38: #{custom_clip_matrix_forward.31} parent=1 // pred_check
      _
    $region39: #{custom_clip_matrix_forward.31} parent=1 // pred_check_branch
      %350 = sbr.rel (0) target = $region41
    $region40: #{custom_clip_matrix_forward.31} parent=1 // pred_region
      %351 = dma.done [#allocation4], 320
    $region41: #{custom_clip_matrix_forward.31} parent=1 // pred_fallthru
      _
    %352 = vsyncpa [#allocation3], 1
    %353 = vsyncpa [#allocation6], 1
    %354 = vsyncpa [#allocation9], 1
    %355 = vsyncpa [#allocation4], 1

// kernel: custom_clip_matrix_forward.37
$region0: #{custom_clip_matrix_forward.37}
  #allocation0 [shape = 'u32[]', space=smem, size = 0x4, offset = 0x4, fixed_abs, tag = 'smem constant byte address 0x4 - core index']
  #allocation1 [shape = 'u32[144,128]{1,0:T(1,128)}', space=vmem, size = 0x12000, scoped, tag = 'internal scratch']
  %s0 = inlined_call_operand.hbm [shape: bf16[2,64], index: 0, kind: input, shape index: {}]
  %s1 = inlined_call_operand.hbm [shape: bf16[64,64], index: 1, kind: input, shape index: {}]
  %s2 = inlined_call_operand.hbm [shape: bf16[1,64], index: 2, kind: input, shape index: {}]
  %s3 = inlined_call_operand.hbm [shape: bf16[1,64], index: 3, kind: input, shape index: {}]
  %s4 = inlined_call_operand.hbm [shape: f32[2,64], index: 4, kind: output, shape index: {}]
  %s5 = sld [smem:[#allocation0]]
  $region42: #{custom_clip_matrix_forward.37} parent=0
    _
  %s7 = ssub.s32 1, %s5
  %s8 = scalar_select 0, %s7, %s5
  $region1: #{custom_clip_matrix_forward.37} parent=0
    #allocation2 [shape = 'u8[512]{0}', space=vmem, size = 0x400, scoped, tag = 'input window, operand 0, single buffered']
    #allocation3 [shape = 's32[1]{0}', space=sflag, size = 0x4, scoped, tag = 'scoped memory for custom_clip_matrix_forward.37']
    #allocation4 [shape = 's32[1]{0}', space=sflag, size = 0x4, scoped, tag = 'scoped memory for custom_clip_matrix_forward.37']
    #allocation5 [shape = 'u8[16384]{0}', space=vmem, size = 0x4000, scoped, tag = 'input window, operand 1, single buffered']
    #allocation6 [shape = 's32[1]{0}', space=sflag, size = 0x4, scoped, tag = 'scoped memory for custom_clip_matrix_forward.37']
    #allocation7 [shape = 'u8[512]{0}', space=vmem, size = 0x400, scoped, tag = 'input window, operand 2, single buffered']
    #allocation8 [shape = 'u8[512]{0}', space=vmem, size = 0x400, scoped, tag = 'input window, operand 3, single buffered']
    #allocation9 [shape = 's32[1]{0}', space=sflag, size = 0x4, scoped, tag = 'scoped memory for custom_clip_matrix_forward.37']
    #allocation10 [shape = 'u8[1024]{0}', space=vmem, size = 0x400, scoped, tag = 'output window, operand 0, single buffered']
    %9 = vsyncpa [#allocation3], 0
    %10 = vsyncpa [#allocation6], 0
    %11 = vsyncpa [#allocation9], 0
    %12 = vsyncpa [#allocation4], 0
    // Predicated region
    $region2: #{custom_clip_matrix_forward.37} parent=1 // pred_check
      _
    $region3: #{custom_clip_matrix_forward.37} parent=1 // pred_check_branch
      %14 = sbr.rel (0) target = $region5
    $region4: #{custom_clip_matrix_forward.37} parent=1 // pred_region
      %s16 = ssub.s32 16, 16
      %17 = vsyncadd [#allocation3], %s16
      %s19 = sshll.u32 [#allocation2], 4
      %s20 = int_to_ptr.vmem [resolvable:$true] %s19
      %22 = dma.hbm_to_vmem [thread:$0]  %s0, 16, %s20, [#allocation3]
    $region5: #{custom_clip_matrix_forward.37} parent=1 // pred_fallthru
      _
    // Predicated region
    $region6: #{custom_clip_matrix_forward.37} parent=1 // pred_check
      _
    $region7: #{custom_clip_matrix_forward.37} parent=1 // pred_check_branch
      %24 = sbr.rel (0) target = $region9
    $region8: #{custom_clip_matrix_forward.37} parent=1 // pred_region
      %s26 = ssub.s32 512, 512
      %27 = vsyncadd [#allocation6], %s26
      %s28 = sshll.u32 [#allocation5], 4
      %s29 = int_to_ptr.vmem [resolvable:$true] %s28
      %34 = dma.hbm_to_vmem [thread:$0]  %s1, 512, %s29, [#allocation6], 64, 64, 4
    $region9: #{custom_clip_matrix_forward.37} parent=1 // pred_fallthru
      _
    // Predicated region
    $region10: #{custom_clip_matrix_forward.37} parent=1 // pred_check
      _
    $region11: #{custom_clip_matrix_forward.37} parent=1 // pred_check_branch
      %36 = sbr.rel (0) target = $region13
    $region12: #{custom_clip_matrix_forward.37} parent=1 // pred_region
      %s38 = ssub.s32 16, 16
      %39 = vsyncadd [#allocation6], %s38
      %s41 = sshll.u32 [#allocation7], 4
      %s42 = int_to_ptr.vmem [resolvable:$true] %s41
      %44 = dma.hbm_to_vmem [thread:$0]  %s2, 16, %s42, [#allocation6]
    $region13: #{custom_clip_matrix_forward.37} parent=1 // pred_fallthru
      _
    // Predicated region
    $region14: #{custom_clip_matrix_forward.37} parent=1 // pred_check
      _
    $region15: #{custom_clip_matrix_forward.37} parent=1 // pred_check_branch
      %46 = sbr.rel (0) target = $region17
    $region16: #{custom_clip_matrix_forward.37} parent=1 // pred_region
      %s48 = ssub.s32 16, 16
      %49 = vsyncadd [#allocation9], %s48
      %s51 = sshll.u32 [#allocation8], 4
      %s52 = int_to_ptr.vmem [resolvable:$true] %s51
      %54 = dma.hbm_to_vmem [thread:$0]  %s3, 16, %s52, [#allocation9]
    $region17: #{custom_clip_matrix_forward.37} parent=1 // pred_fallthru
      _
    // Predicated region
    $region18: #{custom_clip_matrix_forward.37} parent=1 // pred_check
      _
    $region19: #{custom_clip_matrix_forward.37} parent=1 // pred_check_branch
      %56 = sbr.rel (0) target = $region21
    $region20: #{custom_clip_matrix_forward.37} parent=1 // pred_region
      %57 = dma.done [#allocation3], 16
    $region21: #{custom_clip_matrix_forward.37} parent=1 // pred_fallthru
      _
    // Predicated region
    $region22: #{custom_clip_matrix_forward.37} parent=1 // pred_check
      _
    $region23: #{custom_clip_matrix_forward.37} parent=1 // pred_check_branch
      %59 = sbr.rel (0) target = $region25
    $region24: #{custom_clip_matrix_forward.37} parent=1 // pred_region
      %60 = dma.done [#allocation6], 512
    $region25: #{custom_clip_matrix_forward.37} parent=1 // pred_fallthru
      _
    // Predicated region
    $region26: #{custom_clip_matrix_forward.37} parent=1 // pred_check
      _
    $region27: #{custom_clip_matrix_forward.37} parent=1 // pred_check_branch
      %62 = sbr.rel (0) target = $region29
    $region28: #{custom_clip_matrix_forward.37} parent=1 // pred_region
      %63 = dma.done [#allocation6], 16
    $region29: #{custom_clip_matrix_forward.37} parent=1 // pred_fallthru
      _
    // Predicated region
    $region30: #{custom_clip_matrix_forward.37} parent=1 // pred_check
      _
    $region31: #{custom_clip_matrix_forward.37} parent=1 // pred_check_branch
      %65 = sbr.rel (0) target = $region33
    $region32: #{custom_clip_matrix_forward.37} parent=1 // pred_region
      %66 = dma.done [#allocation9], 16
    $region33: #{custom_clip_matrix_forward.37} parent=1 // pred_fallthru
      _
    %v68 = vld [vmem:[#allocation2] sm:$0x1]
    %v69 = vunpack.c.l.bf16 %v68
    %vm70 = vcmask 517120
    %v71 = vsel %vm70, %v69, 0.0
    %72 = vadd.xlane.f32.xlu0 %v71
    %v73 = vpop.xlane.xlu0 %72
    %v74 = vrcp.pop 64.0
    %v75 = vmul.f32 %v73, %v74
    %v76 = vsub.f32 %v69, %v75
    %v77 = vmul.f32 %v76, %v76
    %v78 = vsel %vm70, %v77, 0.0
    %79 = vadd.xlane.f32.xlu0 %v78
    %v80 = vpop.xlane.xlu0 %79
    %v81 = vmul.f32 %v80, %v74
    %v82 = vadd.f32 %v81, 1e-05
    %v83 = vrsqrt.pop %v82
    %v84 = vmul.f32 %v76, %v83
    %v85 = vld [vmem:[#allocation7] sm:$0x1]
    %v86 = vunpack.c.l.bf16 %v85
    %v87 = vlaneseq
    %v88 = vshrl.u32 %v87, 7
    %v89 = vsub.s32 0, %v88
    %v90 = vrot.slane %v86, %v89
    %v91 = vmul.f32 %v84, %v90
    %v92 = vld [vmem:[#allocation8] sm:$0x1]
    %v93 = vunpack.c.l.bf16 %v92
    %v94 = vlaneseq
    %v95 = vshrl.u32 %v94, 7
    %v96 = vsub.s32 0, %v95
    %v97 = vrot.slane %v93, %v96
    %v98 = vadd.f32 %v91, %v97
    %v99 = vpack.c.bf16 %v98, %v98
    %v100 = vld [vmem:[#allocation5] sm:$0xf]
    %v101 = vld [vmem:[#allocation5 + $0x4] sm:$0xf]
    %v102 = vld [vmem:[#allocation5 + $0x8] sm:$0xf]
    %v103 = vld [vmem:[#allocation5 + $0xc] sm:$0xf]
    %v104 = vld [vmem:[#allocation5 + $0x10] sm:$0xf]
    %v105 = vld [vmem:[#allocation5 + $0x14] sm:$0xf]
    %v106 = vld [vmem:[#allocation5 + $0x18] sm:$0xf]
    %v107 = vld [vmem:[#allocation5 + $0x1c] sm:$0xf]
    %v116 = vunpack.c.l.b16 %v100
    %v117 = vunpack.c.l.b16 %v101
    %v118 = vunpack.c.l.b16 %v102
    %v119 = vunpack.c.l.b16 %v103
    %v120 = vunpack.c.l.b16 %v104
    %v121 = vunpack.c.l.b16 %v105
    %v122 = vunpack.c.l.b16 %v106
    %v123 = vunpack.c.l.b16 %v107
    %v124 = vpack.c.b16 %v117, %v116
    %v125 = vpack.c.b16 %v119, %v118
    %v126 = vpack.c.b16 %v121, %v120
    %v127 = vpack.c.b16 %v123, %v122
    %vm132 = vcmask 523264
    %v134 = vsel %vm132, %v99, 0
    %136 = vmatprep.subr.bf16.mxu0 0
    %137 = vmatpush1.bf16.msra.mxu0 %v124
    %138 = vmatprep.subr.bf16.mxu0 0
    %139 = vmatpush1.bf16.msra.mxu0 %v125
    %140 = vmatprep.subr.bf16.mxu0 0
    %141 = vmatpush1.bf16.msra.mxu0 %v126
    %142 = vmatprep.subr.bf16.mxu0 0
    %143 = vmatpush1.bf16.msra.mxu0 %v127
    %144 = vmatprep.subr.bf16.mxu0 0
    %145 = vmatpush1.bf16.msra.mxu0 0
    %146 = vmatprep.subr.bf16.mxu0 0
    %147 = vmatpush1.bf16.msra.mxu0 0
    %148 = vmatprep.subr.bf16.mxu0 0
    %149 = vmatpush1.bf16.msra.mxu0 0
    %150 = vmatprep.subr.bf16.mxu0 0
    %151 = vmatpush1.bf16.msra.mxu0 0
    %152 = vmatprep.subr.bf16.mxu0 0
    %153 = vmatpush1.bf16.msra.mxu0 0
    %154 = vmatprep.subr.bf16.mxu0 0
    %155 = vmatpush1.bf16.msra.mxu0 0
    %156 = vmatprep.subr.bf16.mxu0 0
    %157 = vmatpush1.bf16.msra.mxu0 0
    %158 = vmatprep.subr.bf16.mxu0 0
    %159 = vmatpush1.bf16.msra.mxu0 0
    %160 = vmatprep.subr.bf16.mxu0 0
    %161 = vmatpush1.bf16.msra.mxu0 0
    %162 = vmatprep.subr.bf16.mxu0 0
    %163 = vmatpush1.bf16.msra.mxu0 0
    %164 = vmatprep.subr.bf16.mxu0 0
    %165 = vmatpush1.bf16.msra.mxu0 0
    %166 = vmatprep.subr.bf16.mxu0 0
    %167 = vmatpush1.bf16.msra.mxu0 0
    %168 = vmatprep.mubr.bf16.mxu0 0
    %169 = vmatmul.mubr.bf16.gmra.mrb[0].mxu0 %v134
    %v170 = vpop.f32.mrb[0].mxu0
    %v171 = vadd.f32 0.0, %v170
    %v172 = vpop.f32.mrb[0].mxu0
    %v173 = vpop.f32.mrb[0].mxu0
    %v174 = vpop.f32.mrb[0].mxu0
    %175 = vdwg.mxu0
    %v176 = vmul.f32 %v171, %v171
    %v177 = vsel %vm70, %v176, 0.0
    %178 = vadd.xlane.f32.xlu0 %v177
    %v179 = vpop.xlane.xlu0 %178
    %v180 = vmax.f32 %v179, 1e-24
    %v181 = vrsqrt.pop %v180
    %v182 = vmul.f32 %v171, %v181
    %183 = vst.msk [vmem:[#allocation10] sm:$0x3] %vm70, %v182
    // Predicated region
    $region34: #{custom_clip_matrix_forward.37} parent=1 // pred_check
      _
    $region35: #{custom_clip_matrix_forward.37} parent=1 // pred_check_branch
      %185 = sbr.rel (0) target = $region37
    $region36: #{custom_clip_matrix_forward.37} parent=1 // pred_region
      %s187 = ssub.s32 32, 32
      %188 = vsyncadd [#allocation4], %s187
      %s190 = sshll.u32 [#allocation10], 4
      %s191 = int_to_ptr.vmem [resolvable:$true] %s190
      %193 = dma.vmem_to_hbm [thread:$0]  %s191, 32, %s4, [#allocation4]
    $region37: #{custom_clip_matrix_forward.37} parent=1 // pred_fallthru
      _
    // Predicated region
    $region38: #{custom_clip_matrix_forward.37} parent=1 // pred_check
      _
    $region39: #{custom_clip_matrix_forward.37} parent=1 // pred_check_branch
      %195 = sbr.rel (0) target = $region41
    $region40: #{custom_clip_matrix_forward.37} parent=1 // pred_region
      %196 = dma.done [#allocation4], 32
    $region41: #{custom_clip_matrix_forward.37} parent=1 // pred_fallthru
      _
    %197 = vsyncpa [#allocation3], 1
    %198 = vsyncpa [#allocation6], 1
    %199 = vsyncpa [#allocation9], 1
    %200 = vsyncpa [#allocation4], 1

// kernel: custom_clip_matrix_forward.38
$region0: #{custom_clip_matrix_forward.38}
  #allocation0 [shape = 'u32[]', space=smem, size = 0x4, offset = 0x4, fixed_abs, tag = 'smem constant byte address 0x4 - core index']
  #allocation1 [shape = 'u32[144,128]{1,0:T(1,128)}', space=vmem, size = 0x12000, scoped, tag = 'internal scratch']
  %s0 = inlined_call_operand.hbm [shape: bf16[96,64], index: 0, kind: input, shape index: {}]
  %s1 = inlined_call_operand.hbm [shape: bf16[64,192], index: 1, kind: input, shape index: {}]
  %s2 = inlined_call_operand.hbm [shape: bf16[1,192], index: 2, kind: input, shape index: {}]
  %s3 = inlined_call_operand.hbm [shape: bf16[1,64], index: 3, kind: input, shape index: {}]
  %s4 = inlined_call_operand.hbm [shape: bf16[1,64], index: 4, kind: input, shape index: {}]
  %s5 = inlined_call_operand.hbm [shape: bf16[96,192], index: 5, kind: output, shape index: {}]
  %s6 = sld [smem:[#allocation0]]
  $region50: #{custom_clip_matrix_forward.38} parent=0
    _
  %s8 = ssub.s32 1, %s6
  %s9 = scalar_select 0, %s8, %s6
  $region1: #{custom_clip_matrix_forward.38} parent=0
    #allocation2 [shape = 'u8[24576]{0}', space=vmem, size = 0x6000, scoped, tag = 'input window, operand 0, single buffered']
    #allocation3 [shape = 's32[1]{0}', space=sflag, size = 0x4, scoped, tag = 'scoped memory for custom_clip_matrix_forward.38']
    #allocation4 [shape = 's32[1]{0}', space=sflag, size = 0x4, scoped, tag = 'scoped memory for custom_clip_matrix_forward.38']
    #allocation5 [shape = 'u8[32768]{0}', space=vmem, size = 0x8000, scoped, tag = 'input window, operand 1, single buffered']
    #allocation6 [shape = 's32[1]{0}', space=sflag, size = 0x4, scoped, tag = 'scoped memory for custom_clip_matrix_forward.38']
    #allocation7 [shape = 'u8[1024]{0}', space=vmem, size = 0x400, scoped, tag = 'input window, operand 2, single buffered']
    #allocation8 [shape = 'u8[512]{0}', space=vmem, size = 0x400, scoped, tag = 'input window, operand 3, single buffered']
    #allocation9 [shape = 's32[1]{0}', space=sflag, size = 0x4, scoped, tag = 'scoped memory for custom_clip_matrix_forward.38']
    #allocation10 [shape = 'u8[512]{0}', space=vmem, size = 0x400, scoped, tag = 'input window, operand 4, single buffered']
    #allocation11 [shape = 'u8[49152]{0}', space=vmem, size = 0xc000, scoped, tag = 'output window, operand 0, single buffered']
    %10 = vsyncpa [#allocation3], 0
    %11 = vsyncpa [#allocation6], 0
    %12 = vsyncpa [#allocation9], 0
    %13 = vsyncpa [#allocation4], 0
    // Predicated region
    $region2: #{custom_clip_matrix_forward.38} parent=1 // pred_check
      _
    $region3: #{custom_clip_matrix_forward.38} parent=1 // pred_check_branch
      %15 = sbr.rel (0) target = $region5
    $region4: #{custom_clip_matrix_forward.38} parent=1 // pred_region
      %s17 = ssub.s32 768, 768
      %18 = vsyncadd [#allocation3], %s17
      %s19 = sshll.u32 [#allocation2], 4
      %s20 = int_to_ptr.vmem [resolvable:$true] %s19
      %25 = dma.hbm_to_vmem [thread:$0]  %s0, 768, %s20, [#allocation3], 64, 64, 4
    $region5: #{custom_clip_matrix_forward.38} parent=1 // pred_fallthru
      _
    // Predicated region
    $region6: #{custom_clip_matrix_forward.38} parent=1 // pred_check
      _
    $region7: #{custom_clip_matrix_forward.38} parent=1 // pred_check_branch
      %27 = sbr.rel (0) target = $region9
    $region8: #{custom_clip_matrix_forward.38} parent=1 // pred_region
      %s29 = ssub.s32 1024, 1024
      %30 = vsyncadd [#allocation6], %s29
      %s31 = sshll.u32 [#allocation5], 4
      %s32 = int_to_ptr.vmem [resolvable:$true] %s31
      %37 = dma.hbm_to_vmem [thread:$0]  %s1, 1024, %s32, [#allocation6], 128, 128, 8
    $region9: #{custom_clip_matrix_forward.38} parent=1 // pred_fallthru
      _
    // Predicated region
    $region10: #{custom_clip_matrix_forward.38} parent=1 // pred_check
      _
    $region11: #{custom_clip_matrix_forward.38} parent=1 // pred_check_branch
      %39 = sbr.rel (0) target = $region13
    $region12: #{custom_clip_matrix_forward.38} parent=1 // pred_region
      %s41 = ssub.s32 32, 32
      %42 = vsyncadd [#allocation6], %s41
      %s44 = sshll.u32 [#allocation7], 4
      %s45 = int_to_ptr.vmem [resolvable:$true] %s44
      %47 = dma.hbm_to_vmem [thread:$0]  %s2, 32, %s45, [#allocation6]
    $region13: #{custom_clip_matrix_forward.38} parent=1 // pred_fallthru
      _
    // Predicated region
    $region14: #{custom_clip_matrix_forward.38} parent=1 // pred_check
      _
    $region15: #{custom_clip_matrix_forward.38} parent=1 // pred_check_branch
      %49 = sbr.rel (0) target = $region17
    $region16: #{custom_clip_matrix_forward.38} parent=1 // pred_region
      %s51 = ssub.s32 16, 16
      %52 = vsyncadd [#allocation9], %s51
      %s54 = sshll.u32 [#allocation8], 4
      %s55 = int_to_ptr.vmem [resolvable:$true] %s54
      %57 = dma.hbm_to_vmem [thread:$0]  %s3, 16, %s55, [#allocation9]
    $region17: #{custom_clip_matrix_forward.38} parent=1 // pred_fallthru
      _
    // Predicated region
    $region18: #{custom_clip_matrix_forward.38} parent=1 // pred_check
      _
    $region19: #{custom_clip_matrix_forward.38} parent=1 // pred_check_branch
      %59 = sbr.rel (0) target = $region21
    $region20: #{custom_clip_matrix_forward.38} parent=1 // pred_region
      %s61 = ssub.s32 16, 16
      %62 = vsyncadd [#allocation9], %s61
      %s64 = sshll.u32 [#allocation10], 4
      %s65 = int_to_ptr.vmem [resolvable:$true] %s64
      %67 = dma.hbm_to_vmem [thread:$0]  %s4, 16, %s65, [#allocation9]
    $region21: #{custom_clip_matrix_forward.38} parent=1 // pred_fallthru
      _
    // Predicated region
    $region22: #{custom_clip_matrix_forward.38} parent=1 // pred_check
      _
    $region23: #{custom_clip_matrix_forward.38} parent=1 // pred_check_branch
      %69 = sbr.rel (0) target = $region25
    $region24: #{custom_clip_matrix_forward.38} parent=1 // pred_region
      %70 = dma.done [#allocation3], 768
    $region25: #{custom_clip_matrix_forward.38} parent=1 // pred_fallthru
      _
    // Predicated region
    $region26: #{custom_clip_matrix_forward.38} parent=1 // pred_check
      _
    $region27: #{custom_clip_matrix_forward.38} parent=1 // pred_check_branch
      %72 = sbr.rel (0) target = $region29
    $region28: #{custom_clip_matrix_forward.38} parent=1 // pred_region
      %73 = dma.done [#allocation6], 1024
    $region29: #{custom_clip_matrix_forward.38} parent=1 // pred_fallthru
      _
    // Predicated region
    $region30: #{custom_clip_matrix_forward.38} parent=1 // pred_check
      _
    $region31: #{custom_clip_matrix_forward.38} parent=1 // pred_check_branch
      %75 = sbr.rel (0) target = $region33
    $region32: #{custom_clip_matrix_forward.38} parent=1 // pred_region
      %76 = dma.done [#allocation6], 32
    $region33: #{custom_clip_matrix_forward.38} parent=1 // pred_fallthru
      _
    // Predicated region
    $region34: #{custom_clip_matrix_forward.38} parent=1 // pred_check
      _
    $region35: #{custom_clip_matrix_forward.38} parent=1 // pred_check_branch
      %78 = sbr.rel (0) target = $region37
    $region36: #{custom_clip_matrix_forward.38} parent=1 // pred_region
      %79 = dma.done [#allocation9], 16
    $region37: #{custom_clip_matrix_forward.38} parent=1 // pred_fallthru
      _
    // Predicated region
    $region38: #{custom_clip_matrix_forward.38} parent=1 // pred_check
      _
    $region39: #{custom_clip_matrix_forward.38} parent=1 // pred_check_branch
      %81 = sbr.rel (0) target = $region41
    $region40: #{custom_clip_matrix_forward.38} parent=1 // pred_region
      %82 = dma.done [#allocation9], 16
    $region41: #{custom_clip_matrix_forward.38} parent=1 // pred_fallthru
      _
    %v84 = vld [vmem:[#allocation2] sm:$0xf]
    %v85 = vld [vmem:[#allocation2 + $0x4] sm:$0xf]
    %v86 = vld [vmem:[#allocation2 + $0x8] sm:$0xf]
    %v87 = vld [vmem:[#allocation2 + $0xc] sm:$0xf]
    %v88 = vld [vmem:[#allocation2 + $0x10] sm:$0xf]
    %v89 = vld [vmem:[#allocation2 + $0x14] sm:$0xf]
    %v90 = vld [vmem:[#allocation2 + $0x18] sm:$0xf]
    %v91 = vld [vmem:[#allocation2 + $0x1c] sm:$0xf]
    %v92 = vld [vmem:[#allocation2 + $0x20] sm:$0xf]
    %v93 = vld [vmem:[#allocation2 + $0x24] sm:$0xf]
    %v94 = vld [vmem:[#allocation2 + $0x28] sm:$0xf]
    %v95 = vld [vmem:[#allocation2 + $0x2c] sm:$0xf]
    %v96 = vunpack.c.l.bf16 %v84
    %v97 = vunpack.c.l.bf16 %v85
    %v98 = vunpack.c.l.bf16 %v86
    %v99 = vunpack.c.l.bf16 %v87
    %v100 = vunpack.c.l.bf16 %v88
    %v101 = vunpack.c.l.bf16 %v89
    %v102 = vunpack.c.l.bf16 %v90
    %v103 = vunpack.c.l.bf16 %v91
    %v104 = vunpack.c.l.bf16 %v92
    %v105 = vunpack.c.l.bf16 %v93
    %v106 = vunpack.c.l.bf16 %v94
    %v107 = vunpack.c.l.bf16 %v95
    %vm108 = vcmask 523264
    %v109 = vsel %vm108, %v96, 0.0
    %110 = vadd.xlane.f32.xlu0 %v109
    %v111 = vpop.xlane.xlu0 %110
    %v112 = vsel %vm108, %v97, 0.0
    %113 = vadd.xlane.f32.xlu0 %v112
    %v114 = vpop.xlane.xlu0 %113
    %v115 = vsel %vm108, %v98, 0.0
    %116 = vadd.xlane.f32.xlu0 %v115
    %v117 = vpop.xlane.xlu0 %116
    %v118 = vsel %vm108, %v99, 0.0
    %119 = vadd.xlane.f32.xlu0 %v118
    %v120 = vpop.xlane.xlu0 %119
    %v121 = vsel %vm108, %v100, 0.0
    %122 = vadd.xlane.f32.xlu0 %v121
    %v123 = vpop.xlane.xlu0 %122
    %v124 = vsel %vm108, %v101, 0.0
    %125 = vadd.xlane.f32.xlu0 %v124
    %v126 = vpop.xlane.xlu0 %125
    %v127 = vsel %vm108, %v102, 0.0
    %128 = vadd.xlane.f32.xlu0 %v127
    %v129 = vpop.xlane.xlu0 %128
    %v130 = vsel %vm108, %v103, 0.0
    %131 = vadd.xlane.f32.xlu0 %v130
    %v132 = vpop.xlane.xlu0 %131
    %v133 = vsel %vm108, %v104, 0.0
    %134 = vadd.xlane.f32.xlu0 %v133
    %v135 = vpop.xlane.xlu0 %134
    %v136 = vsel %vm108, %v105, 0.0
    %137 = vadd.xlane.f32.xlu0 %v136
    %v138 = vpop.xlane.xlu0 %137
    %v139 = vsel %vm108, %v106, 0.0
    %140 = vadd.xlane.f32.xlu0 %v139
    %v141 = vpop.xlane.xlu0 %140
    %v142 = vsel %vm108, %v107, 0.0
    %143 = vadd.xlane.f32.xlu0 %v142
    %v144 = vpop.xlane.xlu0 %143
    %v145 = vrcp.pop 64.0
    %v146 = vmul.f32 %v111, %v145
    %v147 = vmul.f32 %v114, %v145
    %v148 = vmul.f32 %v117, %v145
    %v149 = vmul.f32 %v120, %v145
    %v150 = vmul.f32 %v123, %v145
    %v151 = vmul.f32 %v126, %v145
    %v152 = vmul.f32 %v129, %v145
    %v153 = vmul.f32 %v132, %v145
    %v154 = vmul.f32 %v135, %v145
    %v155 = vmul.f32 %v138, %v145
    %v156 = vmul.f32 %v141, %v145
    %v157 = vmul.f32 %v144, %v145
    %v158 = vsub.f32 %v96, %v146
    %v159 = vsub.f32 %v97, %v147
    %v160 = vsub.f32 %v98, %v148
    %v161 = vsub.f32 %v99, %v149
    %v162 = vsub.f32 %v100, %v150
    %v163 = vsub.f32 %v101, %v151
    %v164 = vsub.f32 %v102, %v152
    %v165 = vsub.f32 %v103, %v153
    %v166 = vsub.f32 %v104, %v154
    %v167 = vsub.f32 %v105, %v155
    %v168 = vsub.f32 %v106, %v156
    %v169 = vsub.f32 %v107, %v157
    %v170 = vmul.f32 %v158, %v158
    %v171 = vmul.f32 %v159, %v159
    %v172 = vmul.f32 %v160, %v160
    %v173 = vmul.f32 %v161, %v161
    %v174 = vmul.f32 %v162, %v162
    %v175 = vmul.f32 %v163, %v163
    %v176 = vmul.f32 %v164, %v164
    %v177 = vmul.f32 %v165, %v165
    %v178 = vmul.f32 %v166, %v166
    %v179 = vmul.f32 %v167, %v167
    %v180 = vmul.f32 %v168, %v168
    %v181 = vmul.f32 %v169, %v169
    %v182 = vsel %vm108, %v170, 0.0
    %183 = vadd.xlane.f32.xlu0 %v182
    %v184 = vpop.xlane.xlu0 %183
    %v185 = vsel %vm108, %v171, 0.0
    %186 = vadd.xlane.f32.xlu0 %v185
    %v187 = vpop.xlane.xlu0 %186
    %v188 = vsel %vm108, %v172, 0.0
    %189 = vadd.xlane.f32.xlu0 %v188
    %v190 = vpop.xlane.xlu0 %189
    %v191 = vsel %vm108, %v173, 0.0
    %192 = vadd.xlane.f32.xlu0 %v191
    %v193 = vpop.xlane.xlu0 %192
    %v194 = vsel %vm108, %v174, 0.0
    %195 = vadd.xlane.f32.xlu0 %v194
    %v196 = vpop.xlane.xlu0 %195
    %v197 = vsel %vm108, %v175, 0.0
    %198 = vadd.xlane.f32.xlu0 %v197
    %v199 = vpop.xlane.xlu0 %198
    %v200 = vsel %vm108, %v176, 0.0
    %201 = vadd.xlane.f32.xlu0 %v200
    %v202 = vpop.xlane.xlu0 %201
    %v203 = vsel %vm108, %v177, 0.0
    %204 = vadd.xlane.f32.xlu0 %v203
    %v205 = vpop.xlane.xlu0 %204
    %v206 = vsel %vm108, %v178, 0.0
    %207 = vadd.xlane.f32.xlu0 %v206
    %v208 = vpop.xlane.xlu0 %207
    %v209 = vsel %vm108, %v179, 0.0
    %210 = vadd.xlane.f32.xlu0 %v209
    %v211 = vpop.xlane.xlu0 %210
    %v212 = vsel %vm108, %v180, 0.0
    %213 = vadd.xlane.f32.xlu0 %v212
    %v214 = vpop.xlane.xlu0 %213
    %v215 = vsel %vm108, %v181, 0.0
    %216 = vadd.xlane.f32.xlu0 %v215
    %v217 = vpop.xlane.xlu0 %216
    %v218 = vmul.f32 %v184, %v145
    %v219 = vmul.f32 %v187, %v145
    %v220 = vmul.f32 %v190, %v145
    %v221 = vmul.f32 %v193, %v145
    %v222 = vmul.f32 %v196, %v145
    %v223 = vmul.f32 %v199, %v145
    %v224 = vmul.f32 %v202, %v145
    %v225 = vmul.f32 %v205, %v145
    %v226 = vmul.f32 %v208, %v145
    %v227 = vmul.f32 %v211, %v145
    %v228 = vmul.f32 %v214, %v145
    %v229 = vmul.f32 %v217, %v145
    %v230 = vadd.f32 %v218, 1e-05
    %v231 = vadd.f32 %v219, 1e-05
    %v232 = vadd.f32 %v220, 1e-05
    %v233 = vadd.f32 %v221, 1e-05
    %v234 = vadd.f32 %v222, 1e-05
    %v235 = vadd.f32 %v223, 1e-05
    %v236 = vadd.f32 %v224, 1e-05
    %v237 = vadd.f32 %v225, 1e-05
    %v238 = vadd.f32 %v226, 1e-05
    %v239 = vadd.f32 %v227, 1e-05
    %v240 = vadd.f32 %v228, 1e-05
    %v241 = vadd.f32 %v229, 1e-05
    %v242 = vrsqrt.pop %v230
    %v243 = vrsqrt.pop %v231
    %v244 = vrsqrt.pop %v232
    %v245 = vrsqrt.pop %v233
    %v246 = vrsqrt.pop %v234
    %v247 = vrsqrt.pop %v235
    %v248 = vrsqrt.pop %v236
    %v249 = vrsqrt.pop %v237
    %v250 = vrsqrt.pop %v238
    %v251 = vrsqrt.pop %v239
    %v252 = vrsqrt.pop %v240
    %v253 = vrsqrt.pop %v241
    %v254 = vmul.f32 %v158, %v242
    %v255 = vmul.f32 %v159, %v243
    %v256 = vmul.f32 %v160, %v244
    %v257 = vmul.f32 %v161, %v245
    %v258 = vmul.f32 %v162, %v246
    %v259 = vmul.f32 %v163, %v247
    %v260 = vmul.f32 %v164, %v248
    %v261 = vmul.f32 %v165, %v249
    %v262 = vmul.f32 %v166, %v250
    %v263 = vmul.f32 %v167, %v251
    %v264 = vmul.f32 %v168, %v252
    %v265 = vmul.f32 %v169, %v253
    %v266 = vld [vmem:[#allocation8] sm:$0x1]
    %v267 = vunpack.c.l.bf16 %v266
    %v268 = vlaneseq
    %v269 = vshrl.u32 %v268, 7
    %v270 = vsub.s32 0, %v269
    %v271 = vrot.slane %v267, %v270
    %v272 = vmul.f32 %v254, %v271
    %v273 = vmul.f32 %v255, %v271
    %v274 = vmul.f32 %v256, %v271
    %v275 = vmul.f32 %v257, %v271
    %v276 = vmul.f32 %v258, %v271
    %v277 = vmul.f32 %v259, %v271
    %v278 = vmul.f32 %v260, %v271
    %v279 = vmul.f32 %v261, %v271
    %v280 = vmul.f32 %v262, %v271
    %v281 = vmul.f32 %v263, %v271
    %v282 = vmul.f32 %v264, %v271
    %v283 = vmul.f32 %v265, %v271
    %v284 = vld [vmem:[#allocation10] sm:$0x1]
    %v285 = vunpack.c.l.bf16 %v284
    %v286 = vlaneseq
    %v287 = vshrl.u32 %v286, 7
    %v288 = vsub.s32 0, %v287
    %v289 = vrot.slane %v285, %v288
    %v290 = vadd.f32 %v272, %v289
    %v291 = vadd.f32 %v273, %v289
    %v292 = vadd.f32 %v274, %v289
    %v293 = vadd.f32 %v275, %v289
    %v294 = vadd.f32 %v276, %v289
    %v295 = vadd.f32 %v277, %v289
    %v296 = vadd.f32 %v278, %v289
    %v297 = vadd.f32 %v279, %v289
    %v298 = vadd.f32 %v280, %v289
    %v299 = vadd.f32 %v281, %v289
    %v300 = vadd.f32 %v282, %v289
    %v301 = vadd.f32 %v283, %v289
    %v302 = vpack.c.bf16 %v291, %v290
    %v303 = vpack.c.bf16 %v293, %v292
    %v304 = vpack.c.bf16 %v295, %v294
    %v305 = vpack.c.bf16 %v297, %v296
    %v306 = vpack.c.bf16 %v299, %v298
    %v307 = vpack.c.bf16 %v301, %v300
    %v308 = vld [vmem:[#allocation5] sm:$0xff]
    %v309 = vld [vmem:[#allocation5 + $0x8] sm:$0xff]
    %v310 = vld [vmem:[#allocation5 + $0x10] sm:$0xff]
    %v311 = vld [vmem:[#allocation5 + $0x18] sm:$0xff]
    %v312 = vld [vmem:[#allocation5 + $0x20] sm:$0xff]
    %v313 = vld [vmem:[#allocation5 + $0x28] sm:$0xff]
    %v314 = vld [vmem:[#allocation5 + $0x30] sm:$0xff]
    %v315 = vld [vmem:[#allocation5 + $0x38] sm:$0xff]
    %v316 = vld [vmem:[#allocation7] sm:$0x3]
    %v317 = vunpack.c.l.bf16 %v316
    %v319 = vlaneseq
    %v320 = vshrl.u32 %v319, 7
    %v321 = vsub.s32 0, %v320
    %v322 = vrot.slane %v317, %v321
    %v323 = vlaneseq
    %v324 = vshrl.u32 %v323, 7
    %v325 = vsub.s32 2, %v324
    %v326 = vrot.slane %v317, %v325
    %v329 = vlaneseq
    %v330 = vshrl.u32 %v329, 7
    %v331 = vsub.s32 0, %v330
    %v332 = vrot.slane %v322, %v331
    %v333 = vlaneseq
    %v334 = vshrl.u32 %v333, 7
    %v335 = vsub.s32 0, %v334
    %v336 = vrot.slane %v326, %v335
    %v345 = vunpack.c.l.b16 %v308
    %v346 = vunpack.c.h.b16 %v308
    %v347 = vunpack.c.l.b16 %v309
    %v348 = vunpack.c.h.b16 %v309
    %v349 = vunpack.c.l.b16 %v310
    %v350 = vunpack.c.h.b16 %v310
    %v351 = vunpack.c.l.b16 %v311
    %v352 = vunpack.c.h.b16 %v311
    %v353 = vunpack.c.l.b16 %v312
    %v354 = vunpack.c.h.b16 %v312
    %v355 = vunpack.c.l.b16 %v313
    %v356 = vunpack.c.h.b16 %v313
    %v357 = vunpack.c.l.b16 %v314
    %v358 = vunpack.c.h.b16 %v314
    %v359 = vunpack.c.l.b16 %v315
    %v360 = vunpack.c.h.b16 %v315
    %v361 = vpack.c.b16 %v347, %v345
    %v362 = vpack.c.b16 %v348, %v346
    %v363 = vpack.c.b16 %v351, %v349
    %v364 = vpack.c.b16 %v352, %v350
    %v365 = vpack.c.b16 %v355, %v353
    %v366 = vpack.c.b16 %v356, %v354
    %v367 = vpack.c.b16 %v359, %v357
    %v368 = vpack.c.b16 %v360, %v358
    %v378 = vsel %vm108, %v302, 0
    %v381 = vsel %vm108, %v303, 0
    %v384 = vsel %vm108, %v304, 0
    %v387 = vsel %vm108, %v305, 0
    %v390 = vsel %vm108, %v306, 0
    %v393 = vsel %vm108, %v307, 0
    %395 = vmatprep.subr.bf16.mxu0 %v362
    %396 = vmatpush1.bf16.msra.mxu0 %v361
    %397 = vmatprep.subr.bf16.mxu0 %v364
    %398 = vmatpush1.bf16.msra.mxu0 %v363
    %399 = vmatprep.subr.bf16.mxu0 %v366
    %400 = vmatpush1.bf16.msra.mxu0 %v365
    %401 = vmatprep.subr.bf16.mxu0 %v368
    %402 = vmatpush1.bf16.msra.mxu0 %v367
    %403 = vmatprep.subr.bf16.mxu0 0
    %404 = vmatpush1.bf16.msra.mxu0 0
    %405 = vmatprep.subr.bf16.mxu0 0
    %406 = vmatpush1.bf16.msra.mxu0 0
    %407 = vmatprep.subr.bf16.mxu0 0
    %408 = vmatpush1.bf16.msra.mxu0 0
    %409 = vmatprep.subr.bf16.mxu0 0
    %410 = vmatpush1.bf16.msra.mxu0 0
    %411 = vmatprep.subr.bf16.mxu0 0
    %412 = vmatpush1.bf16.msra.mxu0 0
    %413 = vmatprep.subr.bf16.mxu0 0
    %414 = vmatpush1.bf16.msra.mxu0 0
    %415 = vmatprep.subr.bf16.mxu0 0
    %416 = vmatpush1.bf16.msra.mxu0 0
    %417 = vmatprep.subr.bf16.mxu0 0
    %418 = vmatpush1.bf16.msra.mxu0 0
    %419 = vmatprep.subr.bf16.mxu0 0
    %420 = vmatpush1.bf16.msra.mxu0 0
    %421 = vmatprep.subr.bf16.mxu0 0
    %422 = vmatpush1.bf16.msra.mxu0 0
    %423 = vmatprep.subr.bf16.mxu0 0
    %424 = vmatpush1.bf16.msra.mxu0 0
    %425 = vmatprep.subr.bf16.mxu0 0
    %426 = vmatpush1.bf16.msra.mxu0 0
    %427 = vmatprep.mubr.bf16.mxu0 0
    %428 = vmatmul.mubr.bf16.gmra.mrb[0].mxu0 %v378
    %v429 = vpop.f32.mrb[0].mxu0
    %v430 = vadd.f32 %v332, %v429
    %v431 = vpop.f32.mrb[0].mxu0
    %v432 = vadd.f32 %v336, %v431
    %v433 = vpop.f32.mrb[0].mxu0
    %v434 = vadd.f32 %v332, %v433
    %v435 = vpop.f32.mrb[0].mxu0
    %v436 = vadd.f32 %v336, %v435
    %437 = vmatprep.mubr.bf16.mxu0 0
    %438 = vmatmul.mubr.bf16.gmra.mrb[0].mxu0 %v381
    %v439 = vpop.f32.mrb[0].mxu0
    %v440 = vadd.f32 %v332, %v439
    %v441 = vpop.f32.mrb[0].mxu0
    %v442 = vadd.f32 %v336, %v441
    %v443 = vpop.f32.mrb[0].mxu0
    %v444 = vadd.f32 %v332, %v443
    %v445 = vpop.f32.mrb[0].mxu0
    %v446 = vadd.f32 %v336, %v445
    %447 = vmatprep.mubr.bf16.mxu0 0
    %448 = vmatmul.mubr.bf16.gmra.mrb[0].mxu0 %v384
    %v449 = vpop.f32.mrb[0].mxu0
    %v450 = vadd.f32 %v332, %v449
    %v451 = vpop.f32.mrb[0].mxu0
    %v452 = vadd.f32 %v336, %v451
    %v453 = vpop.f32.mrb[0].mxu0
    %v454 = vadd.f32 %v332, %v453
    %v455 = vpop.f32.mrb[0].mxu0
    %v456 = vadd.f32 %v336, %v455
    %457 = vmatprep.mubr.bf16.mxu0 0
    %458 = vmatmul.mubr.bf16.gmra.mrb[0].mxu0 %v387
    %v459 = vpop.f32.mrb[0].mxu0
    %v460 = vadd.f32 %v332, %v459
    %v461 = vpop.f32.mrb[0].mxu0
    %v462 = vadd.f32 %v336, %v461
    %v463 = vpop.f32.mrb[0].mxu0
    %v464 = vadd.f32 %v332, %v463
    %v465 = vpop.f32.mrb[0].mxu0
    %v466 = vadd.f32 %v336, %v465
    %467 = vmatprep.mubr.bf16.mxu0 0
    %468 = vmatmul.mubr.bf16.gmra.mrb[0].mxu0 %v390
    %v469 = vpop.f32.mrb[0].mxu0
    %v470 = vadd.f32 %v332, %v469
    %v471 = vpop.f32.mrb[0].mxu0
    %v472 = vadd.f32 %v336, %v471
    %v473 = vpop.f32.mrb[0].mxu0
    %v474 = vadd.f32 %v332, %v473
    %v475 = vpop.f32.mrb[0].mxu0
    %v476 = vadd.f32 %v336, %v475
    %477 = vmatprep.mubr.bf16.mxu0 0
    %478 = vmatmul.mubr.bf16.gmra.mrb[0].mxu0 %v393
    %v479 = vpop.f32.mrb[0].mxu0
    %v480 = vadd.f32 %v332, %v479
    %v481 = vpop.f32.mrb[0].mxu0
    %v482 = vadd.f32 %v336, %v481
    %v483 = vpop.f32.mrb[0].mxu0
    %v484 = vadd.f32 %v332, %v483
    %v485 = vpop.f32.mrb[0].mxu0
    %v486 = vadd.f32 %v336, %v485
    %487 = vdwg.mxu0
    %v488 = vpack.c.bf16 %v434, %v430
    %v489 = vpack.c.bf16 %v436, %v432
    %v490 = vpack.c.bf16 %v444, %v440
    %v491 = vpack.c.bf16 %v446, %v442
    %v492 = vpack.c.bf16 %v454, %v450
    %v493 = vpack.c.bf16 %v456, %v452
    %v494 = vpack.c.bf16 %v464, %v460
    %v495 = vpack.c.bf16 %v466, %v462
    %v496 = vpack.c.bf16 %v474, %v470
    %v497 = vpack.c.bf16 %v476, %v472
    %v498 = vpack.c.bf16 %v484, %v480
    %v499 = vpack.c.bf16 %v486, %v482
    %v512 = vunpack.c.l.b16 %v488
    %v513 = vunpack.c.l.b16 %v489
    %v514 = vunpack.c.h.b16 %v488
    %v515 = vunpack.c.h.b16 %v489
    %v516 = vunpack.c.l.b16 %v490
    %v517 = vunpack.c.l.b16 %v491
    %v518 = vunpack.c.h.b16 %v490
    %v519 = vunpack.c.h.b16 %v491
    %v520 = vunpack.c.l.b16 %v492
    %v521 = vunpack.c.l.b16 %v493
    %v522 = vunpack.c.h.b16 %v492
    %v523 = vunpack.c.h.b16 %v493
    %v524 = vunpack.c.l.b16 %v494
    %v525 = vunpack.c.l.b16 %v495
    %v526 = vunpack.c.h.b16 %v494
    %v527 = vunpack.c.h.b16 %v495
    %v528 = vunpack.c.l.b16 %v496
    %v529 = vunpack.c.l.b16 %v497
    %v530 = vunpack.c.h.b16 %v496
    %v531 = vunpack.c.h.b16 %v497
    %v532 = vunpack.c.l.b16 %v498
    %v533 = vunpack.c.l.b16 %v499
    %v534 = vunpack.c.h.b16 %v498
    %v535 = vunpack.c.h.b16 %v499
    %v536 = vpack.c.b16 %v513, %v512
    %v537 = vpack.c.b16 %v515, %v514
    %v538 = vpack.c.b16 %v517, %v516
    %v539 = vpack.c.b16 %v519, %v518
    %v540 = vpack.c.b16 %v521, %v520
    %v541 = vpack.c.b16 %v523, %v522
    %v542 = vpack.c.b16 %v525, %v524
    %v543 = vpack.c.b16 %v527, %v526
    %v544 = vpack.c.b16 %v529, %v528
    %v545 = vpack.c.b16 %v531, %v530
    %v546 = vpack.c.b16 %v533, %v532
    %v547 = vpack.c.b16 %v535, %v534
    %vm560 = vcmask 1043456
    %vm561 = vcmask 523268
    %vm562 = vmor %vm561, %vm560
    %563 = vst.msk [vmem:[#allocation11] sm:$0xff] %vm562, %v536
    %564 = vst.msk [vmem:[#allocation11 + $0x8] sm:$0xff] %vm562, %v537
    %565 = vst.msk [vmem:[#allocation11 + $0x10] sm:$0xff] %vm562, %v538
    %566 = vst.msk [vmem:[#allocation11 + $0x18] sm:$0xff] %vm562, %v539
    %567 = vst.msk [vmem:[#allocation11 + $0x20] sm:$0xff] %vm562, %v540
    %568 = vst.msk [vmem:[#allocation11 + $0x28] sm:$0xff] %vm562, %v541
    %569 = vst.msk [vmem:[#allocation11 + $0x30] sm:$0xff] %vm562, %v542
    %570 = vst.msk [vmem:[#allocation11 + $0x38] sm:$0xff] %vm562, %v543
    %571 = vst.msk [vmem:[#allocation11 + $0x40] sm:$0xff] %vm562, %v544
    %572 = vst.msk [vmem:[#allocation11 + $0x48] sm:$0xff] %vm562, %v545
    %573 = vst.msk [vmem:[#allocation11 + $0x50] sm:$0xff] %vm562, %v546
    %574 = vst.msk [vmem:[#allocation11 + $0x58] sm:$0xff] %vm562, %v547
    // Predicated region
    $region42: #{custom_clip_matrix_forward.38} parent=1 // pred_check
      _
    $region43: #{custom_clip_matrix_forward.38} parent=1 // pred_check_branch
      %576 = sbr.rel (0) target = $region45
    $region44: #{custom_clip_matrix_forward.38} parent=1 // pred_region
      %s578 = ssub.s32 1536, 1536
      %579 = vsyncadd [#allocation4], %s578
      %s580 = sshll.u32 [#allocation11], 4
      %s581 = int_to_ptr.vmem [resolvable:$true] %s580
      %586 = dma.vmem_to_hbm [thread:$0]  %s581, 1536, %s5, [#allocation4], 128, 128, 8
    $region45: #{custom_clip_matrix_forward.38} parent=1 // pred_fallthru
      _
    // Predicated region
    $region46: #{custom_clip_matrix_forward.38} parent=1 // pred_check
      _
    $region47: #{custom_clip_matrix_forward.38} parent=1 // pred_check_branch
      %588 = sbr.rel (0) target = $region49
    $region48: #{custom_clip_matrix_forward.38} parent=1 // pred_region
      %589 = dma.done [#allocation4], 1536
    $region49: #{custom_clip_matrix_forward.38} parent=1 // pred_fallthru
      _
    %590 = vsyncpa [#allocation3], 1
    %591 = vsyncpa [#allocation6], 1
    %592 = vsyncpa [#allocation9], 1
    %593 = vsyncpa [#allocation4], 1

// kernel: custom_clip_matrix_forward.40
$region0: #{custom_clip_matrix_forward.40}
  #allocation0 [shape = 'u32[]', space=smem, size = 0x4, offset = 0x4, fixed_abs, tag = 'smem constant byte address 0x4 - core index']
  #allocation1 [shape = 'u32[144,128]{1,0:T(1,128)}', space=vmem, size = 0x12000, scoped, tag = 'internal scratch']
  %s0 = inlined_call_operand.hbm [shape: bf16[96,64], index: 0, kind: input, shape index: {}]
  %s1 = inlined_call_operand.hbm [shape: bf16[64,64], index: 1, kind: input, shape index: {}]
  %s2 = inlined_call_operand.hbm [shape: bf16[96,64], index: 2, kind: input, shape index: {}]
  %s3 = inlined_call_operand.hbm [shape: bf16[1,64], index: 3, kind: input, shape index: {}]
  %s4 = inlined_call_operand.hbm [shape: bf16[96,64], index: 4, kind: output, shape index: {}]
  %s5 = sld [smem:[#allocation0]]
  $region42: #{custom_clip_matrix_forward.40} parent=0
    _
  %s7 = ssub.s32 1, %s5
  %s8 = scalar_select 0, %s7, %s5
  $region1: #{custom_clip_matrix_forward.40} parent=0
    #allocation2 [shape = 'u8[24576]{0}', space=vmem, size = 0x6000, scoped, tag = 'input window, operand 0, single buffered']
    #allocation3 [shape = 's32[1]{0}', space=sflag, size = 0x4, scoped, tag = 'scoped memory for custom_clip_matrix_forward.40']
    #allocation4 [shape = 's32[1]{0}', space=sflag, size = 0x4, scoped, tag = 'scoped memory for custom_clip_matrix_forward.40']
    #allocation5 [shape = 'u8[16384]{0}', space=vmem, size = 0x4000, scoped, tag = 'input window, operand 1, single buffered']
    #allocation6 [shape = 's32[1]{0}', space=sflag, size = 0x4, scoped, tag = 'scoped memory for custom_clip_matrix_forward.40']
    #allocation7 [shape = 'u8[24576]{0}', space=vmem, size = 0x6000, scoped, tag = 'input window, operand 2, single buffered']
    #allocation8 [shape = 'u8[512]{0}', space=vmem, size = 0x400, scoped, tag = 'input window, operand 3, single buffered']
    #allocation9 [shape = 's32[1]{0}', space=sflag, size = 0x4, scoped, tag = 'scoped memory for custom_clip_matrix_forward.40']
    #allocation10 [shape = 'u8[24576]{0}', space=vmem, size = 0x6000, scoped, tag = 'output window, operand 0, single buffered']
    %9 = vsyncpa [#allocation3], 0
    %10 = vsyncpa [#allocation6], 0
    %11 = vsyncpa [#allocation9], 0
    %12 = vsyncpa [#allocation4], 0
    // Predicated region
    $region2: #{custom_clip_matrix_forward.40} parent=1 // pred_check
      _
    $region3: #{custom_clip_matrix_forward.40} parent=1 // pred_check_branch
      %14 = sbr.rel (0) target = $region5
    $region4: #{custom_clip_matrix_forward.40} parent=1 // pred_region
      %s16 = ssub.s32 768, 768
      %17 = vsyncadd [#allocation3], %s16
      %s18 = sshll.u32 [#allocation2], 4
      %s19 = int_to_ptr.vmem [resolvable:$true] %s18
      %24 = dma.hbm_to_vmem [thread:$0]  %s0, 768, %s19, [#allocation3], 64, 64, 4
    $region5: #{custom_clip_matrix_forward.40} parent=1 // pred_fallthru
      _
    // Predicated region
    $region6: #{custom_clip_matrix_forward.40} parent=1 // pred_check
      _
    $region7: #{custom_clip_matrix_forward.40} parent=1 // pred_check_branch
      %26 = sbr.rel (0) target = $region9
    $region8: #{custom_clip_matrix_forward.40} parent=1 // pred_region
      %s28 = ssub.s32 512, 512
      %29 = vsyncadd [#allocation6], %s28
      %s30 = sshll.u32 [#allocation5], 4
      %s31 = int_to_ptr.vmem [resolvable:$true] %s30
      %36 = dma.hbm_to_vmem [thread:$0]  %s1, 512, %s31, [#allocation6], 64, 64, 4
    $region9: #{custom_clip_matrix_forward.40} parent=1 // pred_fallthru
      _
    // Predicated region
    $region10: #{custom_clip_matrix_forward.40} parent=1 // pred_check
      _
    $region11: #{custom_clip_matrix_forward.40} parent=1 // pred_check_branch
      %38 = sbr.rel (0) target = $region13
    $region12: #{custom_clip_matrix_forward.40} parent=1 // pred_region
      %s40 = ssub.s32 768, 768
      %41 = vsyncadd [#allocation6], %s40
      %s42 = sshll.u32 [#allocation7], 4
      %s43 = int_to_ptr.vmem [resolvable:$true] %s42
      %48 = dma.hbm_to_vmem [thread:$0]  %s2, 768, %s43, [#allocation6], 64, 64, 4
    $region13: #{custom_clip_matrix_forward.40} parent=1 // pred_fallthru
      _
    // Predicated region
    $region14: #{custom_clip_matrix_forward.40} parent=1 // pred_check
      _
    $region15: #{custom_clip_matrix_forward.40} parent=1 // pred_check_branch
      %50 = sbr.rel (0) target = $region17
    $region16: #{custom_clip_matrix_forward.40} parent=1 // pred_region
      %s52 = ssub.s32 16, 16
      %53 = vsyncadd [#allocation9], %s52
      %s55 = sshll.u32 [#allocation8], 4
      %s56 = int_to_ptr.vmem [resolvable:$true] %s55
      %58 = dma.hbm_to_vmem [thread:$0]  %s3, 16, %s56, [#allocation9]
    $region17: #{custom_clip_matrix_forward.40} parent=1 // pred_fallthru
      _
    // Predicated region
    $region18: #{custom_clip_matrix_forward.40} parent=1 // pred_check
      _
    $region19: #{custom_clip_matrix_forward.40} parent=1 // pred_check_branch
      %60 = sbr.rel (0) target = $region21
    $region20: #{custom_clip_matrix_forward.40} parent=1 // pred_region
      %61 = dma.done [#allocation3], 768
    $region21: #{custom_clip_matrix_forward.40} parent=1 // pred_fallthru
      _
    // Predicated region
    $region22: #{custom_clip_matrix_forward.40} parent=1 // pred_check
      _
    $region23: #{custom_clip_matrix_forward.40} parent=1 // pred_check_branch
      %63 = sbr.rel (0) target = $region25
    $region24: #{custom_clip_matrix_forward.40} parent=1 // pred_region
      %64 = dma.done [#allocation6], 512
    $region25: #{custom_clip_matrix_forward.40} parent=1 // pred_fallthru
      _
    // Predicated region
    $region26: #{custom_clip_matrix_forward.40} parent=1 // pred_check
      _
    $region27: #{custom_clip_matrix_forward.40} parent=1 // pred_check_branch
      %66 = sbr.rel (0) target = $region29
    $region28: #{custom_clip_matrix_forward.40} parent=1 // pred_region
      %67 = dma.done [#allocation6], 768
    $region29: #{custom_clip_matrix_forward.40} parent=1 // pred_fallthru
      _
    // Predicated region
    $region30: #{custom_clip_matrix_forward.40} parent=1 // pred_check
      _
    $region31: #{custom_clip_matrix_forward.40} parent=1 // pred_check_branch
      %69 = sbr.rel (0) target = $region33
    $region32: #{custom_clip_matrix_forward.40} parent=1 // pred_region
      %70 = dma.done [#allocation9], 16
    $region33: #{custom_clip_matrix_forward.40} parent=1 // pred_fallthru
      _
    %v72 = vld [vmem:[#allocation2] sm:$0xf]
    %v73 = vld [vmem:[#allocation2 + $0x4] sm:$0xf]
    %v74 = vld [vmem:[#allocation2 + $0x8] sm:$0xf]
    %v75 = vld [vmem:[#allocation2 + $0xc] sm:$0xf]
    %v76 = vld [vmem:[#allocation2 + $0x10] sm:$0xf]
    %v77 = vld [vmem:[#allocation2 + $0x14] sm:$0xf]
    %v78 = vld [vmem:[#allocation2 + $0x18] sm:$0xf]
    %v79 = vld [vmem:[#allocation2 + $0x1c] sm:$0xf]
    %v80 = vld [vmem:[#allocation2 + $0x20] sm:$0xf]
    %v81 = vld [vmem:[#allocation2 + $0x24] sm:$0xf]
    %v82 = vld [vmem:[#allocation2 + $0x28] sm:$0xf]
    %v83 = vld [vmem:[#allocation2 + $0x2c] sm:$0xf]
    %v84 = vld [vmem:[#allocation5] sm:$0xf]
    %v85 = vld [vmem:[#allocation5 + $0x4] sm:$0xf]
    %v86 = vld [vmem:[#allocation5 + $0x8] sm:$0xf]
    %v87 = vld [vmem:[#allocation5 + $0xc] sm:$0xf]
    %v88 = vld [vmem:[#allocation5 + $0x10] sm:$0xf]
    %v89 = vld [vmem:[#allocation5 + $0x14] sm:$0xf]
    %v90 = vld [vmem:[#allocation5 + $0x18] sm:$0xf]
    %v91 = vld [vmem:[#allocation5 + $0x1c] sm:$0xf]
    %v92 = vld [vmem:[#allocation8] sm:$0x1]
    %v93 = vunpack.c.l.bf16 %v92
    %v94 = vlaneseq
    %v95 = vshrl.u32 %v94, 7
    %v96 = vsub.s32 0, %v95
    %v97 = vrot.slane %v93, %v96
    %v110 = vunpack.c.l.b16 %v72
    %v111 = vunpack.c.l.b16 %v73
    %v112 = vunpack.c.l.b16 %v74
    %v113 = vunpack.c.l.b16 %v75
    %v114 = vunpack.c.l.b16 %v76
    %v115 = vunpack.c.l.b16 %v77
    %v116 = vunpack.c.l.b16 %v78
    %v117 = vunpack.c.l.b16 %v79
    %v118 = vunpack.c.l.b16 %v80
    %v119 = vunpack.c.l.b16 %v81
    %v120 = vunpack.c.l.b16 %v82
    %v121 = vunpack.c.l.b16 %v83
    %v122 = vpack.c.b16 %v111, %v110
    %v123 = vpack.c.b16 %v113, %v112
    %v124 = vpack.c.b16 %v115, %v114
    %v125 = vpack.c.b16 %v117, %v116
    %v126 = vpack.c.b16 %v119, %v118
    %v127 = vpack.c.b16 %v121, %v120
    %v136 = vunpack.c.l.b16 %v84
    %v137 = vunpack.c.l.b16 %v85
    %v138 = vunpack.c.l.b16 %v86
    %v139 = vunpack.c.l.b16 %v87
    %v140 = vunpack.c.l.b16 %v88
    %v141 = vunpack.c.l.b16 %v89
    %v142 = vunpack.c.l.b16 %v90
    %v143 = vunpack.c.l.b16 %v91
    %v144 = vpack.c.b16 %v137, %v136
    %v145 = vpack.c.b16 %v139, %v138
    %v146 = vpack.c.b16 %v141, %v140
    %v147 = vpack.c.b16 %v143, %v142
    %vm152 = vcmask 523264
    %v154 = vsel %vm152, %v122, 0
    %v157 = vsel %vm152, %v123, 0
    %v160 = vsel %vm152, %v124, 0
    %v163 = vsel %vm152, %v125, 0
    %v166 = vsel %vm152, %v126, 0
    %v169 = vsel %vm152, %v127, 0
    %171 = vmatprep.subr.bf16.mxu0 0
    %172 = vmatpush1.bf16.msra.mxu0 %v144
    %173 = vmatprep.subr.bf16.mxu0 0
    %174 = vmatpush1.bf16.msra.mxu0 %v145
    %175 = vmatprep.subr.bf16.mxu0 0
    %176 = vmatpush1.bf16.msra.mxu0 %v146
    %177 = vmatprep.subr.bf16.mxu0 0
    %178 = vmatpush1.bf16.msra.mxu0 %v147
    %179 = vmatprep.subr.bf16.mxu0 0
    %180 = vmatpush1.bf16.msra.mxu0 0
    %181 = vmatprep.subr.bf16.mxu0 0
    %182 = vmatpush1.bf16.msra.mxu0 0
    %183 = vmatprep.subr.bf16.mxu0 0
    %184 = vmatpush1.bf16.msra.mxu0 0
    %185 = vmatprep.subr.bf16.mxu0 0
    %186 = vmatpush1.bf16.msra.mxu0 0
    %187 = vmatprep.subr.bf16.mxu0 0
    %188 = vmatpush1.bf16.msra.mxu0 0
    %189 = vmatprep.subr.bf16.mxu0 0
    %190 = vmatpush1.bf16.msra.mxu0 0
    %191 = vmatprep.subr.bf16.mxu0 0
    %192 = vmatpush1.bf16.msra.mxu0 0
    %193 = vmatprep.subr.bf16.mxu0 0
    %194 = vmatpush1.bf16.msra.mxu0 0
    %195 = vmatprep.subr.bf16.mxu0 0
    %196 = vmatpush1.bf16.msra.mxu0 0
    %197 = vmatprep.subr.bf16.mxu0 0
    %198 = vmatpush1.bf16.msra.mxu0 0
    %199 = vmatprep.subr.bf16.mxu0 0
    %200 = vmatpush1.bf16.msra.mxu0 0
    %201 = vmatprep.subr.bf16.mxu0 0
    %202 = vmatpush1.bf16.msra.mxu0 0
    %203 = vmatprep.mubr.bf16.mxu0 0
    %204 = vmatmul.mubr.bf16.gmra.mrb[0].mxu0 %v154
    %v205 = vpop.f32.mrb[0].mxu0
    %v206 = vadd.f32 %v97, %v205
    %v207 = vpop.f32.mrb[0].mxu0
    %v208 = vpop.f32.mrb[0].mxu0
    %v209 = vadd.f32 %v97, %v208
    %v210 = vpop.f32.mrb[0].mxu0
    %211 = vmatprep.mubr.bf16.mxu0 0
    %212 = vmatmul.mubr.bf16.gmra.mrb[0].mxu0 %v157
    %v213 = vpop.f32.mrb[0].mxu0
    %v214 = vadd.f32 %v97, %v213
    %v215 = vpop.f32.mrb[0].mxu0
    %v216 = vpop.f32.mrb[0].mxu0
    %v217 = vadd.f32 %v97, %v216
    %v218 = vpop.f32.mrb[0].mxu0
    %219 = vmatprep.mubr.bf16.mxu0 0
    %220 = vmatmul.mubr.bf16.gmra.mrb[0].mxu0 %v160
    %v221 = vpop.f32.mrb[0].mxu0
    %v222 = vadd.f32 %v97, %v221
    %v223 = vpop.f32.mrb[0].mxu0
    %v224 = vpop.f32.mrb[0].mxu0
    %v225 = vadd.f32 %v97, %v224
    %v226 = vpop.f32.mrb[0].mxu0
    %227 = vmatprep.mubr.bf16.mxu0 0
    %228 = vmatmul.mubr.bf16.gmra.mrb[0].mxu0 %v163
    %v229 = vpop.f32.mrb[0].mxu0
    %v230 = vadd.f32 %v97, %v229
    %v231 = vpop.f32.mrb[0].mxu0
    %v232 = vpop.f32.mrb[0].mxu0
    %v233 = vadd.f32 %v97, %v232
    %v234 = vpop.f32.mrb[0].mxu0
    %235 = vmatprep.mubr.bf16.mxu0 0
    %236 = vmatmul.mubr.bf16.gmra.mrb[0].mxu0 %v166
    %v237 = vpop.f32.mrb[0].mxu0
    %v238 = vadd.f32 %v97, %v237
    %v239 = vpop.f32.mrb[0].mxu0
    %v240 = vpop.f32.mrb[0].mxu0
    %v241 = vadd.f32 %v97, %v240
    %v242 = vpop.f32.mrb[0].mxu0
    %243 = vmatprep.mubr.bf16.mxu0 0
    %244 = vmatmul.mubr.bf16.gmra.mrb[0].mxu0 %v169
    %v245 = vpop.f32.mrb[0].mxu0
    %v246 = vadd.f32 %v97, %v245
    %v247 = vpop.f32.mrb[0].mxu0
    %v248 = vpop.f32.mrb[0].mxu0
    %v249 = vadd.f32 %v97, %v248
    %v250 = vpop.f32.mrb[0].mxu0
    %251 = vdwg.mxu0
    %v252 = vld [vmem:[#allocation7] sm:$0xf]
    %v253 = vld [vmem:[#allocation7 + $0x4] sm:$0xf]
    %v254 = vld [vmem:[#allocation7 + $0x8] sm:$0xf]
    %v255 = vld [vmem:[#allocation7 + $0xc] sm:$0xf]
    %v256 = vld [vmem:[#allocation7 + $0x10] sm:$0xf]
    %v257 = vld [vmem:[#allocation7 + $0x14] sm:$0xf]
    %v258 = vld [vmem:[#allocation7 + $0x18] sm:$0xf]
    %v259 = vld [vmem:[#allocation7 + $0x1c] sm:$0xf]
    %v260 = vld [vmem:[#allocation7 + $0x20] sm:$0xf]
    %v261 = vld [vmem:[#allocation7 + $0x24] sm:$0xf]
    %v262 = vld [vmem:[#allocation7 + $0x28] sm:$0xf]
    %v263 = vld [vmem:[#allocation7 + $0x2c] sm:$0xf]
    %v264 = vunpack.c.l.bf16 %v252
    %v265 = vunpack.c.l.bf16 %v253
    %v266 = vunpack.c.l.bf16 %v254
    %v267 = vunpack.c.l.bf16 %v255
    %v268 = vunpack.c.l.bf16 %v256
    %v269 = vunpack.c.l.bf16 %v257
    %v270 = vunpack.c.l.bf16 %v258
    %v271 = vunpack.c.l.bf16 %v259
    %v272 = vunpack.c.l.bf16 %v260
    %v273 = vunpack.c.l.bf16 %v261
    %v274 = vunpack.c.l.bf16 %v262
    %v275 = vunpack.c.l.bf16 %v263
    %v276 = vadd.f32 %v206, %v264
    %v277 = vadd.f32 %v209, %v265
    %v278 = vadd.f32 %v214, %v266
    %v279 = vadd.f32 %v217, %v267
    %v280 = vadd.f32 %v222, %v268
    %v281 = vadd.f32 %v225, %v269
    %v282 = vadd.f32 %v230, %v270
    %v283 = vadd.f32 %v233, %v271
    %v284 = vadd.f32 %v238, %v272
    %v285 = vadd.f32 %v241, %v273
    %v286 = vadd.f32 %v246, %v274
    %v287 = vadd.f32 %v249, %v275
    %v288 = vpack.c.bf16 %v277, %v276
    %v289 = vpack.c.bf16 %v279, %v278
    %v290 = vpack.c.bf16 %v281, %v280
    %v291 = vpack.c.bf16 %v283, %v282
    %v292 = vpack.c.bf16 %v285, %v284
    %v293 = vpack.c.bf16 %v287, %v286
    %v300 = vunpack.c.l.b16 %v288
    %v301 = vunpack.c.h.b16 %v288
    %v302 = vunpack.c.l.b16 %v289
    %v303 = vunpack.c.h.b16 %v289
    %v304 = vunpack.c.l.b16 %v290
    %v305 = vunpack.c.h.b16 %v290
    %v306 = vunpack.c.l.b16 %v291
    %v307 = vunpack.c.h.b16 %v291
    %v308 = vunpack.c.l.b16 %v292
    %v309 = vunpack.c.h.b16 %v292
    %v310 = vunpack.c.l.b16 %v293
    %v311 = vunpack.c.h.b16 %v293
    %v312 = vpack.c.b16 %v300, %v300
    %v313 = vpack.c.b16 %v301, %v301
    %v314 = vpack.c.b16 %v302, %v302
    %v315 = vpack.c.b16 %v303, %v303
    %v316 = vpack.c.b16 %v304, %v304
    %v317 = vpack.c.b16 %v305, %v305
    %v318 = vpack.c.b16 %v306, %v306
    %v319 = vpack.c.b16 %v307, %v307
    %v320 = vpack.c.b16 %v308, %v308
    %v321 = vpack.c.b16 %v309, %v309
    %v322 = vpack.c.b16 %v310, %v310
    %v323 = vpack.c.b16 %v311, %v311
    %vm336 = vcmask 519168
    %337 = vst.msk [vmem:[#allocation10] sm:$0xf] %vm336, %v312
    %338 = vst.msk [vmem:[#allocation10 + $0x4] sm:$0xf] %vm336, %v313
    %339 = vst.msk [vmem:[#allocation10 + $0x8] sm:$0xf] %vm336, %v314
    %340 = vst.msk [vmem:[#allocation10 + $0xc] sm:$0xf] %vm336, %v315
    %341 = vst.msk [vmem:[#allocation10 + $0x10] sm:$0xf] %vm336, %v316
    %342 = vst.msk [vmem:[#allocation10 + $0x14] sm:$0xf] %vm336, %v317
    %343 = vst.msk [vmem:[#allocation10 + $0x18] sm:$0xf] %vm336, %v318
    %344 = vst.msk [vmem:[#allocation10 + $0x1c] sm:$0xf] %vm336, %v319
    %345 = vst.msk [vmem:[#allocation10 + $0x20] sm:$0xf] %vm336, %v320
    %346 = vst.msk [vmem:[#allocation10 + $0x24] sm:$0xf] %vm336, %v321
    %347 = vst.msk [vmem:[#allocation10 + $0x28] sm:$0xf] %vm336, %v322
    %348 = vst.msk [vmem:[#allocation10 + $0x2c] sm:$0xf] %vm336, %v323
    // Predicated region
    $region34: #{custom_clip_matrix_forward.40} parent=1 // pred_check
      _
    $region35: #{custom_clip_matrix_forward.40} parent=1 // pred_check_branch
      %350 = sbr.rel (0) target = $region37
    $region36: #{custom_clip_matrix_forward.40} parent=1 // pred_region
      %s352 = ssub.s32 768, 768
      %353 = vsyncadd [#allocation4], %s352
      %s354 = sshll.u32 [#allocation10], 4
      %s355 = int_to_ptr.vmem [resolvable:$true] %s354
      %360 = dma.vmem_to_hbm [thread:$0]  %s355, 768, %s4, [#allocation4], 64, 64, 4
    $region37: #{custom_clip_matrix_forward.40} parent=1 // pred_fallthru
      _
    // Predicated region
    $region38: #{custom_clip_matrix_forward.40} parent=1 // pred_check
      _
    $region39: #{custom_clip_matrix_forward.40} parent=1 // pred_check_branch
      %362 = sbr.rel (0) target = $region41
    $region40: #{custom_clip_matrix_forward.40} parent=1 // pred_region
      %363 = dma.done [#allocation4], 768
    $region41: #{custom_clip_matrix_forward.40} parent=1 // pred_fallthru
      _
    %364 = vsyncpa [#allocation3], 1
    %365 = vsyncpa [#allocation6], 1
    %366 = vsyncpa [#allocation9], 1
    %367 = vsyncpa [#allocation4], 1

// kernel: tile.8
$region0: #{tile.8}
  #allocation0 [shape = 's32[1]{0}', space=sflag, size = 0x4, scoped, tag = 'scoped memory for tile.8']
  %s0 = inlined_call_operand.vmem [shape: s32[3], index: 0, kind: input, shape index: {}]
  %s1 = inlined_call_operand.vmem [shape: s32[2,3], index: 1, kind: output, shape index: {}]
  // Predicated region
  $region2: #{tile.8} parent=0 // pred_check
    _
  $region3: #{tile.8} parent=0 // pred_check_branch
    %3 = sbr.rel (0) target = $region5
  $region4: #{tile.8} parent=0 // pred_region
    _
  $region5: #{tile.8} parent=0 // pred_fallthru
    _
  %v4 = vld [vmem:[%s0] ss:$0 sm:$0xff]
  %5 = vst [vmem:[%s1] sm:$0x3] %v4

// kernel: custom_clip_matrix_forward.41
$region0: #{custom_clip_matrix_forward.41}
  #allocation0 [shape = 'u32[]', space=smem, size = 0x4, offset = 0x4, fixed_abs, tag = 'smem constant byte address 0x4 - core index']
  #allocation1 [shape = 'u32[144,128]{1,0:T(1,128)}', space=vmem, size = 0x12000, scoped, tag = 'internal scratch']
  %s0 = inlined_call_operand.hbm [shape: bf16[96,64], index: 0, kind: input, shape index: {}]
  %s1 = inlined_call_operand.hbm [shape: bf16[64,256], index: 1, kind: input, shape index: {}]
  %s2 = inlined_call_operand.hbm [shape: bf16[1,256], index: 2, kind: input, shape index: {}]
  %s3 = inlined_call_operand.hbm [shape: bf16[1,64], index: 3, kind: input, shape index: {}]
  %s4 = inlined_call_operand.hbm [shape: bf16[1,64], index: 4, kind: input, shape index: {}]
  %s5 = inlined_call_operand.hbm [shape: bf16[96,256], index: 5, kind: output, shape index: {}]
  %s6 = sld [smem:[#allocation0]]
  $region50: #{custom_clip_matrix_forward.41} parent=0
    _
  %s8 = ssub.s32 1, %s6
  %s9 = scalar_select 0, %s8, %s6
  $region1: #{custom_clip_matrix_forward.41} parent=0
    #allocation2 [shape = 'u8[24576]{0}', space=vmem, size = 0x6000, scoped, tag = 'input window, operand 0, single buffered']
    #allocation3 [shape = 's32[1]{0}', space=sflag, size = 0x4, scoped, tag = 'scoped memory for custom_clip_matrix_forward.41']
    #allocation4 [shape = 's32[1]{0}', space=sflag, size = 0x4, scoped, tag = 'scoped memory for custom_clip_matrix_forward.41']
    #allocation5 [shape = 'u8[32768]{0}', space=vmem, size = 0x8000, scoped, tag = 'input window, operand 1, single buffered']
    #allocation6 [shape = 's32[1]{0}', space=sflag, size = 0x4, scoped, tag = 'scoped memory for custom_clip_matrix_forward.41']
    #allocation7 [shape = 'u8[1024]{0}', space=vmem, size = 0x400, scoped, tag = 'input window, operand 2, single buffered']
    #allocation8 [shape = 'u8[512]{0}', space=vmem, size = 0x400, scoped, tag = 'input window, operand 3, single buffered']
    #allocation9 [shape = 's32[1]{0}', space=sflag, size = 0x4, scoped, tag = 'scoped memory for custom_clip_matrix_forward.41']
    #allocation10 [shape = 'u8[512]{0}', space=vmem, size = 0x400, scoped, tag = 'input window, operand 4, single buffered']
    #allocation11 [shape = 'u8[49152]{0}', space=vmem, size = 0xc000, scoped, tag = 'output window, operand 0, single buffered']
    %10 = vsyncpa [#allocation3], 0
    %11 = vsyncpa [#allocation6], 0
    %12 = vsyncpa [#allocation9], 0
    %13 = vsyncpa [#allocation4], 0
    // Predicated region
    $region2: #{custom_clip_matrix_forward.41} parent=1 // pred_check
      _
    $region3: #{custom_clip_matrix_forward.41} parent=1 // pred_check_branch
      %15 = sbr.rel (0) target = $region5
    $region4: #{custom_clip_matrix_forward.41} parent=1 // pred_region
      %s17 = ssub.s32 768, 768
      %18 = vsyncadd [#allocation3], %s17
      %s19 = sshll.u32 [#allocation2], 4
      %s20 = int_to_ptr.vmem [resolvable:$true] %s19
      %25 = dma.hbm_to_vmem [thread:$0]  %s0, 768, %s20, [#allocation3], 64, 64, 4
    $region5: #{custom_clip_matrix_forward.41} parent=1 // pred_fallthru
      _
    // Predicated region
    $region6: #{custom_clip_matrix_forward.41} parent=1 // pred_check
      _
    $region7: #{custom_clip_matrix_forward.41} parent=1 // pred_check_branch
      %27 = sbr.rel (0) target = $region9
    $region8: #{custom_clip_matrix_forward.41} parent=1 // pred_region
      %s29 = ssub.s32 1024, 1024
      %30 = vsyncadd [#allocation6], %s29
      %s31 = sshll.u32 [#allocation5], 4
      %s32 = int_to_ptr.vmem [resolvable:$true] %s31
      %37 = dma.hbm_to_vmem [thread:$0]  %s1, 1024, %s32, [#allocation6], 128, 128, 8
    $region9: #{custom_clip_matrix_forward.41} parent=1 // pred_fallthru
      _
    // Predicated region
    $region10: #{custom_clip_matrix_forward.41} parent=1 // pred_check
      _
    $region11: #{custom_clip_matrix_forward.41} parent=1 // pred_check_branch
      %39 = sbr.rel (0) target = $region13
    $region12: #{custom_clip_matrix_forward.41} parent=1 // pred_region
      %s41 = ssub.s32 32, 32
      %42 = vsyncadd [#allocation6], %s41
      %s44 = sshll.u32 [#allocation7], 4
      %s45 = int_to_ptr.vmem [resolvable:$true] %s44
      %47 = dma.hbm_to_vmem [thread:$0]  %s2, 32, %s45, [#allocation6]
    $region13: #{custom_clip_matrix_forward.41} parent=1 // pred_fallthru
      _
    // Predicated region
    $region14: #{custom_clip_matrix_forward.41} parent=1 // pred_check
      _
    $region15: #{custom_clip_matrix_forward.41} parent=1 // pred_check_branch
      %49 = sbr.rel (0) target = $region17
    $region16: #{custom_clip_matrix_forward.41} parent=1 // pred_region
      %s51 = ssub.s32 16, 16
      %52 = vsyncadd [#allocation9], %s51
      %s54 = sshll.u32 [#allocation8], 4
      %s55 = int_to_ptr.vmem [resolvable:$true] %s54
      %57 = dma.hbm_to_vmem [thread:$0]  %s3, 16, %s55, [#allocation9]
    $region17: #{custom_clip_matrix_forward.41} parent=1 // pred_fallthru
      _
    // Predicated region
    $region18: #{custom_clip_matrix_forward.41} parent=1 // pred_check
      _
    $region19: #{custom_clip_matrix_forward.41} parent=1 // pred_check_branch
      %59 = sbr.rel (0) target = $region21
    $region20: #{custom_clip_matrix_forward.41} parent=1 // pred_region
      %s61 = ssub.s32 16, 16
      %62 = vsyncadd [#allocation9], %s61
      %s64 = sshll.u32 [#allocation10], 4
      %s65 = int_to_ptr.vmem [resolvable:$true] %s64
      %67 = dma.hbm_to_vmem [thread:$0]  %s4, 16, %s65, [#allocation9]
    $region21: #{custom_clip_matrix_forward.41} parent=1 // pred_fallthru
      _
    // Predicated region
    $region22: #{custom_clip_matrix_forward.41} parent=1 // pred_check
      _
    $region23: #{custom_clip_matrix_forward.41} parent=1 // pred_check_branch
      %69 = sbr.rel (0) target = $region25
    $region24: #{custom_clip_matrix_forward.41} parent=1 // pred_region
      %70 = dma.done [#allocation3], 768
    $region25: #{custom_clip_matrix_forward.41} parent=1 // pred_fallthru
      _
    // Predicated region
    $region26: #{custom_clip_matrix_forward.41} parent=1 // pred_check
      _
    $region27: #{custom_clip_matrix_forward.41} parent=1 // pred_check_branch
      %72 = sbr.rel (0) target = $region29
    $region28: #{custom_clip_matrix_forward.41} parent=1 // pred_region
      %73 = dma.done [#allocation6], 1024
    $region29: #{custom_clip_matrix_forward.41} parent=1 // pred_fallthru
      _
    // Predicated region
    $region30: #{custom_clip_matrix_forward.41} parent=1 // pred_check
      _
    $region31: #{custom_clip_matrix_forward.41} parent=1 // pred_check_branch
      %75 = sbr.rel (0) target = $region33
    $region32: #{custom_clip_matrix_forward.41} parent=1 // pred_region
      %76 = dma.done [#allocation6], 32
    $region33: #{custom_clip_matrix_forward.41} parent=1 // pred_fallthru
      _
    // Predicated region
    $region34: #{custom_clip_matrix_forward.41} parent=1 // pred_check
      _
    $region35: #{custom_clip_matrix_forward.41} parent=1 // pred_check_branch
      %78 = sbr.rel (0) target = $region37
    $region36: #{custom_clip_matrix_forward.41} parent=1 // pred_region
      %79 = dma.done [#allocation9], 16
    $region37: #{custom_clip_matrix_forward.41} parent=1 // pred_fallthru
      _
    // Predicated region
    $region38: #{custom_clip_matrix_forward.41} parent=1 // pred_check
      _
    $region39: #{custom_clip_matrix_forward.41} parent=1 // pred_check_branch
      %81 = sbr.rel (0) target = $region41
    $region40: #{custom_clip_matrix_forward.41} parent=1 // pred_region
      %82 = dma.done [#allocation9], 16
    $region41: #{custom_clip_matrix_forward.41} parent=1 // pred_fallthru
      _
    %v84 = vld [vmem:[#allocation2] sm:$0xf]
    %v85 = vld [vmem:[#allocation2 + $0x4] sm:$0xf]
    %v86 = vld [vmem:[#allocation2 + $0x8] sm:$0xf]
    %v87 = vld [vmem:[#allocation2 + $0xc] sm:$0xf]
    %v88 = vld [vmem:[#allocation2 + $0x10] sm:$0xf]
    %v89 = vld [vmem:[#allocation2 + $0x14] sm:$0xf]
    %v90 = vld [vmem:[#allocation2 + $0x18] sm:$0xf]
    %v91 = vld [vmem:[#allocation2 + $0x1c] sm:$0xf]
    %v92 = vld [vmem:[#allocation2 + $0x20] sm:$0xf]
    %v93 = vld [vmem:[#allocation2 + $0x24] sm:$0xf]
    %v94 = vld [vmem:[#allocation2 + $0x28] sm:$0xf]
    %v95 = vld [vmem:[#allocation2 + $0x2c] sm:$0xf]
    %v96 = vunpack.c.l.bf16 %v84
    %v97 = vunpack.c.l.bf16 %v85
    %v98 = vunpack.c.l.bf16 %v86
    %v99 = vunpack.c.l.bf16 %v87
    %v100 = vunpack.c.l.bf16 %v88
    %v101 = vunpack.c.l.bf16 %v89
    %v102 = vunpack.c.l.bf16 %v90
    %v103 = vunpack.c.l.bf16 %v91
    %v104 = vunpack.c.l.bf16 %v92
    %v105 = vunpack.c.l.bf16 %v93
    %v106 = vunpack.c.l.bf16 %v94
    %v107 = vunpack.c.l.bf16 %v95
    %vm108 = vcmask 523264
    %v109 = vsel %vm108, %v96, 0.0
    %110 = vadd.xlane.f32.xlu0 %v109
    %v111 = vpop.xlane.xlu0 %110
    %v112 = vsel %vm108, %v97, 0.0
    %113 = vadd.xlane.f32.xlu0 %v112
    %v114 = vpop.xlane.xlu0 %113
    %v115 = vsel %vm108, %v98, 0.0
    %116 = vadd.xlane.f32.xlu0 %v115
    %v117 = vpop.xlane.xlu0 %116
    %v118 = vsel %vm108, %v99, 0.0
    %119 = vadd.xlane.f32.xlu0 %v118
    %v120 = vpop.xlane.xlu0 %119
    %v121 = vsel %vm108, %v100, 0.0
    %122 = vadd.xlane.f32.xlu0 %v121
    %v123 = vpop.xlane.xlu0 %122
    %v124 = vsel %vm108, %v101, 0.0
    %125 = vadd.xlane.f32.xlu0 %v124
    %v126 = vpop.xlane.xlu0 %125
    %v127 = vsel %vm108, %v102, 0.0
    %128 = vadd.xlane.f32.xlu0 %v127
    %v129 = vpop.xlane.xlu0 %128
    %v130 = vsel %vm108, %v103, 0.0
    %131 = vadd.xlane.f32.xlu0 %v130
    %v132 = vpop.xlane.xlu0 %131
    %v133 = vsel %vm108, %v104, 0.0
    %134 = vadd.xlane.f32.xlu0 %v133
    %v135 = vpop.xlane.xlu0 %134
    %v136 = vsel %vm108, %v105, 0.0
    %137 = vadd.xlane.f32.xlu0 %v136
    %v138 = vpop.xlane.xlu0 %137
    %v139 = vsel %vm108, %v106, 0.0
    %140 = vadd.xlane.f32.xlu0 %v139
    %v141 = vpop.xlane.xlu0 %140
    %v142 = vsel %vm108, %v107, 0.0
    %143 = vadd.xlane.f32.xlu0 %v142
    %v144 = vpop.xlane.xlu0 %143
    %v145 = vrcp.pop 64.0
    %v146 = vmul.f32 %v111, %v145
    %v147 = vmul.f32 %v114, %v145
    %v148 = vmul.f32 %v117, %v145
    %v149 = vmul.f32 %v120, %v145
    %v150 = vmul.f32 %v123, %v145
    %v151 = vmul.f32 %v126, %v145
    %v152 = vmul.f32 %v129, %v145
    %v153 = vmul.f32 %v132, %v145
    %v154 = vmul.f32 %v135, %v145
    %v155 = vmul.f32 %v138, %v145
    %v156 = vmul.f32 %v141, %v145
    %v157 = vmul.f32 %v144, %v145
    %v158 = vsub.f32 %v96, %v146
    %v159 = vsub.f32 %v97, %v147
    %v160 = vsub.f32 %v98, %v148
    %v161 = vsub.f32 %v99, %v149
    %v162 = vsub.f32 %v100, %v150
    %v163 = vsub.f32 %v101, %v151
    %v164 = vsub.f32 %v102, %v152
    %v165 = vsub.f32 %v103, %v153
    %v166 = vsub.f32 %v104, %v154
    %v167 = vsub.f32 %v105, %v155
    %v168 = vsub.f32 %v106, %v156
    %v169 = vsub.f32 %v107, %v157
    %v170 = vmul.f32 %v158, %v158
    %v171 = vmul.f32 %v159, %v159
    %v172 = vmul.f32 %v160, %v160
    %v173 = vmul.f32 %v161, %v161
    %v174 = vmul.f32 %v162, %v162
    %v175 = vmul.f32 %v163, %v163
    %v176 = vmul.f32 %v164, %v164
    %v177 = vmul.f32 %v165, %v165
    %v178 = vmul.f32 %v166, %v166
    %v179 = vmul.f32 %v167, %v167
    %v180 = vmul.f32 %v168, %v168
    %v181 = vmul.f32 %v169, %v169
    %v182 = vsel %vm108, %v170, 0.0
    %183 = vadd.xlane.f32.xlu0 %v182
    %v184 = vpop.xlane.xlu0 %183
    %v185 = vsel %vm108, %v171, 0.0
    %186 = vadd.xlane.f32.xlu0 %v185
    %v187 = vpop.xlane.xlu0 %186
    %v188 = vsel %vm108, %v172, 0.0
    %189 = vadd.xlane.f32.xlu0 %v188
    %v190 = vpop.xlane.xlu0 %189
    %v191 = vsel %vm108, %v173, 0.0
    %192 = vadd.xlane.f32.xlu0 %v191
    %v193 = vpop.xlane.xlu0 %192
    %v194 = vsel %vm108, %v174, 0.0
    %195 = vadd.xlane.f32.xlu0 %v194
    %v196 = vpop.xlane.xlu0 %195
    %v197 = vsel %vm108, %v175, 0.0
    %198 = vadd.xlane.f32.xlu0 %v197
    %v199 = vpop.xlane.xlu0 %198
    %v200 = vsel %vm108, %v176, 0.0
    %201 = vadd.xlane.f32.xlu0 %v200
    %v202 = vpop.xlane.xlu0 %201
    %v203 = vsel %vm108, %v177, 0.0
    %204 = vadd.xlane.f32.xlu0 %v203
    %v205 = vpop.xlane.xlu0 %204
    %v206 = vsel %vm108, %v178, 0.0
    %207 = vadd.xlane.f32.xlu0 %v206
    %v208 = vpop.xlane.xlu0 %207
    %v209 = vsel %vm108, %v179, 0.0
    %210 = vadd.xlane.f32.xlu0 %v209
    %v211 = vpop.xlane.xlu0 %210
    %v212 = vsel %vm108, %v180, 0.0
    %213 = vadd.xlane.f32.xlu0 %v212
    %v214 = vpop.xlane.xlu0 %213
    %v215 = vsel %vm108, %v181, 0.0
    %216 = vadd.xlane.f32.xlu0 %v215
    %v217 = vpop.xlane.xlu0 %216
    %v218 = vmul.f32 %v184, %v145
    %v219 = vmul.f32 %v187, %v145
    %v220 = vmul.f32 %v190, %v145
    %v221 = vmul.f32 %v193, %v145
    %v222 = vmul.f32 %v196, %v145
    %v223 = vmul.f32 %v199, %v145
    %v224 = vmul.f32 %v202, %v145
    %v225 = vmul.f32 %v205, %v145
    %v226 = vmul.f32 %v208, %v145
    %v227 = vmul.f32 %v211, %v145
    %v228 = vmul.f32 %v214, %v145
    %v229 = vmul.f32 %v217, %v145
    %v230 = vadd.f32 %v218, 1e-05
    %v231 = vadd.f32 %v219, 1e-05
    %v232 = vadd.f32 %v220, 1e-05
    %v233 = vadd.f32 %v221, 1e-05
    %v234 = vadd.f32 %v222, 1e-05
    %v235 = vadd.f32 %v223, 1e-05
    %v236 = vadd.f32 %v224, 1e-05
    %v237 = vadd.f32 %v225, 1e-05
    %v238 = vadd.f32 %v226, 1e-05
    %v239 = vadd.f32 %v227, 1e-05
    %v240 = vadd.f32 %v228, 1e-05
    %v241 = vadd.f32 %v229, 1e-05
    %v242 = vrsqrt.pop %v230
    %v243 = vrsqrt.pop %v231
    %v244 = vrsqrt.pop %v232
    %v245 = vrsqrt.pop %v233
    %v246 = vrsqrt.pop %v234
    %v247 = vrsqrt.pop %v235
    %v248 = vrsqrt.pop %v236
    %v249 = vrsqrt.pop %v237
    %v250 = vrsqrt.pop %v238
    %v251 = vrsqrt.pop %v239
    %v252 = vrsqrt.pop %v240
    %v253 = vrsqrt.pop %v241
    %v254 = vmul.f32 %v158, %v242
    %v255 = vmul.f32 %v159, %v243
    %v256 = vmul.f32 %v160, %v244
    %v257 = vmul.f32 %v161, %v245
    %v258 = vmul.f32 %v162, %v246
    %v259 = vmul.f32 %v163, %v247
    %v260 = vmul.f32 %v164, %v248
    %v261 = vmul.f32 %v165, %v249
    %v262 = vmul.f32 %v166, %v250
    %v263 = vmul.f32 %v167, %v251
    %v264 = vmul.f32 %v168, %v252
    %v265 = vmul.f32 %v169, %v253
    %v266 = vld [vmem:[#allocation8] sm:$0x1]
    %v267 = vunpack.c.l.bf16 %v266
    %v268 = vlaneseq
    %v269 = vshrl.u32 %v268, 7
    %v270 = vsub.s32 0, %v269
    %v271 = vrot.slane %v267, %v270
    %v272 = vmul.f32 %v254, %v271
    %v273 = vmul.f32 %v255, %v271
    %v274 = vmul.f32 %v256, %v271
    %v275 = vmul.f32 %v257, %v271
    %v276 = vmul.f32 %v258, %v271
    %v277 = vmul.f32 %v259, %v271
    %v278 = vmul.f32 %v260, %v271
    %v279 = vmul.f32 %v261, %v271
    %v280 = vmul.f32 %v262, %v271
    %v281 = vmul.f32 %v263, %v271
    %v282 = vmul.f32 %v264, %v271
    %v283 = vmul.f32 %v265, %v271
    %v284 = vld [vmem:[#allocation10] sm:$0x1]
    %v285 = vunpack.c.l.bf16 %v284
    %v286 = vlaneseq
    %v287 = vshrl.u32 %v286, 7
    %v288 = vsub.s32 0, %v287
    %v289 = vrot.slane %v285, %v288
    %v290 = vadd.f32 %v272, %v289
    %v291 = vadd.f32 %v273, %v289
    %v292 = vadd.f32 %v274, %v289
    %v293 = vadd.f32 %v275, %v289
    %v294 = vadd.f32 %v276, %v289
    %v295 = vadd.f32 %v277, %v289
    %v296 = vadd.f32 %v278, %v289
    %v297 = vadd.f32 %v279, %v289
    %v298 = vadd.f32 %v280, %v289
    %v299 = vadd.f32 %v281, %v289
    %v300 = vadd.f32 %v282, %v289
    %v301 = vadd.f32 %v283, %v289
    %v302 = vpack.c.bf16 %v291, %v290
    %v303 = vpack.c.bf16 %v293, %v292
    %v304 = vpack.c.bf16 %v295, %v294
    %v305 = vpack.c.bf16 %v297, %v296
    %v306 = vpack.c.bf16 %v299, %v298
    %v307 = vpack.c.bf16 %v301, %v300
    %v308 = vld [vmem:[#allocation5] sm:$0xff]
    %v309 = vld [vmem:[#allocation5 + $0x8] sm:$0xff]
    %v310 = vld [vmem:[#allocation5 + $0x10] sm:$0xff]
    %v311 = vld [vmem:[#allocation5 + $0x18] sm:$0xff]
    %v312 = vld [vmem:[#allocation5 + $0x20] sm:$0xff]
    %v313 = vld [vmem:[#allocation5 + $0x28] sm:$0xff]
    %v314 = vld [vmem:[#allocation5 + $0x30] sm:$0xff]
    %v315 = vld [vmem:[#allocation5 + $0x38] sm:$0xff]
    %v316 = vld [vmem:[#allocation7] sm:$0x3]
    %v317 = vunpack.c.l.bf16 %v316
    %v319 = vlaneseq
    %v320 = vshrl.u32 %v319, 7
    %v321 = vsub.s32 0, %v320
    %v322 = vrot.slane %v317, %v321
    %v323 = vlaneseq
    %v324 = vshrl.u32 %v323, 7
    %v325 = vsub.s32 2, %v324
    %v326 = vrot.slane %v317, %v325
    %v329 = vlaneseq
    %v330 = vshrl.u32 %v329, 7
    %v331 = vsub.s32 0, %v330
    %v332 = vrot.slane %v322, %v331
    %v333 = vlaneseq
    %v334 = vshrl.u32 %v333, 7
    %v335 = vsub.s32 0, %v334
    %v336 = vrot.slane %v326, %v335
    %v345 = vunpack.c.l.b16 %v308
    %v346 = vunpack.c.h.b16 %v308
    %v347 = vunpack.c.l.b16 %v309
    %v348 = vunpack.c.h.b16 %v309
    %v349 = vunpack.c.l.b16 %v310
    %v350 = vunpack.c.h.b16 %v310
    %v351 = vunpack.c.l.b16 %v311
    %v352 = vunpack.c.h.b16 %v311
    %v353 = vunpack.c.l.b16 %v312
    %v354 = vunpack.c.h.b16 %v312
    %v355 = vunpack.c.l.b16 %v313
    %v356 = vunpack.c.h.b16 %v313
    %v357 = vunpack.c.l.b16 %v314
    %v358 = vunpack.c.h.b16 %v314
    %v359 = vunpack.c.l.b16 %v315
    %v360 = vunpack.c.h.b16 %v315
    %v361 = vpack.c.b16 %v347, %v345
    %v362 = vpack.c.b16 %v348, %v346
    %v363 = vpack.c.b16 %v351, %v349
    %v364 = vpack.c.b16 %v352, %v350
    %v365 = vpack.c.b16 %v355, %v353
    %v366 = vpack.c.b16 %v356, %v354
    %v367 = vpack.c.b16 %v359, %v357
    %v368 = vpack.c.b16 %v360, %v358
    %v378 = vsel %vm108, %v302, 0
    %v381 = vsel %vm108, %v303, 0
    %v384 = vsel %vm108, %v304, 0
    %v387 = vsel %vm108, %v305, 0
    %v390 = vsel %vm108, %v306, 0
    %v393 = vsel %vm108, %v307, 0
    %395 = vmatprep.subr.bf16.mxu0 %v362
    %396 = vmatpush1.bf16.msra.mxu0 %v361
    %397 = vmatprep.subr.bf16.mxu0 %v364
    %398 = vmatpush1.bf16.msra.mxu0 %v363
    %399 = vmatprep.subr.bf16.mxu0 %v366
    %400 = vmatpush1.bf16.msra.mxu0 %v365
    %401 = vmatprep.subr.bf16.mxu0 %v368
    %402 = vmatpush1.bf16.msra.mxu0 %v367
    %403 = vmatprep.subr.bf16.mxu0 0
    %404 = vmatpush1.bf16.msra.mxu0 0
    %405 = vmatprep.subr.bf16.mxu0 0
    %406 = vmatpush1.bf16.msra.mxu0 0
    %407 = vmatprep.subr.bf16.mxu0 0
    %408 = vmatpush1.bf16.msra.mxu0 0
    %409 = vmatprep.subr.bf16.mxu0 0
    %410 = vmatpush1.bf16.msra.mxu0 0
    %411 = vmatprep.subr.bf16.mxu0 0
    %412 = vmatpush1.bf16.msra.mxu0 0
    %413 = vmatprep.subr.bf16.mxu0 0
    %414 = vmatpush1.bf16.msra.mxu0 0
    %415 = vmatprep.subr.bf16.mxu0 0
    %416 = vmatpush1.bf16.msra.mxu0 0
    %417 = vmatprep.subr.bf16.mxu0 0
    %418 = vmatpush1.bf16.msra.mxu0 0
    %419 = vmatprep.subr.bf16.mxu0 0
    %420 = vmatpush1.bf16.msra.mxu0 0
    %421 = vmatprep.subr.bf16.mxu0 0
    %422 = vmatpush1.bf16.msra.mxu0 0
    %423 = vmatprep.subr.bf16.mxu0 0
    %424 = vmatpush1.bf16.msra.mxu0 0
    %425 = vmatprep.subr.bf16.mxu0 0
    %426 = vmatpush1.bf16.msra.mxu0 0
    %427 = vmatprep.mubr.bf16.mxu0 0
    %428 = vmatmul.mubr.bf16.gmra.mrb[0].mxu0 %v378
    %v429 = vpop.f32.mrb[0].mxu0
    %v430 = vadd.f32 %v332, %v429
    %v431 = vpop.f32.mrb[0].mxu0
    %v432 = vadd.f32 %v336, %v431
    %v433 = vpop.f32.mrb[0].mxu0
    %v434 = vadd.f32 %v332, %v433
    %v435 = vpop.f32.mrb[0].mxu0
    %v436 = vadd.f32 %v336, %v435
    %437 = vmatprep.mubr.bf16.mxu0 0
    %438 = vmatmul.mubr.bf16.gmra.mrb[0].mxu0 %v381
    %v439 = vpop.f32.mrb[0].mxu0
    %v440 = vadd.f32 %v332, %v439
    %v441 = vpop.f32.mrb[0].mxu0
    %v442 = vadd.f32 %v336, %v441
    %v443 = vpop.f32.mrb[0].mxu0
    %v444 = vadd.f32 %v332, %v443
    %v445 = vpop.f32.mrb[0].mxu0
    %v446 = vadd.f32 %v336, %v445
    %447 = vmatprep.mubr.bf16.mxu0 0
    %448 = vmatmul.mubr.bf16.gmra.mrb[0].mxu0 %v384
    %v449 = vpop.f32.mrb[0].mxu0
    %v450 = vadd.f32 %v332, %v449
    %v451 = vpop.f32.mrb[0].mxu0
    %v452 = vadd.f32 %v336, %v451
    %v453 = vpop.f32.mrb[0].mxu0
    %v454 = vadd.f32 %v332, %v453
    %v455 = vpop.f32.mrb[0].mxu0
    %v456 = vadd.f32 %v336, %v455
    %457 = vmatprep.mubr.bf16.mxu0 0
    %458 = vmatmul.mubr.bf16.gmra.mrb[0].mxu0 %v387
    %v459 = vpop.f32.mrb[0].mxu0
    %v460 = vadd.f32 %v332, %v459
    %v461 = vpop.f32.mrb[0].mxu0
    %v462 = vadd.f32 %v336, %v461
    %v463 = vpop.f32.mrb[0].mxu0
    %v464 = vadd.f32 %v332, %v463
    %v465 = vpop.f32.mrb[0].mxu0
    %v466 = vadd.f32 %v336, %v465
    %467 = vmatprep.mubr.bf16.mxu0 0
    %468 = vmatmul.mubr.bf16.gmra.mrb[0].mxu0 %v390
    %v469 = vpop.f32.mrb[0].mxu0
    %v470 = vadd.f32 %v332, %v469
    %v471 = vpop.f32.mrb[0].mxu0
    %v472 = vadd.f32 %v336, %v471
    %v473 = vpop.f32.mrb[0].mxu0
    %v474 = vadd.f32 %v332, %v473
    %v475 = vpop.f32.mrb[0].mxu0
    %v476 = vadd.f32 %v336, %v475
    %477 = vmatprep.mubr.bf16.mxu0 0
    %478 = vmatmul.mubr.bf16.gmra.mrb[0].mxu0 %v393
    %v479 = vpop.f32.mrb[0].mxu0
    %v480 = vadd.f32 %v332, %v479
    %v481 = vpop.f32.mrb[0].mxu0
    %v482 = vadd.f32 %v336, %v481
    %v483 = vpop.f32.mrb[0].mxu0
    %v484 = vadd.f32 %v332, %v483
    %v485 = vpop.f32.mrb[0].mxu0
    %v486 = vadd.f32 %v336, %v485
    %487 = vdwg.mxu0
    %v488 = vmul.f32 %v430, 1.702
    %v489 = vmul.f32 %v432, 1.702
    %v490 = vmul.f32 %v434, 1.702
    %v491 = vmul.f32 %v436, 1.702
    %v492 = vmul.f32 %v440, 1.702
    %v493 = vmul.f32 %v442, 1.702
    %v494 = vmul.f32 %v444, 1.702
    %v495 = vmul.f32 %v446, 1.702
    %v496 = vmul.f32 %v450, 1.702
    %v497 = vmul.f32 %v452, 1.702
    %v498 = vmul.f32 %v454, 1.702
    %v499 = vmul.f32 %v456, 1.702
    %v500 = vmul.f32 %v460, 1.702
    %v501 = vmul.f32 %v462, 1.702
    %v502 = vmul.f32 %v464, 1.702
    %v503 = vmul.f32 %v466, 1.702
    %v504 = vmul.f32 %v470, 1.702
    %v505 = vmul.f32 %v472, 1.702
    %v506 = vmul.f32 %v474, 1.702
    %v507 = vmul.f32 %v476, 1.702
    %v508 = vmul.f32 %v480, 1.702
    %v509 = vmul.f32 %v482, 1.702
    %v510 = vmul.f32 %v484, 1.702
    %v511 = vmul.f32 %v486, 1.702
    %v512 = vxor.u32 %v488, 2147483648
    %v513 = vxor.u32 %v489, 2147483648
    %v514 = vxor.u32 %v490, 2147483648
    %v515 = vxor.u32 %v491, 2147483648
    %v516 = vxor.u32 %v492, 2147483648
    %v517 = vxor.u32 %v493, 2147483648
    %v518 = vxor.u32 %v494, 2147483648
    %v519 = vxor.u32 %v495, 2147483648
    %v520 = vxor.u32 %v496, 2147483648
    %v521 = vxor.u32 %v497, 2147483648
    %v522 = vxor.u32 %v498, 2147483648
    %v523 = vxor.u32 %v499, 2147483648
    %v524 = vxor.u32 %v500, 2147483648
    %v525 = vxor.u32 %v501, 2147483648
    %v526 = vxor.u32 %v502, 2147483648
    %v527 = vxor.u32 %v503, 2147483648
    %v528 = vxor.u32 %v504, 2147483648
    %v529 = vxor.u32 %v505, 2147483648
    %v530 = vxor.u32 %v506, 2147483648
    %v531 = vxor.u32 %v507, 2147483648
    %v532 = vxor.u32 %v508, 2147483648
    %v533 = vxor.u32 %v509, 2147483648
    %v534 = vxor.u32 %v510, 2147483648
    %v535 = vxor.u32 %v511, 2147483648
    %v536 = vmul.f32 %v512, 1.442695
    %v537 = vpow.pop %v536
    %v538 = vmul.f32 %v513, 1.442695
    %v539 = vpow.pop %v538
    %v540 = vmul.f32 %v514, 1.442695
    %v541 = vpow.pop %v540
    %v542 = vmul.f32 %v515, 1.442695
    %v543 = vpow.pop %v542
    %v544 = vmul.f32 %v516, 1.442695
    %v545 = vpow.pop %v544
    %v546 = vmul.f32 %v517, 1.442695
    %v547 = vpow.pop %v546
    %v548 = vmul.f32 %v518, 1.442695
    %v549 = vpow.pop %v548
    %v550 = vmul.f32 %v519, 1.442695
    %v551 = vpow.pop %v550
    %v552 = vmul.f32 %v520, 1.442695
    %v553 = vpow.pop %v552
    %v554 = vmul.f32 %v521, 1.442695
    %v555 = vpow.pop %v554
    %v556 = vmul.f32 %v522, 1.442695
    %v557 = vpow.pop %v556
    %v558 = vmul.f32 %v523, 1.442695
    %v559 = vpow.pop %v558
    %v560 = vmul.f32 %v524, 1.442695
    %v561 = vpow.pop %v560
    %v562 = vmul.f32 %v525, 1.442695
    %v563 = vpow.pop %v562
    %v564 = vmul.f32 %v526, 1.442695
    %v565 = vpow.pop %v564
    %v566 = vmul.f32 %v527, 1.442695
    %v567 = vpow.pop %v566
    %v568 = vmul.f32 %v528, 1.442695
    %v569 = vpow.pop %v568
    %v570 = vmul.f32 %v529, 1.442695
    %v571 = vpow.pop %v570
    %v572 = vmul.f32 %v530, 1.442695
    %v573 = vpow.pop %v572
    %v574 = vmul.f32 %v531, 1.442695
    %v575 = vpow.pop %v574
    %v576 = vmul.f32 %v532, 1.442695
    %v577 = vpow.pop %v576
    %v578 = vmul.f32 %v533, 1.442695
    %v579 = vpow.pop %v578
    %v580 = vmul.f32 %v534, 1.442695
    %v581 = vpow.pop %v580
    %v582 = vmul.f32 %v535, 1.442695
    %v583 = vpow.pop %v582
    %v584 = vadd.f32 %v537, 1.0
    %v585 = vadd.f32 %v539, 1.0
    %v586 = vadd.f32 %v541, 1.0
    %v587 = vadd.f32 %v543, 1.0
    %v588 = vadd.f32 %v545, 1.0
    %v589 = vadd.f32 %v547, 1.0
    %v590 = vadd.f32 %v549, 1.0
    %v591 = vadd.f32 %v551, 1.0
    %v592 = vadd.f32 %v553, 1.0
    %v593 = vadd.f32 %v555, 1.0
    %v594 = vadd.f32 %v557, 1.0
    %v595 = vadd.f32 %v559, 1.0
    %v596 = vadd.f32 %v561, 1.0
    %v597 = vadd.f32 %v563, 1.0
    %v598 = vadd.f32 %v565, 1.0
    %v599 = vadd.f32 %v567, 1.0
    %v600 = vadd.f32 %v569, 1.0
    %v601 = vadd.f32 %v571, 1.0
    %v602 = vadd.f32 %v573, 1.0
    %v603 = vadd.f32 %v575, 1.0
    %v604 = vadd.f32 %v577, 1.0
    %v605 = vadd.f32 %v579, 1.0
    %v606 = vadd.f32 %v581, 1.0
    %v607 = vadd.f32 %v583, 1.0
    %v608 = vrcp.pop %v584
    %v609 = vmul.f32 1.0, %v608
    %v610 = vrcp.pop %v585
    %v611 = vmul.f32 1.0, %v610
    %v612 = vrcp.pop %v586
    %v613 = vmul.f32 1.0, %v612
    %v614 = vrcp.pop %v587
    %v615 = vmul.f32 1.0, %v614
    %v616 = vrcp.pop %v588
    %v617 = vmul.f32 1.0, %v616
    %v618 = vrcp.pop %v589
    %v619 = vmul.f32 1.0, %v618
    %v620 = vrcp.pop %v590
    %v621 = vmul.f32 1.0, %v620
    %v622 = vrcp.pop %v591
    %v623 = vmul.f32 1.0, %v622
    %v624 = vrcp.pop %v592
    %v625 = vmul.f32 1.0, %v624
    %v626 = vrcp.pop %v593
    %v627 = vmul.f32 1.0, %v626
    %v628 = vrcp.pop %v594
    %v629 = vmul.f32 1.0, %v628
    %v630 = vrcp.pop %v595
    %v631 = vmul.f32 1.0, %v630
    %v632 = vrcp.pop %v596
    %v633 = vmul.f32 1.0, %v632
    %v634 = vrcp.pop %v597
    %v635 = vmul.f32 1.0, %v634
    %v636 = vrcp.pop %v598
    %v637 = vmul.f32 1.0, %v636
    %v638 = vrcp.pop %v599
    %v639 = vmul.f32 1.0, %v638
    %v640 = vrcp.pop %v600
    %v641 = vmul.f32 1.0, %v640
    %v642 = vrcp.pop %v601
    %v643 = vmul.f32 1.0, %v642
    %v644 = vrcp.pop %v602
    %v645 = vmul.f32 1.0, %v644
    %v646 = vrcp.pop %v603
    %v647 = vmul.f32 1.0, %v646
    %v648 = vrcp.pop %v604
    %v649 = vmul.f32 1.0, %v648
    %v650 = vrcp.pop %v605
    %v651 = vmul.f32 1.0, %v650
    %v652 = vrcp.pop %v606
    %v653 = vmul.f32 1.0, %v652
    %v654 = vrcp.pop %v607
    %v655 = vmul.f32 1.0, %v654
    %v656 = vmul.f32 %v430, %v609
    %v657 = vmul.f32 %v432, %v611
    %v658 = vmul.f32 %v434, %v613
    %v659 = vmul.f32 %v436, %v615
    %v660 = vmul.f32 %v440, %v617
    %v661 = vmul.f32 %v442, %v619
    %v662 = vmul.f32 %v444, %v621
    %v663 = vmul.f32 %v446, %v623
    %v664 = vmul.f32 %v450, %v625
    %v665 = vmul.f32 %v452, %v627
    %v666 = vmul.f32 %v454, %v629
    %v667 = vmul.f32 %v456, %v631
    %v668 = vmul.f32 %v460, %v633
    %v669 = vmul.f32 %v462, %v635
    %v670 = vmul.f32 %v464, %v637
    %v671 = vmul.f32 %v466, %v639
    %v672 = vmul.f32 %v470, %v641
    %v673 = vmul.f32 %v472, %v643
    %v674 = vmul.f32 %v474, %v645
    %v675 = vmul.f32 %v476, %v647
    %v676 = vmul.f32 %v480, %v649
    %v677 = vmul.f32 %v482, %v651
    %v678 = vmul.f32 %v484, %v653
    %v679 = vmul.f32 %v486, %v655
    %v680 = vpack.c.bf16 %v658, %v656
    %v681 = vpack.c.bf16 %v659, %v657
    %v682 = vpack.c.bf16 %v662, %v660
    %v683 = vpack.c.bf16 %v663, %v661
    %v684 = vpack.c.bf16 %v666, %v664
    %v685 = vpack.c.bf16 %v667, %v665
    %v686 = vpack.c.bf16 %v670, %v668
    %v687 = vpack.c.bf16 %v671, %v669
    %v688 = vpack.c.bf16 %v674, %v672
    %v689 = vpack.c.bf16 %v675, %v673
    %v690 = vpack.c.bf16 %v678, %v676
    %v691 = vpack.c.bf16 %v679, %v677
    %v704 = vunpack.c.l.b16 %v680
    %v705 = vunpack.c.l.b16 %v681
    %v706 = vunpack.c.h.b16 %v680
    %v707 = vunpack.c.h.b16 %v681
    %v708 = vunpack.c.l.b16 %v682
    %v709 = vunpack.c.l.b16 %v683
    %v710 = vunpack.c.h.b16 %v682
    %v711 = vunpack.c.h.b16 %v683
    %v712 = vunpack.c.l.b16 %v684
    %v713 = vunpack.c.l.b16 %v685
    %v714 = vunpack.c.h.b16 %v684
    %v715 = vunpack.c.h.b16 %v685
    %v716 = vunpack.c.l.b16 %v686
    %v717 = vunpack.c.l.b16 %v687
    %v718 = vunpack.c.h.b16 %v686
    %v719 = vunpack.c.h.b16 %v687
    %v720 = vunpack.c.l.b16 %v688
    %v721 = vunpack.c.l.b16 %v689
    %v722 = vunpack.c.h.b16 %v688
    %v723 = vunpack.c.h.b16 %v689
    %v724 = vunpack.c.l.b16 %v690
    %v725 = vunpack.c.l.b16 %v691
    %v726 = vunpack.c.h.b16 %v690
    %v727 = vunpack.c.h.b16 %v691
    %v728 = vpack.c.b16 %v705, %v704
    %v729 = vpack.c.b16 %v707, %v706
    %v730 = vpack.c.b16 %v709, %v708
    %v731 = vpack.c.b16 %v711, %v710
    %v732 = vpack.c.b16 %v713, %v712
    %v733 = vpack.c.b16 %v715, %v714
    %v734 = vpack.c.b16 %v717, %v716
    %v735 = vpack.c.b16 %v719, %v718
    %v736 = vpack.c.b16 %v721, %v720
    %v737 = vpack.c.b16 %v723, %v722
    %v738 = vpack.c.b16 %v725, %v724
    %v739 = vpack.c.b16 %v727, %v726
    %752 = vst [vmem:[#allocation11] sm:$0xff] %v728
    %753 = vst [vmem:[#allocation11 + $0x8] sm:$0xff] %v729
    %754 = vst [vmem:[#allocation11 + $0x10] sm:$0xff] %v730
    %755 = vst [vmem:[#allocation11 + $0x18] sm:$0xff] %v731
    %756 = vst [vmem:[#allocation11 + $0x20] sm:$0xff] %v732
    %757 = vst [vmem:[#allocation11 + $0x28] sm:$0xff] %v733
    %758 = vst [vmem:[#allocation11 + $0x30] sm:$0xff] %v734
    %759 = vst [vmem:[#allocation11 + $0x38] sm:$0xff] %v735
    %760 = vst [vmem:[#allocation11 + $0x40] sm:$0xff] %v736
    %761 = vst [vmem:[#allocation11 + $0x48] sm:$0xff] %v737
    %762 = vst [vmem:[#allocation11 + $0x50] sm:$0xff] %v738
    %763 = vst [vmem:[#allocation11 + $0x58] sm:$0xff] %v739
    // Predicated region
    $region42: #{custom_clip_matrix_forward.41} parent=1 // pred_check
      _
    $region43: #{custom_clip_matrix_forward.41} parent=1 // pred_check_branch
      %765 = sbr.rel (0) target = $region45
    $region44: #{custom_clip_matrix_forward.41} parent=1 // pred_region
      %s767 = ssub.s32 1536, 1536
      %768 = vsyncadd [#allocation4], %s767
      %s769 = sshll.u32 [#allocation11], 4
      %s770 = int_to_ptr.vmem [resolvable:$true] %s769
      %775 = dma.vmem_to_hbm [thread:$0]  %s770, 1536, %s5, [#allocation4], 128, 128, 8
    $region45: #{custom_clip_matrix_forward.41} parent=1 // pred_fallthru
      _
    // Predicated region
    $region46: #{custom_clip_matrix_forward.41} parent=1 // pred_check
      _
    $region47: #{custom_clip_matrix_forward.41} parent=1 // pred_check_branch
      %777 = sbr.rel (0) target = $region49
    $region48: #{custom_clip_matrix_forward.41} parent=1 // pred_region
      %778 = dma.done [#allocation4], 1536
    $region49: #{custom_clip_matrix_forward.41} parent=1 // pred_fallthru
      _
    %779 = vsyncpa [#allocation3], 1
    %780 = vsyncpa [#allocation6], 1
    %781 = vsyncpa [#allocation9], 1
    %782 = vsyncpa [#allocation4], 1

// kernel: custom_clip_matrix_forward.39
$region0: #{custom_clip_matrix_forward.39}
  #allocation0 [shape = 'u32[]', space=smem, size = 0x4, offset = 0x4, fixed_abs, tag = 'smem constant byte address 0x4 - core index']
  #allocation1 [shape = 'u32[144,128]{1,0:T(1,128)}', space=vmem, size = 0x12000, scoped, tag = 'internal scratch']
  %s0 = inlined_call_operand.hbm [shape: bf16[6,16,192], index: 0, kind: input, shape index: {}]
  %s1 = inlined_call_operand.hbm [shape: bf16[6,16,64], index: 1, kind: output, shape index: {}]
  %s2 = sld [smem:[#allocation0]]
  $region41: #{custom_clip_matrix_forward.39} parent=0
    _
  %s4 = ssub.s32 1, %s2
  %s5 = scalar_select 0, %s4, %s2
  $region1: #{custom_clip_matrix_forward.39} parent=0
    #allocation2 [shape = 'u8[32768]{0}', space=vmem, size = 0x8000, scoped, tag = 'input window, operand 0']
    #allocation3 [shape = 's32[2]{0}', space=sflag, size = 0x8, scoped, tag = 'scoped memory for custom_clip_matrix_forward.39']
    #allocation4 [shape = 's32[2]{0}', space=sflag, size = 0x8, scoped, tag = 'scoped memory for custom_clip_matrix_forward.39']
    #allocation5 [shape = 'u8[16384]{0}', space=vmem, size = 0x4000, scoped, tag = 'output window, operand 0']
    %6 = vsyncpa [#allocation3], 0
    %s7 = scalar_lea.sflag [#allocation3], 1
    %8 = vsyncpa %s7, 0
    %9 = vsyncpa [#allocation4], 0
    %s10 = scalar_lea.sflag [#allocation4], 1
    %11 = vsyncpa %s10, 0
    loop: start=0, step=1, limit=5
    $region2: #{custom_clip_matrix_forward.39} parent=1 // loop_pre_header
      _
    $region3: #{custom_clip_matrix_forward.39} parent=1 // loop_header
      %s13 = sphi 0, %s17
      %p14 = scmp.ge.s32.totalorder %s13, 5
      %s23 = sphi 0, %s25
      %s26 = sphi 0, %s23
      %s27 = sphi 0, %s26
      %s43 = sphi 0, %s27
      %s49 = sphi 0, %s51
      %s52 = sphi 0, %s49
      %s53 = sphi 0, %s52
      %s69 = sphi 0, %s53
    $region4: #{custom_clip_matrix_forward.39} parent=1 // loop_header_branch
      %16 = sbr.rel (%p14) target = $region8
    $region5: #{custom_clip_matrix_forward.39} parent=1 // loop_body
      %s18 = ssub.s32 %s13, 1
      %s19 = ssub.s32 %s13, 2
      %s20 = sadd.s32 %s13, 1
      %s21 = ssub.s32 %s13, %s20
      %p22 = scmp.eq.s32.totalorder %s21, 0
      %s24 = sadd.s32 %s23, 1
      %s25 = scalar_select %p22, %s23, %s24
      %p28 = pneg %p22
      %p29 = scmp.eq.s32.totalorder %s13, 2
      %p30 = por %p28, %p29
      %p31 = scmp.ne.s32.totalorder %s23, %s26
      %p32 = scmp.eq.s32.totalorder %s13, 0
      %p33 = por %p31, %p32
      %p34 = scmp.ne.s32.totalorder %s23, %s26
      %p35 = scmp.eq.s32.totalorder %s18, 2
      %p36 = por %p34, %p35
      %p37 = scmp.ne.s32.totalorder %s26, %s27
      %p38 = scmp.eq.s32.totalorder %s18, 0
      %p39 = por %p37, %p38
      %p40 = scmp.ne.s32.totalorder %s26, %s27
      %p41 = scmp.eq.s32.totalorder %s19, 2
      %p42 = por %p40, %p41
      %p44 = scmp.ne.s32.totalorder %s27, %s43
      %p45 = scmp.eq.s32.totalorder %s19, 0
      %p46 = por %p44, %p45
      %s47 = ssub.s32 %s13, %s20
      %p48 = scmp.eq.s32.totalorder %s47, 0
      %s50 = sadd.s32 %s49, 1
      %s51 = scalar_select %p48, %s49, %s50
      %p54 = pneg %p48
      %p55 = scmp.eq.s32.totalorder %s13, 2
      %p56 = por %p54, %p55
      %p57 = scmp.ne.s32.totalorder %s49, %s52
      %p58 = scmp.eq.s32.totalorder %s13, 0
      %p59 = por %p57, %p58
      %p60 = scmp.ne.s32.totalorder %s49, %s52
      %p61 = scmp.eq.s32.totalorder %s18, 2
      %p62 = por %p60, %p61
      %p63 = scmp.ne.s32.totalorder %s52, %s53
      %p64 = scmp.eq.s32.totalorder %s18, 0
      %p65 = por %p63, %p64
      %p66 = scmp.ne.s32.totalorder %s52, %s53
      %p67 = scmp.eq.s32.totalorder %s19, 2
      %p68 = por %p66, %p67
      %p70 = scmp.ne.s32.totalorder %s53, %s69
      %p71 = scmp.eq.s32.totalorder %s19, 0
      %p72 = por %p70, %p71
      %p73 = scmp.le.s32.totalorder 1, %s13
      %p74 = scmp.lt.s32.totalorder %s13, 4
      %p75 = pnand %p73, %p74
      %p76 = pneg %p75
      // Predicated region
      $region9: #{custom_clip_matrix_forward.39} parent=5 // pred_check
        _
      $region10: #{custom_clip_matrix_forward.39} parent=5 // pred_check_branch
        %78 = sbr.rel (%p75) target = $region12
      $region11: #{custom_clip_matrix_forward.39} parent=5 // pred_region
        %s79 = ssub.s32 %s13, 1
      $region12: #{custom_clip_matrix_forward.39} parent=5 // pred_fallthru
        _
      %p80 = scmp.lt.s32.totalorder %s13, 3
      // Predicated region
      $region13: #{custom_clip_matrix_forward.39} parent=5 // pred_check
        %p81 = pneg %p80
      $region14: #{custom_clip_matrix_forward.39} parent=5 // pred_check_branch
        %83 = sbr.rel (%p81) target = $region16
      $region15: #{custom_clip_matrix_forward.39} parent=5 // pred_region
        // Predicated region
        $region17: #{custom_clip_matrix_forward.39} parent=15 // pred_check
          %p84 = pneg %p33
        $region18: #{custom_clip_matrix_forward.39} parent=15 // pred_check_branch
          %86 = sbr.rel (%p84) target = $region20
        $region19: #{custom_clip_matrix_forward.39} parent=15 // pred_region
          %s87 = sand.u32 %s23, 1
          %s88 = scalar_lea.sflag [#allocation3], %s87
          %s89 = sand.u32 %s23, 1
          %s90 = smul.addr %s89, 32
          %s91 = scalar_lea.vmem [#allocation2], %s90
          %s92 = smul.u32 2, %s13
          %s94 = ssub.s32 512, 512
          %95 = vsyncadd %s88, %s94
          %s96 = smul.addr %s92, 4
          %s97 = smul.addr %s96, 64
          %s98 = scalar_lea.hbm %s0, %s97
          %s99 = sshll.u32 %s91, 4
          %s100 = int_to_ptr.vmem [resolvable:$true] %s99
          %105 = dma.hbm_to_vmem [thread:$0]  %s98, 512, %s100, %s88, 128, 128, 8
        $region20: #{custom_clip_matrix_forward.39} parent=15 // pred_fallthru
          _
      $region16: #{custom_clip_matrix_forward.39} parent=5 // pred_fallthru
        _
      %p106 = scmp.le.s32.totalorder 1, %s13
      %p107 = scmp.lt.s32.totalorder %s13, 4
      %p108 = pnand %p106, %p107
      %p109 = pneg %p108
      // Predicated region
      $region21: #{custom_clip_matrix_forward.39} parent=5 // pred_check
        _
      $region22: #{custom_clip_matrix_forward.39} parent=5 // pred_check_branch
        %111 = sbr.rel (%p108) target = $region24
      $region23: #{custom_clip_matrix_forward.39} parent=5 // pred_region
        %s112 = ssub.s32 %s13, 1
        %s113 = sand.u32 %s26, 1
        %s114 = scalar_lea.sflag [#allocation3], %s113
        %s115 = sand.u32 %s26, 1
        %s116 = smul.addr %s115, 32
        %s117 = scalar_lea.vmem [#allocation2], %s116
        // Predicated region
        $region25: #{custom_clip_matrix_forward.39} parent=23 // pred_check
          %p118 = pneg %p39
        $region26: #{custom_clip_matrix_forward.39} parent=23 // pred_check_branch
          %120 = sbr.rel (%p118) target = $region28
        $region27: #{custom_clip_matrix_forward.39} parent=23 // pred_region
          %121 = dma.done %s114, 512
        $region28: #{custom_clip_matrix_forward.39} parent=23 // pred_fallthru
          _
        %s122 = sand.u32 %s26, 1
        %s123 = scalar_lea.sflag [#allocation3], %s122
        %s124 = sand.u32 %s26, 1
        %s125 = smul.addr %s124, 32
        %s126 = scalar_lea.vmem [#allocation2], %s125
        %p127 = pneg %p39
        %p128 = pneg %p36
        %p129 = pneg %p65
        %p130 = pneg %p62
        %s131 = sand.u32 %s52, 1
        %s132 = scalar_lea.sflag [#allocation4], %s131
        %s133 = sand.u32 %s52, 1
        %s134 = smul.addr %s133, 16
        %s135 = scalar_lea.vmem [#allocation5], %s134
        %s136 = smul.u32 2, %s18
        %s137 = smul.u32 2, %s18
        %v140 = vlaneseq
        %v141 = vshrl.u32 %v140, 7
        %v142 = vadd.s32 %v141, 8
        %v143 = vlaneseq
        %v144 = vand.u32 %v143, 127
        %vm145 = vcmp.le.s32.totalorder %v144, %v141
        %vm146 = vcmp.le.s32.totalorder %v144, %v142
        %v147 = vld [vmem:[%s117] sm:$0xf]
        %v148 = vld [vmem:[%s117 + $0x8] sm:$0xf]
        %v149 = vld [vmem:[%s117 + $0x10] sm:$0xf]
        %v150 = vld [vmem:[%s117 + $0x18] sm:$0xf]
        %v151 = vmul.bf16 %v147, 1048592000
        %v152 = vmul.bf16 %v148, 1048592000
        %v153 = vmul.bf16 %v149, 1048592000
        %v154 = vmul.bf16 %v150, 1048592000
        %v155 = vld [vmem:[%s117 + $0x4] sm:$0xf]
        %v156 = vld [vmem:[%s117 + $0xc] sm:$0xf]
        %v157 = vld [vmem:[%s117 + $0x14] sm:$0xf]
        %v158 = vld [vmem:[%s117 + $0x1c] sm:$0xf]
        %v161 = vunpack.c.l.b16 %v151
        %v162 = vunpack.c.l.b16 %v152
        %v163 = vpack.c.b16 %v162, %v161
        %v166 = vunpack.c.l.b16 %v147
        %v167 = vunpack.c.l.b16 %v148
        %v168 = vpack.c.b16 %v167, %v166
        %169 = vrot.lane.b32.xlu0 %v168, 64
        %v170 = vpop.permute.xlu0 %169
        %vm171 = vcmask 130048
        %v173 = vsel %vm171, %v163, 0
        %v176 = vsel %vm171, %v170, 0
        %178 = vmatprep.subr.bf16.mxu0 0
        %179 = vmatpush1.bf16.xpose.msra.mxu0 %v176
        %180 = vmatprep.subr.bf16.mxu0 0
        %181 = vmatpush1.bf16.xpose.msra.mxu0 0
        %182 = vmatprep.subr.bf16.mxu0 0
        %183 = vmatpush1.bf16.xpose.msra.mxu0 0
        %184 = vmatprep.subr.bf16.mxu0 0
        %185 = vmatpush1.bf16.xpose.msra.mxu0 0
        %186 = vmatprep.subr.bf16.mxu0 0
        %187 = vmatpush1.bf16.xpose.msra.mxu0 0
        %188 = vmatprep.subr.bf16.mxu0 0
        %189 = vmatpush1.bf16.xpose.msra.mxu0 0
        %190 = vmatprep.subr.bf16.mxu0 0
        %191 = vmatpush1.bf16.xpose.msra.mxu0 0
        %192 = vmatprep.subr.bf16.mxu0 0
        %193 = vmatpush1.bf16.xpose.msra.mxu0 0
        %194 = vmatprep.subr.bf16.mxu0 0
        %195 = vmatpush1.bf16.xpose.msra.mxu0 0
        %196 = vmatprep.subr.bf16.mxu0 0
        %197 = vmatpush1.bf16.xpose.msra.mxu0 0
        %198 = vmatprep.subr.bf16.mxu0 0
        %199 = vmatpush1.bf16.xpose.msra.mxu0 0
        %200 = vmatprep.subr.bf16.mxu0 0
        %201 = vmatpush1.bf16.xpose.msra.mxu0 0
        %202 = vmatprep.subr.bf16.mxu0 0
        %203 = vmatpush1.bf16.xpose.msra.mxu0 0
        %204 = vmatprep.subr.bf16.mxu0 0
        %205 = vmatpush1.bf16.xpose.msra.mxu0 0
        %206 = vmatprep.subr.bf16.mxu0 0
        %207 = vmatpush1.bf16.xpose.msra.mxu0 0
        %208 = vmatprep.subr.bf16.mxu0 0
        %209 = vmatpush1.bf16.xpose.msra.mxu0 0
        %210 = vmatprep.mubr.bf16.mxu0 0
        %211 = vmatmul.mubr.bf16.gmra.mrb[0].mxu0 %v173
        %v212 = vpop.f32.mrb[0].mxu0
        %v213 = vadd.f32 0.0, %v212
        %v214 = vpop.f32.mrb[0].mxu0
        %v215 = vpop.f32.mrb[0].mxu0
        %v216 = vadd.f32 0.0, %v215
        %v217 = vpop.f32.mrb[0].mxu0
        %218 = vdwg.mxu0
        %v221 = vunpack.c.l.b16 %v153
        %v222 = vunpack.c.l.b16 %v154
        %v223 = vpack.c.b16 %v222, %v221
        %v226 = vunpack.c.l.b16 %v149
        %v227 = vunpack.c.l.b16 %v150
        %v228 = vpack.c.b16 %v227, %v226
        %229 = vrot.lane.b32.xlu0 %v228, 64
        %v230 = vpop.permute.xlu0 %229
        %v232 = vsel %vm171, %v223, 0
        %v235 = vsel %vm171, %v230, 0
        %237 = vmatprep.subr.bf16.mxu0 0
        %238 = vmatpush1.bf16.xpose.msra.mxu0 %v235
        %239 = vmatprep.subr.bf16.mxu0 0
        %240 = vmatpush1.bf16.xpose.msra.mxu0 0
        %241 = vmatprep.subr.bf16.mxu0 0
        %242 = vmatpush1.bf16.xpose.msra.mxu0 0
        %243 = vmatprep.subr.bf16.mxu0 0
        %244 = vmatpush1.bf16.xpose.msra.mxu0 0
        %245 = vmatprep.subr.bf16.mxu0 0
        %246 = vmatpush1.bf16.xpose.msra.mxu0 0
        %247 = vmatprep.subr.bf16.mxu0 0
        %248 = vmatpush1.bf16.xpose.msra.mxu0 0
        %249 = vmatprep.subr.bf16.mxu0 0
        %250 = vmatpush1.bf16.xpose.msra.mxu0 0
        %251 = vmatprep.subr.bf16.mxu0 0
        %252 = vmatpush1.bf16.xpose.msra.mxu0 0
        %253 = vmatprep.subr.bf16.mxu0 0
        %254 = vmatpush1.bf16.xpose.msra.mxu0 0
        %255 = vmatprep.subr.bf16.mxu0 0
        %256 = vmatpush1.bf16.xpose.msra.mxu0 0
        %257 = vmatprep.subr.bf16.mxu0 0
        %258 = vmatpush1.bf16.xpose.msra.mxu0 0
        %259 = vmatprep.subr.bf16.mxu0 0
        %260 = vmatpush1.bf16.xpose.msra.mxu0 0
        %261 = vmatprep.subr.bf16.mxu0 0
        %262 = vmatpush1.bf16.xpose.msra.mxu0 0
        %263 = vmatprep.subr.bf16.mxu0 0
        %264 = vmatpush1.bf16.xpose.msra.mxu0 0
        %265 = vmatprep.subr.bf16.mxu0 0
        %266 = vmatpush1.bf16.xpose.msra.mxu0 0
        %267 = vmatprep.subr.bf16.mxu0 0
        %268 = vmatpush1.bf16.xpose.msra.mxu0 0
        %269 = vmatprep.mubr.bf16.mxu0 0
        %270 = vmatmul.mubr.bf16.gmra.mrb[0].mxu0 %v232
        %v271 = vpop.f32.mrb[0].mxu0
        %v272 = vadd.f32 0.0, %v271
        %v273 = vpop.f32.mrb[0].mxu0
        %v274 = vpop.f32.mrb[0].mxu0
        %v275 = vadd.f32 0.0, %v274
        %v276 = vpop.f32.mrb[0].mxu0
        %277 = vdwg.mxu0
        %v278 = vsel %vm145, 1, 0
        %v279 = vsel %vm146, 1, 0
        %vm280 = vcmp.eq.s32.totalorder %v278, 1
        %vm281 = vcmp.eq.s32.totalorder %v279, 1
        %v282 = vsel %vm280, %v213, -1e+30
        %v283 = vsel %vm281, %v216, -1e+30
        %v284 = vsel %vm280, %v272, -1e+30
        %v285 = vsel %vm281, %v275, -1e+30
        %v286 = vsel %vm171, %v282, -inf
        %287 = vmax.xlane.f32.xlu0 %v286
        %v288 = vpop.xlane.xlu0 %287
        %v289 = vsel %vm171, %v283, -inf
        %290 = vmax.xlane.f32.xlu0 %v289
        %v291 = vpop.xlane.xlu0 %290
        %v292 = vsel %vm171, %v284, -inf
        %293 = vmax.xlane.f32.xlu0 %v292
        %v294 = vpop.xlane.xlu0 %293
        %v295 = vsel %vm171, %v285, -inf
        %296 = vmax.xlane.f32.xlu0 %v295
        %v297 = vpop.xlane.xlu0 %296
        %v298 = vsub.f32 %v282, %v288
        %v299 = vsub.f32 %v283, %v291
        %v300 = vsub.f32 %v284, %v294
        %v301 = vsub.f32 %v285, %v297
        %v302 = vmul.f32 %v298, 1.442695
        %v303 = vpow.pop %v302
        %v304 = vmul.f32 %v299, 1.442695
        %v305 = vpow.pop %v304
        %v306 = vmul.f32 %v300, 1.442695
        %v307 = vpow.pop %v306
        %v308 = vmul.f32 %v301, 1.442695
        %v309 = vpow.pop %v308
        %v310 = vsel %vm171, %v303, 0.0
        %311 = vadd.xlane.f32.xlu0 %v310
        %v312 = vpop.xlane.xlu0 %311
        %v313 = vsel %vm171, %v305, 0.0
        %314 = vadd.xlane.f32.xlu0 %v313
        %v315 = vpop.xlane.xlu0 %314
        %v316 = vsel %vm171, %v307, 0.0
        %317 = vadd.xlane.f32.xlu0 %v316
        %v318 = vpop.xlane.xlu0 %317
        %v319 = vsel %vm171, %v309, 0.0
        %320 = vadd.xlane.f32.xlu0 %v319
        %v321 = vpop.xlane.xlu0 %320
        %v322 = vrcp.pop %v312
        %v323 = vrcp.pop %v315
        %v324 = vrcp.pop %v318
        %v325 = vrcp.pop %v321
        %v326 = vmul.f32 %v303, %v322
        %v327 = vmul.f32 %v305, %v323
        %v328 = vmul.f32 %v307, %v324
        %v329 = vmul.f32 %v309, %v325
        %v330 = vpack.c.bf16 %v327, %v326
        %v331 = vpack.c.bf16 %v329, %v328
        %v334 = vunpack.c.l.b16 %v155
        %v335 = vunpack.c.l.b16 %v156
        %v336 = vpack.c.b16 %v335, %v334
        %v339 = vsel %vm171, %v330, 0
        %341 = vmatprep.subr.bf16.mxu0 0
        %342 = vmatpush1.bf16.msra.mxu0 %v336
        %343 = vmatprep.subr.bf16.mxu0 0
        %344 = vmatpush1.bf16.msra.mxu0 0
        %345 = vmatprep.subr.bf16.mxu0 0
        %346 = vmatpush1.bf16.msra.mxu0 0
        %347 = vmatprep.subr.bf16.mxu0 0
        %348 = vmatpush1.bf16.msra.mxu0 0
        %349 = vmatprep.subr.bf16.mxu0 0
        %350 = vmatpush1.bf16.msra.mxu0 0
        %351 = vmatprep.subr.bf16.mxu0 0
        %352 = vmatpush1.bf16.msra.mxu0 0
        %353 = vmatprep.subr.bf16.mxu0 0
        %354 = vmatpush1.bf16.msra.mxu0 0
        %355 = vmatprep.subr.bf16.mxu0 0
        %356 = vmatpush1.bf16.msra.mxu0 0
        %357 = vmatprep.subr.bf16.mxu0 0
        %358 = vmatpush1.bf16.msra.mxu0 0
        %359 = vmatprep.subr.bf16.mxu0 0
        %360 = vmatpush1.bf16.msra.mxu0 0
        %361 = vmatprep.subr.bf16.mxu0 0
        %362 = vmatpush1.bf16.msra.mxu0 0
        %363 = vmatprep.subr.bf16.mxu0 0
        %364 = vmatpush1.bf16.msra.mxu0 0
        %365 = vmatprep.subr.bf16.mxu0 0
        %366 = vmatpush1.bf16.msra.mxu0 0
        %367 = vmatprep.subr.bf16.mxu0 0
        %368 = vmatpush1.bf16.msra.mxu0 0
        %369 = vmatprep.subr.bf16.mxu0 0
        %370 = vmatpush1.bf16.msra.mxu0 0
        %371 = vmatprep.subr.bf16.mxu0 0
        %372 = vmatpush1.bf16.msra.mxu0 0
        %373 = vmatprep.mubr.bf16.mxu0 0
        %374 = vmatmul.mubr.bf16.gmra.mrb[0].mxu0 %v339
        %v375 = vpop.f32.mrb[0].mxu0
        %v376 = vadd.f32 0.0, %v375
        %v377 = vpop.f32.mrb[0].mxu0
        %v378 = vpop.f32.mrb[0].mxu0
        %v379 = vadd.f32 0.0, %v378
        %v380 = vpop.f32.mrb[0].mxu0
        %381 = vdwg.mxu0
        %v384 = vunpack.c.l.b16 %v157
        %v385 = vunpack.c.l.b16 %v158
        %v386 = vpack.c.b16 %v385, %v384
        %v389 = vsel %vm171, %v331, 0
        %391 = vmatprep.subr.bf16.mxu0 0
        %392 = vmatpush1.bf16.msra.mxu0 %v386
        %393 = vmatprep.subr.bf16.mxu0 0
        %394 = vmatpush1.bf16.msra.mxu0 0
        %395 = vmatprep.subr.bf16.mxu0 0
        %396 = vmatpush1.bf16.msra.mxu0 0
        %397 = vmatprep.subr.bf16.mxu0 0
        %398 = vmatpush1.bf16.msra.mxu0 0
        %399 = vmatprep.subr.bf16.mxu0 0
        %400 = vmatpush1.bf16.msra.mxu0 0
        %401 = vmatprep.subr.bf16.mxu0 0
        %402 = vmatpush1.bf16.msra.mxu0 0
        %403 = vmatprep.subr.bf16.mxu0 0
        %404 = vmatpush1.bf16.msra.mxu0 0
        %405 = vmatprep.subr.bf16.mxu0 0
        %406 = vmatpush1.bf16.msra.mxu0 0
        %407 = vmatprep.subr.bf16.mxu0 0
        %408 = vmatpush1.bf16.msra.mxu0 0
        %409 = vmatprep.subr.bf16.mxu0 0
        %410 = vmatpush1.bf16.msra.mxu0 0
        %411 = vmatprep.subr.bf16.mxu0 0
        %412 = vmatpush1.bf16.msra.mxu0 0
        %413 = vmatprep.subr.bf16.mxu0 0
        %414 = vmatpush1.bf16.msra.mxu0 0
        %415 = vmatprep.subr.bf16.mxu0 0
        %416 = vmatpush1.bf16.msra.mxu0 0
        %417 = vmatprep.subr.bf16.mxu0 0
        %418 = vmatpush1.bf16.msra.mxu0 0
        %419 = vmatprep.subr.bf16.mxu0 0
        %420 = vmatpush1.bf16.msra.mxu0 0
        %421 = vmatprep.subr.bf16.mxu0 0
        %422 = vmatpush1.bf16.msra.mxu0 0
        %423 = vmatprep.mubr.bf16.mxu0 0
        %424 = vmatmul.mubr.bf16.gmra.mrb[0].mxu0 %v389
        %v425 = vpop.f32.mrb[0].mxu0
        %v426 = vadd.f32 0.0, %v425
        %v427 = vpop.f32.mrb[0].mxu0
        %v428 = vpop.f32.mrb[0].mxu0
        %v429 = vadd.f32 0.0, %v428
        %v430 = vpop.f32.mrb[0].mxu0
        %431 = vdwg.mxu0
        %v432 = vpack.c.bf16 %v379, %v376
        %v433 = vpack.c.bf16 %v429, %v426
        %v436 = vunpack.c.l.b16 %v432
        %v437 = vunpack.c.h.b16 %v432
        %v438 = vunpack.c.l.b16 %v433
        %v439 = vunpack.c.h.b16 %v433
        %v440 = vpack.c.b16 %v436, %v436
        %v441 = vpack.c.b16 %v437, %v437
        %v442 = vpack.c.b16 %v438, %v438
        %v443 = vpack.c.b16 %v439, %v439
        %vm448 = vcmask 125952
        %449 = vst.msk [vmem:[%s135] sm:$0xf] %vm448, %v440
        %450 = vst.msk [vmem:[%s135 + $0x4] sm:$0xf] %vm448, %v441
        %451 = vst.msk [vmem:[%s135 + $0x8] sm:$0xf] %vm448, %v442
        %452 = vst.msk [vmem:[%s135 + $0xc] sm:$0xf] %vm448, %v443
        %v453 = vld [vmem:[%s117] sm:$0xf]
        %v454 = vld [vmem:[%s117 + $0x8] sm:$0xf]
        %v455 = vld [vmem:[%s117 + $0x10] sm:$0xf]
        %v456 = vld [vmem:[%s117 + $0x18] sm:$0xf]
        %v457 = vmul.bf16 %v453, 1048592000
        %v458 = vmul.bf16 %v454, 1048592000
        %v459 = vmul.bf16 %v455, 1048592000
        %v460 = vmul.bf16 %v456, 1048592000
        %v461 = vld [vmem:[%s117 + $0x4] sm:$0xf]
        %v462 = vld [vmem:[%s117 + $0xc] sm:$0xf]
        %v463 = vld [vmem:[%s117 + $0x14] sm:$0xf]
        %v464 = vld [vmem:[%s117 + $0x1c] sm:$0xf]
        %v467 = vunpack.c.l.b16 %v457
        %v468 = vunpack.c.l.b16 %v458
        %v469 = vpack.c.b16 %v468, %v467
        %470 = vrot.lane.b32.xlu0 %v469, 112
        %v471 = vpop.permute.xlu0 %470
        %v474 = vunpack.c.l.b16 %v453
        %v475 = vunpack.c.l.b16 %v454
        %v476 = vpack.c.b16 %v475, %v474
        %477 = vrot.lane.b32.xlu0 %v476, 48
        %v478 = vpop.permute.xlu0 %477
        %v480 = vsel %vm171, %v471, 0
        %v483 = vsel %vm171, %v478, 0
        %485 = vmatprep.subr.bf16.mxu0 0
        %486 = vmatpush1.bf16.xpose.msra.mxu0 %v483
        %487 = vmatprep.subr.bf16.mxu0 0
        %488 = vmatpush1.bf16.xpose.msra.mxu0 0
        %489 = vmatprep.subr.bf16.mxu0 0
        %490 = vmatpush1.bf16.xpose.msra.mxu0 0
        %491 = vmatprep.subr.bf16.mxu0 0
        %492 = vmatpush1.bf16.xpose.msra.mxu0 0
        %493 = vmatprep.subr.bf16.mxu0 0
        %494 = vmatpush1.bf16.xpose.msra.mxu0 0
        %495 = vmatprep.subr.bf16.mxu0 0
        %496 = vmatpush1.bf16.xpose.msra.mxu0 0
        %497 = vmatprep.subr.bf16.mxu0 0
        %498 = vmatpush1.bf16.xpose.msra.mxu0 0
        %499 = vmatprep.subr.bf16.mxu0 0
        %500 = vmatpush1.bf16.xpose.msra.mxu0 0
        %501 = vmatprep.subr.bf16.mxu0 0
        %502 = vmatpush1.bf16.xpose.msra.mxu0 0
        %503 = vmatprep.subr.bf16.mxu0 0
        %504 = vmatpush1.bf16.xpose.msra.mxu0 0
        %505 = vmatprep.subr.bf16.mxu0 0
        %506 = vmatpush1.bf16.xpose.msra.mxu0 0
        %507 = vmatprep.subr.bf16.mxu0 0
        %508 = vmatpush1.bf16.xpose.msra.mxu0 0
        %509 = vmatprep.subr.bf16.mxu0 0
        %510 = vmatpush1.bf16.xpose.msra.mxu0 0
        %511 = vmatprep.subr.bf16.mxu0 0
        %512 = vmatpush1.bf16.xpose.msra.mxu0 0
        %513 = vmatprep.subr.bf16.mxu0 0
        %514 = vmatpush1.bf16.xpose.msra.mxu0 0
        %515 = vmatprep.subr.bf16.mxu0 0
        %516 = vmatpush1.bf16.xpose.msra.mxu0 0
        %517 = vmatprep.mubr.bf16.mxu0 0
        %518 = vmatmul.mubr.bf16.gmra.mrb[0].mxu0 %v480
        %v519 = vpop.f32.mrb[0].mxu0
        %v520 = vadd.f32 0.0, %v519
        %v521 = vpop.f32.mrb[0].mxu0
        %v522 = vpop.f32.mrb[0].mxu0
        %v523 = vadd.f32 0.0, %v522
        %v524 = vpop.f32.mrb[0].mxu0
        %525 = vdwg.mxu0
        %v528 = vunpack.c.l.b16 %v459
        %v529 = vunpack.c.l.b16 %v460
        %v530 = vpack.c.b16 %v529, %v528
        %531 = vrot.lane.b32.xlu0 %v530, 112
        %v532 = vpop.permute.xlu0 %531
        %v535 = vunpack.c.l.b16 %v455
        %v536 = vunpack.c.l.b16 %v456
        %v537 = vpack.c.b16 %v536, %v535
        %538 = vrot.lane.b32.xlu0 %v537, 48
        %v539 = vpop.permute.xlu0 %538
        %v541 = vsel %vm171, %v532, 0
        %v544 = vsel %vm171, %v539, 0
        %546 = vmatprep.subr.bf16.mxu0 0
        %547 = vmatpush1.bf16.xpose.msra.mxu0 %v544
        %548 = vmatprep.subr.bf16.mxu0 0
        %549 = vmatpush1.bf16.xpose.msra.mxu0 0
        %550 = vmatprep.subr.bf16.mxu0 0
        %551 = vmatpush1.bf16.xpose.msra.mxu0 0
        %552 = vmatprep.subr.bf16.mxu0 0
        %553 = vmatpush1.bf16.xpose.msra.mxu0 0
        %554 = vmatprep.subr.bf16.mxu0 0
        %555 = vmatpush1.bf16.xpose.msra.mxu0 0
        %556 = vmatprep.subr.bf16.mxu0 0
        %557 = vmatpush1.bf16.xpose.msra.mxu0 0
        %558 = vmatprep.subr.bf16.mxu0 0
        %559 = vmatpush1.bf16.xpose.msra.mxu0 0
        %560 = vmatprep.subr.bf16.mxu0 0
        %561 = vmatpush1.bf16.xpose.msra.mxu0 0
        %562 = vmatprep.subr.bf16.mxu0 0
        %563 = vmatpush1.bf16.xpose.msra.mxu0 0
        %564 = vmatprep.subr.bf16.mxu0 0
        %565 = vmatpush1.bf16.xpose.msra.mxu0 0
        %566 = vmatprep.subr.bf16.mxu0 0
        %567 = vmatpush1.bf16.xpose.msra.mxu0 0
        %568 = vmatprep.subr.bf16.mxu0 0
        %569 = vmatpush1.bf16.xpose.msra.mxu0 0
        %570 = vmatprep.subr.bf16.mxu0 0
        %571 = vmatpush1.bf16.xpose.msra.mxu0 0
        %572 = vmatprep.subr.bf16.mxu0 0
        %573 = vmatpush1.bf16.xpose.msra.mxu0 0
        %574 = vmatprep.subr.bf16.mxu0 0
        %575 = vmatpush1.bf16.xpose.msra.mxu0 0
        %576 = vmatprep.subr.bf16.mxu0 0
        %577 = vmatpush1.bf16.xpose.msra.mxu0 0
        %578 = vmatprep.mubr.bf16.mxu0 0
        %579 = vmatmul.mubr.bf16.gmra.mrb[0].mxu0 %v541
        %v580 = vpop.f32.mrb[0].mxu0
        %v581 = vadd.f32 0.0, %v580
        %v582 = vpop.f32.mrb[0].mxu0
        %v583 = vpop.f32.mrb[0].mxu0
        %v584 = vadd.f32 0.0, %v583
        %v585 = vpop.f32.mrb[0].mxu0
        %586 = vdwg.mxu0
        %v587 = vsel %vm280, %v520, -1e+30
        %v588 = vsel %vm281, %v523, -1e+30
        %v589 = vsel %vm280, %v581, -1e+30
        %v590 = vsel %vm281, %v584, -1e+30
        %v591 = vsel %vm171, %v587, -inf
        %592 = vmax.xlane.f32.xlu0 %v591
        %v593 = vpop.xlane.xlu0 %592
        %v594 = vsel %vm171, %v588, -inf
        %595 = vmax.xlane.f32.xlu0 %v594
        %v596 = vpop.xlane.xlu0 %595
        %v597 = vsel %vm171, %v589, -inf
        %598 = vmax.xlane.f32.xlu0 %v597
        %v599 = vpop.xlane.xlu0 %598
        %v600 = vsel %vm171, %v590, -inf
        %601 = vmax.xlane.f32.xlu0 %v600
        %v602 = vpop.xlane.xlu0 %601
        %v603 = vsub.f32 %v587, %v593
        %v604 = vsub.f32 %v588, %v596
        %v605 = vsub.f32 %v589, %v599
        %v606 = vsub.f32 %v590, %v602
        %v607 = vmul.f32 %v603, 1.442695
        %v608 = vpow.pop %v607
        %v609 = vmul.f32 %v604, 1.442695
        %v610 = vpow.pop %v609
        %v611 = vmul.f32 %v605, 1.442695
        %v612 = vpow.pop %v611
        %v613 = vmul.f32 %v606, 1.442695
        %v614 = vpow.pop %v613
        %v615 = vsel %vm171, %v608, 0.0
        %616 = vadd.xlane.f32.xlu0 %v615
        %v617 = vpop.xlane.xlu0 %616
        %v618 = vsel %vm171, %v610, 0.0
        %619 = vadd.xlane.f32.xlu0 %v618
        %v620 = vpop.xlane.xlu0 %619
        %v621 = vsel %vm171, %v612, 0.0
        %622 = vadd.xlane.f32.xlu0 %v621
        %v623 = vpop.xlane.xlu0 %622
        %v624 = vsel %vm171, %v614, 0.0
        %625 = vadd.xlane.f32.xlu0 %v624
        %v626 = vpop.xlane.xlu0 %625
        %v627 = vrcp.pop %v617
        %v628 = vrcp.pop %v620
        %v629 = vrcp.pop %v623
        %v630 = vrcp.pop %v626
        %v631 = vmul.f32 %v608, %v627
        %v632 = vmul.f32 %v610, %v628
        %v633 = vmul.f32 %v612, %v629
        %v634 = vmul.f32 %v614, %v630
        %v635 = vpack.c.bf16 %v632, %v631
        %v636 = vpack.c.bf16 %v634, %v633
        %v639 = vunpack.c.l.b16 %v461
        %v640 = vunpack.c.l.b16 %v462
        %v641 = vpack.c.b16 %v640, %v639
        %642 = vrot.lane.b32.xlu0 %v641, 112
        %v643 = vpop.permute.xlu0 %642
        %v646 = vsel %vm171, %v635, 0
        %648 = vmatprep.subr.bf16.mxu0 0
        %649 = vmatpush1.bf16.msra.mxu0 %v643
        %650 = vmatprep.subr.bf16.mxu0 0
        %651 = vmatpush1.bf16.msra.mxu0 0
        %652 = vmatprep.subr.bf16.mxu0 0
        %653 = vmatpush1.bf16.msra.mxu0 0
        %654 = vmatprep.subr.bf16.mxu0 0
        %655 = vmatpush1.bf16.msra.mxu0 0
        %656 = vmatprep.subr.bf16.mxu0 0
        %657 = vmatpush1.bf16.msra.mxu0 0
        %658 = vmatprep.subr.bf16.mxu0 0
        %659 = vmatpush1.bf16.msra.mxu0 0
        %660 = vmatprep.subr.bf16.mxu0 0
        %661 = vmatpush1.bf16.msra.mxu0 0
        %662 = vmatprep.subr.bf16.mxu0 0
        %663 = vmatpush1.bf16.msra.mxu0 0
        %664 = vmatprep.subr.bf16.mxu0 0
        %665 = vmatpush1.bf16.msra.mxu0 0
        %666 = vmatprep.subr.bf16.mxu0 0
        %667 = vmatpush1.bf16.msra.mxu0 0
        %668 = vmatprep.subr.bf16.mxu0 0
        %669 = vmatpush1.bf16.msra.mxu0 0
        %670 = vmatprep.subr.bf16.mxu0 0
        %671 = vmatpush1.bf16.msra.mxu0 0
        %672 = vmatprep.subr.bf16.mxu0 0
        %673 = vmatpush1.bf16.msra.mxu0 0
        %674 = vmatprep.subr.bf16.mxu0 0
        %675 = vmatpush1.bf16.msra.mxu0 0
        %676 = vmatprep.subr.bf16.mxu0 0
        %677 = vmatpush1.bf16.msra.mxu0 0
        %678 = vmatprep.subr.bf16.mxu0 0
        %679 = vmatpush1.bf16.msra.mxu0 0
        %680 = vmatprep.mubr.bf16.mxu0 0
        %681 = vmatmul.mubr.bf16.gmra.mrb[0].mxu0 %v646
        %v682 = vpop.f32.mrb[0].mxu0
        %v683 = vadd.f32 0.0, %v682
        %v684 = vpop.f32.mrb[0].mxu0
        %v685 = vpop.f32.mrb[0].mxu0
        %v686 = vadd.f32 0.0, %v685
        %v687 = vpop.f32.mrb[0].mxu0
        %688 = vdwg.mxu0
        %v691 = vunpack.c.l.b16 %v463
        %v692 = vunpack.c.l.b16 %v464
        %v693 = vpack.c.b16 %v692, %v691
        %694 = vrot.lane.b32.xlu0 %v693, 112
        %v695 = vpop.permute.xlu0 %694
        %v698 = vsel %vm171, %v636, 0
        %700 = vmatprep.subr.bf16.mxu0 0
        %701 = vmatpush1.bf16.msra.mxu0 %v695
        %702 = vmatprep.subr.bf16.mxu0 0
        %703 = vmatpush1.bf16.msra.mxu0 0
        %704 = vmatprep.subr.bf16.mxu0 0
        %705 = vmatpush1.bf16.msra.mxu0 0
        %706 = vmatprep.subr.bf16.mxu0 0
        %707 = vmatpush1.bf16.msra.mxu0 0
        %708 = vmatprep.subr.bf16.mxu0 0
        %709 = vmatpush1.bf16.msra.mxu0 0
        %710 = vmatprep.subr.bf16.mxu0 0
        %711 = vmatpush1.bf16.msra.mxu0 0
        %712 = vmatprep.subr.bf16.mxu0 0
        %713 = vmatpush1.bf16.msra.mxu0 0
        %714 = vmatprep.subr.bf16.mxu0 0
        %715 = vmatpush1.bf16.msra.mxu0 0
        %716 = vmatprep.subr.bf16.mxu0 0
        %717 = vmatpush1.bf16.msra.mxu0 0
        %718 = vmatprep.subr.bf16.mxu0 0
        %719 = vmatpush1.bf16.msra.mxu0 0
        %720 = vmatprep.subr.bf16.mxu0 0
        %721 = vmatpush1.bf16.msra.mxu0 0
        %722 = vmatprep.subr.bf16.mxu0 0
        %723 = vmatpush1.bf16.msra.mxu0 0
        %724 = vmatprep.subr.bf16.mxu0 0
        %725 = vmatpush1.bf16.msra.mxu0 0
        %726 = vmatprep.subr.bf16.mxu0 0
        %727 = vmatpush1.bf16.msra.mxu0 0
        %728 = vmatprep.subr.bf16.mxu0 0
        %729 = vmatpush1.bf16.msra.mxu0 0
        %730 = vmatprep.subr.bf16.mxu0 0
        %731 = vmatpush1.bf16.msra.mxu0 0
        %732 = vmatprep.mubr.bf16.mxu0 0
        %733 = vmatmul.mubr.bf16.gmra.mrb[0].mxu0 %v698
        %v734 = vpop.f32.mrb[0].mxu0
        %v735 = vadd.f32 0.0, %v734
        %v736 = vpop.f32.mrb[0].mxu0
        %v737 = vpop.f32.mrb[0].mxu0
        %v738 = vadd.f32 0.0, %v737
        %v739 = vpop.f32.mrb[0].mxu0
        %740 = vdwg.mxu0
        %v741 = vpack.c.bf16 %v686, %v683
        %v742 = vpack.c.bf16 %v738, %v735
        %v745 = vunpack.c.l.b16 %v741
        %v746 = vunpack.c.h.b16 %v741
        %v747 = vunpack.c.l.b16 %v742
        %v748 = vunpack.c.h.b16 %v742
        %v749 = vpack.c.b16 %v745, %v745
        %v750 = vpack.c.b16 %v746, %v746
        %v751 = vpack.c.b16 %v747, %v747
        %v752 = vpack.c.b16 %v748, %v748
        %753 = vrot.lane.b32.xlu0 %v749, 16
        %v754 = vpop.permute.xlu0 %753
        %755 = vrot.lane.b32.xlu0 %v750, 16
        %v756 = vpop.permute.xlu0 %755
        %757 = vrot.lane.b32.xlu0 %v751, 16
        %v758 = vpop.permute.xlu0 %757
        %759 = vrot.lane.b32.xlu0 %v752, 16
        %v760 = vpop.permute.xlu0 %759
        %vm765 = vcmask 257152
        %766 = vst.msk [vmem:[%s135] sm:$0xf] %vm765, %v754
        %767 = vst.msk [vmem:[%s135 + $0x4] sm:$0xf] %vm765, %v756
        %768 = vst.msk [vmem:[%s135 + $0x8] sm:$0xf] %vm765, %v758
        %769 = vst.msk [vmem:[%s135 + $0xc] sm:$0xf] %vm765, %v760
        %v770 = vld [vmem:[%s117] sm:$0xf]
        %v771 = vld [vmem:[%s117 + $0x8] sm:$0xf]
        %v772 = vld [vmem:[%s117 + $0x10] sm:$0xf]
        %v773 = vld [vmem:[%s117 + $0x18] sm:$0xf]
        %v774 = vmul.bf16 %v770, 1048592000
        %v775 = vmul.bf16 %v771, 1048592000
        %v776 = vmul.bf16 %v772, 1048592000
        %v777 = vmul.bf16 %v773, 1048592000
        %v778 = vld [vmem:[%s117 + $0x4] sm:$0xf]
        %v779 = vld [vmem:[%s117 + $0xc] sm:$0xf]
        %v780 = vld [vmem:[%s117 + $0x14] sm:$0xf]
        %v781 = vld [vmem:[%s117 + $0x1c] sm:$0xf]
        %v784 = vunpack.c.l.b16 %v774
        %v785 = vunpack.c.l.b16 %v775
        %v786 = vpack.c.b16 %v785, %v784
        %787 = vrot.lane.b32.xlu0 %v786, 96
        %v788 = vpop.permute.xlu0 %787
        %v791 = vunpack.c.l.b16 %v770
        %v792 = vunpack.c.l.b16 %v771
        %v793 = vpack.c.b16 %v792, %v791
        %794 = vrot.lane.b32.xlu0 %v793, 32
        %v795 = vpop.permute.xlu0 %794
        %v797 = vsel %vm171, %v788, 0
        %v800 = vsel %vm171, %v795, 0
        %802 = vmatprep.subr.bf16.mxu0 0
        %803 = vmatpush1.bf16.xpose.msra.mxu0 %v800
        %804 = vmatprep.subr.bf16.mxu0 0
        %805 = vmatpush1.bf16.xpose.msra.mxu0 0
        %806 = vmatprep.subr.bf16.mxu0 0
        %807 = vmatpush1.bf16.xpose.msra.mxu0 0
        %808 = vmatprep.subr.bf16.mxu0 0
        %809 = vmatpush1.bf16.xpose.msra.mxu0 0
        %810 = vmatprep.subr.bf16.mxu0 0
        %811 = vmatpush1.bf16.xpose.msra.mxu0 0
        %812 = vmatprep.subr.bf16.mxu0 0
        %813 = vmatpush1.bf16.xpose.msra.mxu0 0
        %814 = vmatprep.subr.bf16.mxu0 0
        %815 = vmatpush1.bf16.xpose.msra.mxu0 0
        %816 = vmatprep.subr.bf16.mxu0 0
        %817 = vmatpush1.bf16.xpose.msra.mxu0 0
        %818 = vmatprep.subr.bf16.mxu0 0
        %819 = vmatpush1.bf16.xpose.msra.mxu0 0
        %820 = vmatprep.subr.bf16.mxu0 0
        %821 = vmatpush1.bf16.xpose.msra.mxu0 0
        %822 = vmatprep.subr.bf16.mxu0 0
        %823 = vmatpush1.bf16.xpose.msra.mxu0 0
        %824 = vmatprep.subr.bf16.mxu0 0
        %825 = vmatpush1.bf16.xpose.msra.mxu0 0
        %826 = vmatprep.subr.bf16.mxu0 0
        %827 = vmatpush1.bf16.xpose.msra.mxu0 0
        %828 = vmatprep.subr.bf16.mxu0 0
        %829 = vmatpush1.bf16.xpose.msra.mxu0 0
        %830 = vmatprep.subr.bf16.mxu0 0
        %831 = vmatpush1.bf16.xpose.msra.mxu0 0
        %832 = vmatprep.subr.bf16.mxu0 0
        %833 = vmatpush1.bf16.xpose.msra.mxu0 0
        %834 = vmatprep.mubr.bf16.mxu0 0
        %835 = vmatmul.mubr.bf16.gmra.mrb[0].mxu0 %v797
        %v836 = vpop.f32.mrb[0].mxu0
        %v837 = vadd.f32 0.0, %v836
        %v838 = vpop.f32.mrb[0].mxu0
        %v839 = vpop.f32.mrb[0].mxu0
        %v840 = vadd.f32 0.0, %v839
        %v841 = vpop.f32.mrb[0].mxu0
        %842 = vdwg.mxu0
        %v845 = vunpack.c.l.b16 %v776
        %v846 = vunpack.c.l.b16 %v777
        %v847 = vpack.c.b16 %v846, %v845
        %848 = vrot.lane.b32.xlu0 %v847, 96
        %v849 = vpop.permute.xlu0 %848
        %v852 = vunpack.c.l.b16 %v772
        %v853 = vunpack.c.l.b16 %v773
        %v854 = vpack.c.b16 %v853, %v852
        %855 = vrot.lane.b32.xlu0 %v854, 32
        %v856 = vpop.permute.xlu0 %855
        %v858 = vsel %vm171, %v849, 0
        %v861 = vsel %vm171, %v856, 0
        %863 = vmatprep.subr.bf16.mxu0 0
        %864 = vmatpush1.bf16.xpose.msra.mxu0 %v861
        %865 = vmatprep.subr.bf16.mxu0 0
        %866 = vmatpush1.bf16.xpose.msra.mxu0 0
        %867 = vmatprep.subr.bf16.mxu0 0
        %868 = vmatpush1.bf16.xpose.msra.mxu0 0
        %869 = vmatprep.subr.bf16.mxu0 0
        %870 = vmatpush1.bf16.xpose.msra.mxu0 0
        %871 = vmatprep.subr.bf16.mxu0 0
        %872 = vmatpush1.bf16.xpose.msra.mxu0 0
        %873 = vmatprep.subr.bf16.mxu0 0
        %874 = vmatpush1.bf16.xpose.msra.mxu0 0
        %875 = vmatprep.subr.bf16.mxu0 0
        %876 = vmatpush1.bf16.xpose.msra.mxu0 0
        %877 = vmatprep.subr.bf16.mxu0 0
        %878 = vmatpush1.bf16.xpose.msra.mxu0 0
        %879 = vmatprep.subr.bf16.mxu0 0
        %880 = vmatpush1.bf16.xpose.msra.mxu0 0
        %881 = vmatprep.subr.bf16.mxu0 0
        %882 = vmatpush1.bf16.xpose.msra.mxu0 0
        %883 = vmatprep.subr.bf16.mxu0 0
        %884 = vmatpush1.bf16.xpose.msra.mxu0 0
        %885 = vmatprep.subr.bf16.mxu0 0
        %886 = vmatpush1.bf16.xpose.msra.mxu0 0
        %887 = vmatprep.subr.bf16.mxu0 0
        %888 = vmatpush1.bf16.xpose.msra.mxu0 0
        %889 = vmatprep.subr.bf16.mxu0 0
        %890 = vmatpush1.bf16.xpose.msra.mxu0 0
        %891 = vmatprep.subr.bf16.mxu0 0
        %892 = vmatpush1.bf16.xpose.msra.mxu0 0
        %893 = vmatprep.subr.bf16.mxu0 0
        %894 = vmatpush1.bf16.xpose.msra.mxu0 0
        %895 = vmatprep.mubr.bf16.mxu0 0
        %896 = vmatmul.mubr.bf16.gmra.mrb[0].mxu0 %v858
        %v897 = vpop.f32.mrb[0].mxu0
        %v898 = vadd.f32 0.0, %v897
        %v899 = vpop.f32.mrb[0].mxu0
        %v900 = vpop.f32.mrb[0].mxu0
        %v901 = vadd.f32 0.0, %v900
        %v902 = vpop.f32.mrb[0].mxu0
        %903 = vdwg.mxu0
        %v904 = vsel %vm280, %v837, -1e+30
        %v905 = vsel %vm281, %v840, -1e+30
        %v906 = vsel %vm280, %v898, -1e+30
        %v907 = vsel %vm281, %v901, -1e+30
        %v908 = vsel %vm171, %v904, -inf
        %909 = vmax.xlane.f32.xlu0 %v908
        %v910 = vpop.xlane.xlu0 %909
        %v911 = vsel %vm171, %v905, -inf
        %912 = vmax.xlane.f32.xlu0 %v911
        %v913 = vpop.xlane.xlu0 %912
        %v914 = vsel %vm171, %v906, -inf
        %915 = vmax.xlane.f32.xlu0 %v914
        %v916 = vpop.xlane.xlu0 %915
        %v917 = vsel %vm171, %v907, -inf
        %918 = vmax.xlane.f32.xlu0 %v917
        %v919 = vpop.xlane.xlu0 %918
        %v920 = vsub.f32 %v904, %v910
        %v921 = vsub.f32 %v905, %v913
        %v922 = vsub.f32 %v906, %v916
        %v923 = vsub.f32 %v907, %v919
        %v924 = vmul.f32 %v920, 1.442695
        %v925 = vpow.pop %v924
        %v926 = vmul.f32 %v921, 1.442695
        %v927 = vpow.pop %v926
        %v928 = vmul.f32 %v922, 1.442695
        %v929 = vpow.pop %v928
        %v930 = vmul.f32 %v923, 1.442695
        %v931 = vpow.pop %v930
        %v932 = vsel %vm171, %v925, 0.0
        %933 = vadd.xlane.f32.xlu0 %v932
        %v934 = vpop.xlane.xlu0 %933
        %v935 = vsel %vm171, %v927, 0.0
        %936 = vadd.xlane.f32.xlu0 %v935
        %v937 = vpop.xlane.xlu0 %936
        %v938 = vsel %vm171, %v929, 0.0
        %939 = vadd.xlane.f32.xlu0 %v938
        %v940 = vpop.xlane.xlu0 %939
        %v941 = vsel %vm171, %v931, 0.0
        %942 = vadd.xlane.f32.xlu0 %v941
        %v943 = vpop.xlane.xlu0 %942
        %v944 = vrcp.pop %v934
        %v945 = vrcp.pop %v937
        %v946 = vrcp.pop %v940
        %v947 = vrcp.pop %v943
        %v948 = vmul.f32 %v925, %v944
        %v949 = vmul.f32 %v927, %v945
        %v950 = vmul.f32 %v929, %v946
        %v951 = vmul.f32 %v931, %v947
        %v952 = vpack.c.bf16 %v949, %v948
        %v953 = vpack.c.bf16 %v951, %v950
        %v956 = vunpack.c.l.b16 %v778
        %v957 = vunpack.c.l.b16 %v779
        %v958 = vpack.c.b16 %v957, %v956
        %959 = vrot.lane.b32.xlu0 %v958, 96
        %v960 = vpop.permute.xlu0 %959
        %v963 = vsel %vm171, %v952, 0
        %965 = vmatprep.subr.bf16.mxu0 0
        %966 = vmatpush1.bf16.msra.mxu0 %v960
        %967 = vmatprep.subr.bf16.mxu0 0
        %968 = vmatpush1.bf16.msra.mxu0 0
        %969 = vmatprep.subr.bf16.mxu0 0
        %970 = vmatpush1.bf16.msra.mxu0 0
        %971 = vmatprep.subr.bf16.mxu0 0
        %972 = vmatpush1.bf16.msra.mxu0 0
        %973 = vmatprep.subr.bf16.mxu0 0
        %974 = vmatpush1.bf16.msra.mxu0 0
        %975 = vmatprep.subr.bf16.mxu0 0
        %976 = vmatpush1.bf16.msra.mxu0 0
        %977 = vmatprep.subr.bf16.mxu0 0
        %978 = vmatpush1.bf16.msra.mxu0 0
        %979 = vmatprep.subr.bf16.mxu0 0
        %980 = vmatpush1.bf16.msra.mxu0 0
        %981 = vmatprep.subr.bf16.mxu0 0
        %982 = vmatpush1.bf16.msra.mxu0 0
        %983 = vmatprep.subr.bf16.mxu0 0
        %984 = vmatpush1.bf16.msra.mxu0 0
        %985 = vmatprep.subr.bf16.mxu0 0
        %986 = vmatpush1.bf16.msra.mxu0 0
        %987 = vmatprep.subr.bf16.mxu0 0
        %988 = vmatpush1.bf16.msra.mxu0 0
        %989 = vmatprep.subr.bf16.mxu0 0
        %990 = vmatpush1.bf16.msra.mxu0 0
        %991 = vmatprep.subr.bf16.mxu0 0
        %992 = vmatpush1.bf16.msra.mxu0 0
        %993 = vmatprep.subr.bf16.mxu0 0
        %994 = vmatpush1.bf16.msra.mxu0 0
        %995 = vmatprep.subr.bf16.mxu0 0
        %996 = vmatpush1.bf16.msra.mxu0 0
        %997 = vmatprep.mubr.bf16.mxu0 0
        %998 = vmatmul.mubr.bf16.gmra.mrb[0].mxu0 %v963
        %v999 = vpop.f32.mrb[0].mxu0
        %v1000 = vadd.f32 0.0, %v999
        %v1001 = vpop.f32.mrb[0].mxu0
        %v1002 = vpop.f32.mrb[0].mxu0
        %v1003 = vadd.f32 0.0, %v1002
        %v1004 = vpop.f32.mrb[0].mxu0
        %1005 = vdwg.mxu0
        %v1008 = vunpack.c.l.b16 %v780
        %v1009 = vunpack.c.l.b16 %v781
        %v1010 = vpack.c.b16 %v1009, %v1008
        %1011 = vrot.lane.b32.xlu0 %v1010, 96
        %v1012 = vpop.permute.xlu0 %1011
        %v1015 = vsel %vm171, %v953, 0
        %1017 = vmatprep.subr.bf16.mxu0 0
        %1018 = vmatpush1.bf16.msra.mxu0 %v1012
        %1019 = vmatprep.subr.bf16.mxu0 0
        %1020 = vmatpush1.bf16.msra.mxu0 0
        %1021 = vmatprep.subr.bf16.mxu0 0
        %1022 = vmatpush1.bf16.msra.mxu0 0
        %1023 = vmatprep.subr.bf16.mxu0 0
        %1024 = vmatpush1.bf16.msra.mxu0 0
        %1025 = vmatprep.subr.bf16.mxu0 0
        %1026 = vmatpush1.bf16.msra.mxu0 0
        %1027 = vmatprep.subr.bf16.mxu0 0
        %1028 = vmatpush1.bf16.msra.mxu0 0
        %1029 = vmatprep.subr.bf16.mxu0 0
        %1030 = vmatpush1.bf16.msra.mxu0 0
        %1031 = vmatprep.subr.bf16.mxu0 0
        %1032 = vmatpush1.bf16.msra.mxu0 0
        %1033 = vmatprep.subr.bf16.mxu0 0
        %1034 = vmatpush1.bf16.msra.mxu0 0
        %1035 = vmatprep.subr.bf16.mxu0 0
        %1036 = vmatpush1.bf16.msra.mxu0 0
        %1037 = vmatprep.subr.bf16.mxu0 0
        %1038 = vmatpush1.bf16.msra.mxu0 0
        %1039 = vmatprep.subr.bf16.mxu0 0
        %1040 = vmatpush1.bf16.msra.mxu0 0
        %1041 = vmatprep.subr.bf16.mxu0 0
        %1042 = vmatpush1.bf16.msra.mxu0 0
        %1043 = vmatprep.subr.bf16.mxu0 0
        %1044 = vmatpush1.bf16.msra.mxu0 0
        %1045 = vmatprep.subr.bf16.mxu0 0
        %1046 = vmatpush1.bf16.msra.mxu0 0
        %1047 = vmatprep.subr.bf16.mxu0 0
        %1048 = vmatpush1.bf16.msra.mxu0 0
        %1049 = vmatprep.mubr.bf16.mxu0 0
        %1050 = vmatmul.mubr.bf16.gmra.mrb[0].mxu0 %v1015
        %v1051 = vpop.f32.mrb[0].mxu0
        %v1052 = vadd.f32 0.0, %v1051
        %v1053 = vpop.f32.mrb[0].mxu0
        %v1054 = vpop.f32.mrb[0].mxu0
        %v1055 = vadd.f32 0.0, %v1054
        %v1056 = vpop.f32.mrb[0].mxu0
        %1057 = vdwg.mxu0
        %v1058 = vpack.c.bf16 %v1003, %v1000
        %v1059 = vpack.c.bf16 %v1055, %v1052
        %v1062 = vunpack.c.l.b16 %v1058
        %v1063 = vunpack.c.h.b16 %v1058
        %v1064 = vunpack.c.l.b16 %v1059
        %v1065 = vunpack.c.h.b16 %v1059
        %v1066 = vpack.c.b16 %v1062, %v1062
        %v1067 = vpack.c.b16 %v1063, %v1063
        %v1068 = vpack.c.b16 %v1064, %v1064
        %v1069 = vpack.c.b16 %v1065, %v1065
        %1070 = vrot.lane.b32.xlu0 %v1066, 32
        %v1071 = vpop.permute.xlu0 %1070
        %1072 = vrot.lane.b32.xlu0 %v1067, 32
        %v1073 = vpop.permute.xlu0 %1072
        %1074 = vrot.lane.b32.xlu0 %v1068, 32
        %v1075 = vpop.permute.xlu0 %1074
        %1076 = vrot.lane.b32.xlu0 %v1069, 32
        %v1077 = vpop.permute.xlu0 %1076
        %vm1082 = vcmask 388352
        %1083 = vst.msk [vmem:[%s135] sm:$0xf] %vm1082, %v1071
        %1084 = vst.msk [vmem:[%s135 + $0x4] sm:$0xf] %vm1082, %v1073
        %1085 = vst.msk [vmem:[%s135 + $0x8] sm:$0xf] %vm1082, %v1075
        %1086 = vst.msk [vmem:[%s135 + $0xc] sm:$0xf] %vm1082, %v1077
        %v1087 = vld [vmem:[%s117] sm:$0xf]
        %v1088 = vld [vmem:[%s117 + $0x8] sm:$0xf]
        %v1089 = vld [vmem:[%s117 + $0x10] sm:$0xf]
        %v1090 = vld [vmem:[%s117 + $0x18] sm:$0xf]
        %v1091 = vmul.bf16 %v1087, 1048592000
        %v1092 = vmul.bf16 %v1088, 1048592000
        %v1093 = vmul.bf16 %v1089, 1048592000
        %v1094 = vmul.bf16 %v1090, 1048592000
        %v1095 = vld [vmem:[%s117 + $0x4] sm:$0xf]
        %v1096 = vld [vmem:[%s117 + $0xc] sm:$0xf]
        %v1097 = vld [vmem:[%s117 + $0x14] sm:$0xf]
        %v1098 = vld [vmem:[%s117 + $0x1c] sm:$0xf]
        %v1101 = vunpack.c.l.b16 %v1091
        %v1102 = vunpack.c.l.b16 %v1092
        %v1103 = vpack.c.b16 %v1102, %v1101
        %1104 = vrot.lane.b32.xlu0 %v1103, 80
        %v1105 = vpop.permute.xlu0 %1104
        %v1108 = vunpack.c.l.b16 %v1087
        %v1109 = vunpack.c.l.b16 %v1088
        %v1110 = vpack.c.b16 %v1109, %v1108
        %1111 = vrot.lane.b32.xlu0 %v1110, 16
        %v1112 = vpop.permute.xlu0 %1111
        %v1114 = vsel %vm171, %v1105, 0
        %v1117 = vsel %vm171, %v1112, 0
        %1119 = vmatprep.subr.bf16.mxu0 0
        %1120 = vmatpush1.bf16.xpose.msra.mxu0 %v1117
        %1121 = vmatprep.subr.bf16.mxu0 0
        %1122 = vmatpush1.bf16.xpose.msra.mxu0 0
        %1123 = vmatprep.subr.bf16.mxu0 0
        %1124 = vmatpush1.bf16.xpose.msra.mxu0 0
        %1125 = vmatprep.subr.bf16.mxu0 0
        %1126 = vmatpush1.bf16.xpose.msra.mxu0 0
        %1127 = vmatprep.subr.bf16.mxu0 0
        %1128 = vmatpush1.bf16.xpose.msra.mxu0 0
        %1129 = vmatprep.subr.bf16.mxu0 0
        %1130 = vmatpush1.bf16.xpose.msra.mxu0 0
        %1131 = vmatprep.subr.bf16.mxu0 0
        %1132 = vmatpush1.bf16.xpose.msra.mxu0 0
        %1133 = vmatprep.subr.bf16.mxu0 0
        %1134 = vmatpush1.bf16.xpose.msra.mxu0 0
        %1135 = vmatprep.subr.bf16.mxu0 0
        %1136 = vmatpush1.bf16.xpose.msra.mxu0 0
        %1137 = vmatprep.subr.bf16.mxu0 0
        %1138 = vmatpush1.bf16.xpose.msra.mxu0 0
        %1139 = vmatprep.subr.bf16.mxu0 0
        %1140 = vmatpush1.bf16.xpose.msra.mxu0 0
        %1141 = vmatprep.subr.bf16.mxu0 0
        %1142 = vmatpush1.bf16.xpose.msra.mxu0 0
        %1143 = vmatprep.subr.bf16.mxu0 0
        %1144 = vmatpush1.bf16.xpose.msra.mxu0 0
        %1145 = vmatprep.subr.bf16.mxu0 0
        %1146 = vmatpush1.bf16.xpose.msra.mxu0 0
        %1147 = vmatprep.subr.bf16.mxu0 0
        %1148 = vmatpush1.bf16.xpose.msra.mxu0 0
        %1149 = vmatprep.subr.bf16.mxu0 0
        %1150 = vmatpush1.bf16.xpose.msra.mxu0 0
        %1151 = vmatprep.mubr.bf16.mxu0 0
        %1152 = vmatmul.mubr.bf16.gmra.mrb[0].mxu0 %v1114
        %v1153 = vpop.f32.mrb[0].mxu0
        %v1154 = vadd.f32 0.0, %v1153
        %v1155 = vpop.f32.mrb[0].mxu0
        %v1156 = vpop.f32.mrb[0].mxu0
        %v1157 = vadd.f32 0.0, %v1156
        %v1158 = vpop.f32.mrb[0].mxu0
        %1159 = vdwg.mxu0
        %v1162 = vunpack.c.l.b16 %v1093
        %v1163 = vunpack.c.l.b16 %v1094
        %v1164 = vpack.c.b16 %v1163, %v1162
        %1165 = vrot.lane.b32.xlu0 %v1164, 80
        %v1166 = vpop.permute.xlu0 %1165
        %v1169 = vunpack.c.l.b16 %v1089
        %v1170 = vunpack.c.l.b16 %v1090
        %v1171 = vpack.c.b16 %v1170, %v1169
        %1172 = vrot.lane.b32.xlu0 %v1171, 16
        %v1173 = vpop.permute.xlu0 %1172
        %v1175 = vsel %vm171, %v1166, 0
        %v1178 = vsel %vm171, %v1173, 0
        %1180 = vmatprep.subr.bf16.mxu0 0
        %1181 = vmatpush1.bf16.xpose.msra.mxu0 %v1178
        %1182 = vmatprep.subr.bf16.mxu0 0
        %1183 = vmatpush1.bf16.xpose.msra.mxu0 0
        %1184 = vmatprep.subr.bf16.mxu0 0
        %1185 = vmatpush1.bf16.xpose.msra.mxu0 0
        %1186 = vmatprep.subr.bf16.mxu0 0
        %1187 = vmatpush1.bf16.xpose.msra.mxu0 0
        %1188 = vmatprep.subr.bf16.mxu0 0
        %1189 = vmatpush1.bf16.xpose.msra.mxu0 0
        %1190 = vmatprep.subr.bf16.mxu0 0
        %1191 = vmatpush1.bf16.xpose.msra.mxu0 0
        %1192 = vmatprep.subr.bf16.mxu0 0
        %1193 = vmatpush1.bf16.xpose.msra.mxu0 0
        %1194 = vmatprep.subr.bf16.mxu0 0
        %1195 = vmatpush1.bf16.xpose.msra.mxu0 0
        %1196 = vmatprep.subr.bf16.mxu0 0
        %1197 = vmatpush1.bf16.xpose.msra.mxu0 0
        %1198 = vmatprep.subr.bf16.mxu0 0
        %1199 = vmatpush1.bf16.xpose.msra.mxu0 0
        %1200 = vmatprep.subr.bf16.mxu0 0
        %1201 = vmatpush1.bf16.xpose.msra.mxu0 0
        %1202 = vmatprep.subr.bf16.mxu0 0
        %1203 = vmatpush1.bf16.xpose.msra.mxu0 0
        %1204 = vmatprep.subr.bf16.mxu0 0
        %1205 = vmatpush1.bf16.xpose.msra.mxu0 0
        %1206 = vmatprep.subr.bf16.mxu0 0
        %1207 = vmatpush1.bf16.xpose.msra.mxu0 0
        %1208 = vmatprep.subr.bf16.mxu0 0
        %1209 = vmatpush1.bf16.xpose.msra.mxu0 0
        %1210 = vmatprep.subr.bf16.mxu0 0
        %1211 = vmatpush1.bf16.xpose.msra.mxu0 0
        %1212 = vmatprep.mubr.bf16.mxu0 0
        %1213 = vmatmul.mubr.bf16.gmra.mrb[0].mxu0 %v1175
        %v1214 = vpop.f32.mrb[0].mxu0
        %v1215 = vadd.f32 0.0, %v1214
        %v1216 = vpop.f32.mrb[0].mxu0
        %v1217 = vpop.f32.mrb[0].mxu0
        %v1218 = vadd.f32 0.0, %v1217
        %v1219 = vpop.f32.mrb[0].mxu0
        %1220 = vdwg.mxu0
        %v1221 = vsel %vm280, %v1154, -1e+30
        %v1222 = vsel %vm281, %v1157, -1e+30
        %v1223 = vsel %vm280, %v1215, -1e+30
        %v1224 = vsel %vm281, %v1218, -1e+30
        %v1225 = vsel %vm171, %v1221, -inf
        %1226 = vmax.xlane.f32.xlu0 %v1225
        %v1227 = vpop.xlane.xlu0 %1226
        %v1228 = vsel %vm171, %v1222, -inf
        %1229 = vmax.xlane.f32.xlu0 %v1228
        %v1230 = vpop.xlane.xlu0 %1229
        %v1231 = vsel %vm171, %v1223, -inf
        %1232 = vmax.xlane.f32.xlu0 %v1231
        %v1233 = vpop.xlane.xlu0 %1232
        %v1234 = vsel %vm171, %v1224, -inf
        %1235 = vmax.xlane.f32.xlu0 %v1234
        %v1236 = vpop.xlane.xlu0 %1235
        %v1237 = vsub.f32 %v1221, %v1227
        %v1238 = vsub.f32 %v1222, %v1230
        %v1239 = vsub.f32 %v1223, %v1233
        %v1240 = vsub.f32 %v1224, %v1236
        %v1241 = vmul.f32 %v1237, 1.442695
        %v1242 = vpow.pop %v1241
        %v1243 = vmul.f32 %v1238, 1.442695
        %v1244 = vpow.pop %v1243
        %v1245 = vmul.f32 %v1239, 1.442695
        %v1246 = vpow.pop %v1245
        %v1247 = vmul.f32 %v1240, 1.442695
        %v1248 = vpow.pop %v1247
        %v1249 = vsel %vm171, %v1242, 0.0
        %1250 = vadd.xlane.f32.xlu0 %v1249
        %v1251 = vpop.xlane.xlu0 %1250
        %v1252 = vsel %vm171, %v1244, 0.0
        %1253 = vadd.xlane.f32.xlu0 %v1252
        %v1254 = vpop.xlane.xlu0 %1253
        %v1255 = vsel %vm171, %v1246, 0.0
        %1256 = vadd.xlane.f32.xlu0 %v1255
        %v1257 = vpop.xlane.xlu0 %1256
        %v1258 = vsel %vm171, %v1248, 0.0
        %1259 = vadd.xlane.f32.xlu0 %v1258
        %v1260 = vpop.xlane.xlu0 %1259
        %v1261 = vrcp.pop %v1251
        %v1262 = vrcp.pop %v1254
        %v1263 = vrcp.pop %v1257
        %v1264 = vrcp.pop %v1260
        %v1265 = vmul.f32 %v1242, %v1261
        %v1266 = vmul.f32 %v1244, %v1262
        %v1267 = vmul.f32 %v1246, %v1263
        %v1268 = vmul.f32 %v1248, %v1264
        %v1269 = vpack.c.bf16 %v1266, %v1265
        %v1270 = vpack.c.bf16 %v1268, %v1267
        %v1273 = vunpack.c.l.b16 %v1095
        %v1274 = vunpack.c.l.b16 %v1096
        %v1275 = vpack.c.b16 %v1274, %v1273
        %1276 = vrot.lane.b32.xlu0 %v1275, 80
        %v1277 = vpop.permute.xlu0 %1276
        %v1280 = vsel %vm171, %v1269, 0
        %1282 = vmatprep.subr.bf16.mxu0 0
        %1283 = vmatpush1.bf16.msra.mxu0 %v1277
        %1284 = vmatprep.subr.bf16.mxu0 0
        %1285 = vmatpush1.bf16.msra.mxu0 0
        %1286 = vmatprep.subr.bf16.mxu0 0
        %1287 = vmatpush1.bf16.msra.mxu0 0
        %1288 = vmatprep.subr.bf16.mxu0 0
        %1289 = vmatpush1.bf16.msra.mxu0 0
        %1290 = vmatprep.subr.bf16.mxu0 0
        %1291 = vmatpush1.bf16.msra.mxu0 0
        %1292 = vmatprep.subr.bf16.mxu0 0
        %1293 = vmatpush1.bf16.msra.mxu0 0
        %1294 = vmatprep.subr.bf16.mxu0 0
        %1295 = vmatpush1.bf16.msra.mxu0 0
        %1296 = vmatprep.subr.bf16.mxu0 0
        %1297 = vmatpush1.bf16.msra.mxu0 0
        %1298 = vmatprep.subr.bf16.mxu0 0
        %1299 = vmatpush1.bf16.msra.mxu0 0
        %1300 = vmatprep.subr.bf16.mxu0 0
        %1301 = vmatpush1.bf16.msra.mxu0 0
        %1302 = vmatprep.subr.bf16.mxu0 0
        %1303 = vmatpush1.bf16.msra.mxu0 0
        %1304 = vmatprep.subr.bf16.mxu0 0
        %1305 = vmatpush1.bf16.msra.mxu0 0
        %1306 = vmatprep.subr.bf16.mxu0 0
        %1307 = vmatpush1.bf16.msra.mxu0 0
        %1308 = vmatprep.subr.bf16.mxu0 0
        %1309 = vmatpush1.bf16.msra.mxu0 0
        %1310 = vmatprep.subr.bf16.mxu0 0
        %1311 = vmatpush1.bf16.msra.mxu0 0
        %1312 = vmatprep.subr.bf16.mxu0 0
        %1313 = vmatpush1.bf16.msra.mxu0 0
        %1314 = vmatprep.mubr.bf16.mxu0 0
        %1315 = vmatmul.mubr.bf16.gmra.mrb[0].mxu0 %v1280
        %v1316 = vpop.f32.mrb[0].mxu0
        %v1317 = vadd.f32 0.0, %v1316
        %v1318 = vpop.f32.mrb[0].mxu0
        %v1319 = vpop.f32.mrb[0].mxu0
        %v1320 = vadd.f32 0.0, %v1319
        %v1321 = vpop.f32.mrb[0].mxu0
        %1322 = vdwg.mxu0
        %v1325 = vunpack.c.l.b16 %v1097
        %v1326 = vunpack.c.l.b16 %v1098
        %v1327 = vpack.c.b16 %v1326, %v1325
        %1328 = vrot.lane.b32.xlu0 %v1327, 80
        %v1329 = vpop.permute.xlu0 %1328
        %v1332 = vsel %vm171, %v1270, 0
        %1334 = vmatprep.subr.bf16.mxu0 0
        %1335 = vmatpush1.bf16.msra.mxu0 %v1329
        %1336 = vmatprep.subr.bf16.mxu0 0
        %1337 = vmatpush1.bf16.msra.mxu0 0
        %1338 = vmatprep.subr.bf16.mxu0 0
        %1339 = vmatpush1.bf16.msra.mxu0 0
        %1340 = vmatprep.subr.bf16.mxu0 0
        %1341 = vmatpush1.bf16.msra.mxu0 0
        %1342 = vmatprep.subr.bf16.mxu0 0
        %1343 = vmatpush1.bf16.msra.mxu0 0
        %1344 = vmatprep.subr.bf16.mxu0 0
        %1345 = vmatpush1.bf16.msra.mxu0 0
        %1346 = vmatprep.subr.bf16.mxu0 0
        %1347 = vmatpush1.bf16.msra.mxu0 0
        %1348 = vmatprep.subr.bf16.mxu0 0
        %1349 = vmatpush1.bf16.msra.mxu0 0
        %1350 = vmatprep.subr.bf16.mxu0 0
        %1351 = vmatpush1.bf16.msra.mxu0 0
        %1352 = vmatprep.subr.bf16.mxu0 0
        %1353 = vmatpush1.bf16.msra.mxu0 0
        %1354 = vmatprep.subr.bf16.mxu0 0
        %1355 = vmatpush1.bf16.msra.mxu0 0
        %1356 = vmatprep.subr.bf16.mxu0 0
        %1357 = vmatpush1.bf16.msra.mxu0 0
        %1358 = vmatprep.subr.bf16.mxu0 0
        %1359 = vmatpush1.bf16.msra.mxu0 0
        %1360 = vmatprep.subr.bf16.mxu0 0
        %1361 = vmatpush1.bf16.msra.mxu0 0
        %1362 = vmatprep.subr.bf16.mxu0 0
        %1363 = vmatpush1.bf16.msra.mxu0 0
        %1364 = vmatprep.subr.bf16.mxu0 0
        %1365 = vmatpush1.bf16.msra.mxu0 0
        %1366 = vmatprep.mubr.bf16.mxu0 0
        %1367 = vmatmul.mubr.bf16.gmra.mrb[0].mxu0 %v1332
        %v1368 = vpop.f32.mrb[0].mxu0
        %v1369 = vadd.f32 0.0, %v1368
        %v1370 = vpop.f32.mrb[0].mxu0
        %v1371 = vpop.f32.mrb[0].mxu0
        %v1372 = vadd.f32 0.0, %v1371
        %v1373 = vpop.f32.mrb[0].mxu0
        %1374 = vdwg.mxu0
        %v1375 = vpack.c.bf16 %v1320, %v1317
        %v1376 = vpack.c.bf16 %v1372, %v1369
        %v1379 = vunpack.c.l.b16 %v1375
        %v1380 = vunpack.c.h.b16 %v1375
        %v1381 = vunpack.c.l.b16 %v1376
        %v1382 = vunpack.c.h.b16 %v1376
        %v1383 = vpack.c.b16 %v1379, %v1379
        %v1384 = vpack.c.b16 %v1380, %v1380
        %v1385 = vpack.c.b16 %v1381, %v1381
        %v1386 = vpack.c.b16 %v1382, %v1382
        %1387 = vrot.lane.b32.xlu0 %v1383, 48
        %v1388 = vpop.permute.xlu0 %1387
        %1389 = vrot.lane.b32.xlu0 %v1384, 48
        %v1390 = vpop.permute.xlu0 %1389
        %1391 = vrot.lane.b32.xlu0 %v1385, 48
        %v1392 = vpop.permute.xlu0 %1391
        %1393 = vrot.lane.b32.xlu0 %v1386, 48
        %v1394 = vpop.permute.xlu0 %1393
        %vm1399 = vcmask 519552
        %1400 = vst.msk [vmem:[%s135] sm:$0xf] %vm1399, %v1388
        %1401 = vst.msk [vmem:[%s135 + $0x4] sm:$0xf] %vm1399, %v1390
        %1402 = vst.msk [vmem:[%s135 + $0x8] sm:$0xf] %vm1399, %v1392
        %1403 = vst.msk [vmem:[%s135 + $0xc] sm:$0xf] %vm1399, %v1394
        %s1404 = sand.u32 %s52, 1
        %s1405 = scalar_lea.sflag [#allocation4], %s1404
        %s1406 = sand.u32 %s52, 1
        %s1407 = smul.addr %s1406, 16
        %s1408 = scalar_lea.vmem [#allocation5], %s1407
        // Predicated region
        $region29: #{custom_clip_matrix_forward.39} parent=23 // pred_check
          %p1409 = pneg %p62
        $region30: #{custom_clip_matrix_forward.39} parent=23 // pred_check_branch
          %1411 = sbr.rel (%p1409) target = $region32
        $region31: #{custom_clip_matrix_forward.39} parent=23 // pred_region
          %s1412 = smul.u32 2, %s18
          %s1414 = ssub.s32 256, 256
          %1415 = vsyncadd %s1405, %s1414
          %s1416 = smul.addr %s1412, 2
          %s1417 = smul.addr %s1416, 64
          %s1418 = scalar_lea.hbm %s1, %s1417
          %s1419 = sshll.u32 %s1408, 4
          %s1420 = int_to_ptr.vmem [resolvable:$true] %s1419
          %1425 = dma.vmem_to_hbm [thread:$0]  %s1420, 256, %s1418, %s1405, 64, 64, 4
        $region32: #{custom_clip_matrix_forward.39} parent=23 // pred_fallthru
          _
      $region24: #{custom_clip_matrix_forward.39} parent=5 // pred_fallthru
        _
      %p1426 = scmp.le.s32.totalorder 2, %s13
      // Predicated region
      $region33: #{custom_clip_matrix_forward.39} parent=5 // pred_check
        %p1427 = pneg %p1426
      $region34: #{custom_clip_matrix_forward.39} parent=5 // pred_check_branch
        %1429 = sbr.rel (%p1427) target = $region36
      $region35: #{custom_clip_matrix_forward.39} parent=5 // pred_region
        %s1430 = ssub.s32 %s13, 2
        // Predicated region
        $region37: #{custom_clip_matrix_forward.39} parent=35 // pred_check
          %p1431 = pneg %p68
        $region38: #{custom_clip_matrix_forward.39} parent=35 // pred_check_branch
          %1433 = sbr.rel (%p1431) target = $region40
        $region39: #{custom_clip_matrix_forward.39} parent=35 // pred_region
          %s1434 = sand.u32 %s53, 1
          %s1435 = scalar_lea.sflag [#allocation4], %s1434
          %s1436 = sand.u32 %s53, 1
          %s1437 = smul.addr %s1436, 16
          %s1438 = scalar_lea.vmem [#allocation5], %s1437
          %1439 = dma.done %s1435, 256
        $region40: #{custom_clip_matrix_forward.39} parent=35 // pred_fallthru
          _
      $region36: #{custom_clip_matrix_forward.39} parent=5 // pred_fallthru
        _
    $region6: #{custom_clip_matrix_forward.39} parent=1 // loop_footer
      %s17 = sadd.s32 1, %s13
    $region7: #{custom_clip_matrix_forward.39} parent=1 // loop_footer_branch
      %12 = sbr.rel target = $region3
    $region8: #{custom_clip_matrix_forward.39} parent=1 // loop_exit
      _
    %1440 = vsyncpa [#allocation3], 1
    %s1441 = scalar_lea.sflag [#allocation3], 1
    %1442 = vsyncpa %s1441, 1
    %1443 = vsyncpa [#allocation4], 1
    %s1444 = scalar_lea.sflag [#allocation4], 1
    %1445 = vsyncpa %s1444, 1

// kernel: custom_clip_matrix_forward.42
$region0: #{custom_clip_matrix_forward.42}
  #allocation0 [shape = 'u32[]', space=smem, size = 0x4, offset = 0x4, fixed_abs, tag = 'smem constant byte address 0x4 - core index']
  #allocation1 [shape = 'u32[144,128]{1,0:T(1,128)}', space=vmem, size = 0x12000, scoped, tag = 'internal scratch']
  %s0 = inlined_call_operand.hbm [shape: bf16[96,256], index: 0, kind: input, shape index: {}]
  %s1 = inlined_call_operand.hbm [shape: bf16[256,64], index: 1, kind: input, shape index: {}]
  %s2 = inlined_call_operand.hbm [shape: bf16[96,64], index: 2, kind: input, shape index: {}]
  %s3 = inlined_call_operand.hbm [shape: bf16[1,64], index: 3, kind: input, shape index: {}]
  %s4 = inlined_call_operand.hbm [shape: bf16[96,64], index: 4, kind: output, shape index: {}]
  %s5 = sld [smem:[#allocation0]]
  $region42: #{custom_clip_matrix_forward.42} parent=0
    _
  %s7 = ssub.s32 1, %s5
  %s8 = scalar_select 0, %s7, %s5
  $region1: #{custom_clip_matrix_forward.42} parent=0
    #allocation2 [shape = 'u8[49152]{0}', space=vmem, size = 0xc000, scoped, tag = 'input window, operand 0, single buffered']
    #allocation3 [shape = 's32[1]{0}', space=sflag, size = 0x4, scoped, tag = 'scoped memory for custom_clip_matrix_forward.42']
    #allocation4 [shape = 's32[1]{0}', space=sflag, size = 0x4, scoped, tag = 'scoped memory for custom_clip_matrix_forward.42']
    #allocation5 [shape = 'u8[65536]{0}', space=vmem, size = 0x10000, scoped, tag = 'input window, operand 1, single buffered']
    #allocation6 [shape = 's32[1]{0}', space=sflag, size = 0x4, scoped, tag = 'scoped memory for custom_clip_matrix_forward.42']
    #allocation7 [shape = 'u8[24576]{0}', space=vmem, size = 0x6000, scoped, tag = 'input window, operand 2, single buffered']
    #allocation8 [shape = 'u8[512]{0}', space=vmem, size = 0x400, scoped, tag = 'input window, operand 3, single buffered']
    #allocation9 [shape = 's32[1]{0}', space=sflag, size = 0x4, scoped, tag = 'scoped memory for custom_clip_matrix_forward.42']
    #allocation10 [shape = 'u8[24576]{0}', space=vmem, size = 0x6000, scoped, tag = 'output window, operand 0, single buffered']
    %9 = vsyncpa [#allocation3], 0
    %10 = vsyncpa [#allocation6], 0
    %11 = vsyncpa [#allocation9], 0
    %12 = vsyncpa [#allocation4], 0
    // Predicated region
    $region2: #{custom_clip_matrix_forward.42} parent=1 // pred_check
      _
    $region3: #{custom_clip_matrix_forward.42} parent=1 // pred_check_branch
      %14 = sbr.rel (0) target = $region5
    $region4: #{custom_clip_matrix_forward.42} parent=1 // pred_region
      %s16 = ssub.s32 1536, 1536
      %17 = vsyncadd [#allocation3], %s16
      %s18 = sshll.u32 [#allocation2], 4
      %s19 = int_to_ptr.vmem [resolvable:$true] %s18
      %24 = dma.hbm_to_vmem [thread:$0]  %s0, 1536, %s19, [#allocation3], 128, 128, 8
    $region5: #{custom_clip_matrix_forward.42} parent=1 // pred_fallthru
      _
    // Predicated region
    $region6: #{custom_clip_matrix_forward.42} parent=1 // pred_check
      _
    $region7: #{custom_clip_matrix_forward.42} parent=1 // pred_check_branch
      %26 = sbr.rel (0) target = $region9
    $region8: #{custom_clip_matrix_forward.42} parent=1 // pred_region
      %s28 = ssub.s32 2048, 2048
      %29 = vsyncadd [#allocation6], %s28
      %s30 = sshll.u32 [#allocation5], 4
      %s31 = int_to_ptr.vmem [resolvable:$true] %s30
      %36 = dma.hbm_to_vmem [thread:$0]  %s1, 2048, %s31, [#allocation6], 64, 64, 4
    $region9: #{custom_clip_matrix_forward.42} parent=1 // pred_fallthru
      _
    // Predicated region
    $region10: #{custom_clip_matrix_forward.42} parent=1 // pred_check
      _
    $region11: #{custom_clip_matrix_forward.42} parent=1 // pred_check_branch
      %38 = sbr.rel (0) target = $region13
    $region12: #{custom_clip_matrix_forward.42} parent=1 // pred_region
      %s40 = ssub.s32 768, 768
      %41 = vsyncadd [#allocation6], %s40
      %s42 = sshll.u32 [#allocation7], 4
      %s43 = int_to_ptr.vmem [resolvable:$true] %s42
      %48 = dma.hbm_to_vmem [thread:$0]  %s2, 768, %s43, [#allocation6], 64, 64, 4
    $region13: #{custom_clip_matrix_forward.42} parent=1 // pred_fallthru
      _
    // Predicated region
    $region14: #{custom_clip_matrix_forward.42} parent=1 // pred_check
      _
    $region15: #{custom_clip_matrix_forward.42} parent=1 // pred_check_branch
      %50 = sbr.rel (0) target = $region17
    $region16: #{custom_clip_matrix_forward.42} parent=1 // pred_region
      %s52 = ssub.s32 16, 16
      %53 = vsyncadd [#allocation9], %s52
      %s55 = sshll.u32 [#allocation8], 4
      %s56 = int_to_ptr.vmem [resolvable:$true] %s55
      %58 = dma.hbm_to_vmem [thread:$0]  %s3, 16, %s56, [#allocation9]
    $region17: #{custom_clip_matrix_forward.42} parent=1 // pred_fallthru
      _
    // Predicated region
    $region18: #{custom_clip_matrix_forward.42} parent=1 // pred_check
      _
    $region19: #{custom_clip_matrix_forward.42} parent=1 // pred_check_branch
      %60 = sbr.rel (0) target = $region21
    $region20: #{custom_clip_matrix_forward.42} parent=1 // pred_region
      %61 = dma.done [#allocation3], 1536
    $region21: #{custom_clip_matrix_forward.42} parent=1 // pred_fallthru
      _
    // Predicated region
    $region22: #{custom_clip_matrix_forward.42} parent=1 // pred_check
      _
    $region23: #{custom_clip_matrix_forward.42} parent=1 // pred_check_branch
      %63 = sbr.rel (0) target = $region25
    $region24: #{custom_clip_matrix_forward.42} parent=1 // pred_region
      %64 = dma.done [#allocation6], 2048
    $region25: #{custom_clip_matrix_forward.42} parent=1 // pred_fallthru
      _
    // Predicated region
    $region26: #{custom_clip_matrix_forward.42} parent=1 // pred_check
      _
    $region27: #{custom_clip_matrix_forward.42} parent=1 // pred_check_branch
      %66 = sbr.rel (0) target = $region29
    $region28: #{custom_clip_matrix_forward.42} parent=1 // pred_region
      %67 = dma.done [#allocation6], 768
    $region29: #{custom_clip_matrix_forward.42} parent=1 // pred_fallthru
      _
    // Predicated region
    $region30: #{custom_clip_matrix_forward.42} parent=1 // pred_check
      _
    $region31: #{custom_clip_matrix_forward.42} parent=1 // pred_check_branch
      %69 = sbr.rel (0) target = $region33
    $region32: #{custom_clip_matrix_forward.42} parent=1 // pred_region
      %70 = dma.done [#allocation9], 16
    $region33: #{custom_clip_matrix_forward.42} parent=1 // pred_fallthru
      _
    %v72 = vld [vmem:[#allocation2] sm:$0xff]
    %v73 = vld [vmem:[#allocation2 + $0x8] sm:$0xff]
    %v74 = vld [vmem:[#allocation2 + $0x10] sm:$0xff]
    %v75 = vld [vmem:[#allocation2 + $0x18] sm:$0xff]
    %v76 = vld [vmem:[#allocation2 + $0x20] sm:$0xff]
    %v77 = vld [vmem:[#allocation2 + $0x28] sm:$0xff]
    %v78 = vld [vmem:[#allocation2 + $0x30] sm:$0xff]
    %v79 = vld [vmem:[#allocation2 + $0x38] sm:$0xff]
    %v80 = vld [vmem:[#allocation2 + $0x40] sm:$0xff]
    %v81 = vld [vmem:[#allocation2 + $0x48] sm:$0xff]
    %v82 = vld [vmem:[#allocation2 + $0x50] sm:$0xff]
    %v83 = vld [vmem:[#allocation2 + $0x58] sm:$0xff]
    %v84 = vld [vmem:[#allocation5] sm:$0xf]
    %v85 = vld [vmem:[#allocation5 + $0x4] sm:$0xf]
    %v86 = vld [vmem:[#allocation5 + $0x8] sm:$0xf]
    %v87 = vld [vmem:[#allocation5 + $0xc] sm:$0xf]
    %v88 = vld [vmem:[#allocation5 + $0x10] sm:$0xf]
    %v89 = vld [vmem:[#allocation5 + $0x14] sm:$0xf]
    %v90 = vld [vmem:[#allocation5 + $0x18] sm:$0xf]
    %v91 = vld [vmem:[#allocation5 + $0x1c] sm:$0xf]
    %v92 = vld [vmem:[#allocation5 + $0x20] sm:$0xf]
    %v93 = vld [vmem:[#allocation5 + $0x24] sm:$0xf]
    %v94 = vld [vmem:[#allocation5 + $0x28] sm:$0xf]
    %v95 = vld [vmem:[#allocation5 + $0x2c] sm:$0xf]
    %v96 = vld [vmem:[#allocation5 + $0x30] sm:$0xf]
    %v97 = vld [vmem:[#allocation5 + $0x34] sm:$0xf]
    %v98 = vld [vmem:[#allocation5 + $0x38] sm:$0xf]
    %v99 = vld [vmem:[#allocation5 + $0x3c] sm:$0xf]
    %v100 = vld [vmem:[#allocation5 + $0x40] sm:$0xf]
    %v101 = vld [vmem:[#allocation5 + $0x44] sm:$0xf]
    %v102 = vld [vmem:[#allocation5 + $0x48] sm:$0xf]
    %v103 = vld [vmem:[#allocation5 + $0x4c] sm:$0xf]
    %v104 = vld [vmem:[#allocation5 + $0x50] sm:$0xf]
    %v105 = vld [vmem:[#allocation5 + $0x54] sm:$0xf]
    %v106 = vld [vmem:[#allocation5 + $0x58] sm:$0xf]
    %v107 = vld [vmem:[#allocation5 + $0x5c] sm:$0xf]
    %v108 = vld [vmem:[#allocation5 + $0x60] sm:$0xf]
    %v109 = vld [vmem:[#allocation5 + $0x64] sm:$0xf]
    %v110 = vld [vmem:[#allocation5 + $0x68] sm:$0xf]
    %v111 = vld [vmem:[#allocation5 + $0x6c] sm:$0xf]
    %v112 = vld [vmem:[#allocation5 + $0x70] sm:$0xf]
    %v113 = vld [vmem:[#allocation5 + $0x74] sm:$0xf]
    %v114 = vld [vmem:[#allocation5 + $0x78] sm:$0xf]
    %v115 = vld [vmem:[#allocation5 + $0x7c] sm:$0xf]
    %v116 = vld [vmem:[#allocation8] sm:$0x1]
    %v117 = vunpack.c.l.bf16 %v116
    %v118 = vlaneseq
    %v119 = vshrl.u32 %v118, 7
    %v120 = vsub.s32 0, %v119
    %v121 = vrot.slane %v117, %v120
    %v134 = vunpack.c.l.b16 %v72
    %v135 = vunpack.c.h.b16 %v72
    %v136 = vunpack.c.l.b16 %v73
    %v137 = vunpack.c.h.b16 %v73
    %v138 = vunpack.c.l.b16 %v74
    %v139 = vunpack.c.h.b16 %v74
    %v140 = vunpack.c.l.b16 %v75
    %v141 = vunpack.c.h.b16 %v75
    %v142 = vunpack.c.l.b16 %v76
    %v143 = vunpack.c.h.b16 %v76
    %v144 = vunpack.c.l.b16 %v77
    %v145 = vunpack.c.h.b16 %v77
    %v146 = vunpack.c.l.b16 %v78
    %v147 = vunpack.c.h.b16 %v78
    %v148 = vunpack.c.l.b16 %v79
    %v149 = vunpack.c.h.b16 %v79
    %v150 = vunpack.c.l.b16 %v80
    %v151 = vunpack.c.h.b16 %v80
    %v152 = vunpack.c.l.b16 %v81
    %v153 = vunpack.c.h.b16 %v81
    %v154 = vunpack.c.l.b16 %v82
    %v155 = vunpack.c.h.b16 %v82
    %v156 = vunpack.c.l.b16 %v83
    %v157 = vunpack.c.h.b16 %v83
    %v158 = vpack.c.b16 %v136, %v134
    %v159 = vpack.c.b16 %v137, %v135
    %v160 = vpack.c.b16 %v140, %v138
    %v161 = vpack.c.b16 %v141, %v139
    %v162 = vpack.c.b16 %v144, %v142
    %v163 = vpack.c.b16 %v145, %v143
    %v164 = vpack.c.b16 %v148, %v146
    %v165 = vpack.c.b16 %v149, %v147
    %v166 = vpack.c.b16 %v152, %v150
    %v167 = vpack.c.b16 %v153, %v151
    %v168 = vpack.c.b16 %v156, %v154
    %v169 = vpack.c.b16 %v157, %v155
    %v214 = vunpack.c.l.b16 %v84
    %v215 = vunpack.c.l.b16 %v85
    %v216 = vunpack.c.l.b16 %v86
    %v217 = vunpack.c.l.b16 %v87
    %v218 = vunpack.c.l.b16 %v88
    %v219 = vunpack.c.l.b16 %v89
    %v220 = vunpack.c.l.b16 %v90
    %v221 = vunpack.c.l.b16 %v91
    %v222 = vunpack.c.l.b16 %v92
    %v223 = vunpack.c.l.b16 %v93
    %v224 = vunpack.c.l.b16 %v94
    %v225 = vunpack.c.l.b16 %v95
    %v226 = vunpack.c.l.b16 %v96
    %v227 = vunpack.c.l.b16 %v97
    %v228 = vunpack.c.l.b16 %v98
    %v229 = vunpack.c.l.b16 %v99
    %v230 = vunpack.c.l.b16 %v100
    %v231 = vunpack.c.l.b16 %v101
    %v232 = vunpack.c.l.b16 %v102
    %v233 = vunpack.c.l.b16 %v103
    %v234 = vunpack.c.l.b16 %v104
    %v235 = vunpack.c.l.b16 %v105
    %v236 = vunpack.c.l.b16 %v106
    %v237 = vunpack.c.l.b16 %v107
    %v238 = vunpack.c.l.b16 %v108
    %v239 = vunpack.c.l.b16 %v109
    %v240 = vunpack.c.l.b16 %v110
    %v241 = vunpack.c.l.b16 %v111
    %v242 = vunpack.c.l.b16 %v112
    %v243 = vunpack.c.l.b16 %v113
    %v244 = vunpack.c.l.b16 %v114
    %v245 = vunpack.c.l.b16 %v115
    %v246 = vpack.c.b16 %v215, %v214
    %v247 = vpack.c.b16 %v217, %v216
    %v248 = vpack.c.b16 %v219, %v218
    %v249 = vpack.c.b16 %v221, %v220
    %v250 = vpack.c.b16 %v223, %v222
    %v251 = vpack.c.b16 %v225, %v224
    %v252 = vpack.c.b16 %v227, %v226
    %v253 = vpack.c.b16 %v229, %v228
    %v254 = vpack.c.b16 %v231, %v230
    %v255 = vpack.c.b16 %v233, %v232
    %v256 = vpack.c.b16 %v235, %v234
    %v257 = vpack.c.b16 %v237, %v236
    %v258 = vpack.c.b16 %v239, %v238
    %v259 = vpack.c.b16 %v241, %v240
    %v260 = vpack.c.b16 %v243, %v242
    %v261 = vpack.c.b16 %v245, %v244
    %278 = vmatprep.subr.bf16.mxu0 0
    %279 = vmatpush1.bf16.msra.mxu0 %v246
    %280 = vmatprep.subr.bf16.mxu0 0
    %281 = vmatpush1.bf16.msra.mxu0 %v247
    %282 = vmatprep.subr.bf16.mxu0 0
    %283 = vmatpush1.bf16.msra.mxu0 %v248
    %284 = vmatprep.subr.bf16.mxu0 0
    %285 = vmatpush1.bf16.msra.mxu0 %v249
    %286 = vmatprep.subr.bf16.mxu0 0
    %287 = vmatpush1.bf16.msra.mxu0 %v250
    %288 = vmatprep.subr.bf16.mxu0 0
    %289 = vmatpush1.bf16.msra.mxu0 %v251
    %290 = vmatprep.subr.bf16.mxu0 0
    %291 = vmatpush1.bf16.msra.mxu0 %v252
    %292 = vmatprep.subr.bf16.mxu0 0
    %293 = vmatpush1.bf16.msra.mxu0 %v253
    %294 = vmatprep.subr.bf16.mxu0 0
    %295 = vmatpush1.bf16.msra.mxu0 %v254
    %296 = vmatprep.subr.bf16.mxu0 0
    %297 = vmatpush1.bf16.msra.mxu0 %v255
    %298 = vmatprep.subr.bf16.mxu0 0
    %299 = vmatpush1.bf16.msra.mxu0 %v256
    %300 = vmatprep.subr.bf16.mxu0 0
    %301 = vmatpush1.bf16.msra.mxu0 %v257
    %302 = vmatprep.subr.bf16.mxu0 0
    %303 = vmatpush1.bf16.msra.mxu0 %v258
    %304 = vmatprep.subr.bf16.mxu0 0
    %305 = vmatpush1.bf16.msra.mxu0 %v259
    %306 = vmatprep.subr.bf16.mxu0 0
    %307 = vmatpush1.bf16.msra.mxu0 %v260
    %308 = vmatprep.subr.bf16.mxu0 0
    %309 = vmatpush1.bf16.msra.mxu0 %v261
    %310 = vmatprep.mubr.bf16.mxu0 %v159
    %311 = vmatmul.mubr.bf16.gmra.mrb[0].mxu0 %v158
    %v312 = vpop.f32.mrb[0].mxu0
    %v313 = vadd.f32 %v121, %v312
    %v314 = vpop.f32.mrb[0].mxu0
    %v315 = vpop.f32.mrb[0].mxu0
    %v316 = vadd.f32 %v121, %v315
    %v317 = vpop.f32.mrb[0].mxu0
    %318 = vmatprep.mubr.bf16.mxu0 %v161
    %319 = vmatmul.mubr.bf16.gmra.mrb[0].mxu0 %v160
    %v320 = vpop.f32.mrb[0].mxu0
    %v321 = vadd.f32 %v121, %v320
    %v322 = vpop.f32.mrb[0].mxu0
    %v323 = vpop.f32.mrb[0].mxu0
    %v324 = vadd.f32 %v121, %v323
    %v325 = vpop.f32.mrb[0].mxu0
    %326 = vmatprep.mubr.bf16.mxu0 %v163
    %327 = vmatmul.mubr.bf16.gmra.mrb[0].mxu0 %v162
    %v328 = vpop.f32.mrb[0].mxu0
    %v329 = vadd.f32 %v121, %v328
    %v330 = vpop.f32.mrb[0].mxu0
    %v331 = vpop.f32.mrb[0].mxu0
    %v332 = vadd.f32 %v121, %v331
    %v333 = vpop.f32.mrb[0].mxu0
    %334 = vmatprep.mubr.bf16.mxu0 %v165
    %335 = vmatmul.mubr.bf16.gmra.mrb[0].mxu0 %v164
    %v336 = vpop.f32.mrb[0].mxu0
    %v337 = vadd.f32 %v121, %v336
    %v338 = vpop.f32.mrb[0].mxu0
    %v339 = vpop.f32.mrb[0].mxu0
    %v340 = vadd.f32 %v121, %v339
    %v341 = vpop.f32.mrb[0].mxu0
    %342 = vmatprep.mubr.bf16.mxu0 %v167
    %343 = vmatmul.mubr.bf16.gmra.mrb[0].mxu0 %v166
    %v344 = vpop.f32.mrb[0].mxu0
    %v345 = vadd.f32 %v121, %v344
    %v346 = vpop.f32.mrb[0].mxu0
    %v347 = vpop.f32.mrb[0].mxu0
    %v348 = vadd.f32 %v121, %v347
    %v349 = vpop.f32.mrb[0].mxu0
    %350 = vmatprep.mubr.bf16.mxu0 %v169
    %351 = vmatmul.mubr.bf16.gmra.mrb[0].mxu0 %v168
    %v352 = vpop.f32.mrb[0].mxu0
    %v353 = vadd.f32 %v121, %v352
    %v354 = vpop.f32.mrb[0].mxu0
    %v355 = vpop.f32.mrb[0].mxu0
    %v356 = vadd.f32 %v121, %v355
    %v357 = vpop.f32.mrb[0].mxu0
    %358 = vdwg.mxu0
    %v359 = vld [vmem:[#allocation7] sm:$0xf]
    %v360 = vld [vmem:[#allocation7 + $0x4] sm:$0xf]
    %v361 = vld [vmem:[#allocation7 + $0x8] sm:$0xf]
    %v362 = vld [vmem:[#allocation7 + $0xc] sm:$0xf]
    %v363 = vld [vmem:[#allocation7 + $0x10] sm:$0xf]
    %v364 = vld [vmem:[#allocation7 + $0x14] sm:$0xf]
    %v365 = vld [vmem:[#allocation7 + $0x18] sm:$0xf]
    %v366 = vld [vmem:[#allocation7 + $0x1c] sm:$0xf]
    %v367 = vld [vmem:[#allocation7 + $0x20] sm:$0xf]
    %v368 = vld [vmem:[#allocation7 + $0x24] sm:$0xf]
    %v369 = vld [vmem:[#allocation7 + $0x28] sm:$0xf]
    %v370 = vld [vmem:[#allocation7 + $0x2c] sm:$0xf]
    %v371 = vunpack.c.l.bf16 %v359
    %v372 = vunpack.c.l.bf16 %v360
    %v373 = vunpack.c.l.bf16 %v361
    %v374 = vunpack.c.l.bf16 %v362
    %v375 = vunpack.c.l.bf16 %v363
    %v376 = vunpack.c.l.bf16 %v364
    %v377 = vunpack.c.l.bf16 %v365
    %v378 = vunpack.c.l.bf16 %v366
    %v379 = vunpack.c.l.bf16 %v367
    %v380 = vunpack.c.l.bf16 %v368
    %v381 = vunpack.c.l.bf16 %v369
    %v382 = vunpack.c.l.bf16 %v370
    %v383 = vadd.f32 %v313, %v371
    %v384 = vadd.f32 %v316, %v372
    %v385 = vadd.f32 %v321, %v373
    %v386 = vadd.f32 %v324, %v374
    %v387 = vadd.f32 %v329, %v375
    %v388 = vadd.f32 %v332, %v376
    %v389 = vadd.f32 %v337, %v377
    %v390 = vadd.f32 %v340, %v378
    %v391 = vadd.f32 %v345, %v379
    %v392 = vadd.f32 %v348, %v380
    %v393 = vadd.f32 %v353, %v381
    %v394 = vadd.f32 %v356, %v382
    %v395 = vpack.c.bf16 %v384, %v383
    %v396 = vpack.c.bf16 %v386, %v385
    %v397 = vpack.c.bf16 %v388, %v387
    %v398 = vpack.c.bf16 %v390, %v389
    %v399 = vpack.c.bf16 %v392, %v391
    %v400 = vpack.c.bf16 %v394, %v393
    %v407 = vunpack.c.l.b16 %v395
    %v408 = vunpack.c.h.b16 %v395
    %v409 = vunpack.c.l.b16 %v396
    %v410 = vunpack.c.h.b16 %v396
    %v411 = vunpack.c.l.b16 %v397
    %v412 = vunpack.c.h.b16 %v397
    %v413 = vunpack.c.l.b16 %v398
    %v414 = vunpack.c.h.b16 %v398
    %v415 = vunpack.c.l.b16 %v399
    %v416 = vunpack.c.h.b16 %v399
    %v417 = vunpack.c.l.b16 %v400
    %v418 = vunpack.c.h.b16 %v400
    %v419 = vpack.c.b16 %v407, %v407
    %v420 = vpack.c.b16 %v408, %v408
    %v421 = vpack.c.b16 %v409, %v409
    %v422 = vpack.c.b16 %v410, %v410
    %v423 = vpack.c.b16 %v411, %v411
    %v424 = vpack.c.b16 %v412, %v412
    %v425 = vpack.c.b16 %v413, %v413
    %v426 = vpack.c.b16 %v414, %v414
    %v427 = vpack.c.b16 %v415, %v415
    %v428 = vpack.c.b16 %v416, %v416
    %v429 = vpack.c.b16 %v417, %v417
    %v430 = vpack.c.b16 %v418, %v418
    %vm443 = vcmask 519168
    %444 = vst.msk [vmem:[#allocation10] sm:$0xf] %vm443, %v419
    %445 = vst.msk [vmem:[#allocation10 + $0x4] sm:$0xf] %vm443, %v420
    %446 = vst.msk [vmem:[#allocation10 + $0x8] sm:$0xf] %vm443, %v421
    %447 = vst.msk [vmem:[#allocation10 + $0xc] sm:$0xf] %vm443, %v422
    %448 = vst.msk [vmem:[#allocation10 + $0x10] sm:$0xf] %vm443, %v423
    %449 = vst.msk [vmem:[#allocation10 + $0x14] sm:$0xf] %vm443, %v424
    %450 = vst.msk [vmem:[#allocation10 + $0x18] sm:$0xf] %vm443, %v425
    %451 = vst.msk [vmem:[#allocation10 + $0x1c] sm:$0xf] %vm443, %v426
    %452 = vst.msk [vmem:[#allocation10 + $0x20] sm:$0xf] %vm443, %v427
    %453 = vst.msk [vmem:[#allocation10 + $0x24] sm:$0xf] %vm443, %v428
    %454 = vst.msk [vmem:[#allocation10 + $0x28] sm:$0xf] %vm443, %v429
    %455 = vst.msk [vmem:[#allocation10 + $0x2c] sm:$0xf] %vm443, %v430
    // Predicated region
    $region34: #{custom_clip_matrix_forward.42} parent=1 // pred_check
      _
    $region35: #{custom_clip_matrix_forward.42} parent=1 // pred_check_branch
      %457 = sbr.rel (0) target = $region37
    $region36: #{custom_clip_matrix_forward.42} parent=1 // pred_region
      %s459 = ssub.s32 768, 768
      %460 = vsyncadd [#allocation4], %s459
      %s461 = sshll.u32 [#allocation10], 4
      %s462 = int_to_ptr.vmem [resolvable:$true] %s461
      %467 = dma.vmem_to_hbm [thread:$0]  %s462, 768, %s4, [#allocation4], 64, 64, 4
    $region37: #{custom_clip_matrix_forward.42} parent=1 // pred_fallthru
      _
    // Predicated region
    $region38: #{custom_clip_matrix_forward.42} parent=1 // pred_check
      _
    $region39: #{custom_clip_matrix_forward.42} parent=1 // pred_check_branch
      %469 = sbr.rel (0) target = $region41
    $region40: #{custom_clip_matrix_forward.42} parent=1 // pred_region
      %470 = dma.done [#allocation4], 768
    $region41: #{custom_clip_matrix_forward.42} parent=1 // pred_fallthru
      _
    %471 = vsyncpa [#allocation3], 1
    %472 = vsyncpa [#allocation6], 1
    %473 = vsyncpa [#allocation9], 1
    %474 = vsyncpa [#allocation4], 1

// kernel: custom_clip_matrix_forward.49
$region0: #{custom_clip_matrix_forward.49}
  #allocation0 [shape = 'u32[]', space=smem, size = 0x4, offset = 0x4, fixed_abs, tag = 'smem constant byte address 0x4 - core index']
  #allocation1 [shape = 'u32[144,128]{1,0:T(1,128)}', space=vmem, size = 0x12000, scoped, tag = 'internal scratch']
  #allocation2 [shape = 'f32[1,1]{1,0:T(1,128)S(6)}', space=smem, size = 0x200, scoped, tag = 'scoped memory for custom_clip_matrix_forward.49']
  %s0 = inlined_call_operand.hbm [shape: f32[2,64], index: 0, kind: input, shape index: {}]
  %s1 = inlined_call_operand.hbm [shape: f32[6,64], index: 1, kind: input, shape index: {}]
  %s2 = inlined_call_operand.<no memory space> [shape: f32[1,1], index: 2, kind: input, shape index: {}]
  %s3 = inlined_call_operand.hbm [shape: f32[2,6], index: 3, kind: output, shape index: {}]
  %s4 = sld [smem:[#allocation0]]
  $region30: #{custom_clip_matrix_forward.49} parent=0
    _
  %s6 = ssub.s32 1, %s4
  %s7 = scalar_select 0, %s6, %s4
  %8 = sst [smem:[#allocation2]] %s2
  $region1: #{custom_clip_matrix_forward.49} parent=0
    #allocation3 [shape = 'u8[1024]{0}', space=vmem, size = 0x400, scoped, tag = 'input window, operand 0, single buffered']
    #allocation4 [shape = 's32[1]{0}', space=sflag, size = 0x4, scoped, tag = 'scoped memory for custom_clip_matrix_forward.49']
    #allocation5 [shape = 's32[1]{0}', space=sflag, size = 0x4, scoped, tag = 'scoped memory for custom_clip_matrix_forward.49']
    #allocation6 [shape = 'u8[4096]{0}', space=vmem, size = 0x1000, scoped, tag = 'input window, operand 1, single buffered']
    #allocation7 [shape = 's32[1]{0}', space=sflag, size = 0x4, scoped, tag = 'scoped memory for custom_clip_matrix_forward.49']
    #allocation8 [shape = 'u8[1024]{0}', space=vmem, size = 0x400, scoped, tag = 'output window, operand 0, single buffered']
    %9 = vsyncpa [#allocation4], 0
    %10 = vsyncpa [#allocation7], 0
    %11 = vsyncpa [#allocation5], 0
    // Predicated region
    $region2: #{custom_clip_matrix_forward.49} parent=1 // pred_check
      _
    $region3: #{custom_clip_matrix_forward.49} parent=1 // pred_check_branch
      %13 = sbr.rel (0) target = $region5
    $region4: #{custom_clip_matrix_forward.49} parent=1 // pred_region
      %s15 = ssub.s32 32, 32
      %16 = vsyncadd [#allocation4], %s15
      %s18 = sshll.u32 [#allocation3], 4
      %s19 = int_to_ptr.vmem [resolvable:$true] %s18
      %21 = dma.hbm_to_vmem [thread:$0]  %s0, 32, %s19, [#allocation4]
    $region5: #{custom_clip_matrix_forward.49} parent=1 // pred_fallthru
      _
    // Predicated region
    $region6: #{custom_clip_matrix_forward.49} parent=1 // pred_check
      _
    $region7: #{custom_clip_matrix_forward.49} parent=1 // pred_check_branch
      %23 = sbr.rel (0) target = $region9
    $region8: #{custom_clip_matrix_forward.49} parent=1 // pred_region
      %s25 = ssub.s32 128, 128
      %26 = vsyncadd [#allocation7], %s25
      %s28 = sshll.u32 [#allocation6], 4
      %s29 = int_to_ptr.vmem [resolvable:$true] %s28
      %31 = dma.hbm_to_vmem [thread:$0]  %s1, 128, %s29, [#allocation7]
    $region9: #{custom_clip_matrix_forward.49} parent=1 // pred_fallthru
      _
    // Predicated region
    $region10: #{custom_clip_matrix_forward.49} parent=1 // pred_check
      _
    $region11: #{custom_clip_matrix_forward.49} parent=1 // pred_check_branch
      %33 = sbr.rel (0) target = $region13
    $region12: #{custom_clip_matrix_forward.49} parent=1 // pred_region
      _
    $region13: #{custom_clip_matrix_forward.49} parent=1 // pred_fallthru
      _
    // Predicated region
    $region14: #{custom_clip_matrix_forward.49} parent=1 // pred_check
      _
    $region15: #{custom_clip_matrix_forward.49} parent=1 // pred_check_branch
      %35 = sbr.rel (0) target = $region17
    $region16: #{custom_clip_matrix_forward.49} parent=1 // pred_region
      %36 = dma.done [#allocation4], 32
    $region17: #{custom_clip_matrix_forward.49} parent=1 // pred_fallthru
      _
    // Predicated region
    $region18: #{custom_clip_matrix_forward.49} parent=1 // pred_check
      _
    $region19: #{custom_clip_matrix_forward.49} parent=1 // pred_check_branch
      %38 = sbr.rel (0) target = $region21
    $region20: #{custom_clip_matrix_forward.49} parent=1 // pred_region
      %39 = dma.done [#allocation7], 128
    $region21: #{custom_clip_matrix_forward.49} parent=1 // pred_fallthru
      _
    %v41 = vld [vmem:[#allocation3] sm:$0x3]
    %v42 = vld [vmem:[#allocation6] sm:$0x3f]
    %v43 = vpack.c.bf16 %v41, %v41
    %v44 = vpack.c.bf16 %v42, %v42
    %vm45 = vcmask 523264
    %v47 = vsel %vm45, %v43, 0
    %v50 = vsel %vm45, %v44, 0
    %52 = vmatprep.subr.bf16.mxu0 0
    %53 = vmatpush1.bf16.xpose.msra.mxu0 %v50
    %54 = vmatprep.subr.bf16.mxu0 0
    %55 = vmatpush1.bf16.xpose.msra.mxu0 0
    %56 = vmatprep.subr.bf16.mxu0 0
    %57 = vmatpush1.bf16.xpose.msra.mxu0 0
    %58 = vmatprep.subr.bf16.mxu0 0
    %59 = vmatpush1.bf16.xpose.msra.mxu0 0
    %60 = vmatprep.subr.bf16.mxu0 0
    %61 = vmatpush1.bf16.xpose.msra.mxu0 0
    %62 = vmatprep.subr.bf16.mxu0 0
    %63 = vmatpush1.bf16.xpose.msra.mxu0 0
    %64 = vmatprep.subr.bf16.mxu0 0
    %65 = vmatpush1.bf16.xpose.msra.mxu0 0
    %66 = vmatprep.subr.bf16.mxu0 0
    %67 = vmatpush1.bf16.xpose.msra.mxu0 0
    %68 = vmatprep.subr.bf16.mxu0 0
    %69 = vmatpush1.bf16.xpose.msra.mxu0 0
    %70 = vmatprep.subr.bf16.mxu0 0
    %71 = vmatpush1.bf16.xpose.msra.mxu0 0
    %72 = vmatprep.subr.bf16.mxu0 0
    %73 = vmatpush1.bf16.xpose.msra.mxu0 0
    %74 = vmatprep.subr.bf16.mxu0 0
    %75 = vmatpush1.bf16.xpose.msra.mxu0 0
    %76 = vmatprep.subr.bf16.mxu0 0
    %77 = vmatpush1.bf16.xpose.msra.mxu0 0
    %78 = vmatprep.subr.bf16.mxu0 0
    %79 = vmatpush1.bf16.xpose.msra.mxu0 0
    %80 = vmatprep.subr.bf16.mxu0 0
    %81 = vmatpush1.bf16.xpose.msra.mxu0 0
    %82 = vmatprep.subr.bf16.mxu0 0
    %83 = vmatpush1.bf16.xpose.msra.mxu0 0
    %84 = vmatprep.mubr.bf16.mxu0 0
    %85 = vmatmul.mubr.bf16.gmra.mrb[0].mxu0 %v47
    %v86 = vpop.f32.mrb[0].mxu0
    %v87 = vadd.f32 0.0, %v86
    %v88 = vpop.f32.mrb[0].mxu0
    %v89 = vpop.f32.mrb[0].mxu0
    %v90 = vpop.f32.mrb[0].mxu0
    %91 = vdwg.mxu0
    %s92 = sld [smem:[#allocation2]]
    %v93 = vstv %s92
    %v94 = vmul.f32 %v87, %v93
    %vm95 = vcmask 41984
    %96 = vst.msk [vmem:[#allocation8] sm:$0x3] %vm95, %v94
    // Predicated region
    $region22: #{custom_clip_matrix_forward.49} parent=1 // pred_check
      _
    $region23: #{custom_clip_matrix_forward.49} parent=1 // pred_check_branch
      %98 = sbr.rel (0) target = $region25
    $region24: #{custom_clip_matrix_forward.49} parent=1 // pred_region
      %s100 = ssub.s32 32, 32
      %101 = vsyncadd [#allocation5], %s100
      %s103 = sshll.u32 [#allocation8], 4
      %s104 = int_to_ptr.vmem [resolvable:$true] %s103
      %106 = dma.vmem_to_hbm [thread:$0]  %s104, 32, %s3, [#allocation5]
    $region25: #{custom_clip_matrix_forward.49} parent=1 // pred_fallthru
      _
    // Predicated region
    $region26: #{custom_clip_matrix_forward.49} parent=1 // pred_check
      _
    $region27: #{custom_clip_matrix_forward.49} parent=1 // pred_check_branch
      %108 = sbr.rel (0) target = $region29
    $region28: #{custom_clip_matrix_forward.49} parent=1 // pred_region
      %109 = dma.done [#allocation5], 32
    $region29: #{custom_clip_matrix_forward.49} parent=1 // pred_fallthru
      _
    %110 = vsyncpa [#allocation4], 1
    %111 = vsyncpa [#allocation7], 1
    %112 = vsyncpa [#allocation5], 1

// kernel: custom_clip_matrix_forward.48
$region0: #{custom_clip_matrix_forward.48}
  #allocation0 [shape = 'u32[]', space=smem, size = 0x4, offset = 0x4, fixed_abs, tag = 'smem constant byte address 0x4 - core index']
  #allocation1 [shape = 'u32[144,128]{1,0:T(1,128)}', space=vmem, size = 0x12000, scoped, tag = 'internal scratch']
  %s0 = inlined_call_operand.hbm [shape: bf16[6,64], index: 0, kind: input, shape index: {}]
  %s1 = inlined_call_operand.hbm [shape: bf16[64,64], index: 1, kind: input, shape index: {}]
  %s2 = inlined_call_operand.hbm [shape: bf16[1,64], index: 2, kind: input, shape index: {}]
  %s3 = inlined_call_operand.hbm [shape: bf16[1,64], index: 3, kind: input, shape index: {}]
  %s4 = inlined_call_operand.hbm [shape: f32[6,64], index: 4, kind: output, shape index: {}]
  %s5 = sld [smem:[#allocation0]]
  $region42: #{custom_clip_matrix_forward.48} parent=0
    _
  %s7 = ssub.s32 1, %s5
  %s8 = scalar_select 0, %s7, %s5
  $region1: #{custom_clip_matrix_forward.48} parent=0
    #allocation2 [shape = 'u8[2048]{0}', space=vmem, size = 0x800, scoped, tag = 'input window, operand 0, single buffered']
    #allocation3 [shape = 's32[1]{0}', space=sflag, size = 0x4, scoped, tag = 'scoped memory for custom_clip_matrix_forward.48']
    #allocation4 [shape = 's32[1]{0}', space=sflag, size = 0x4, scoped, tag = 'scoped memory for custom_clip_matrix_forward.48']
    #allocation5 [shape = 'u8[16384]{0}', space=vmem, size = 0x4000, scoped, tag = 'input window, operand 1, single buffered']
    #allocation6 [shape = 's32[1]{0}', space=sflag, size = 0x4, scoped, tag = 'scoped memory for custom_clip_matrix_forward.48']
    #allocation7 [shape = 'u8[512]{0}', space=vmem, size = 0x400, scoped, tag = 'input window, operand 2, single buffered']
    #allocation8 [shape = 'u8[512]{0}', space=vmem, size = 0x400, scoped, tag = 'input window, operand 3, single buffered']
    #allocation9 [shape = 's32[1]{0}', space=sflag, size = 0x4, scoped, tag = 'scoped memory for custom_clip_matrix_forward.48']
    #allocation10 [shape = 'u8[4096]{0}', space=vmem, size = 0x1000, scoped, tag = 'output window, operand 0, single buffered']
    %9 = vsyncpa [#allocation3], 0
    %10 = vsyncpa [#allocation6], 0
    %11 = vsyncpa [#allocation9], 0
    %12 = vsyncpa [#allocation4], 0
    // Predicated region
    $region2: #{custom_clip_matrix_forward.48} parent=1 // pred_check
      _
    $region3: #{custom_clip_matrix_forward.48} parent=1 // pred_check_branch
      %14 = sbr.rel (0) target = $region5
    $region4: #{custom_clip_matrix_forward.48} parent=1 // pred_region
      %s16 = ssub.s32 64, 64
      %17 = vsyncadd [#allocation3], %s16
      %s19 = sshll.u32 [#allocation2], 4
      %s20 = int_to_ptr.vmem [resolvable:$true] %s19
      %22 = dma.hbm_to_vmem [thread:$0]  %s0, 64, %s20, [#allocation3]
    $region5: #{custom_clip_matrix_forward.48} parent=1 // pred_fallthru
      _
    // Predicated region
    $region6: #{custom_clip_matrix_forward.48} parent=1 // pred_check
      _
    $region7: #{custom_clip_matrix_forward.48} parent=1 // pred_check_branch
      %24 = sbr.rel (0) target = $region9
    $region8: #{custom_clip_matrix_forward.48} parent=1 // pred_region
      %s26 = ssub.s32 512, 512
      %27 = vsyncadd [#allocation6], %s26
      %s28 = sshll.u32 [#allocation5], 4
      %s29 = int_to_ptr.vmem [resolvable:$true] %s28
      %34 = dma.hbm_to_vmem [thread:$0]  %s1, 512, %s29, [#allocation6], 64, 64, 4
    $region9: #{custom_clip_matrix_forward.48} parent=1 // pred_fallthru
      _
    // Predicated region
    $region10: #{custom_clip_matrix_forward.48} parent=1 // pred_check
      _
    $region11: #{custom_clip_matrix_forward.48} parent=1 // pred_check_branch
      %36 = sbr.rel (0) target = $region13
    $region12: #{custom_clip_matrix_forward.48} parent=1 // pred_region
      %s38 = ssub.s32 16, 16
      %39 = vsyncadd [#allocation6], %s38
      %s41 = sshll.u32 [#allocation7], 4
      %s42 = int_to_ptr.vmem [resolvable:$true] %s41
      %44 = dma.hbm_to_vmem [thread:$0]  %s2, 16, %s42, [#allocation6]
    $region13: #{custom_clip_matrix_forward.48} parent=1 // pred_fallthru
      _
    // Predicated region
    $region14: #{custom_clip_matrix_forward.48} parent=1 // pred_check
      _
    $region15: #{custom_clip_matrix_forward.48} parent=1 // pred_check_branch
      %46 = sbr.rel (0) target = $region17
    $region16: #{custom_clip_matrix_forward.48} parent=1 // pred_region
      %s48 = ssub.s32 16, 16
      %49 = vsyncadd [#allocation9], %s48
      %s51 = sshll.u32 [#allocation8], 4
      %s52 = int_to_ptr.vmem [resolvable:$true] %s51
      %54 = dma.hbm_to_vmem [thread:$0]  %s3, 16, %s52, [#allocation9]
    $region17: #{custom_clip_matrix_forward.48} parent=1 // pred_fallthru
      _
    // Predicated region
    $region18: #{custom_clip_matrix_forward.48} parent=1 // pred_check
      _
    $region19: #{custom_clip_matrix_forward.48} parent=1 // pred_check_branch
      %56 = sbr.rel (0) target = $region21
    $region20: #{custom_clip_matrix_forward.48} parent=1 // pred_region
      %57 = dma.done [#allocation3], 64
    $region21: #{custom_clip_matrix_forward.48} parent=1 // pred_fallthru
      _
    // Predicated region
    $region22: #{custom_clip_matrix_forward.48} parent=1 // pred_check
      _
    $region23: #{custom_clip_matrix_forward.48} parent=1 // pred_check_branch
      %59 = sbr.rel (0) target = $region25
    $region24: #{custom_clip_matrix_forward.48} parent=1 // pred_region
      %60 = dma.done [#allocation6], 512
    $region25: #{custom_clip_matrix_forward.48} parent=1 // pred_fallthru
      _
    // Predicated region
    $region26: #{custom_clip_matrix_forward.48} parent=1 // pred_check
      _
    $region27: #{custom_clip_matrix_forward.48} parent=1 // pred_check_branch
      %62 = sbr.rel (0) target = $region29
    $region28: #{custom_clip_matrix_forward.48} parent=1 // pred_region
      %63 = dma.done [#allocation6], 16
    $region29: #{custom_clip_matrix_forward.48} parent=1 // pred_fallthru
      _
    // Predicated region
    $region30: #{custom_clip_matrix_forward.48} parent=1 // pred_check
      _
    $region31: #{custom_clip_matrix_forward.48} parent=1 // pred_check_branch
      %65 = sbr.rel (0) target = $region33
    $region32: #{custom_clip_matrix_forward.48} parent=1 // pred_region
      %66 = dma.done [#allocation9], 16
    $region33: #{custom_clip_matrix_forward.48} parent=1 // pred_fallthru
      _
    %v68 = vld [vmem:[#allocation2] sm:$0x7]
    %v69 = vunpack.c.l.bf16 %v68
    %vm70 = vcmask 521216
    %v71 = vsel %vm70, %v69, 0.0
    %72 = vadd.xlane.f32.xlu0 %v71
    %v73 = vpop.xlane.xlu0 %72
    %v74 = vrcp.pop 64.0
    %v75 = vmul.f32 %v73, %v74
    %v76 = vsub.f32 %v69, %v75
    %v77 = vmul.f32 %v76, %v76
    %v78 = vsel %vm70, %v77, 0.0
    %79 = vadd.xlane.f32.xlu0 %v78
    %v80 = vpop.xlane.xlu0 %79
    %v81 = vmul.f32 %v80, %v74
    %v82 = vadd.f32 %v81, 1e-05
    %v83 = vrsqrt.pop %v82
    %v84 = vmul.f32 %v76, %v83
    %v85 = vld [vmem:[#allocation7] sm:$0x1]
    %v86 = vunpack.c.l.bf16 %v85
    %v87 = vlaneseq
    %v88 = vshrl.u32 %v87, 7
    %v89 = vsub.s32 0, %v88
    %v90 = vrot.slane %v86, %v89
    %v91 = vmul.f32 %v84, %v90
    %v92 = vld [vmem:[#allocation8] sm:$0x1]
    %v93 = vunpack.c.l.bf16 %v92
    %v94 = vlaneseq
    %v95 = vshrl.u32 %v94, 7
    %v96 = vsub.s32 0, %v95
    %v97 = vrot.slane %v93, %v96
    %v98 = vadd.f32 %v91, %v97
    %v99 = vpack.c.bf16 %v98, %v98
    %v100 = vld [vmem:[#allocation5] sm:$0xf]
    %v101 = vld [vmem:[#allocation5 + $0x4] sm:$0xf]
    %v102 = vld [vmem:[#allocation5 + $0x8] sm:$0xf]
    %v103 = vld [vmem:[#allocation5 + $0xc] sm:$0xf]
    %v104 = vld [vmem:[#allocation5 + $0x10] sm:$0xf]
    %v105 = vld [vmem:[#allocation5 + $0x14] sm:$0xf]
    %v106 = vld [vmem:[#allocation5 + $0x18] sm:$0xf]
    %v107 = vld [vmem:[#allocation5 + $0x1c] sm:$0xf]
    %v116 = vunpack.c.l.b16 %v100
    %v117 = vunpack.c.l.b16 %v101
    %v118 = vunpack.c.l.b16 %v102
    %v119 = vunpack.c.l.b16 %v103
    %v120 = vunpack.c.l.b16 %v104
    %v121 = vunpack.c.l.b16 %v105
    %v122 = vunpack.c.l.b16 %v106
    %v123 = vunpack.c.l.b16 %v107
    %v124 = vpack.c.b16 %v117, %v116
    %v125 = vpack.c.b16 %v119, %v118
    %v126 = vpack.c.b16 %v121, %v120
    %v127 = vpack.c.b16 %v123, %v122
    %vm132 = vcmask 523264
    %v134 = vsel %vm132, %v99, 0
    %136 = vmatprep.subr.bf16.mxu0 0
    %137 = vmatpush1.bf16.msra.mxu0 %v124
    %138 = vmatprep.subr.bf16.mxu0 0
    %139 = vmatpush1.bf16.msra.mxu0 %v125
    %140 = vmatprep.subr.bf16.mxu0 0
    %141 = vmatpush1.bf16.msra.mxu0 %v126
    %142 = vmatprep.subr.bf16.mxu0 0
    %143 = vmatpush1.bf16.msra.mxu0 %v127
    %144 = vmatprep.subr.bf16.mxu0 0
    %145 = vmatpush1.bf16.msra.mxu0 0
    %146 = vmatprep.subr.bf16.mxu0 0
    %147 = vmatpush1.bf16.msra.mxu0 0
    %148 = vmatprep.subr.bf16.mxu0 0
    %149 = vmatpush1.bf16.msra.mxu0 0
    %150 = vmatprep.subr.bf16.mxu0 0
    %151 = vmatpush1.bf16.msra.mxu0 0
    %152 = vmatprep.subr.bf16.mxu0 0
    %153 = vmatpush1.bf16.msra.mxu0 0
    %154 = vmatprep.subr.bf16.mxu0 0
    %155 = vmatpush1.bf16.msra.mxu0 0
    %156 = vmatprep.subr.bf16.mxu0 0
    %157 = vmatpush1.bf16.msra.mxu0 0
    %158 = vmatprep.subr.bf16.mxu0 0
    %159 = vmatpush1.bf16.msra.mxu0 0
    %160 = vmatprep.subr.bf16.mxu0 0
    %161 = vmatpush1.bf16.msra.mxu0 0
    %162 = vmatprep.subr.bf16.mxu0 0
    %163 = vmatpush1.bf16.msra.mxu0 0
    %164 = vmatprep.subr.bf16.mxu0 0
    %165 = vmatpush1.bf16.msra.mxu0 0
    %166 = vmatprep.subr.bf16.mxu0 0
    %167 = vmatpush1.bf16.msra.mxu0 0
    %168 = vmatprep.mubr.bf16.mxu0 0
    %169 = vmatmul.mubr.bf16.gmra.mrb[0].mxu0 %v134
    %v170 = vpop.f32.mrb[0].mxu0
    %v171 = vadd.f32 0.0, %v170
    %v172 = vpop.f32.mrb[0].mxu0
    %v173 = vpop.f32.mrb[0].mxu0
    %v174 = vpop.f32.mrb[0].mxu0
    %175 = vdwg.mxu0
    %v176 = vmul.f32 %v171, %v171
    %v177 = vsel %vm70, %v176, 0.0
    %178 = vadd.xlane.f32.xlu0 %v177
    %v179 = vpop.xlane.xlu0 %178
    %v180 = vmax.f32 %v179, 1e-24
    %v181 = vrsqrt.pop %v180
    %v182 = vmul.f32 %v171, %v181
    %183 = vst.msk [vmem:[#allocation10] sm:$0x3f] %vm70, %v182
    // Predicated region
    $region34: #{custom_clip_matrix_forward.48} parent=1 // pred_check
      _
    $region35: #{custom_clip_matrix_forward.48} parent=1 // pred_check_branch
      %185 = sbr.rel (0) target = $region37
    $region36: #{custom_clip_matrix_forward.48} parent=1 // pred_region
      %s187 = ssub.s32 128, 128
      %188 = vsyncadd [#allocation4], %s187
      %s190 = sshll.u32 [#allocation10], 4
      %s191 = int_to_ptr.vmem [resolvable:$true] %s190
      %193 = dma.vmem_to_hbm [thread:$0]  %s191, 128, %s4, [#allocation4]
    $region37: #{custom_clip_matrix_forward.48} parent=1 // pred_fallthru
      _
    // Predicated region
    $region38: #{custom_clip_matrix_forward.48} parent=1 // pred_check
      _
    $region39: #{custom_clip_matrix_forward.48} parent=1 // pred_check_branch
      %195 = sbr.rel (0) target = $region41
    $region40: #{custom_clip_matrix_forward.48} parent=1 // pred_region
      %196 = dma.done [#allocation4], 128
    $region41: #{custom_clip_matrix_forward.48} parent=1 // pred_fallthru
      _
    %197 = vsyncpa [#allocation3], 1
    %198 = vsyncpa [#allocation6], 1
    %199 = vsyncpa [#allocation9], 1
    %200 = vsyncpa [#allocation4], 1

</llo_original>
